<compile_context>
chip_gen: v6e
topology: v6e:2x2x1
jax: 0.10.0
libtpu: 0.0.40
codegen_flags: <defaults>
</compile_context>

<pallas_src>
import math

import jax
import jax.numpy as jnp
import numpy as np
from jax import lax
from jax.experimental import pallas as pl
from jax.experimental.pallas import tpu as pltpu


def _softmax_axis0(s):
    """Numerically-stable softmax over the sublane (row) axis."""
    m = jnp.max(s, axis=0, keepdims=True)
    e = jnp.exp(s - m)
    return e / jnp.sum(e, axis=0, keepdims=True)


def _make_cross_attention_kernel(S, C, nh, dh):
    scale = 1.0 / math.sqrt(dh)
    nt_dims = (((1,), (1,)), ((), ()))          # contract last dims: A @ B^T

    def kernel(hc_ref, win_ref, bin_ref, wout_ref, bout_ref, out_ref):
        hc = hc_ref[0]                                       # (S, 2C) = [h1 | h2]

        # Fused input projections (single wide MXU matmul):
        #   [Q | V1 | K | V2] = [h1 | h2] @ W_in  with W_in block-diagonal per stream.
        p = jnp.dot(hc, win_ref[...],
                    preferred_element_type=jnp.float32) + bin_ref[...]   # (S, 4C)
        q, v1 = p[:, 0 * C:1 * C], p[:, 1 * C:2 * C]
        k, v2 = p[:, 2 * C:3 * C], p[:, 3 * C:4 * C]

        ctx1_heads, ctx2_heads = [], []
        for h in range(nh):                                  # static unrolled head loop
            sl = slice(h * dh, (h + 1) * dh)
            qh, kh = q[:, sl], k[:, sl]                      # (S, dh)

            # scores[i, j] = <q_i, k_j> / sqrt(dh)
            s_qk = lax.dot_general(qh, kh, nt_dims,
                                   preferred_element_type=jnp.float32) * scale  # (Sq, Sk)
            # scores^T via a second trans-B matmul (keeps XLU free)
            s_kq = lax.dot_general(kh, qh, nt_dims,
                                   preferred_element_type=jnp.float32) * scale  # (Sk, Sq)

            a1 = _softmax_axis0(s_qk)    # softmax1: over query axis (dim=-2 of scores)
            a2t = _softmax_axis0(s_kq)   # == softmax2(scores, dim=-1).T

            ctx1_heads.append(jnp.dot(a1, v1[:, sl],
                                      preferred_element_type=jnp.float32))       # (S, dh)
            ctx2_heads.append(jnp.dot(a2t, v2[:, sl],
                                      preferred_element_type=jnp.float32))       # (S, dh)

        ctx = jnp.concatenate(ctx1_heads + ctx2_heads, axis=-1)                  # (S, 2C)

        # Fused output projections (block-diagonal) + bias + residual in (S, channel) layout.
        o = jnp.dot(ctx, wout_ref[...],
                    preferred_element_type=jnp.float32) + bout_ref[...] + hc     # (S, 2C)
        out_ref[0] = o.astype(out_ref.dtype)

    return kernel


def cross_attention_forward(x1, x2, params, *, nh=8, size=(4, 4, 4)):
    """x1, x2: (B, hidden, D, H, W) f32.  params: PyTorch-layout Linear weights (out, in)."""
    B, C, D, H, W = x1.shape
    S = D * H * W
    assert C % nh == 0
    dh = C // nh
    assert (D, H, W) == tuple(size)

    # hidden_states: flatten(2).transpose(-1,-2) -> (B, S, C); fuse both streams on lanes.
    h1 = jnp.transpose(x1.reshape(B, C, S), (0, 2, 1)).astype(jnp.float32)
    h2 = jnp.transpose(x2.reshape(B, C, S), (0, 2, 1)).astype(jnp.float32)
    hcat = jnp.concatenate([h1, h2], axis=-1)                           # (B, S, 2C)

    # Block-diagonal fused projection weight: [h1 | h2] @ W_in -> [Q | V1 | K | V2]
    w_in = jnp.zeros((2 * C, 4 * C), jnp.float32)
    w_in = w_in.at[:C, 0 * C:1 * C].set(params['wq'].T)
    w_in = w_in.at[:C, 1 * C:2 * C].set(params['wv1'].T)
    w_in = w_in.at[C:, 2 * C:3 * C].set(params['wk'].T)
    w_in = w_in.at[C:, 3 * C:4 * C].set(params['wv2'].T)
    b_in = jnp.concatenate([params['bq'], params['bv1'],
                            params['bk'], params['bv2']]).reshape(1, 4 * C)

    # Block-diagonal fused output weight: [ctx1 | ctx2] @ W_out -> [o1 | o2]
    w_out = jnp.zeros((2 * C, 2 * C), jnp.float32)
    w_out = w_out.at[:C, :C].set(params['wo1'].T)
    w_out = w_out.at[C:, C:].set(params['wo2'].T)
    b_out = jnp.concatenate([params['bo1'], params['bo2']]).reshape(1, 2 * C)

    kernel = _make_cross_attention_kernel(S, C, nh, dh)

    batch3d = lambda b: (b, 0, 0)
    const2d = lambda b: (0, 0)

    ocat = pl.pallas_call(
        kernel,
        out_shape=jax.ShapeDtypeStruct((B, S, 2 * C), jnp.float32),
        grid_spec=pltpu.PrefetchScalarGridSpec(
            num_scalar_prefetch=0,
            grid=(B,),
            in_specs=[
                pl.BlockSpec((1, S, 2 * C), batch3d),      # [h1 | h2]
                pl.BlockSpec((2 * C, 4 * C), const2d),     # block-diag input projection
                pl.BlockSpec((1, 4 * C), const2d),         # [bq | bv1 | bk | bv2]
                pl.BlockSpec((2 * C, 2 * C), const2d),     # block-diag output projection
                pl.BlockSpec((1, 2 * C), const2d),         # [bo1 | bo2]
            ],
            out_specs=pl.BlockSpec((1, S, 2 * C), batch3d),
        ),
        compiler_params=pltpu.CompilerParams(
            dimension_semantics=("parallel",)),
    )(hcat, w_in, b_in, w_out, b_out)

    o1, o2 = ocat[..., :C], ocat[..., C:]
    out1 = jnp.transpose(o1, (0, 2, 1)).reshape(B, C, D, H, W)
    out2 = jnp.transpose(o2, (0, 2, 1)).reshape(B, C, D, H, W)
    return out1, out2


def reference_forward(x1, x2, params, nh):
    """Pure-JAX reference matching the PyTorch CrossAttention.forward exactly."""
    B, C, D, H, W = x1.shape
    S = D * H * W
    dh = C // nh
    hp = jax.lax.Precision.HIGHEST

    h1 = jnp.transpose(x1.reshape(B, C, S), (0, 2, 1))
    h2 = jnp.transpose(x2.reshape(B, C, S), (0, 2, 1))

    def lin(x, w, b):
        return jnp.einsum('bsc,oc->bso', x, w, precision=hp) + b

    def heads(x):
        return jnp.transpose(x.reshape(B, S, nh, dh), (0, 2, 1, 3))

    q = heads(lin(h1, params['wq'], params['bq']))
    k = heads(lin(h2, params['wk'], params['bk']))
    v1 = heads(lin(h1, params['wv1'], params['bv1']))
    v2 = heads(lin(h2, params['wv2'], params['bv2']))

    scores = jnp.einsum('bhqd,bhkd->bhqk', q, k, precision=hp) / math.sqrt(dh)
    p1 = jax.nn.softmax(scores, axis=-2)
    p2 = jnp.swapaxes(jax.nn.softmax(scores, axis=-1), -1, -2)

    c1 = jnp.einsum('bhqk,bhkd->bhqd', p1, v1, precision=hp)
    c2 = jnp.einsum('bhqk,bhkd->bhqd', p2, v2, precision=hp)

    def merge(c):
        return jnp.transpose(c, (0, 2, 1, 3)).reshape(B, S, C)

    o1 = lin(merge(c1), params['wo1'], params['bo1'])
    o2 = lin(merge(c2), params['wo2'], params['bo2'])

    out1 = jnp.transpose(o1, (0, 2, 1)).reshape(B, C, D, H, W) + x1
    out2 = jnp.transpose(o2, (0, 2, 1)).reshape(B, C, D, H, W) + x2
    return out1, out2


if __name__ == "__main__":
    # small shapes consistent with the module: hidden_size=32 (8 heads x 4), input_size=(4,4,4)
    B, C = 2, 32
    size = (4, 4, 4)
    D, Hh, W = size
    nh = 8

    key = jax.random.PRNGKey(0)
    keys = jax.random.split(key, 14)
    x1 = jax.random.normal(keys[0], (B, C, D, Hh, W), dtype=jnp.float32)
    x2 = jax.random.normal(keys[1], (B, C, D, Hh, W), dtype=jnp.float32)

    # nn.Linear default init: U(-1/sqrt(in), 1/sqrt(in))
    bound = 1.0 / math.sqrt(C)
    mk_w = lambda k: jax.random.uniform(k, (C, C), jnp.float32, -bound, bound)
    mk_b = lambda k: jax.random.uniform(k, (C,), jnp.float32, -bound, bound)

    params = {
        'wq': mk_w(keys[2]),  'bq': mk_b(keys[3]),
        'wk': mk_w(keys[4]),  'bk': mk_b(keys[5]),
        'wv1': mk_w(keys[6]), 'bv1': mk_b(keys[7]),
        'wv2': mk_w(keys[8]), 'bv2': mk_b(keys[9]),
        'wo1': mk_w(keys[10]), 'bo1': mk_b(keys[11]),
        'wo2': mk_w(keys[12]), 'bo2': mk_b(keys[13]),
    }

    out1, out2 = cross_attention_forward(x1, x2, params, nh=nh, size=size)
    out1, out2 = jax.block_until_ready((out1, out2))

    ref1, ref2 = jax.block_until_ready(reference_forward(x1, x2, params, nh))
    np.testing.assert_allclose(np.asarray(out1), np.asarray(ref1), rtol=1e-3, atol=1e-3)
    np.testing.assert_allclose(np.asarray(out2), np.asarray(ref2), rtol=1e-3, atol=1e-3)

    print("KERNEL_OK")
</pallas_src>

<mosaic_0001>
module attributes {stable_mosaic.version = 11 : i64} {
  func.func @kernel(%arg0: i32, %arg1: memref<1x64x64xf32, #tpu.memory_space<vmem>>, %arg2: memref<64x128xf32, #tpu.memory_space<vmem>>, %arg3: memref<1x128xf32, #tpu.memory_space<vmem>>, %arg4: memref<64x64xf32, #tpu.memory_space<vmem>>, %arg5: memref<1x64xf32, #tpu.memory_space<vmem>>, %arg6: memref<1x64x64xf32, #tpu.memory_space<vmem>>) attributes {dimension_semantics = [#tpu.dimension_semantics<parallel>], iteration_bounds = array<i64: 2>, scalar_prefetch = 0 : i64, scratch_operands = 0 : i64, tpu.core_type = #tpu.core_type<tc>, window_params = [{transform_indices = @transform_0, window_bounds = array<i64: 1, 64, 64>}, {pipeline_mode = #tpu.pipeline_mode<synchronous>, transform_indices = @transform_1, window_bounds = array<i64: 64, 128>}, {pipeline_mode = #tpu.pipeline_mode<synchronous>, transform_indices = @transform_2, window_bounds = array<i64: 1, 128>}, {pipeline_mode = #tpu.pipeline_mode<synchronous>, transform_indices = @transform_3, window_bounds = array<i64: 64, 64>}, {pipeline_mode = #tpu.pipeline_mode<synchronous>, transform_indices = @transform_4, window_bounds = array<i64: 1, 64>}, {transform_indices = @transform_5, window_bounds = array<i64: 1, 64, 64>}]} {
    %c0 = arith.constant 0 : index
    %c0_0 = arith.constant 0 : index
    %c0_1 = arith.constant 0 : index
    %0 = vector.load %arg1[%c0, %c0_0, %c0_1] : memref<1x64x64xf32, #tpu.memory_space<vmem>>, vector<1x64x64xf32>
    %1 = vector.shape_cast %0 : vector<1x64x64xf32> to vector<64x64xf32>
    %c0_2 = arith.constant 0 : index
    %c0_3 = arith.constant 0 : index
    %2 = vector.load %arg2[%c0_2, %c0_3] : memref<64x128xf32, #tpu.memory_space<vmem>>, vector<64x128xf32>
    %cst = arith.constant dense<0.000000e+00> : vector<64x128xf32>
    %3 = tpu.matmul %1, %2, %cst {dimension_numbers = #tpu.dot_dimension_numbers<[1], [0], [0], [1], [0, 0, 1, 1], [], []>} : vector<64x64xf32>, vector<64x128xf32>, vector<64x128xf32> -> vector<64x128xf32>
    %c0_4 = arith.constant 0 : index
    %c0_5 = arith.constant 0 : index
    %4 = vector.load %arg3[%c0_4, %c0_5] : memref<1x128xf32, #tpu.memory_space<vmem>>, vector<1x128xf32>
    %5 = vector.broadcast %4 : vector<1x128xf32> to vector<64x128xf32>
    %6 = arith.addf %3, %5 : vector<64x128xf32>
    %7 = vector.extract_strided_slice %6 {offsets = [0, 0], sizes = [64, 32], strides = [1, 1]} : vector<64x128xf32> to vector<64x32xf32>
    %8 = vector.extract_strided_slice %6 {offsets = [0, 32], sizes = [64, 32], strides = [1, 1]} : vector<64x128xf32> to vector<64x32xf32>
    %9 = vector.extract_strided_slice %6 {offsets = [0, 64], sizes = [64, 32], strides = [1, 1]} : vector<64x128xf32> to vector<64x32xf32>
    %10 = vector.extract_strided_slice %6 {offsets = [0, 96], sizes = [64, 32], strides = [1, 1]} : vector<64x128xf32> to vector<64x32xf32>
    %11 = vector.extract_strided_slice %7 {offsets = [0, 0], sizes = [64, 4], strides = [1, 1]} : vector<64x32xf32> to vector<64x4xf32>
    %12 = vector.extract_strided_slice %9 {offsets = [0, 0], sizes = [64, 4], strides = [1, 1]} : vector<64x32xf32> to vector<64x4xf32>
    %cst_6 = arith.constant dense<0.000000e+00> : vector<64x64xf32>
    %13 = tpu.matmul %11, %12, %cst_6 {dimension_numbers = #tpu.dot_dimension_numbers<[1], [1], [0], [0], [0, 0, 1, 0], [], []>} : vector<64x4xf32>, vector<64x4xf32>, vector<64x64xf32> -> vector<64x64xf32>
    %cst_7 = arith.constant 5.000000e-01 : f32
    %14 = vector.broadcast %cst_7 : f32 to vector<64x64xf32>
    %15 = arith.mulf %13, %14 : vector<64x64xf32>
    %cst_8 = arith.constant dense<0.000000e+00> : vector<64x64xf32>
    %16 = tpu.matmul %12, %11, %cst_8 {dimension_numbers = #tpu.dot_dimension_numbers<[1], [1], [0], [0], [0, 0, 1, 0], [], []>} : vector<64x4xf32>, vector<64x4xf32>, vector<64x64xf32> -> vector<64x64xf32>
    %cst_9 = arith.constant 5.000000e-01 : f32
    %17 = vector.broadcast %cst_9 : f32 to vector<64x64xf32>
    %18 = arith.mulf %16, %17 : vector<64x64xf32>
    %cst_10 = arith.constant dense<0xFF800000> : vector<64xf32>
    %19 = vector.multi_reduction <maximumf>, %15, %cst_10 [0] : vector<64x64xf32> to vector<64xf32>
    %20 = vector.shape_cast %19 : vector<64xf32> to vector<1x64xf32>
    %21 = vector.broadcast %20 : vector<1x64xf32> to vector<64x64xf32>
    %22 = arith.subf %15, %21 : vector<64x64xf32>
    %23 = math.exp %22 : vector<64x64xf32>
    %cst_11 = arith.constant dense<0.000000e+00> : vector<64xf32>
    %24 = vector.multi_reduction <add>, %23, %cst_11 [0] : vector<64x64xf32> to vector<64xf32>
    %25 = vector.shape_cast %24 : vector<64xf32> to vector<1x64xf32>
    %26 = vector.broadcast %25 : vector<1x64xf32> to vector<64x64xf32>
    %27 = arith.divf %23, %26 : vector<64x64xf32>
    %cst_12 = arith.constant dense<0xFF800000> : vector<64xf32>
    %28 = vector.multi_reduction <maximumf>, %18, %cst_12 [0] : vector<64x64xf32> to vector<64xf32>
    %29 = vector.shape_cast %28 : vector<64xf32> to vector<1x64xf32>
    %30 = vector.broadcast %29 : vector<1x64xf32> to vector<64x64xf32>
    %31 = arith.subf %18, %30 : vector<64x64xf32>
    %32 = math.exp %31 : vector<64x64xf32>
    %cst_13 = arith.constant dense<0.000000e+00> : vector<64xf32>
    %33 = vector.multi_reduction <add>, %32, %cst_13 [0] : vector<64x64xf32> to vector<64xf32>
    %34 = vector.shape_cast %33 : vector<64xf32> to vector<1x64xf32>
    %35 = vector.broadcast %34 : vector<1x64xf32> to vector<64x64xf32>
    %36 = arith.divf %32, %35 : vector<64x64xf32>
    %37 = vector.extract_strided_slice %8 {offsets = [0, 0], sizes = [64, 4], strides = [1, 1]} : vector<64x32xf32> to vector<64x4xf32>
    %cst_14 = arith.constant dense<0.000000e+00> : vector<64x4xf32>
    %38 = tpu.matmul %27, %37, %cst_14 {dimension_numbers = #tpu.dot_dimension_numbers<[1], [0], [0], [1], [0, 0, 1, 1], [], []>} : vector<64x64xf32>, vector<64x4xf32>, vector<64x4xf32> -> vector<64x4xf32>
    %39 = vector.extract_strided_slice %10 {offsets = [0, 0], sizes = [64, 4], strides = [1, 1]} : vector<64x32xf32> to vector<64x4xf32>
    %cst_15 = arith.constant dense<0.000000e+00> : vector<64x4xf32>
    %40 = tpu.matmul %36, %39, %cst_15 {dimension_numbers = #tpu.dot_dimension_numbers<[1], [0], [0], [1], [0, 0, 1, 1], [], []>} : vector<64x64xf32>, vector<64x4xf32>, vector<64x4xf32> -> vector<64x4xf32>
    %41 = vector.extract_strided_slice %7 {offsets = [0, 4], sizes = [64, 4], strides = [1, 1]} : vector<64x32xf32> to vector<64x4xf32>
    %42 = vector.extract_strided_slice %9 {offsets = [0, 4], sizes = [64, 4], strides = [1, 1]} : vector<64x32xf32> to vector<64x4xf32>
    %cst_16 = arith.constant dense<0.000000e+00> : vector<64x64xf32>
    %43 = tpu.matmul %41, %42, %cst_16 {dimension_numbers = #tpu.dot_dimension_numbers<[1], [1], [0], [0], [0, 0, 1, 0], [], []>} : vector<64x4xf32>, vector<64x4xf32>, vector<64x64xf32> -> vector<64x64xf32>
    %cst_17 = arith.constant 5.000000e-01 : f32
    %44 = vector.broadcast %cst_17 : f32 to vector<64x64xf32>
    %45 = arith.mulf %43, %44 : vector<64x64xf32>
    %cst_18 = arith.constant dense<0.000000e+00> : vector<64x64xf32>
    %46 = tpu.matmul %42, %41, %cst_18 {dimension_numbers = #tpu.dot_dimension_numbers<[1], [1], [0], [0], [0, 0, 1, 0], [], []>} : vector<64x4xf32>, vector<64x4xf32>, vector<64x64xf32> -> vector<64x64xf32>
    %cst_19 = arith.constant 5.000000e-01 : f32
    %47 = vector.broadcast %cst_19 : f32 to vector<64x64xf32>
    %48 = arith.mulf %46, %47 : vector<64x64xf32>
    %cst_20 = arith.constant dense<0xFF800000> : vector<64xf32>
    %49 = vector.multi_reduction <maximumf>, %45, %cst_20 [0] : vector<64x64xf32> to vector<64xf32>
    %50 = vector.shape_cast %49 : vector<64xf32> to vector<1x64xf32>
    %51 = vector.broadcast %50 : vector<1x64xf32> to vector<64x64xf32>
    %52 = arith.subf %45, %51 : vector<64x64xf32>
    %53 = math.exp %52 : vector<64x64xf32>
    %cst_21 = arith.constant dense<0.000000e+00> : vector<64xf32>
    %54 = vector.multi_reduction <add>, %53, %cst_21 [0] : vector<64x64xf32> to vector<64xf32>
    %55 = vector.shape_cast %54 : vector<64xf32> to vector<1x64xf32>
    %56 = vector.broadcast %55 : vector<1x64xf32> to vector<64x64xf32>
    %57 = arith.divf %53, %56 : vector<64x64xf32>
    %cst_22 = arith.constant dense<0xFF800000> : vector<64xf32>
    %58 = vector.multi_reduction <maximumf>, %48, %cst_22 [0] : vector<64x64xf32> to vector<64xf32>
    %59 = vector.shape_cast %58 : vector<64xf32> to vector<1x64xf32>
    %60 = vector.broadcast %59 : vector<1x64xf32> to vector<64x64xf32>
    %61 = arith.subf %48, %60 : vector<64x64xf32>
    %62 = math.exp %61 : vector<64x64xf32>
    %cst_23 = arith.constant dense<0.000000e+00> : vector<64xf32>
    %63 = vector.multi_reduction <add>, %62, %cst_23 [0] : vector<64x64xf32> to vector<64xf32>
    %64 = vector.shape_cast %63 : vector<64xf32> to vector<1x64xf32>
    %65 = vector.broadcast %64 : vector<1x64xf32> to vector<64x64xf32>
    %66 = arith.divf %62, %65 : vector<64x64xf32>
    %67 = vector.extract_strided_slice %8 {offsets = [0, 4], sizes = [64, 4], strides = [1, 1]} : vector<64x32xf32> to vector<64x4xf32>
    %cst_24 = arith.constant dense<0.000000e+00> : vector<64x4xf32>
    %68 = tpu.matmul %57, %67, %cst_24 {dimension_numbers = #tpu.dot_dimension_numbers<[1], [0], [0], [1], [0, 0, 1, 1], [], []>} : vector<64x64xf32>, vector<64x4xf32>, vector<64x4xf32> -> vector<64x4xf32>
    %69 = vector.extract_strided_slice %10 {offsets = [0, 4], sizes = [64, 4], strides = [1, 1]} : vector<64x32xf32> to vector<64x4xf32>
    %cst_25 = arith.constant dense<0.000000e+00> : vector<64x4xf32>
    %70 = tpu.matmul %66, %69, %cst_25 {dimension_numbers = #tpu.dot_dimension_numbers<[1], [0], [0], [1], [0, 0, 1, 1], [], []>} : vector<64x64xf32>, vector<64x4xf32>, vector<64x4xf32> -> vector<64x4xf32>
    %71 = vector.extract_strided_slice %7 {offsets = [0, 8], sizes = [64, 4], strides = [1, 1]} : vector<64x32xf32> to vector<64x4xf32>
    %72 = vector.extract_strided_slice %9 {offsets = [0, 8], sizes = [64, 4], strides = [1, 1]} : vector<64x32xf32> to vector<64x4xf32>
    %cst_26 = arith.constant dense<0.000000e+00> : vector<64x64xf32>
    %73 = tpu.matmul %71, %72, %cst_26 {dimension_numbers = #tpu.dot_dimension_numbers<[1], [1], [0], [0], [0, 0, 1, 0], [], []>} : vector<64x4xf32>, vector<64x4xf32>, vector<64x64xf32> -> vector<64x64xf32>
    %cst_27 = arith.constant 5.000000e-01 : f32
    %74 = vector.broadcast %cst_27 : f32 to vector<64x64xf32>
    %75 = arith.mulf %73, %74 : vector<64x64xf32>
    %cst_28 = arith.constant dense<0.000000e+00> : vector<64x64xf32>
    %76 = tpu.matmul %72, %71, %cst_28 {dimension_numbers = #tpu.dot_dimension_numbers<[1], [1], [0], [0], [0, 0, 1, 0], [], []>} : vector<64x4xf32>, vector<64x4xf32>, vector<64x64xf32> -> vector<64x64xf32>
    %cst_29 = arith.constant 5.000000e-01 : f32
    %77 = vector.broadcast %cst_29 : f32 to vector<64x64xf32>
    %78 = arith.mulf %76, %77 : vector<64x64xf32>
    %cst_30 = arith.constant dense<0xFF800000> : vector<64xf32>
    %79 = vector.multi_reduction <maximumf>, %75, %cst_30 [0] : vector<64x64xf32> to vector<64xf32>
    %80 = vector.shape_cast %79 : vector<64xf32> to vector<1x64xf32>
    %81 = vector.broadcast %80 : vector<1x64xf32> to vector<64x64xf32>
    %82 = arith.subf %75, %81 : vector<64x64xf32>
    %83 = math.exp %82 : vector<64x64xf32>
    %cst_31 = arith.constant dense<0.000000e+00> : vector<64xf32>
    %84 = vector.multi_reduction <add>, %83, %cst_31 [0] : vector<64x64xf32> to vector<64xf32>
    %85 = vector.shape_cast %84 : vector<64xf32> to vector<1x64xf32>
    %86 = vector.broadcast %85 : vector<1x64xf32> to vector<64x64xf32>
    %87 = arith.divf %83, %86 : vector<64x64xf32>
    %cst_32 = arith.constant dense<0xFF800000> : vector<64xf32>
    %88 = vector.multi_reduction <maximumf>, %78, %cst_32 [0] : vector<64x64xf32> to vector<64xf32>
    %89 = vector.shape_cast %88 : vector<64xf32> to vector<1x64xf32>
    %90 = vector.broadcast %89 : vector<1x64xf32> to vector<64x64xf32>
    %91 = arith.subf %78, %90 : vector<64x64xf32>
    %92 = math.exp %91 : vector<64x64xf32>
    %cst_33 = arith.constant dense<0.000000e+00> : vector<64xf32>
    %93 = vector.multi_reduction <add>, %92, %cst_33 [0] : vector<64x64xf32> to vector<64xf32>
    %94 = vector.shape_cast %93 : vector<64xf32> to vector<1x64xf32>
    %95 = vector.broadcast %94 : vector<1x64xf32> to vector<64x64xf32>
    %96 = arith.divf %92, %95 : vector<64x64xf32>
    %97 = vector.extract_strided_slice %8 {offsets = [0, 8], sizes = [64, 4], strides = [1, 1]} : vector<64x32xf32> to vector<64x4xf32>
    %cst_34 = arith.constant dense<0.000000e+00> : vector<64x4xf32>
    %98 = tpu.matmul %87, %97, %cst_34 {dimension_numbers = #tpu.dot_dimension_numbers<[1], [0], [0], [1], [0, 0, 1, 1], [], []>} : vector<64x64xf32>, vector<64x4xf32>, vector<64x4xf32> -> vector<64x4xf32>
    %99 = vector.extract_strided_slice %10 {offsets = [0, 8], sizes = [64, 4], strides = [1, 1]} : vector<64x32xf32> to vector<64x4xf32>
    %cst_35 = arith.constant dense<0.000000e+00> : vector<64x4xf32>
    %100 = tpu.matmul %96, %99, %cst_35 {dimension_numbers = #tpu.dot_dimension_numbers<[1], [0], [0], [1], [0, 0, 1, 1], [], []>} : vector<64x64xf32>, vector<64x4xf32>, vector<64x4xf32> -> vector<64x4xf32>
    %101 = vector.extract_strided_slice %7 {offsets = [0, 12], sizes = [64, 4], strides = [1, 1]} : vector<64x32xf32> to vector<64x4xf32>
    %102 = vector.extract_strided_slice %9 {offsets = [0, 12], sizes = [64, 4], strides = [1, 1]} : vector<64x32xf32> to vector<64x4xf32>
    %cst_36 = arith.constant dense<0.000000e+00> : vector<64x64xf32>
    %103 = tpu.matmul %101, %102, %cst_36 {dimension_numbers = #tpu.dot_dimension_numbers<[1], [1], [0], [0], [0, 0, 1, 0], [], []>} : vector<64x4xf32>, vector<64x4xf32>, vector<64x64xf32> -> vector<64x64xf32>
    %cst_37 = arith.constant 5.000000e-01 : f32
    %104 = vector.broadcast %cst_37 : f32 to vector<64x64xf32>
    %105 = arith.mulf %103, %104 : vector<64x64xf32>
    %cst_38 = arith.constant dense<0.000000e+00> : vector<64x64xf32>
    %106 = tpu.matmul %102, %101, %cst_38 {dimension_numbers = #tpu.dot_dimension_numbers<[1], [1], [0], [0], [0, 0, 1, 0], [], []>} : vector<64x4xf32>, vector<64x4xf32>, vector<64x64xf32> -> vector<64x64xf32>
    %cst_39 = arith.constant 5.000000e-01 : f32
    %107 = vector.broadcast %cst_39 : f32 to vector<64x64xf32>
    %108 = arith.mulf %106, %107 : vector<64x64xf32>
    %cst_40 = arith.constant dense<0xFF800000> : vector<64xf32>
    %109 = vector.multi_reduction <maximumf>, %105, %cst_40 [0] : vector<64x64xf32> to vector<64xf32>
    %110 = vector.shape_cast %109 : vector<64xf32> to vector<1x64xf32>
    %111 = vector.broadcast %110 : vector<1x64xf32> to vector<64x64xf32>
    %112 = arith.subf %105, %111 : vector<64x64xf32>
    %113 = math.exp %112 : vector<64x64xf32>
    %cst_41 = arith.constant dense<0.000000e+00> : vector<64xf32>
    %114 = vector.multi_reduction <add>, %113, %cst_41 [0] : vector<64x64xf32> to vector<64xf32>
    %115 = vector.shape_cast %114 : vector<64xf32> to vector<1x64xf32>
    %116 = vector.broadcast %115 : vector<1x64xf32> to vector<64x64xf32>
    %117 = arith.divf %113, %116 : vector<64x64xf32>
    %cst_42 = arith.constant dense<0xFF800000> : vector<64xf32>
    %118 = vector.multi_reduction <maximumf>, %108, %cst_42 [0] : vector<64x64xf32> to vector<64xf32>
    %119 = vector.shape_cast %118 : vector<64xf32> to vector<1x64xf32>
    %120 = vector.broadcast %119 : vector<1x64xf32> to vector<64x64xf32>
    %121 = arith.subf %108, %120 : vector<64x64xf32>
    %122 = math.exp %121 : vector<64x64xf32>
    %cst_43 = arith.constant dense<0.000000e+00> : vector<64xf32>
    %123 = vector.multi_reduction <add>, %122, %cst_43 [0] : vector<64x64xf32> to vector<64xf32>
    %124 = vector.shape_cast %123 : vector<64xf32> to vector<1x64xf32>
    %125 = vector.broadcast %124 : vector<1x64xf32> to vector<64x64xf32>
    %126 = arith.divf %122, %125 : vector<64x64xf32>
    %127 = vector.extract_strided_slice %8 {offsets = [0, 12], sizes = [64, 4], strides = [1, 1]} : vector<64x32xf32> to vector<64x4xf32>
    %cst_44 = arith.constant dense<0.000000e+00> : vector<64x4xf32>
    %128 = tpu.matmul %117, %127, %cst_44 {dimension_numbers = #tpu.dot_dimension_numbers<[1], [0], [0], [1], [0, 0, 1, 1], [], []>} : vector<64x64xf32>, vector<64x4xf32>, vector<64x4xf32> -> vector<64x4xf32>
    %129 = vector.extract_strided_slice %10 {offsets = [0, 12], sizes = [64, 4], strides = [1, 1]} : vector<64x32xf32> to vector<64x4xf32>
    %cst_45 = arith.constant dense<0.000000e+00> : vector<64x4xf32>
    %130 = tpu.matmul %126, %129, %cst_45 {dimension_numbers = #tpu.dot_dimension_numbers<[1], [0], [0], [1], [0, 0, 1, 1], [], []>} : vector<64x64xf32>, vector<64x4xf32>, vector<64x4xf32> -> vector<64x4xf32>
    %131 = vector.extract_strided_slice %7 {offsets = [0, 16], sizes = [64, 4], strides = [1, 1]} : vector<64x32xf32> to vector<64x4xf32>
    %132 = vector.extract_strided_slice %9 {offsets = [0, 16], sizes = [64, 4], strides = [1, 1]} : vector<64x32xf32> to vector<64x4xf32>
    %cst_46 = arith.constant dense<0.000000e+00> : vector<64x64xf32>
    %133 = tpu.matmul %131, %132, %cst_46 {dimension_numbers = #tpu.dot_dimension_numbers<[1], [1], [0], [0], [0, 0, 1, 0], [], []>} : vector<64x4xf32>, vector<64x4xf32>, vector<64x64xf32> -> vector<64x64xf32>
    %cst_47 = arith.constant 5.000000e-01 : f32
    %134 = vector.broadcast %cst_47 : f32 to vector<64x64xf32>
    %135 = arith.mulf %133, %134 : vector<64x64xf32>
    %cst_48 = arith.constant dense<0.000000e+00> : vector<64x64xf32>
    %136 = tpu.matmul %132, %131, %cst_48 {dimension_numbers = #tpu.dot_dimension_numbers<[1], [1], [0], [0], [0, 0, 1, 0], [], []>} : vector<64x4xf32>, vector<64x4xf32>, vector<64x64xf32> -> vector<64x64xf32>
    %cst_49 = arith.constant 5.000000e-01 : f32
    %137 = vector.broadcast %cst_49 : f32 to vector<64x64xf32>
    %138 = arith.mulf %136, %137 : vector<64x64xf32>
    %cst_50 = arith.constant dense<0xFF800000> : vector<64xf32>
    %139 = vector.multi_reduction <maximumf>, %135, %cst_50 [0] : vector<64x64xf32> to vector<64xf32>
    %140 = vector.shape_cast %139 : vector<64xf32> to vector<1x64xf32>
    %141 = vector.broadcast %140 : vector<1x64xf32> to vector<64x64xf32>
    %142 = arith.subf %135, %141 : vector<64x64xf32>
    %143 = math.exp %142 : vector<64x64xf32>
    %cst_51 = arith.constant dense<0.000000e+00> : vector<64xf32>
    %144 = vector.multi_reduction <add>, %143, %cst_51 [0] : vector<64x64xf32> to vector<64xf32>
    %145 = vector.shape_cast %144 : vector<64xf32> to vector<1x64xf32>
    %146 = vector.broadcast %145 : vector<1x64xf32> to vector<64x64xf32>
    %147 = arith.divf %143, %146 : vector<64x64xf32>
    %cst_52 = arith.constant dense<0xFF800000> : vector<64xf32>
    %148 = vector.multi_reduction <maximumf>, %138, %cst_52 [0] : vector<64x64xf32> to vector<64xf32>
    %149 = vector.shape_cast %148 : vector<64xf32> to vector<1x64xf32>
    %150 = vector.broadcast %149 : vector<1x64xf32> to vector<64x64xf32>
    %151 = arith.subf %138, %150 : vector<64x64xf32>
    %152 = math.exp %151 : vector<64x64xf32>
    %cst_53 = arith.constant dense<0.000000e+00> : vector<64xf32>
    %153 = vector.multi_reduction <add>, %152, %cst_53 [0] : vector<64x64xf32> to vector<64xf32>
    %154 = vector.shape_cast %153 : vector<64xf32> to vector<1x64xf32>
    %155 = vector.broadcast %154 : vector<1x64xf32> to vector<64x64xf32>
    %156 = arith.divf %152, %155 : vector<64x64xf32>
    %157 = vector.extract_strided_slice %8 {offsets = [0, 16], sizes = [64, 4], strides = [1, 1]} : vector<64x32xf32> to vector<64x4xf32>
    %cst_54 = arith.constant dense<0.000000e+00> : vector<64x4xf32>
    %158 = tpu.matmul %147, %157, %cst_54 {dimension_numbers = #tpu.dot_dimension_numbers<[1], [0], [0], [1], [0, 0, 1, 1], [], []>} : vector<64x64xf32>, vector<64x4xf32>, vector<64x4xf32> -> vector<64x4xf32>
    %159 = vector.extract_strided_slice %10 {offsets = [0, 16], sizes = [64, 4], strides = [1, 1]} : vector<64x32xf32> to vector<64x4xf32>
    %cst_55 = arith.constant dense<0.000000e+00> : vector<64x4xf32>
    %160 = tpu.matmul %156, %159, %cst_55 {dimension_numbers = #tpu.dot_dimension_numbers<[1], [0], [0], [1], [0, 0, 1, 1], [], []>} : vector<64x64xf32>, vector<64x4xf32>, vector<64x4xf32> -> vector<64x4xf32>
    %161 = vector.extract_strided_slice %7 {offsets = [0, 20], sizes = [64, 4], strides = [1, 1]} : vector<64x32xf32> to vector<64x4xf32>
    %162 = vector.extract_strided_slice %9 {offsets = [0, 20], sizes = [64, 4], strides = [1, 1]} : vector<64x32xf32> to vector<64x4xf32>
    %cst_56 = arith.constant dense<0.000000e+00> : vector<64x64xf32>
    %163 = tpu.matmul %161, %162, %cst_56 {dimension_numbers = #tpu.dot_dimension_numbers<[1], [1], [0], [0], [0, 0, 1, 0], [], []>} : vector<64x4xf32>, vector<64x4xf32>, vector<64x64xf32> -> vector<64x64xf32>
    %cst_57 = arith.constant 5.000000e-01 : f32
    %164 = vector.broadcast %cst_57 : f32 to vector<64x64xf32>
    %165 = arith.mulf %163, %164 : vector<64x64xf32>
    %cst_58 = arith.constant dense<0.000000e+00> : vector<64x64xf32>
    %166 = tpu.matmul %162, %161, %cst_58 {dimension_numbers = #tpu.dot_dimension_numbers<[1], [1], [0], [0], [0, 0, 1, 0], [], []>} : vector<64x4xf32>, vector<64x4xf32>, vector<64x64xf32> -> vector<64x64xf32>
    %cst_59 = arith.constant 5.000000e-01 : f32
    %167 = vector.broadcast %cst_59 : f32 to vector<64x64xf32>
    %168 = arith.mulf %166, %167 : vector<64x64xf32>
    %cst_60 = arith.constant dense<0xFF800000> : vector<64xf32>
    %169 = vector.multi_reduction <maximumf>, %165, %cst_60 [0] : vector<64x64xf32> to vector<64xf32>
    %170 = vector.shape_cast %169 : vector<64xf32> to vector<1x64xf32>
    %171 = vector.broadcast %170 : vector<1x64xf32> to vector<64x64xf32>
    %172 = arith.subf %165, %171 : vector<64x64xf32>
    %173 = math.exp %172 : vector<64x64xf32>
    %cst_61 = arith.constant dense<0.000000e+00> : vector<64xf32>
    %174 = vector.multi_reduction <add>, %173, %cst_61 [0] : vector<64x64xf32> to vector<64xf32>
    %175 = vector.shape_cast %174 : vector<64xf32> to vector<1x64xf32>
    %176 = vector.broadcast %175 : vector<1x64xf32> to vector<64x64xf32>
    %177 = arith.divf %173, %176 : vector<64x64xf32>
    %cst_62 = arith.constant dense<0xFF800000> : vector<64xf32>
    %178 = vector.multi_reduction <maximumf>, %168, %cst_62 [0] : vector<64x64xf32> to vector<64xf32>
    %179 = vector.shape_cast %178 : vector<64xf32> to vector<1x64xf32>
    %180 = vector.broadcast %179 : vector<1x64xf32> to vector<64x64xf32>
    %181 = arith.subf %168, %180 : vector<64x64xf32>
    %182 = math.exp %181 : vector<64x64xf32>
    %cst_63 = arith.constant dense<0.000000e+00> : vector<64xf32>
    %183 = vector.multi_reduction <add>, %182, %cst_63 [0] : vector<64x64xf32> to vector<64xf32>
    %184 = vector.shape_cast %183 : vector<64xf32> to vector<1x64xf32>
    %185 = vector.broadcast %184 : vector<1x64xf32> to vector<64x64xf32>
    %186 = arith.divf %182, %185 : vector<64x64xf32>
    %187 = vector.extract_strided_slice %8 {offsets = [0, 20], sizes = [64, 4], strides = [1, 1]} : vector<64x32xf32> to vector<64x4xf32>
    %cst_64 = arith.constant dense<0.000000e+00> : vector<64x4xf32>
    %188 = tpu.matmul %177, %187, %cst_64 {dimension_numbers = #tpu.dot_dimension_numbers<[1], [0], [0], [1], [0, 0, 1, 1], [], []>} : vector<64x64xf32>, vector<64x4xf32>, vector<64x4xf32> -> vector<64x4xf32>
    %189 = vector.extract_strided_slice %10 {offsets = [0, 20], sizes = [64, 4], strides = [1, 1]} : vector<64x32xf32> to vector<64x4xf32>
    %cst_65 = arith.constant dense<0.000000e+00> : vector<64x4xf32>
    %190 = tpu.matmul %186, %189, %cst_65 {dimension_numbers = #tpu.dot_dimension_numbers<[1], [0], [0], [1], [0, 0, 1, 1], [], []>} : vector<64x64xf32>, vector<64x4xf32>, vector<64x4xf32> -> vector<64x4xf32>
    %191 = vector.extract_strided_slice %7 {offsets = [0, 24], sizes = [64, 4], strides = [1, 1]} : vector<64x32xf32> to vector<64x4xf32>
    %192 = vector.extract_strided_slice %9 {offsets = [0, 24], sizes = [64, 4], strides = [1, 1]} : vector<64x32xf32> to vector<64x4xf32>
    %cst_66 = arith.constant dense<0.000000e+00> : vector<64x64xf32>
    %193 = tpu.matmul %191, %192, %cst_66 {dimension_numbers = #tpu.dot_dimension_numbers<[1], [1], [0], [0], [0, 0, 1, 0], [], []>} : vector<64x4xf32>, vector<64x4xf32>, vector<64x64xf32> -> vector<64x64xf32>
    %cst_67 = arith.constant 5.000000e-01 : f32
    %194 = vector.broadcast %cst_67 : f32 to vector<64x64xf32>
    %195 = arith.mulf %193, %194 : vector<64x64xf32>
    %cst_68 = arith.constant dense<0.000000e+00> : vector<64x64xf32>
    %196 = tpu.matmul %192, %191, %cst_68 {dimension_numbers = #tpu.dot_dimension_numbers<[1], [1], [0], [0], [0, 0, 1, 0], [], []>} : vector<64x4xf32>, vector<64x4xf32>, vector<64x64xf32> -> vector<64x64xf32>
    %cst_69 = arith.constant 5.000000e-01 : f32
    %197 = vector.broadcast %cst_69 : f32 to vector<64x64xf32>
    %198 = arith.mulf %196, %197 : vector<64x64xf32>
    %cst_70 = arith.constant dense<0xFF800000> : vector<64xf32>
    %199 = vector.multi_reduction <maximumf>, %195, %cst_70 [0] : vector<64x64xf32> to vector<64xf32>
    %200 = vector.shape_cast %199 : vector<64xf32> to vector<1x64xf32>
    %201 = vector.broadcast %200 : vector<1x64xf32> to vector<64x64xf32>
    %202 = arith.subf %195, %201 : vector<64x64xf32>
    %203 = math.exp %202 : vector<64x64xf32>
    %cst_71 = arith.constant dense<0.000000e+00> : vector<64xf32>
    %204 = vector.multi_reduction <add>, %203, %cst_71 [0] : vector<64x64xf32> to vector<64xf32>
    %205 = vector.shape_cast %204 : vector<64xf32> to vector<1x64xf32>
    %206 = vector.broadcast %205 : vector<1x64xf32> to vector<64x64xf32>
    %207 = arith.divf %203, %206 : vector<64x64xf32>
    %cst_72 = arith.constant dense<0xFF800000> : vector<64xf32>
    %208 = vector.multi_reduction <maximumf>, %198, %cst_72 [0] : vector<64x64xf32> to vector<64xf32>
    %209 = vector.shape_cast %208 : vector<64xf32> to vector<1x64xf32>
    %210 = vector.broadcast %209 : vector<1x64xf32> to vector<64x64xf32>
    %211 = arith.subf %198, %210 : vector<64x64xf32>
    %212 = math.exp %211 : vector<64x64xf32>
    %cst_73 = arith.constant dense<0.000000e+00> : vector<64xf32>
    %213 = vector.multi_reduction <add>, %212, %cst_73 [0] : vector<64x64xf32> to vector<64xf32>
    %214 = vector.shape_cast %213 : vector<64xf32> to vector<1x64xf32>
    %215 = vector.broadcast %214 : vector<1x64xf32> to vector<64x64xf32>
    %216 = arith.divf %212, %215 : vector<64x64xf32>
    %217 = vector.extract_strided_slice %8 {offsets = [0, 24], sizes = [64, 4], strides = [1, 1]} : vector<64x32xf32> to vector<64x4xf32>
    %cst_74 = arith.constant dense<0.000000e+00> : vector<64x4xf32>
    %218 = tpu.matmul %207, %217, %cst_74 {dimension_numbers = #tpu.dot_dimension_numbers<[1], [0], [0], [1], [0, 0, 1, 1], [], []>} : vector<64x64xf32>, vector<64x4xf32>, vector<64x4xf32> -> vector<64x4xf32>
    %219 = vector.extract_strided_slice %10 {offsets = [0, 24], sizes = [64, 4], strides = [1, 1]} : vector<64x32xf32> to vector<64x4xf32>
    %cst_75 = arith.constant dense<0.000000e+00> : vector<64x4xf32>
    %220 = tpu.matmul %216, %219, %cst_75 {dimension_numbers = #tpu.dot_dimension_numbers<[1], [0], [0], [1], [0, 0, 1, 1], [], []>} : vector<64x64xf32>, vector<64x4xf32>, vector<64x4xf32> -> vector<64x4xf32>
    %221 = vector.extract_strided_slice %7 {offsets = [0, 28], sizes = [64, 4], strides = [1, 1]} : vector<64x32xf32> to vector<64x4xf32>
    %222 = vector.extract_strided_slice %9 {offsets = [0, 28], sizes = [64, 4], strides = [1, 1]} : vector<64x32xf32> to vector<64x4xf32>
    %cst_76 = arith.constant dense<0.000000e+00> : vector<64x64xf32>
    %223 = tpu.matmul %221, %222, %cst_76 {dimension_numbers = #tpu.dot_dimension_numbers<[1], [1], [0], [0], [0, 0, 1, 0], [], []>} : vector<64x4xf32>, vector<64x4xf32>, vector<64x64xf32> -> vector<64x64xf32>
    %cst_77 = arith.constant 5.000000e-01 : f32
    %224 = vector.broadcast %cst_77 : f32 to vector<64x64xf32>
    %225 = arith.mulf %223, %224 : vector<64x64xf32>
    %cst_78 = arith.constant dense<0.000000e+00> : vector<64x64xf32>
    %226 = tpu.matmul %222, %221, %cst_78 {dimension_numbers = #tpu.dot_dimension_numbers<[1], [1], [0], [0], [0, 0, 1, 0], [], []>} : vector<64x4xf32>, vector<64x4xf32>, vector<64x64xf32> -> vector<64x64xf32>
    %cst_79 = arith.constant 5.000000e-01 : f32
    %227 = vector.broadcast %cst_79 : f32 to vector<64x64xf32>
    %228 = arith.mulf %226, %227 : vector<64x64xf32>
    %cst_80 = arith.constant dense<0xFF800000> : vector<64xf32>
    %229 = vector.multi_reduction <maximumf>, %225, %cst_80 [0] : vector<64x64xf32> to vector<64xf32>
    %230 = vector.shape_cast %229 : vector<64xf32> to vector<1x64xf32>
    %231 = vector.broadcast %230 : vector<1x64xf32> to vector<64x64xf32>
    %232 = arith.subf %225, %231 : vector<64x64xf32>
    %233 = math.exp %232 : vector<64x64xf32>
    %cst_81 = arith.constant dense<0.000000e+00> : vector<64xf32>
    %234 = vector.multi_reduction <add>, %233, %cst_81 [0] : vector<64x64xf32> to vector<64xf32>
    %235 = vector.shape_cast %234 : vector<64xf32> to vector<1x64xf32>
    %236 = vector.broadcast %235 : vector<1x64xf32> to vector<64x64xf32>
    %237 = arith.divf %233, %236 : vector<64x64xf32>
    %cst_82 = arith.constant dense<0xFF800000> : vector<64xf32>
    %238 = vector.multi_reduction <maximumf>, %228, %cst_82 [0] : vector<64x64xf32> to vector<64xf32>
    %239 = vector.shape_cast %238 : vector<64xf32> to vector<1x64xf32>
    %240 = vector.broadcast %239 : vector<1x64xf32> to vector<64x64xf32>
    %241 = arith.subf %228, %240 : vector<64x64xf32>
    %242 = math.exp %241 : vector<64x64xf32>
    %cst_83 = arith.constant dense<0.000000e+00> : vector<64xf32>
    %243 = vector.multi_reduction <add>, %242, %cst_83 [0] : vector<64x64xf32> to vector<64xf32>
    %244 = vector.shape_cast %243 : vector<64xf32> to vector<1x64xf32>
    %245 = vector.broadcast %244 : vector<1x64xf32> to vector<64x64xf32>
    %246 = arith.divf %242, %245 : vector<64x64xf32>
    %247 = vector.extract_strided_slice %8 {offsets = [0, 28], sizes = [64, 4], strides = [1, 1]} : vector<64x32xf32> to vector<64x4xf32>
    %cst_84 = arith.constant dense<0.000000e+00> : vector<64x4xf32>
    %248 = tpu.matmul %237, %247, %cst_84 {dimension_numbers = #tpu.dot_dimension_numbers<[1], [0], [0], [1], [0, 0, 1, 1], [], []>} : vector<64x64xf32>, vector<64x4xf32>, vector<64x4xf32> -> vector<64x4xf32>
    %249 = vector.extract_strided_slice %10 {offsets = [0, 28], sizes = [64, 4], strides = [1, 1]} : vector<64x32xf32> to vector<64x4xf32>
    %cst_85 = arith.constant dense<0.000000e+00> : vector<64x4xf32>
    %250 = tpu.matmul %246, %249, %cst_85 {dimension_numbers = #tpu.dot_dimension_numbers<[1], [0], [0], [1], [0, 0, 1, 1], [], []>} : vector<64x64xf32>, vector<64x4xf32>, vector<64x4xf32> -> vector<64x4xf32>
    %251 = tpu.concatenate %38, %68, %98, %128, %158, %188, %218, %248, %40, %70, %100, %130, %160, %190, %220, %250 in 1 : vector<64x4xf32>, vector<64x4xf32>, vector<64x4xf32>, vector<64x4xf32>, vector<64x4xf32>, vector<64x4xf32>, vector<64x4xf32>, vector<64x4xf32>, vector<64x4xf32>, vector<64x4xf32>, vector<64x4xf32>, vector<64x4xf32>, vector<64x4xf32>, vector<64x4xf32>, vector<64x4xf32>, vector<64x4xf32> -> vector<64x64xf32>
    %c0_86 = arith.constant 0 : index
    %c0_87 = arith.constant 0 : index
    %252 = vector.load %arg4[%c0_86, %c0_87] : memref<64x64xf32, #tpu.memory_space<vmem>>, vector<64x64xf32>
    %cst_88 = arith.constant dense<0.000000e+00> : vector<64x64xf32>
    %253 = tpu.matmul %251, %252, %cst_88 {dimension_numbers = #tpu.dot_dimension_numbers<[1], [0], [0], [1], [0, 0, 1, 1], [], []>} : vector<64x64xf32>, vector<64x64xf32>, vector<64x64xf32> -> vector<64x64xf32>
    %c0_89 = arith.constant 0 : index
    %c0_90 = arith.constant 0 : index
    %254 = vector.load %arg5[%c0_89, %c0_90] : memref<1x64xf32, #tpu.memory_space<vmem>>, vector<1x64xf32>
    %255 = vector.broadcast %254 : vector<1x64xf32> to vector<64x64xf32>
    %256 = arith.addf %253, %255 : vector<64x64xf32>
    %257 = arith.addf %256, %1 : vector<64x64xf32>
    %c0_91 = arith.constant 0 : index
    %c0_92 = arith.constant 0 : index
    %c0_93 = arith.constant 0 : index
    %258 = vector.load %arg6[%c0_91, %c0_92, %c0_93] : memref<1x64x64xf32, #tpu.memory_space<vmem>>, vector<1x64x64xf32>
    %259 = vector.shape_cast %258 : vector<1x64x64xf32> to vector<64x64xf32>
    %260 = vector.shape_cast %257 : vector<64x64xf32> to vector<1x64x64xf32>
    tpu.vector_store %arg6[%c0_91, %c0_92, %c0_93], %260 {strides = array<i32>} : memref<1x64x64xf32, #tpu.memory_space<vmem>>, vector<1x64x64xf32>,
    return
  }
  func.func @transform_0(%arg0: i32) -> (i32, i32, i32) {
    %c0_i32 = arith.constant 0 : i32
    %c0_i32_0 = arith.constant 0 : i32
    %c0_i32_1 = arith.constant 0 : i32
    return %arg0, %c0_i32, %c0_i32_0 : i32, i32, i32
  }
  func.func @transform_1(%arg0: i32) -> (i32, i32) {
    %c0_i32 = arith.constant 0 : i32
    %c0_i32_0 = arith.constant 0 : i32
    %c0_i32_1 = arith.constant 0 : i32
    return %c0_i32, %c0_i32_0 : i32, i32
  }
  func.func @transform_2(%arg0: i32) -> (i32, i32) {
    %c0_i32 = arith.constant 0 : i32
    %c0_i32_0 = arith.constant 0 : i32
    %c0_i32_1 = arith.constant 0 : i32
    return %c0_i32, %c0_i32_0 : i32, i32
  }
  func.func @transform_3(%arg0: i32) -> (i32, i32) {
    %c0_i32 = arith.constant 0 : i32
    %c0_i32_0 = arith.constant 0 : i32
    %c0_i32_1 = arith.constant 0 : i32
    return %c0_i32, %c0_i32_0 : i32, i32
  }
  func.func @transform_4(%arg0: i32) -> (i32, i32) {
    %c0_i32 = arith.constant 0 : i32
    %c0_i32_0 = arith.constant 0 : i32
    %c0_i32_1 = arith.constant 0 : i32
    return %c0_i32, %c0_i32_0 : i32, i32
  }
  func.func @transform_5(%arg0: i32) -> (i32, i32, i32) {
    %c0_i32 = arith.constant 0 : i32
    %c0_i32_0 = arith.constant 0 : i32
    %c0_i32_1 = arith.constant 0 : i32
    return %arg0, %c0_i32, %c0_i32_0 : i32, i32, i32
  }
}

</mosaic_0001>

<llo_original>
// kernel: tpu_custom_call.1
$region0: #{tpu_custom_call.1}
  #allocation0 [shape = 'u32[]', space=smem, size = 0x4, offset = 0x4, fixed_abs, tag = 'smem constant byte address 0x4 - core index']
  #allocation1 [shape = 'u32[144,128]{1,0:T(1,128)}', space=vmem, size = 0x12000, scoped, tag = 'internal scratch']
  %s0 = inlined_call_operand.hbm [shape: f32[2,64,64], index: 0, kind: input, shape index: {}]
  %s1 = inlined_call_operand.hbm [shape: f32[64,128], index: 1, kind: input, shape index: {}]
  %s2 = inlined_call_operand.vmem [shape: f32[1,128], index: 2, kind: input, shape index: {}]
  %s3 = inlined_call_operand.hbm [shape: f32[64,64], index: 3, kind: input, shape index: {}]
  %s4 = inlined_call_operand.vmem [shape: f32[1,64], index: 4, kind: input, shape index: {}]
  %s5 = inlined_call_operand.hbm [shape: f32[2,64,64], index: 5, kind: output, shape index: {}]
  %s6 = sld [smem:[#allocation0]]
  $region65: #{tpu_custom_call.1} parent=0
    _
  %s8 = ssub.s32 1, %s6
  %s9 = scalar_select 0, %s8, %s6
  $region1: #{tpu_custom_call.1} parent=0
    #allocation2 [shape = 'u8[65536]{0}', space=vmem, size = 0x10000, scoped, tag = 'input window, operand 0']
    #allocation3 [shape = 's32[2]{0}', space=sflag, size = 0x8, scoped, tag = 'scoped memory for tpu_custom_call.1']
    #allocation4 [shape = 's32[2]{0}', space=sflag, size = 0x8, scoped, tag = 'scoped memory for tpu_custom_call.1']
    #allocation5 [shape = 'u8[32768]{0}', space=vmem, size = 0x8000, scoped, tag = 'input window, operand 1, single buffered']
    #allocation6 [shape = 's32[1]{0}', space=sflag, size = 0x4, scoped, tag = 'scoped memory for tpu_custom_call.1']
    #allocation7 [shape = 'u8[32768]{0}', space=vmem, size = 0x8000, scoped, tag = 'input window, operand 3, single buffered']
    #allocation8 [shape = 'u8[65536]{0}', space=vmem, size = 0x10000, scoped, tag = 'output window, operand 0']
    %10 = vsyncpa [#allocation3], 0
    %s11 = scalar_lea.sflag [#allocation3], 1
    %12 = vsyncpa %s11, 0
    %13 = vsyncpa [#allocation6], 0
    %14 = vsyncpa [#allocation4], 0
    %s15 = scalar_lea.sflag [#allocation4], 1
    %16 = vsyncpa %s15, 0
    loop: start=0, step=1, limit=4
    $region2: #{tpu_custom_call.1} parent=1 // loop_pre_header
      _
    $region3: #{tpu_custom_call.1} parent=1 // loop_header
      %s18 = sphi 0, %s22
      %p19 = scmp.ge.s32.totalorder %s18, 4
      %s28 = sphi 0, %s30
      %s31 = sphi 0, %s28
      %s32 = sphi 0, %s31
      %s48 = sphi 0, %s32
      %s52 = sphi 0, %s52
      %s54 = sphi 0, %s52
      %s55 = sphi 0, %s54
      %s69 = sphi 0, %s55
      %s73 = sphi 0, %s73
      %s75 = sphi 0, %s73
      %s76 = sphi 0, %s75
      %s90 = sphi 0, %s76
      %s94 = sphi 0, %s94
      %s96 = sphi 0, %s94
      %s97 = sphi 0, %s96
      %s111 = sphi 0, %s97
      %s115 = sphi 0, %s115
      %s117 = sphi 0, %s115
      %s118 = sphi 0, %s117
      %s132 = sphi 0, %s118
      %s138 = sphi 0, %s140
      %s141 = sphi 0, %s138
      %s142 = sphi 0, %s141
      %s158 = sphi 0, %s142
    $region4: #{tpu_custom_call.1} parent=1 // loop_header_branch
      %21 = sbr.rel (%p19) target = $region8
    $region5: #{tpu_custom_call.1} parent=1 // loop_body
      %s23 = ssub.s32 %s18, 1
      %s24 = ssub.s32 %s18, 2
      %s25 = sadd.s32 %s18, 1
      %s26 = ssub.s32 %s18, %s25
      %p27 = scmp.eq.s32.totalorder %s26, 0
      %s29 = sadd.s32 %s28, 1
      %s30 = scalar_select %p27, %s28, %s29
      %p33 = pneg %p27
      %p34 = scmp.eq.s32.totalorder %s18, 1
      %p35 = por %p33, %p34
      %p36 = scmp.ne.s32.totalorder %s28, %s31
      %p37 = scmp.eq.s32.totalorder %s18, 0
      %p38 = por %p36, %p37
      %p39 = scmp.ne.s32.totalorder %s28, %s31
      %p40 = scmp.eq.s32.totalorder %s23, 1
      %p41 = por %p39, %p40
      %p42 = scmp.ne.s32.totalorder %s31, %s32
      %p43 = scmp.eq.s32.totalorder %s23, 0
      %p44 = por %p42, %p43
      %p45 = scmp.ne.s32.totalorder %s31, %s32
      %p46 = scmp.eq.s32.totalorder %s24, 1
      %p47 = por %p45, %p46
      %p49 = scmp.ne.s32.totalorder %s32, %s48
      %p50 = scmp.eq.s32.totalorder %s24, 0
      %p51 = por %p49, %p50
      %s53 = sadd.s32 %s52, 1
      %p56 = scmp.eq.s32.totalorder %s18, 1
      %p57 = scmp.ne.s32.totalorder %s52, %s54
      %p58 = scmp.eq.s32.totalorder %s18, 0
      %p59 = por %p57, %p58
      %p60 = scmp.ne.s32.totalorder %s52, %s54
      %p61 = scmp.eq.s32.totalorder %s23, 1
      %p62 = por %p60, %p61
      %p63 = scmp.ne.s32.totalorder %s54, %s55
      %p64 = scmp.eq.s32.totalorder %s23, 0
      %p65 = por %p63, %p64
      %p66 = scmp.ne.s32.totalorder %s54, %s55
      %p67 = scmp.eq.s32.totalorder %s24, 1
      %p68 = por %p66, %p67
      %p70 = scmp.ne.s32.totalorder %s55, %s69
      %p71 = scmp.eq.s32.totalorder %s24, 0
      %p72 = por %p70, %p71
      %s74 = sadd.s32 %s73, 1
      %p77 = scmp.eq.s32.totalorder %s18, 1
      %p78 = scmp.ne.s32.totalorder %s73, %s75
      %p79 = scmp.eq.s32.totalorder %s18, 0
      %p80 = por %p78, %p79
      %p81 = scmp.ne.s32.totalorder %s73, %s75
      %p82 = scmp.eq.s32.totalorder %s23, 1
      %p83 = por %p81, %p82
      %p84 = scmp.ne.s32.totalorder %s75, %s76
      %p85 = scmp.eq.s32.totalorder %s23, 0
      %p86 = por %p84, %p85
      %p87 = scmp.ne.s32.totalorder %s75, %s76
      %p88 = scmp.eq.s32.totalorder %s24, 1
      %p89 = por %p87, %p88
      %p91 = scmp.ne.s32.totalorder %s76, %s90
      %p92 = scmp.eq.s32.totalorder %s24, 0
      %p93 = por %p91, %p92
      %s95 = sadd.s32 %s94, 1
      %p98 = scmp.eq.s32.totalorder %s18, 1
      %p99 = scmp.ne.s32.totalorder %s94, %s96
      %p100 = scmp.eq.s32.totalorder %s18, 0
      %p101 = por %p99, %p100
      %p102 = scmp.ne.s32.totalorder %s94, %s96
      %p103 = scmp.eq.s32.totalorder %s23, 1
      %p104 = por %p102, %p103
      %p105 = scmp.ne.s32.totalorder %s96, %s97
      %p106 = scmp.eq.s32.totalorder %s23, 0
      %p107 = por %p105, %p106
      %p108 = scmp.ne.s32.totalorder %s96, %s97
      %p109 = scmp.eq.s32.totalorder %s24, 1
      %p110 = por %p108, %p109
      %p112 = scmp.ne.s32.totalorder %s97, %s111
      %p113 = scmp.eq.s32.totalorder %s24, 0
      %p114 = por %p112, %p113
      %s116 = sadd.s32 %s115, 1
      %p119 = scmp.eq.s32.totalorder %s18, 1
      %p120 = scmp.ne.s32.totalorder %s115, %s117
      %p121 = scmp.eq.s32.totalorder %s18, 0
      %p122 = por %p120, %p121
      %p123 = scmp.ne.s32.totalorder %s115, %s117
      %p124 = scmp.eq.s32.totalorder %s23, 1
      %p125 = por %p123, %p124
      %p126 = scmp.ne.s32.totalorder %s117, %s118
      %p127 = scmp.eq.s32.totalorder %s23, 0
      %p128 = por %p126, %p127
      %p129 = scmp.ne.s32.totalorder %s117, %s118
      %p130 = scmp.eq.s32.totalorder %s24, 1
      %p131 = por %p129, %p130
      %p133 = scmp.ne.s32.totalorder %s118, %s132
      %p134 = scmp.eq.s32.totalorder %s24, 0
      %p135 = por %p133, %p134
      %s136 = ssub.s32 %s18, %s25
      %p137 = scmp.eq.s32.totalorder %s136, 0
      %s139 = sadd.s32 %s138, 1
      %s140 = scalar_select %p137, %s138, %s139
      %p143 = pneg %p137
      %p144 = scmp.eq.s32.totalorder %s18, 1
      %p145 = por %p143, %p144
      %p146 = scmp.ne.s32.totalorder %s138, %s141
      %p147 = scmp.eq.s32.totalorder %s18, 0
      %p148 = por %p146, %p147
      %p149 = scmp.ne.s32.totalorder %s138, %s141
      %p150 = scmp.eq.s32.totalorder %s23, 1
      %p151 = por %p149, %p150
      %p152 = scmp.ne.s32.totalorder %s141, %s142
      %p153 = scmp.eq.s32.totalorder %s23, 0
      %p154 = por %p152, %p153
      %p155 = scmp.ne.s32.totalorder %s141, %s142
      %p156 = scmp.eq.s32.totalorder %s24, 1
      %p157 = por %p155, %p156
      %p159 = scmp.ne.s32.totalorder %s142, %s158
      %p160 = scmp.eq.s32.totalorder %s24, 0
      %p161 = por %p159, %p160
      %p162 = scmp.le.s32.totalorder 1, %s18
      %p163 = scmp.lt.s32.totalorder %s18, 3
      %p164 = pnand %p162, %p163
      %p165 = pneg %p164
      // Predicated region
      $region9: #{tpu_custom_call.1} parent=5 // pred_check
        _
      $region10: #{tpu_custom_call.1} parent=5 // pred_check_branch
        %167 = sbr.rel (%p164) target = $region12
      $region11: #{tpu_custom_call.1} parent=5 // pred_region
        %s168 = ssub.s32 %s18, 1
        // Predicated region
        $region13: #{tpu_custom_call.1} parent=11 // pred_check
          %p169 = pneg %p65
        $region14: #{tpu_custom_call.1} parent=11 // pred_check_branch
          %171 = sbr.rel (%p169) target = $region16
        $region15: #{tpu_custom_call.1} parent=11 // pred_region
          %s173 = ssub.s32 1024, 1024
          %174 = vsyncadd [#allocation6], %s173
          %s175 = sshll.u32 [#allocation5], 4
          %s176 = int_to_ptr.vmem [resolvable:$true] %s175
          %181 = dma.hbm_to_vmem [thread:$0]  %s1, 1024, %s176, [#allocation6], 128, 128, 8
        $region16: #{tpu_custom_call.1} parent=11 // pred_fallthru
          _
        // Predicated region
        $region17: #{tpu_custom_call.1} parent=11 // pred_check
          %p182 = pneg %p86
        $region18: #{tpu_custom_call.1} parent=11 // pred_check_branch
          %184 = sbr.rel (%p182) target = $region20
        $region19: #{tpu_custom_call.1} parent=11 // pred_region
          _
        $region20: #{tpu_custom_call.1} parent=11 // pred_fallthru
          _
        // Predicated region
        $region21: #{tpu_custom_call.1} parent=11 // pred_check
          %p185 = pneg %p107
        $region22: #{tpu_custom_call.1} parent=11 // pred_check_branch
          %187 = sbr.rel (%p185) target = $region24
        $region23: #{tpu_custom_call.1} parent=11 // pred_region
          %s189 = ssub.s32 1024, 1024
          %190 = vsyncadd [#allocation6], %s189
          %s191 = sshll.u32 [#allocation7], 4
          %s192 = int_to_ptr.vmem [resolvable:$true] %s191
          %197 = dma.hbm_to_vmem [thread:$0]  %s3, 1024, %s192, [#allocation6], 128, 128, 8
        $region24: #{tpu_custom_call.1} parent=11 // pred_fallthru
          _
        // Predicated region
        $region25: #{tpu_custom_call.1} parent=11 // pred_check
          %p198 = pneg %p128
        $region26: #{tpu_custom_call.1} parent=11 // pred_check_branch
          %200 = sbr.rel (%p198) target = $region28
        $region27: #{tpu_custom_call.1} parent=11 // pred_region
          _
        $region28: #{tpu_custom_call.1} parent=11 // pred_fallthru
          _
      $region12: #{tpu_custom_call.1} parent=5 // pred_fallthru
        _
      %p201 = scmp.lt.s32.totalorder %s18, 2
      // Predicated region
      $region29: #{tpu_custom_call.1} parent=5 // pred_check
        %p202 = pneg %p201
      $region30: #{tpu_custom_call.1} parent=5 // pred_check_branch
        %204 = sbr.rel (%p202) target = $region32
      $region31: #{tpu_custom_call.1} parent=5 // pred_region
        // Predicated region
        $region33: #{tpu_custom_call.1} parent=31 // pred_check
          %p205 = pneg %p38
        $region34: #{tpu_custom_call.1} parent=31 // pred_check_branch
          %207 = sbr.rel (%p205) target = $region36
        $region35: #{tpu_custom_call.1} parent=31 // pred_region
          %s208 = sand.u32 %s28, 1
          %s209 = scalar_lea.sflag [#allocation3], %s208
          %s210 = sand.u32 %s28, 1
          %s211 = smul.addr %s210, 64
          %s212 = scalar_lea.vmem [#allocation2], %s211
          %s214 = ssub.s32 1024, 1024
          %215 = vsyncadd %s209, %s214
          %s216 = smul.addr %s18, 8
          %s217 = smul.addr %s216, 128
          %s218 = scalar_lea.hbm %s0, %s217
          %s219 = sshll.u32 %s212, 4
          %s220 = int_to_ptr.vmem [resolvable:$true] %s219
          %225 = dma.hbm_to_vmem [thread:$0]  %s218, 1024, %s220, %s209, 128, 128, 8
        $region36: #{tpu_custom_call.1} parent=31 // pred_fallthru
          _
      $region32: #{tpu_custom_call.1} parent=5 // pred_fallthru
        _
      %p226 = scmp.le.s32.totalorder 1, %s18
      %p227 = scmp.lt.s32.totalorder %s18, 3
      %p228 = pnand %p226, %p227
      %p229 = pneg %p228
      // Predicated region
      $region37: #{tpu_custom_call.1} parent=5 // pred_check
        _
      $region38: #{tpu_custom_call.1} parent=5 // pred_check_branch
        %231 = sbr.rel (%p228) target = $region40
      $region39: #{tpu_custom_call.1} parent=5 // pred_region
        %s232 = ssub.s32 %s18, 1
        %s233 = sand.u32 %s31, 1
        %s234 = scalar_lea.sflag [#allocation3], %s233
        %s235 = sand.u32 %s31, 1
        %s236 = smul.addr %s235, 64
        %s237 = scalar_lea.vmem [#allocation2], %s236
        // Predicated region
        $region41: #{tpu_custom_call.1} parent=39 // pred_check
          %p238 = pneg %p44
        $region42: #{tpu_custom_call.1} parent=39 // pred_check_branch
          %240 = sbr.rel (%p238) target = $region44
        $region43: #{tpu_custom_call.1} parent=39 // pred_region
          %241 = dma.done %s234, 1024
        $region44: #{tpu_custom_call.1} parent=39 // pred_fallthru
          _
        // Predicated region
        $region45: #{tpu_custom_call.1} parent=39 // pred_check
          %p242 = pneg %p65
        $region46: #{tpu_custom_call.1} parent=39 // pred_check_branch
          %244 = sbr.rel (%p242) target = $region48
        $region47: #{tpu_custom_call.1} parent=39 // pred_region
          %245 = dma.done [#allocation6], 1024
        $region48: #{tpu_custom_call.1} parent=39 // pred_fallthru
          _
        // Predicated region
        $region49: #{tpu_custom_call.1} parent=39 // pred_check
          %p246 = pneg %p107
        $region50: #{tpu_custom_call.1} parent=39 // pred_check_branch
          %248 = sbr.rel (%p246) target = $region52
        $region51: #{tpu_custom_call.1} parent=39 // pred_region
          %249 = dma.done [#allocation6], 1024
        $region52: #{tpu_custom_call.1} parent=39 // pred_fallthru
          _
        %s250 = sand.u32 %s31, 1
        %s251 = scalar_lea.sflag [#allocation3], %s250
        %s252 = sand.u32 %s31, 1
        %s253 = smul.addr %s252, 64
        %s254 = scalar_lea.vmem [#allocation2], %s253
        %p255 = pneg %p44
        %p256 = pneg %p41
        %p257 = pneg %p65
        %p258 = pneg %p62
        %p259 = pneg %p86
        %p260 = pneg %p83
        %p261 = pneg %p107
        %p262 = pneg %p104
        %p263 = pneg %p128
        %p264 = pneg %p125
        %p265 = pneg %p154
        %p266 = pneg %p151
        %s267 = sand.u32 %s141, 1
        %s268 = scalar_lea.sflag [#allocation4], %s267
        %s269 = sand.u32 %s141, 1
        %s270 = smul.addr %s269, 64
        %s271 = scalar_lea.vmem [#allocation8], %s270
        %v272 = vld [vmem:[%s237] sm:$0xff]
        %v273 = vld [vmem:[%s237 + $0x8] sm:$0xff]
        %v274 = vld [vmem:[%s237 + $0x10] sm:$0xff]
        %v275 = vld [vmem:[%s237 + $0x18] sm:$0xff]
        %v276 = vld [vmem:[%s237 + $0x20] sm:$0xff]
        %v277 = vld [vmem:[%s237 + $0x28] sm:$0xff]
        %v278 = vld [vmem:[%s237 + $0x30] sm:$0xff]
        %v279 = vld [vmem:[%s237 + $0x38] sm:$0xff]
        %v280 = vld [vmem:[#allocation5] sm:$0xff]
        %v281 = vld [vmem:[#allocation5 + $0x8] sm:$0xff]
        %v282 = vld [vmem:[#allocation5 + $0x10] sm:$0xff]
        %v283 = vld [vmem:[#allocation5 + $0x18] sm:$0xff]
        %v284 = vld [vmem:[#allocation5 + $0x20] sm:$0xff]
        %v285 = vld [vmem:[#allocation5 + $0x28] sm:$0xff]
        %v286 = vld [vmem:[#allocation5 + $0x30] sm:$0xff]
        %v287 = vld [vmem:[#allocation5 + $0x38] sm:$0xff]
        %v288 = vld [vmem:[%s2] sm:$0x1]
        %v290 = vlaneseq
        %v291 = vshrl.u32 %v290, 7
        %v292 = vsub.s32 0, %v291
        %v293 = vrot.slane %v288, %v292
        %vm295 = vcmask 523264
        %v297 = vsel %vm295, %v272, 0
        %v300 = vsel %vm295, %v273, 0
        %v303 = vsel %vm295, %v274, 0
        %v306 = vsel %vm295, %v275, 0
        %v309 = vsel %vm295, %v276, 0
        %v312 = vsel %vm295, %v277, 0
        %v315 = vsel %vm295, %v278, 0
        %v318 = vsel %vm295, %v279, 0
        %320 = vmatprep.subr.mxu0 0.0
        %321 = vmatpush1.msra.mxu0 0.0
        %322 = vmatprep.subr.mxu0 0.0
        %323 = vmatpush1.msra.mxu0 0.0
        %324 = vmatprep.subr.mxu0 0.0
        %325 = vmatpush1.msra.mxu0 0.0
        %326 = vmatprep.subr.mxu0 0.0
        %327 = vmatpush1.msra.mxu0 0.0
        %328 = vmatprep.subr.mxu0 0.0
        %329 = vmatpush1.msra.mxu0 0.0
        %330 = vmatprep.subr.mxu0 0.0
        %331 = vmatpush1.msra.mxu0 0.0
        %332 = vmatprep.subr.mxu0 0.0
        %333 = vmatpush1.msra.mxu0 0.0
        %334 = vmatprep.subr.mxu0 0.0
        %335 = vmatpush1.msra.mxu0 0.0
        %336 = vmatprep.subr.mxu0 0.0
        %337 = vmatpush1.msra.mxu0 %v287
        %338 = vmatprep.subr.mxu0 0.0
        %339 = vmatpush1.msra.mxu0 %v286
        %340 = vmatprep.subr.mxu0 0.0
        %341 = vmatpush1.msra.mxu0 %v285
        %342 = vmatprep.subr.mxu0 0.0
        %343 = vmatpush1.msra.mxu0 %v284
        %344 = vmatprep.subr.mxu0 0.0
        %345 = vmatpush1.msra.mxu0 %v283
        %346 = vmatprep.subr.mxu0 0.0
        %347 = vmatpush1.msra.mxu0 %v282
        %348 = vmatprep.subr.mxu0 0.0
        %349 = vmatpush1.msra.mxu0 %v281
        %350 = vmatprep.subr.mxu0 0.0
        %351 = vmatpush1.msra.mxu0 %v280
        %352 = vmatprep.subr.mxu0 0.0
        %353 = vmatpush2.msra.mxu0 0.0
        %354 = vmatprep.subr.mxu0 0.0
        %355 = vmatpush2.msra.mxu0 0.0
        %356 = vmatprep.subr.mxu0 0.0
        %357 = vmatpush2.msra.mxu0 0.0
        %358 = vmatprep.subr.mxu0 0.0
        %359 = vmatpush2.msra.mxu0 0.0
        %360 = vmatprep.subr.mxu0 0.0
        %361 = vmatpush2.msra.mxu0 0.0
        %362 = vmatprep.subr.mxu0 0.0
        %363 = vmatpush2.msra.mxu0 0.0
        %364 = vmatprep.subr.mxu0 0.0
        %365 = vmatpush2.msra.mxu0 0.0
        %366 = vmatprep.subr.mxu0 0.0
        %367 = vmatpush2.msra.mxu0 0.0
        %368 = vmatprep.subr.mxu0 0.0
        %369 = vmatpush2.msra.mxu0 0.0
        %370 = vmatprep.subr.mxu0 0.0
        %371 = vmatpush2.msra.mxu0 0.0
        %372 = vmatprep.subr.mxu0 0.0
        %373 = vmatpush2.msra.mxu0 0.0
        %374 = vmatprep.subr.mxu0 0.0
        %375 = vmatpush2.msra.mxu0 0.0
        %376 = vmatprep.subr.mxu0 0.0
        %377 = vmatpush2.msra.mxu0 0.0
        %378 = vmatprep.subr.mxu0 0.0
        %379 = vmatpush2.msra.mxu0 0.0
        %380 = vmatprep.subr.mxu0 0.0
        %381 = vmatpush2.msra.mxu0 0.0
        %382 = vmatprep.subr.mxu0 0.0
        %383 = vmatpush2.msra.mxu0 0.0
        %384 = vmatprep.mubr.f32.mxu0 0.0
        %385 = vmatmul.mubr.f32.gmra.mxu0 %v297
        %v386 = vpop.f32.mrf.mxu0
        %v387 = vadd.f32 %v293, %v386
        %v388 = vpop.f32.mrf.mxu0
        %389 = vmatprep.mubr.f32.mxu0 0.0
        %390 = vmatmul.mubr.f32.gmra.mxu0 %v300
        %v391 = vpop.f32.mrf.mxu0
        %v392 = vadd.f32 %v293, %v391
        %v393 = vpop.f32.mrf.mxu0
        %394 = vmatprep.mubr.f32.mxu0 0.0
        %395 = vmatmul.mubr.f32.gmra.mxu0 %v303
        %v396 = vpop.f32.mrf.mxu0
        %v397 = vadd.f32 %v293, %v396
        %v398 = vpop.f32.mrf.mxu0
        %399 = vmatprep.mubr.f32.mxu0 0.0
        %400 = vmatmul.mubr.f32.gmra.mxu0 %v306
        %v401 = vpop.f32.mrf.mxu0
        %v402 = vadd.f32 %v293, %v401
        %v403 = vpop.f32.mrf.mxu0
        %404 = vmatprep.mubr.f32.mxu0 0.0
        %405 = vmatmul.mubr.f32.gmra.mxu0 %v309
        %v406 = vpop.f32.mrf.mxu0
        %v407 = vadd.f32 %v293, %v406
        %v408 = vpop.f32.mrf.mxu0
        %409 = vmatprep.mubr.f32.mxu0 0.0
        %410 = vmatmul.mubr.f32.gmra.mxu0 %v312
        %v411 = vpop.f32.mrf.mxu0
        %v412 = vadd.f32 %v293, %v411
        %v413 = vpop.f32.mrf.mxu0
        %414 = vmatprep.mubr.f32.mxu0 0.0
        %415 = vmatmul.mubr.f32.gmra.mxu0 %v315
        %v416 = vpop.f32.mrf.mxu0
        %v417 = vadd.f32 %v293, %v416
        %v418 = vpop.f32.mrf.mxu0
        %419 = vmatprep.mubr.f32.mxu0 0.0
        %420 = vmatmul.mubr.f32.gmra.mxu0 %v318
        %v421 = vpop.f32.mrf.mxu0
        %v422 = vadd.f32 %v293, %v421
        %v423 = vpop.f32.mrf.mxu0
        %424 = vdwg.mxu0
        %433 = vrot.lane.b32.xlu0 %v387, 64
        %v434 = vpop.permute.xlu0 %433
        %435 = vrot.lane.b32.xlu0 %v392, 64
        %v436 = vpop.permute.xlu0 %435
        %437 = vrot.lane.b32.xlu0 %v397, 64
        %v438 = vpop.permute.xlu0 %437
        %439 = vrot.lane.b32.xlu0 %v402, 64
        %v440 = vpop.permute.xlu0 %439
        %441 = vrot.lane.b32.xlu0 %v407, 64
        %v442 = vpop.permute.xlu0 %441
        %443 = vrot.lane.b32.xlu0 %v412, 64
        %v444 = vpop.permute.xlu0 %443
        %445 = vrot.lane.b32.xlu0 %v417, 64
        %v446 = vpop.permute.xlu0 %445
        %447 = vrot.lane.b32.xlu0 %v422, 64
        %v448 = vpop.permute.xlu0 %447
        %vm449 = vcmask 31744
        %v450 = vsel %vm449, %v387, 0
        %v452 = vsel %vm449, %v392, 0
        %v454 = vsel %vm449, %v397, 0
        %v456 = vsel %vm449, %v402, 0
        %v458 = vsel %vm449, %v407, 0
        %v460 = vsel %vm449, %v412, 0
        %v462 = vsel %vm449, %v417, 0
        %v464 = vsel %vm449, %v422, 0
        %v466 = vsel %vm449, %v434, 0
        %v468 = vsel %vm449, %v436, 0
        %v470 = vsel %vm449, %v438, 0
        %v472 = vsel %vm449, %v440, 0
        %v474 = vsel %vm449, %v442, 0
        %v476 = vsel %vm449, %v444, 0
        %v478 = vsel %vm449, %v446, 0
        %v480 = vsel %vm449, %v448, 0
        %482 = vmatprep.subr.mxu0 0.0
        %483 = vmatpush1.xpose.msra.mxu0 0.0
        %484 = vmatprep.subr.mxu0 0.0
        %485 = vmatpush1.xpose.msra.mxu0 0.0
        %486 = vmatprep.subr.mxu0 0.0
        %487 = vmatpush1.xpose.msra.mxu0 0.0
        %488 = vmatprep.subr.mxu0 0.0
        %489 = vmatpush1.xpose.msra.mxu0 0.0
        %490 = vmatprep.subr.mxu0 0.0
        %491 = vmatpush1.xpose.msra.mxu0 0.0
        %492 = vmatprep.subr.mxu0 0.0
        %493 = vmatpush1.xpose.msra.mxu0 0.0
        %494 = vmatprep.subr.mxu0 0.0
        %495 = vmatpush1.xpose.msra.mxu0 0.0
        %496 = vmatprep.subr.mxu0 0.0
        %497 = vmatpush1.xpose.msra.mxu0 0.0
        %498 = vmatprep.subr.mxu0 0.0
        %499 = vmatpush1.xpose.msra.mxu0 %v480
        %500 = vmatprep.subr.mxu0 0.0
        %501 = vmatpush1.xpose.msra.mxu0 %v478
        %502 = vmatprep.subr.mxu0 0.0
        %503 = vmatpush1.xpose.msra.mxu0 %v476
        %504 = vmatprep.subr.mxu0 0.0
        %505 = vmatpush1.xpose.msra.mxu0 %v474
        %506 = vmatprep.subr.mxu0 0.0
        %507 = vmatpush1.xpose.msra.mxu0 %v472
        %508 = vmatprep.subr.mxu0 0.0
        %509 = vmatpush1.xpose.msra.mxu0 %v470
        %510 = vmatprep.subr.mxu0 0.0
        %511 = vmatpush1.xpose.msra.mxu0 %v468
        %512 = vmatprep.subr.mxu0 0.0
        %513 = vmatpush1.xpose.msra.mxu0 %v466
        %514 = vmatprep.subr.mxu0 0.0
        %515 = vmatpush2.xpose.msra.mxu0 0.0
        %516 = vmatprep.subr.mxu0 0.0
        %517 = vmatpush2.xpose.msra.mxu0 0.0
        %518 = vmatprep.subr.mxu0 0.0
        %519 = vmatpush2.xpose.msra.mxu0 0.0
        %520 = vmatprep.subr.mxu0 0.0
        %521 = vmatpush2.xpose.msra.mxu0 0.0
        %522 = vmatprep.subr.mxu0 0.0
        %523 = vmatpush2.xpose.msra.mxu0 0.0
        %524 = vmatprep.subr.mxu0 0.0
        %525 = vmatpush2.xpose.msra.mxu0 0.0
        %526 = vmatprep.subr.mxu0 0.0
        %527 = vmatpush2.xpose.msra.mxu0 0.0
        %528 = vmatprep.subr.mxu0 0.0
        %529 = vmatpush2.xpose.msra.mxu0 0.0
        %530 = vmatprep.subr.mxu0 0.0
        %531 = vmatpush2.xpose.msra.mxu0 0.0
        %532 = vmatprep.subr.mxu0 0.0
        %533 = vmatpush2.xpose.msra.mxu0 0.0
        %534 = vmatprep.subr.mxu0 0.0
        %535 = vmatpush2.xpose.msra.mxu0 0.0
        %536 = vmatprep.subr.mxu0 0.0
        %537 = vmatpush2.xpose.msra.mxu0 0.0
        %538 = vmatprep.subr.mxu0 0.0
        %539 = vmatpush2.xpose.msra.mxu0 0.0
        %540 = vmatprep.subr.mxu0 0.0
        %541 = vmatpush2.xpose.msra.mxu0 0.0
        %542 = vmatprep.subr.mxu0 0.0
        %543 = vmatpush2.xpose.msra.mxu0 0.0
        %544 = vmatprep.subr.mxu0 0.0
        %545 = vmatpush2.xpose.msra.mxu0 0.0
        %546 = vmatprep.mubr.f32.mxu0 0.0
        %547 = vmatmul.mubr.f32.gmra.mxu0 %v450
        %v548 = vpop.f32.mrf.mxu0
        %v549 = vadd.f32 0.0, %v548
        %v550 = vpop.f32.mrf.mxu0
        %551 = vmatprep.mubr.f32.mxu0 0.0
        %552 = vmatmul.mubr.f32.gmra.mxu0 %v452
        %v553 = vpop.f32.mrf.mxu0
        %v554 = vadd.f32 0.0, %v553
        %v555 = vpop.f32.mrf.mxu0
        %556 = vmatprep.mubr.f32.mxu0 0.0
        %557 = vmatmul.mubr.f32.gmra.mxu0 %v454
        %v558 = vpop.f32.mrf.mxu0
        %v559 = vadd.f32 0.0, %v558
        %v560 = vpop.f32.mrf.mxu0
        %561 = vmatprep.mubr.f32.mxu0 0.0
        %562 = vmatmul.mubr.f32.gmra.mxu0 %v456
        %v563 = vpop.f32.mrf.mxu0
        %v564 = vadd.f32 0.0, %v563
        %v565 = vpop.f32.mrf.mxu0
        %566 = vmatprep.mubr.f32.mxu0 0.0
        %567 = vmatmul.mubr.f32.gmra.mxu0 %v458
        %v568 = vpop.f32.mrf.mxu0
        %v569 = vadd.f32 0.0, %v568
        %v570 = vpop.f32.mrf.mxu0
        %571 = vmatprep.mubr.f32.mxu0 0.0
        %572 = vmatmul.mubr.f32.gmra.mxu0 %v460
        %v573 = vpop.f32.mrf.mxu0
        %v574 = vadd.f32 0.0, %v573
        %v575 = vpop.f32.mrf.mxu0
        %576 = vmatprep.mubr.f32.mxu0 0.0
        %577 = vmatmul.mubr.f32.gmra.mxu0 %v462
        %v578 = vpop.f32.mrf.mxu0
        %v579 = vadd.f32 0.0, %v578
        %v580 = vpop.f32.mrf.mxu0
        %581 = vmatprep.mubr.f32.mxu0 0.0
        %582 = vmatmul.mubr.f32.gmra.mxu0 %v464
        %v583 = vpop.f32.mrf.mxu0
        %v584 = vadd.f32 0.0, %v583
        %v585 = vpop.f32.mrf.mxu0
        %586 = vdwg.mxu0
        %v587 = vmul.f32 %v549, 0.5
        %v588 = vmul.f32 %v554, 0.5
        %v589 = vmul.f32 %v559, 0.5
        %v590 = vmul.f32 %v564, 0.5
        %v591 = vmul.f32 %v569, 0.5
        %v592 = vmul.f32 %v574, 0.5
        %v593 = vmul.f32 %v579, 0.5
        %v594 = vmul.f32 %v584, 0.5
        %595 = vmatprep.subr.mxu0 0.0
        %596 = vmatpush1.xpose.msra.mxu0 0.0
        %597 = vmatprep.subr.mxu0 0.0
        %598 = vmatpush1.xpose.msra.mxu0 0.0
        %599 = vmatprep.subr.mxu0 0.0
        %600 = vmatpush1.xpose.msra.mxu0 0.0
        %601 = vmatprep.subr.mxu0 0.0
        %602 = vmatpush1.xpose.msra.mxu0 0.0
        %603 = vmatprep.subr.mxu0 0.0
        %604 = vmatpush1.xpose.msra.mxu0 0.0
        %605 = vmatprep.subr.mxu0 0.0
        %606 = vmatpush1.xpose.msra.mxu0 0.0
        %607 = vmatprep.subr.mxu0 0.0
        %608 = vmatpush1.xpose.msra.mxu0 0.0
        %609 = vmatprep.subr.mxu0 0.0
        %610 = vmatpush1.xpose.msra.mxu0 0.0
        %611 = vmatprep.subr.mxu0 0.0
        %612 = vmatpush1.xpose.msra.mxu0 %v464
        %613 = vmatprep.subr.mxu0 0.0
        %614 = vmatpush1.xpose.msra.mxu0 %v462
        %615 = vmatprep.subr.mxu0 0.0
        %616 = vmatpush1.xpose.msra.mxu0 %v460
        %617 = vmatprep.subr.mxu0 0.0
        %618 = vmatpush1.xpose.msra.mxu0 %v458
        %619 = vmatprep.subr.mxu0 0.0
        %620 = vmatpush1.xpose.msra.mxu0 %v456
        %621 = vmatprep.subr.mxu0 0.0
        %622 = vmatpush1.xpose.msra.mxu0 %v454
        %623 = vmatprep.subr.mxu0 0.0
        %624 = vmatpush1.xpose.msra.mxu0 %v452
        %625 = vmatprep.subr.mxu0 0.0
        %626 = vmatpush1.xpose.msra.mxu0 %v450
        %627 = vmatprep.subr.mxu0 0.0
        %628 = vmatpush2.xpose.msra.mxu0 0.0
        %629 = vmatprep.subr.mxu0 0.0
        %630 = vmatpush2.xpose.msra.mxu0 0.0
        %631 = vmatprep.subr.mxu0 0.0
        %632 = vmatpush2.xpose.msra.mxu0 0.0
        %633 = vmatprep.subr.mxu0 0.0
        %634 = vmatpush2.xpose.msra.mxu0 0.0
        %635 = vmatprep.subr.mxu0 0.0
        %636 = vmatpush2.xpose.msra.mxu0 0.0
        %637 = vmatprep.subr.mxu0 0.0
        %638 = vmatpush2.xpose.msra.mxu0 0.0
        %639 = vmatprep.subr.mxu0 0.0
        %640 = vmatpush2.xpose.msra.mxu0 0.0
        %641 = vmatprep.subr.mxu0 0.0
        %642 = vmatpush2.xpose.msra.mxu0 0.0
        %643 = vmatprep.subr.mxu0 0.0
        %644 = vmatpush2.xpose.msra.mxu0 0.0
        %645 = vmatprep.subr.mxu0 0.0
        %646 = vmatpush2.xpose.msra.mxu0 0.0
        %647 = vmatprep.subr.mxu0 0.0
        %648 = vmatpush2.xpose.msra.mxu0 0.0
        %649 = vmatprep.subr.mxu0 0.0
        %650 = vmatpush2.xpose.msra.mxu0 0.0
        %651 = vmatprep.subr.mxu0 0.0
        %652 = vmatpush2.xpose.msra.mxu0 0.0
        %653 = vmatprep.subr.mxu0 0.0
        %654 = vmatpush2.xpose.msra.mxu0 0.0
        %655 = vmatprep.subr.mxu0 0.0
        %656 = vmatpush2.xpose.msra.mxu0 0.0
        %657 = vmatprep.subr.mxu0 0.0
        %658 = vmatpush2.xpose.msra.mxu0 0.0
        %659 = vmatprep.mubr.f32.mxu0 0.0
        %660 = vmatmul.mubr.f32.gmra.mxu0 %v466
        %v661 = vpop.f32.mrf.mxu0
        %v662 = vadd.f32 0.0, %v661
        %v663 = vpop.f32.mrf.mxu0
        %664 = vmatprep.mubr.f32.mxu0 0.0
        %665 = vmatmul.mubr.f32.gmra.mxu0 %v468
        %v666 = vpop.f32.mrf.mxu0
        %v667 = vadd.f32 0.0, %v666
        %v668 = vpop.f32.mrf.mxu0
        %669 = vmatprep.mubr.f32.mxu0 0.0
        %670 = vmatmul.mubr.f32.gmra.mxu0 %v470
        %v671 = vpop.f32.mrf.mxu0
        %v672 = vadd.f32 0.0, %v671
        %v673 = vpop.f32.mrf.mxu0
        %674 = vmatprep.mubr.f32.mxu0 0.0
        %675 = vmatmul.mubr.f32.gmra.mxu0 %v472
        %v676 = vpop.f32.mrf.mxu0
        %v677 = vadd.f32 0.0, %v676
        %v678 = vpop.f32.mrf.mxu0
        %679 = vmatprep.mubr.f32.mxu0 0.0
        %680 = vmatmul.mubr.f32.gmra.mxu0 %v474
        %v681 = vpop.f32.mrf.mxu0
        %v682 = vadd.f32 0.0, %v681
        %v683 = vpop.f32.mrf.mxu0
        %684 = vmatprep.mubr.f32.mxu0 0.0
        %685 = vmatmul.mubr.f32.gmra.mxu0 %v476
        %v686 = vpop.f32.mrf.mxu0
        %v687 = vadd.f32 0.0, %v686
        %v688 = vpop.f32.mrf.mxu0
        %689 = vmatprep.mubr.f32.mxu0 0.0
        %690 = vmatmul.mubr.f32.gmra.mxu0 %v478
        %v691 = vpop.f32.mrf.mxu0
        %v692 = vadd.f32 0.0, %v691
        %v693 = vpop.f32.mrf.mxu0
        %694 = vmatprep.mubr.f32.mxu0 0.0
        %695 = vmatmul.mubr.f32.gmra.mxu0 %v480
        %v696 = vpop.f32.mrf.mxu0
        %v697 = vadd.f32 0.0, %v696
        %v698 = vpop.f32.mrf.mxu0
        %699 = vdwg.mxu0
        %v700 = vmul.f32 %v662, 0.5
        %v701 = vmul.f32 %v667, 0.5
        %v702 = vmul.f32 %v672, 0.5
        %v703 = vmul.f32 %v677, 0.5
        %v704 = vmul.f32 %v682, 0.5
        %v705 = vmul.f32 %v687, 0.5
        %v706 = vmul.f32 %v692, 0.5
        %v707 = vmul.f32 %v697, 0.5
        %v708 = vsel %vm295, %v587, -inf
        %v709 = vsel %vm295, %v588, -inf
        %v710 = vsel %vm295, %v589, -inf
        %v711 = vsel %vm295, %v590, -inf
        %v712 = vsel %vm295, %v591, -inf
        %v713 = vmax.f32 %v708, %v712
        %v714 = vsel %vm295, %v592, -inf
        %v715 = vmax.f32 %v709, %v714
        %v716 = vsel %vm295, %v593, -inf
        %v717 = vmax.f32 %v710, %v716
        %v718 = vsel %vm295, %v594, -inf
        %v719 = vmax.f32 %v711, %v718
        %v720 = vmax.f32 %v713, %v715
        %v721 = vmax.f32 %v717, %v719
        %v722 = vmax.f32 %v720, %v721
        %v723 = vrot.slane %v722, 4
        %v724 = vmax.f32 %v722, %v723
        %v725 = vrot.slane %v724, 2
        %v726 = vmax.f32 %v724, %v725
        %v727 = vrot.slane %v726, 1
        %v728 = vmax.f32 %v726, %v727
        %v729 = vsub.f32 %v587, %v728
        %v730 = vsub.f32 %v588, %v728
        %v731 = vsub.f32 %v589, %v728
        %v732 = vsub.f32 %v590, %v728
        %v733 = vsub.f32 %v591, %v728
        %v734 = vsub.f32 %v592, %v728
        %v735 = vsub.f32 %v593, %v728
        %v736 = vsub.f32 %v594, %v728
        %v737 = vmul.f32 %v729, 1.442695
        %v738 = vpow.pop %v737
        %v739 = vmul.f32 %v730, 1.442695
        %v740 = vpow.pop %v739
        %v741 = vmul.f32 %v731, 1.442695
        %v742 = vpow.pop %v741
        %v743 = vmul.f32 %v732, 1.442695
        %v744 = vpow.pop %v743
        %v745 = vmul.f32 %v733, 1.442695
        %v746 = vpow.pop %v745
        %v747 = vmul.f32 %v734, 1.442695
        %v748 = vpow.pop %v747
        %v749 = vmul.f32 %v735, 1.442695
        %v750 = vpow.pop %v749
        %v751 = vmul.f32 %v736, 1.442695
        %v752 = vpow.pop %v751
        %v753 = vsel %vm295, %v738, 0.0
        %v754 = vsel %vm295, %v740, 0.0
        %v755 = vadd.f32 %v753, %v754
        %v756 = vsel %vm295, %v742, 0.0
        %v757 = vadd.f32 %v755, %v756
        %v758 = vsel %vm295, %v744, 0.0
        %v759 = vadd.f32 %v757, %v758
        %v760 = vsel %vm295, %v746, 0.0
        %v761 = vadd.f32 %v759, %v760
        %v762 = vsel %vm295, %v748, 0.0
        %v763 = vadd.f32 %v761, %v762
        %v764 = vsel %vm295, %v750, 0.0
        %v765 = vadd.f32 %v763, %v764
        %v766 = vsel %vm295, %v752, 0.0
        %v767 = vadd.f32 %v765, %v766
        %v768 = vrot.slane %v767, 4
        %v769 = vadd.f32 %v767, %v768
        %v770 = vrot.slane %v769, 2
        %v771 = vadd.f32 %v769, %v770
        %v772 = vrot.slane %v771, 1
        %v773 = vadd.f32 %v771, %v772
        %v774 = vrcp.pop %v773
        %v775 = vmul.f32 %v738, %v774
        %v776 = vmul.f32 %v740, %v774
        %v777 = vmul.f32 %v742, %v774
        %v778 = vmul.f32 %v744, %v774
        %v779 = vmul.f32 %v746, %v774
        %v780 = vmul.f32 %v748, %v774
        %v781 = vmul.f32 %v750, %v774
        %v782 = vmul.f32 %v752, %v774
        %v783 = vsel %vm295, %v700, -inf
        %v784 = vsel %vm295, %v701, -inf
        %v785 = vsel %vm295, %v702, -inf
        %v786 = vsel %vm295, %v703, -inf
        %v787 = vsel %vm295, %v704, -inf
        %v788 = vmax.f32 %v783, %v787
        %v789 = vsel %vm295, %v705, -inf
        %v790 = vmax.f32 %v784, %v789
        %v791 = vsel %vm295, %v706, -inf
        %v792 = vmax.f32 %v785, %v791
        %v793 = vsel %vm295, %v707, -inf
        %v794 = vmax.f32 %v786, %v793
        %v795 = vmax.f32 %v788, %v790
        %v796 = vmax.f32 %v792, %v794
        %v797 = vmax.f32 %v795, %v796
        %v798 = vrot.slane %v797, 4
        %v799 = vmax.f32 %v797, %v798
        %v800 = vrot.slane %v799, 2
        %v801 = vmax.f32 %v799, %v800
        %v802 = vrot.slane %v801, 1
        %v803 = vmax.f32 %v801, %v802
        %v804 = vsub.f32 %v700, %v803
        %v805 = vsub.f32 %v701, %v803
        %v806 = vsub.f32 %v702, %v803
        %v807 = vsub.f32 %v703, %v803
        %v808 = vsub.f32 %v704, %v803
        %v809 = vsub.f32 %v705, %v803
        %v810 = vsub.f32 %v706, %v803
        %v811 = vsub.f32 %v707, %v803
        %v812 = vmul.f32 %v804, 1.442695
        %v813 = vpow.pop %v812
        %v814 = vmul.f32 %v805, 1.442695
        %v815 = vpow.pop %v814
        %v816 = vmul.f32 %v806, 1.442695
        %v817 = vpow.pop %v816
        %v818 = vmul.f32 %v807, 1.442695
        %v819 = vpow.pop %v818
        %v820 = vmul.f32 %v808, 1.442695
        %v821 = vpow.pop %v820
        %v822 = vmul.f32 %v809, 1.442695
        %v823 = vpow.pop %v822
        %v824 = vmul.f32 %v810, 1.442695
        %v825 = vpow.pop %v824
        %v826 = vmul.f32 %v811, 1.442695
        %v827 = vpow.pop %v826
        %v828 = vsel %vm295, %v813, 0.0
        %v829 = vsel %vm295, %v815, 0.0
        %v830 = vadd.f32 %v828, %v829
        %v831 = vsel %vm295, %v817, 0.0
        %v832 = vadd.f32 %v830, %v831
        %v833 = vsel %vm295, %v819, 0.0
        %v834 = vadd.f32 %v832, %v833
        %v835 = vsel %vm295, %v821, 0.0
        %v836 = vadd.f32 %v834, %v835
        %v837 = vsel %vm295, %v823, 0.0
        %v838 = vadd.f32 %v836, %v837
        %v839 = vsel %vm295, %v825, 0.0
        %v840 = vadd.f32 %v838, %v839
        %v841 = vsel %vm295, %v827, 0.0
        %v842 = vadd.f32 %v840, %v841
        %v843 = vrot.slane %v842, 4
        %v844 = vadd.f32 %v842, %v843
        %v845 = vrot.slane %v844, 2
        %v846 = vadd.f32 %v844, %v845
        %v847 = vrot.slane %v846, 1
        %v848 = vadd.f32 %v846, %v847
        %v849 = vrcp.pop %v848
        %v850 = vmul.f32 %v813, %v849
        %v851 = vmul.f32 %v815, %v849
        %v852 = vmul.f32 %v817, %v849
        %v853 = vmul.f32 %v819, %v849
        %v854 = vmul.f32 %v821, %v849
        %v855 = vmul.f32 %v823, %v849
        %v856 = vmul.f32 %v825, %v849
        %v857 = vmul.f32 %v827, %v849
        %858 = vrot.lane.b32.xlu0 %v387, 96
        %v859 = vpop.permute.xlu0 %858
        %860 = vrot.lane.b32.xlu0 %v392, 96
        %v861 = vpop.permute.xlu0 %860
        %862 = vrot.lane.b32.xlu0 %v397, 96
        %v863 = vpop.permute.xlu0 %862
        %864 = vrot.lane.b32.xlu0 %v402, 96
        %v865 = vpop.permute.xlu0 %864
        %866 = vrot.lane.b32.xlu0 %v407, 96
        %v867 = vpop.permute.xlu0 %866
        %868 = vrot.lane.b32.xlu0 %v412, 96
        %v869 = vpop.permute.xlu0 %868
        %870 = vrot.lane.b32.xlu0 %v417, 96
        %v871 = vpop.permute.xlu0 %870
        %872 = vrot.lane.b32.xlu0 %v422, 96
        %v873 = vpop.permute.xlu0 %872
        %v883 = vsel %vm295, %v775, 0
        %v886 = vsel %vm295, %v776, 0
        %v889 = vsel %vm295, %v777, 0
        %v892 = vsel %vm295, %v778, 0
        %v895 = vsel %vm295, %v779, 0
        %v898 = vsel %vm295, %v780, 0
        %v901 = vsel %vm295, %v781, 0
        %v904 = vsel %vm295, %v782, 0
        %906 = vmatprep.subr.mxu0 0.0
        %907 = vmatpush1.msra.mxu0 0.0
        %908 = vmatprep.subr.mxu0 0.0
        %909 = vmatpush1.msra.mxu0 0.0
        %910 = vmatprep.subr.mxu0 0.0
        %911 = vmatpush1.msra.mxu0 0.0
        %912 = vmatprep.subr.mxu0 0.0
        %913 = vmatpush1.msra.mxu0 0.0
        %914 = vmatprep.subr.mxu0 0.0
        %915 = vmatpush1.msra.mxu0 0.0
        %916 = vmatprep.subr.mxu0 0.0
        %917 = vmatpush1.msra.mxu0 0.0
        %918 = vmatprep.subr.mxu0 0.0
        %919 = vmatpush1.msra.mxu0 0.0
        %920 = vmatprep.subr.mxu0 0.0
        %921 = vmatpush1.msra.mxu0 0.0
        %922 = vmatprep.subr.mxu0 0.0
        %923 = vmatpush1.msra.mxu0 %v873
        %924 = vmatprep.subr.mxu0 0.0
        %925 = vmatpush1.msra.mxu0 %v871
        %926 = vmatprep.subr.mxu0 0.0
        %927 = vmatpush1.msra.mxu0 %v869
        %928 = vmatprep.subr.mxu0 0.0
        %929 = vmatpush1.msra.mxu0 %v867
        %930 = vmatprep.subr.mxu0 0.0
        %931 = vmatpush1.msra.mxu0 %v865
        %932 = vmatprep.subr.mxu0 0.0
        %933 = vmatpush1.msra.mxu0 %v863
        %934 = vmatprep.subr.mxu0 0.0
        %935 = vmatpush1.msra.mxu0 %v861
        %936 = vmatprep.subr.mxu0 0.0
        %937 = vmatpush1.msra.mxu0 %v859
        %938 = vmatprep.subr.mxu0 0.0
        %939 = vmatpush2.msra.mxu0 0.0
        %940 = vmatprep.subr.mxu0 0.0
        %941 = vmatpush2.msra.mxu0 0.0
        %942 = vmatprep.subr.mxu0 0.0
        %943 = vmatpush2.msra.mxu0 0.0
        %944 = vmatprep.subr.mxu0 0.0
        %945 = vmatpush2.msra.mxu0 0.0
        %946 = vmatprep.subr.mxu0 0.0
        %947 = vmatpush2.msra.mxu0 0.0
        %948 = vmatprep.subr.mxu0 0.0
        %949 = vmatpush2.msra.mxu0 0.0
        %950 = vmatprep.subr.mxu0 0.0
        %951 = vmatpush2.msra.mxu0 0.0
        %952 = vmatprep.subr.mxu0 0.0
        %953 = vmatpush2.msra.mxu0 0.0
        %954 = vmatprep.subr.mxu0 0.0
        %955 = vmatpush2.msra.mxu0 0.0
        %956 = vmatprep.subr.mxu0 0.0
        %957 = vmatpush2.msra.mxu0 0.0
        %958 = vmatprep.subr.mxu0 0.0
        %959 = vmatpush2.msra.mxu0 0.0
        %960 = vmatprep.subr.mxu0 0.0
        %961 = vmatpush2.msra.mxu0 0.0
        %962 = vmatprep.subr.mxu0 0.0
        %963 = vmatpush2.msra.mxu0 0.0
        %964 = vmatprep.subr.mxu0 0.0
        %965 = vmatpush2.msra.mxu0 0.0
        %966 = vmatprep.subr.mxu0 0.0
        %967 = vmatpush2.msra.mxu0 0.0
        %968 = vmatprep.subr.mxu0 0.0
        %969 = vmatpush2.msra.mxu0 0.0
        %970 = vmatprep.mubr.f32.mxu0 0.0
        %971 = vmatmul.mubr.f32.gmra.mxu0 %v883
        %v972 = vpop.f32.mrf.mxu0
        %v973 = vadd.f32 0.0, %v972
        %v974 = vpop.f32.mrf.mxu0
        %975 = vmatprep.mubr.f32.mxu0 0.0
        %976 = vmatmul.mubr.f32.gmra.mxu0 %v886
        %v977 = vpop.f32.mrf.mxu0
        %v978 = vadd.f32 0.0, %v977
        %v979 = vpop.f32.mrf.mxu0
        %980 = vmatprep.mubr.f32.mxu0 0.0
        %981 = vmatmul.mubr.f32.gmra.mxu0 %v889
        %v982 = vpop.f32.mrf.mxu0
        %v983 = vadd.f32 0.0, %v982
        %v984 = vpop.f32.mrf.mxu0
        %985 = vmatprep.mubr.f32.mxu0 0.0
        %986 = vmatmul.mubr.f32.gmra.mxu0 %v892
        %v987 = vpop.f32.mrf.mxu0
        %v988 = vadd.f32 0.0, %v987
        %v989 = vpop.f32.mrf.mxu0
        %990 = vmatprep.mubr.f32.mxu0 0.0
        %991 = vmatmul.mubr.f32.gmra.mxu0 %v895
        %v992 = vpop.f32.mrf.mxu0
        %v993 = vadd.f32 0.0, %v992
        %v994 = vpop.f32.mrf.mxu0
        %995 = vmatprep.mubr.f32.mxu0 0.0
        %996 = vmatmul.mubr.f32.gmra.mxu0 %v898
        %v997 = vpop.f32.mrf.mxu0
        %v998 = vadd.f32 0.0, %v997
        %v999 = vpop.f32.mrf.mxu0
        %1000 = vmatprep.mubr.f32.mxu0 0.0
        %1001 = vmatmul.mubr.f32.gmra.mxu0 %v901
        %v1002 = vpop.f32.mrf.mxu0
        %v1003 = vadd.f32 0.0, %v1002
        %v1004 = vpop.f32.mrf.mxu0
        %1005 = vmatprep.mubr.f32.mxu0 0.0
        %1006 = vmatmul.mubr.f32.gmra.mxu0 %v904
        %v1007 = vpop.f32.mrf.mxu0
        %v1008 = vadd.f32 0.0, %v1007
        %v1009 = vpop.f32.mrf.mxu0
        %1010 = vdwg.mxu0
        %1011 = vrot.lane.b32.xlu0 %v387, 32
        %v1012 = vpop.permute.xlu0 %1011
        %1013 = vrot.lane.b32.xlu0 %v392, 32
        %v1014 = vpop.permute.xlu0 %1013
        %1015 = vrot.lane.b32.xlu0 %v397, 32
        %v1016 = vpop.permute.xlu0 %1015
        %1017 = vrot.lane.b32.xlu0 %v402, 32
        %v1018 = vpop.permute.xlu0 %1017
        %1019 = vrot.lane.b32.xlu0 %v407, 32
        %v1020 = vpop.permute.xlu0 %1019
        %1021 = vrot.lane.b32.xlu0 %v412, 32
        %v1022 = vpop.permute.xlu0 %1021
        %1023 = vrot.lane.b32.xlu0 %v417, 32
        %v1024 = vpop.permute.xlu0 %1023
        %1025 = vrot.lane.b32.xlu0 %v422, 32
        %v1026 = vpop.permute.xlu0 %1025
        %v1036 = vsel %vm295, %v850, 0
        %v1039 = vsel %vm295, %v851, 0
        %v1042 = vsel %vm295, %v852, 0
        %v1045 = vsel %vm295, %v853, 0
        %v1048 = vsel %vm295, %v854, 0
        %v1051 = vsel %vm295, %v855, 0
        %v1054 = vsel %vm295, %v856, 0
        %v1057 = vsel %vm295, %v857, 0
        %1059 = vmatprep.subr.mxu0 0.0
        %1060 = vmatpush1.msra.mxu0 0.0
        %1061 = vmatprep.subr.mxu0 0.0
        %1062 = vmatpush1.msra.mxu0 0.0
        %1063 = vmatprep.subr.mxu0 0.0
        %1064 = vmatpush1.msra.mxu0 0.0
        %1065 = vmatprep.subr.mxu0 0.0
        %1066 = vmatpush1.msra.mxu0 0.0
        %1067 = vmatprep.subr.mxu0 0.0
        %1068 = vmatpush1.msra.mxu0 0.0
        %1069 = vmatprep.subr.mxu0 0.0
        %1070 = vmatpush1.msra.mxu0 0.0
        %1071 = vmatprep.subr.mxu0 0.0
        %1072 = vmatpush1.msra.mxu0 0.0
        %1073 = vmatprep.subr.mxu0 0.0
        %1074 = vmatpush1.msra.mxu0 0.0
        %1075 = vmatprep.subr.mxu0 0.0
        %1076 = vmatpush1.msra.mxu0 %v1026
        %1077 = vmatprep.subr.mxu0 0.0
        %1078 = vmatpush1.msra.mxu0 %v1024
        %1079 = vmatprep.subr.mxu0 0.0
        %1080 = vmatpush1.msra.mxu0 %v1022
        %1081 = vmatprep.subr.mxu0 0.0
        %1082 = vmatpush1.msra.mxu0 %v1020
        %1083 = vmatprep.subr.mxu0 0.0
        %1084 = vmatpush1.msra.mxu0 %v1018
        %1085 = vmatprep.subr.mxu0 0.0
        %1086 = vmatpush1.msra.mxu0 %v1016
        %1087 = vmatprep.subr.mxu0 0.0
        %1088 = vmatpush1.msra.mxu0 %v1014
        %1089 = vmatprep.subr.mxu0 0.0
        %1090 = vmatpush1.msra.mxu0 %v1012
        %1091 = vmatprep.subr.mxu0 0.0
        %1092 = vmatpush2.msra.mxu0 0.0
        %1093 = vmatprep.subr.mxu0 0.0
        %1094 = vmatpush2.msra.mxu0 0.0
        %1095 = vmatprep.subr.mxu0 0.0
        %1096 = vmatpush2.msra.mxu0 0.0
        %1097 = vmatprep.subr.mxu0 0.0
        %1098 = vmatpush2.msra.mxu0 0.0
        %1099 = vmatprep.subr.mxu0 0.0
        %1100 = vmatpush2.msra.mxu0 0.0
        %1101 = vmatprep.subr.mxu0 0.0
        %1102 = vmatpush2.msra.mxu0 0.0
        %1103 = vmatprep.subr.mxu0 0.0
        %1104 = vmatpush2.msra.mxu0 0.0
        %1105 = vmatprep.subr.mxu0 0.0
        %1106 = vmatpush2.msra.mxu0 0.0
        %1107 = vmatprep.subr.mxu0 0.0
        %1108 = vmatpush2.msra.mxu0 0.0
        %1109 = vmatprep.subr.mxu0 0.0
        %1110 = vmatpush2.msra.mxu0 0.0
        %1111 = vmatprep.subr.mxu0 0.0
        %1112 = vmatpush2.msra.mxu0 0.0
        %1113 = vmatprep.subr.mxu0 0.0
        %1114 = vmatpush2.msra.mxu0 0.0
        %1115 = vmatprep.subr.mxu0 0.0
        %1116 = vmatpush2.msra.mxu0 0.0
        %1117 = vmatprep.subr.mxu0 0.0
        %1118 = vmatpush2.msra.mxu0 0.0
        %1119 = vmatprep.subr.mxu0 0.0
        %1120 = vmatpush2.msra.mxu0 0.0
        %1121 = vmatprep.subr.mxu0 0.0
        %1122 = vmatpush2.msra.mxu0 0.0
        %1123 = vmatprep.mubr.f32.mxu0 0.0
        %1124 = vmatmul.mubr.f32.gmra.mxu0 %v1036
        %v1125 = vpop.f32.mrf.mxu0
        %v1126 = vadd.f32 0.0, %v1125
        %v1127 = vpop.f32.mrf.mxu0
        %1128 = vmatprep.mubr.f32.mxu0 0.0
        %1129 = vmatmul.mubr.f32.gmra.mxu0 %v1039
        %v1130 = vpop.f32.mrf.mxu0
        %v1131 = vadd.f32 0.0, %v1130
        %v1132 = vpop.f32.mrf.mxu0
        %1133 = vmatprep.mubr.f32.mxu0 0.0
        %1134 = vmatmul.mubr.f32.gmra.mxu0 %v1042
        %v1135 = vpop.f32.mrf.mxu0
        %v1136 = vadd.f32 0.0, %v1135
        %v1137 = vpop.f32.mrf.mxu0
        %1138 = vmatprep.mubr.f32.mxu0 0.0
        %1139 = vmatmul.mubr.f32.gmra.mxu0 %v1045
        %v1140 = vpop.f32.mrf.mxu0
        %v1141 = vadd.f32 0.0, %v1140
        %v1142 = vpop.f32.mrf.mxu0
        %1143 = vmatprep.mubr.f32.mxu0 0.0
        %1144 = vmatmul.mubr.f32.gmra.mxu0 %v1048
        %v1145 = vpop.f32.mrf.mxu0
        %v1146 = vadd.f32 0.0, %v1145
        %v1147 = vpop.f32.mrf.mxu0
        %1148 = vmatprep.mubr.f32.mxu0 0.0
        %1149 = vmatmul.mubr.f32.gmra.mxu0 %v1051
        %v1150 = vpop.f32.mrf.mxu0
        %v1151 = vadd.f32 0.0, %v1150
        %v1152 = vpop.f32.mrf.mxu0
        %1153 = vmatprep.mubr.f32.mxu0 0.0
        %1154 = vmatmul.mubr.f32.gmra.mxu0 %v1054
        %v1155 = vpop.f32.mrf.mxu0
        %v1156 = vadd.f32 0.0, %v1155
        %v1157 = vpop.f32.mrf.mxu0
        %1158 = vmatprep.mubr.f32.mxu0 0.0
        %1159 = vmatmul.mubr.f32.gmra.mxu0 %v1057
        %v1160 = vpop.f32.mrf.mxu0
        %v1161 = vadd.f32 0.0, %v1160
        %v1162 = vpop.f32.mrf.mxu0
        %1163 = vdwg.mxu0
        %1164 = vrot.lane.b32.xlu0 %v387, 124
        %v1165 = vpop.permute.xlu0 %1164
        %1166 = vrot.lane.b32.xlu0 %v392, 124
        %v1167 = vpop.permute.xlu0 %1166
        %1168 = vrot.lane.b32.xlu0 %v397, 124
        %v1169 = vpop.permute.xlu0 %1168
        %1170 = vrot.lane.b32.xlu0 %v402, 124
        %v1171 = vpop.permute.xlu0 %1170
        %1172 = vrot.lane.b32.xlu0 %v407, 124
        %v1173 = vpop.permute.xlu0 %1172
        %1174 = vrot.lane.b32.xlu0 %v412, 124
        %v1175 = vpop.permute.xlu0 %1174
        %1176 = vrot.lane.b32.xlu0 %v417, 124
        %v1177 = vpop.permute.xlu0 %1176
        %1178 = vrot.lane.b32.xlu0 %v422, 124
        %v1179 = vpop.permute.xlu0 %1178
        %1180 = vrot.lane.b32.xlu0 %v387, 60
        %v1181 = vpop.permute.xlu0 %1180
        %1182 = vrot.lane.b32.xlu0 %v392, 60
        %v1183 = vpop.permute.xlu0 %1182
        %1184 = vrot.lane.b32.xlu0 %v397, 60
        %v1185 = vpop.permute.xlu0 %1184
        %1186 = vrot.lane.b32.xlu0 %v402, 60
        %v1187 = vpop.permute.xlu0 %1186
        %1188 = vrot.lane.b32.xlu0 %v407, 60
        %v1189 = vpop.permute.xlu0 %1188
        %1190 = vrot.lane.b32.xlu0 %v412, 60
        %v1191 = vpop.permute.xlu0 %1190
        %1192 = vrot.lane.b32.xlu0 %v417, 60
        %v1193 = vpop.permute.xlu0 %1192
        %1194 = vrot.lane.b32.xlu0 %v422, 60
        %v1195 = vpop.permute.xlu0 %1194
        %v1196 = vsel %vm449, %v1165, 0
        %v1198 = vsel %vm449, %v1167, 0
        %v1200 = vsel %vm449, %v1169, 0
        %v1202 = vsel %vm449, %v1171, 0
        %v1204 = vsel %vm449, %v1173, 0
        %v1206 = vsel %vm449, %v1175, 0
        %v1208 = vsel %vm449, %v1177, 0
        %v1210 = vsel %vm449, %v1179, 0
        %v1212 = vsel %vm449, %v1181, 0
        %v1214 = vsel %vm449, %v1183, 0
        %v1216 = vsel %vm449, %v1185, 0
        %v1218 = vsel %vm449, %v1187, 0
        %v1220 = vsel %vm449, %v1189, 0
        %v1222 = vsel %vm449, %v1191, 0
        %v1224 = vsel %vm449, %v1193, 0
        %v1226 = vsel %vm449, %v1195, 0
        %1228 = vmatprep.subr.mxu0 0.0
        %1229 = vmatpush1.xpose.msra.mxu0 0.0
        %1230 = vmatprep.subr.mxu0 0.0
        %1231 = vmatpush1.xpose.msra.mxu0 0.0
        %1232 = vmatprep.subr.mxu0 0.0
        %1233 = vmatpush1.xpose.msra.mxu0 0.0
        %1234 = vmatprep.subr.mxu0 0.0
        %1235 = vmatpush1.xpose.msra.mxu0 0.0
        %1236 = vmatprep.subr.mxu0 0.0
        %1237 = vmatpush1.xpose.msra.mxu0 0.0
        %1238 = vmatprep.subr.mxu0 0.0
        %1239 = vmatpush1.xpose.msra.mxu0 0.0
        %1240 = vmatprep.subr.mxu0 0.0
        %1241 = vmatpush1.xpose.msra.mxu0 0.0
        %1242 = vmatprep.subr.mxu0 0.0
        %1243 = vmatpush1.xpose.msra.mxu0 0.0
        %1244 = vmatprep.subr.mxu0 0.0
        %1245 = vmatpush1.xpose.msra.mxu0 %v1226
        %1246 = vmatprep.subr.mxu0 0.0
        %1247 = vmatpush1.xpose.msra.mxu0 %v1224
        %1248 = vmatprep.subr.mxu0 0.0
        %1249 = vmatpush1.xpose.msra.mxu0 %v1222
        %1250 = vmatprep.subr.mxu0 0.0
        %1251 = vmatpush1.xpose.msra.mxu0 %v1220
        %1252 = vmatprep.subr.mxu0 0.0
        %1253 = vmatpush1.xpose.msra.mxu0 %v1218
        %1254 = vmatprep.subr.mxu0 0.0
        %1255 = vmatpush1.xpose.msra.mxu0 %v1216
        %1256 = vmatprep.subr.mxu0 0.0
        %1257 = vmatpush1.xpose.msra.mxu0 %v1214
        %1258 = vmatprep.subr.mxu0 0.0
        %1259 = vmatpush1.xpose.msra.mxu0 %v1212
        %1260 = vmatprep.subr.mxu0 0.0
        %1261 = vmatpush2.xpose.msra.mxu0 0.0
        %1262 = vmatprep.subr.mxu0 0.0
        %1263 = vmatpush2.xpose.msra.mxu0 0.0
        %1264 = vmatprep.subr.mxu0 0.0
        %1265 = vmatpush2.xpose.msra.mxu0 0.0
        %1266 = vmatprep.subr.mxu0 0.0
        %1267 = vmatpush2.xpose.msra.mxu0 0.0
        %1268 = vmatprep.subr.mxu0 0.0
        %1269 = vmatpush2.xpose.msra.mxu0 0.0
        %1270 = vmatprep.subr.mxu0 0.0
        %1271 = vmatpush2.xpose.msra.mxu0 0.0
        %1272 = vmatprep.subr.mxu0 0.0
        %1273 = vmatpush2.xpose.msra.mxu0 0.0
        %1274 = vmatprep.subr.mxu0 0.0
        %1275 = vmatpush2.xpose.msra.mxu0 0.0
        %1276 = vmatprep.subr.mxu0 0.0
        %1277 = vmatpush2.xpose.msra.mxu0 0.0
        %1278 = vmatprep.subr.mxu0 0.0
        %1279 = vmatpush2.xpose.msra.mxu0 0.0
        %1280 = vmatprep.subr.mxu0 0.0
        %1281 = vmatpush2.xpose.msra.mxu0 0.0
        %1282 = vmatprep.subr.mxu0 0.0
        %1283 = vmatpush2.xpose.msra.mxu0 0.0
        %1284 = vmatprep.subr.mxu0 0.0
        %1285 = vmatpush2.xpose.msra.mxu0 0.0
        %1286 = vmatprep.subr.mxu0 0.0
        %1287 = vmatpush2.xpose.msra.mxu0 0.0
        %1288 = vmatprep.subr.mxu0 0.0
        %1289 = vmatpush2.xpose.msra.mxu0 0.0
        %1290 = vmatprep.subr.mxu0 0.0
        %1291 = vmatpush2.xpose.msra.mxu0 0.0
        %1292 = vmatprep.mubr.f32.mxu0 0.0
        %1293 = vmatmul.mubr.f32.gmra.mxu0 %v1196
        %v1294 = vpop.f32.mrf.mxu0
        %v1295 = vadd.f32 0.0, %v1294
        %v1296 = vpop.f32.mrf.mxu0
        %1297 = vmatprep.mubr.f32.mxu0 0.0
        %1298 = vmatmul.mubr.f32.gmra.mxu0 %v1198
        %v1299 = vpop.f32.mrf.mxu0
        %v1300 = vadd.f32 0.0, %v1299
        %v1301 = vpop.f32.mrf.mxu0
        %1302 = vmatprep.mubr.f32.mxu0 0.0
        %1303 = vmatmul.mubr.f32.gmra.mxu0 %v1200
        %v1304 = vpop.f32.mrf.mxu0
        %v1305 = vadd.f32 0.0, %v1304
        %v1306 = vpop.f32.mrf.mxu0
        %1307 = vmatprep.mubr.f32.mxu0 0.0
        %1308 = vmatmul.mubr.f32.gmra.mxu0 %v1202
        %v1309 = vpop.f32.mrf.mxu0
        %v1310 = vadd.f32 0.0, %v1309
        %v1311 = vpop.f32.mrf.mxu0
        %1312 = vmatprep.mubr.f32.mxu0 0.0
        %1313 = vmatmul.mubr.f32.gmra.mxu0 %v1204
        %v1314 = vpop.f32.mrf.mxu0
        %v1315 = vadd.f32 0.0, %v1314
        %v1316 = vpop.f32.mrf.mxu0
        %1317 = vmatprep.mubr.f32.mxu0 0.0
        %1318 = vmatmul.mubr.f32.gmra.mxu0 %v1206
        %v1319 = vpop.f32.mrf.mxu0
        %v1320 = vadd.f32 0.0, %v1319
        %v1321 = vpop.f32.mrf.mxu0
        %1322 = vmatprep.mubr.f32.mxu0 0.0
        %1323 = vmatmul.mubr.f32.gmra.mxu0 %v1208
        %v1324 = vpop.f32.mrf.mxu0
        %v1325 = vadd.f32 0.0, %v1324
        %v1326 = vpop.f32.mrf.mxu0
        %1327 = vmatprep.mubr.f32.mxu0 0.0
        %1328 = vmatmul.mubr.f32.gmra.mxu0 %v1210
        %v1329 = vpop.f32.mrf.mxu0
        %v1330 = vadd.f32 0.0, %v1329
        %v1331 = vpop.f32.mrf.mxu0
        %1332 = vdwg.mxu0
        %v1333 = vmul.f32 %v1295, 0.5
        %v1334 = vmul.f32 %v1300, 0.5
        %v1335 = vmul.f32 %v1305, 0.5
        %v1336 = vmul.f32 %v1310, 0.5
        %v1337 = vmul.f32 %v1315, 0.5
        %v1338 = vmul.f32 %v1320, 0.5
        %v1339 = vmul.f32 %v1325, 0.5
        %v1340 = vmul.f32 %v1330, 0.5
        %1341 = vmatprep.subr.mxu0 0.0
        %1342 = vmatpush1.xpose.msra.mxu0 0.0
        %1343 = vmatprep.subr.mxu0 0.0
        %1344 = vmatpush1.xpose.msra.mxu0 0.0
        %1345 = vmatprep.subr.mxu0 0.0
        %1346 = vmatpush1.xpose.msra.mxu0 0.0
        %1347 = vmatprep.subr.mxu0 0.0
        %1348 = vmatpush1.xpose.msra.mxu0 0.0
        %1349 = vmatprep.subr.mxu0 0.0
        %1350 = vmatpush1.xpose.msra.mxu0 0.0
        %1351 = vmatprep.subr.mxu0 0.0
        %1352 = vmatpush1.xpose.msra.mxu0 0.0
        %1353 = vmatprep.subr.mxu0 0.0
        %1354 = vmatpush1.xpose.msra.mxu0 0.0
        %1355 = vmatprep.subr.mxu0 0.0
        %1356 = vmatpush1.xpose.msra.mxu0 0.0
        %1357 = vmatprep.subr.mxu0 0.0
        %1358 = vmatpush1.xpose.msra.mxu0 %v1210
        %1359 = vmatprep.subr.mxu0 0.0
        %1360 = vmatpush1.xpose.msra.mxu0 %v1208
        %1361 = vmatprep.subr.mxu0 0.0
        %1362 = vmatpush1.xpose.msra.mxu0 %v1206
        %1363 = vmatprep.subr.mxu0 0.0
        %1364 = vmatpush1.xpose.msra.mxu0 %v1204
        %1365 = vmatprep.subr.mxu0 0.0
        %1366 = vmatpush1.xpose.msra.mxu0 %v1202
        %1367 = vmatprep.subr.mxu0 0.0
        %1368 = vmatpush1.xpose.msra.mxu0 %v1200
        %1369 = vmatprep.subr.mxu0 0.0
        %1370 = vmatpush1.xpose.msra.mxu0 %v1198
        %1371 = vmatprep.subr.mxu0 0.0
        %1372 = vmatpush1.xpose.msra.mxu0 %v1196
        %1373 = vmatprep.subr.mxu0 0.0
        %1374 = vmatpush2.xpose.msra.mxu0 0.0
        %1375 = vmatprep.subr.mxu0 0.0
        %1376 = vmatpush2.xpose.msra.mxu0 0.0
        %1377 = vmatprep.subr.mxu0 0.0
        %1378 = vmatpush2.xpose.msra.mxu0 0.0
        %1379 = vmatprep.subr.mxu0 0.0
        %1380 = vmatpush2.xpose.msra.mxu0 0.0
        %1381 = vmatprep.subr.mxu0 0.0
        %1382 = vmatpush2.xpose.msra.mxu0 0.0
        %1383 = vmatprep.subr.mxu0 0.0
        %1384 = vmatpush2.xpose.msra.mxu0 0.0
        %1385 = vmatprep.subr.mxu0 0.0
        %1386 = vmatpush2.xpose.msra.mxu0 0.0
        %1387 = vmatprep.subr.mxu0 0.0
        %1388 = vmatpush2.xpose.msra.mxu0 0.0
        %1389 = vmatprep.subr.mxu0 0.0
        %1390 = vmatpush2.xpose.msra.mxu0 0.0
        %1391 = vmatprep.subr.mxu0 0.0
        %1392 = vmatpush2.xpose.msra.mxu0 0.0
        %1393 = vmatprep.subr.mxu0 0.0
        %1394 = vmatpush2.xpose.msra.mxu0 0.0
        %1395 = vmatprep.subr.mxu0 0.0
        %1396 = vmatpush2.xpose.msra.mxu0 0.0
        %1397 = vmatprep.subr.mxu0 0.0
        %1398 = vmatpush2.xpose.msra.mxu0 0.0
        %1399 = vmatprep.subr.mxu0 0.0
        %1400 = vmatpush2.xpose.msra.mxu0 0.0
        %1401 = vmatprep.subr.mxu0 0.0
        %1402 = vmatpush2.xpose.msra.mxu0 0.0
        %1403 = vmatprep.subr.mxu0 0.0
        %1404 = vmatpush2.xpose.msra.mxu0 0.0
        %1405 = vmatprep.mubr.f32.mxu0 0.0
        %1406 = vmatmul.mubr.f32.gmra.mxu0 %v1212
        %v1407 = vpop.f32.mrf.mxu0
        %v1408 = vadd.f32 0.0, %v1407
        %v1409 = vpop.f32.mrf.mxu0
        %1410 = vmatprep.mubr.f32.mxu0 0.0
        %1411 = vmatmul.mubr.f32.gmra.mxu0 %v1214
        %v1412 = vpop.f32.mrf.mxu0
        %v1413 = vadd.f32 0.0, %v1412
        %v1414 = vpop.f32.mrf.mxu0
        %1415 = vmatprep.mubr.f32.mxu0 0.0
        %1416 = vmatmul.mubr.f32.gmra.mxu0 %v1216
        %v1417 = vpop.f32.mrf.mxu0
        %v1418 = vadd.f32 0.0, %v1417
        %v1419 = vpop.f32.mrf.mxu0
        %1420 = vmatprep.mubr.f32.mxu0 0.0
        %1421 = vmatmul.mubr.f32.gmra.mxu0 %v1218
        %v1422 = vpop.f32.mrf.mxu0
        %v1423 = vadd.f32 0.0, %v1422
        %v1424 = vpop.f32.mrf.mxu0
        %1425 = vmatprep.mubr.f32.mxu0 0.0
        %1426 = vmatmul.mubr.f32.gmra.mxu0 %v1220
        %v1427 = vpop.f32.mrf.mxu0
        %v1428 = vadd.f32 0.0, %v1427
        %v1429 = vpop.f32.mrf.mxu0
        %1430 = vmatprep.mubr.f32.mxu0 0.0
        %1431 = vmatmul.mubr.f32.gmra.mxu0 %v1222
        %v1432 = vpop.f32.mrf.mxu0
        %v1433 = vadd.f32 0.0, %v1432
        %v1434 = vpop.f32.mrf.mxu0
        %1435 = vmatprep.mubr.f32.mxu0 0.0
        %1436 = vmatmul.mubr.f32.gmra.mxu0 %v1224
        %v1437 = vpop.f32.mrf.mxu0
        %v1438 = vadd.f32 0.0, %v1437
        %v1439 = vpop.f32.mrf.mxu0
        %1440 = vmatprep.mubr.f32.mxu0 0.0
        %1441 = vmatmul.mubr.f32.gmra.mxu0 %v1226
        %v1442 = vpop.f32.mrf.mxu0
        %v1443 = vadd.f32 0.0, %v1442
        %v1444 = vpop.f32.mrf.mxu0
        %1445 = vdwg.mxu0
        %v1446 = vmul.f32 %v1408, 0.5
        %v1447 = vmul.f32 %v1413, 0.5
        %v1448 = vmul.f32 %v1418, 0.5
        %v1449 = vmul.f32 %v1423, 0.5
        %v1450 = vmul.f32 %v1428, 0.5
        %v1451 = vmul.f32 %v1433, 0.5
        %v1452 = vmul.f32 %v1438, 0.5
        %v1453 = vmul.f32 %v1443, 0.5
        %v1454 = vsel %vm295, %v1333, -inf
        %v1455 = vsel %vm295, %v1334, -inf
        %v1456 = vsel %vm295, %v1335, -inf
        %v1457 = vsel %vm295, %v1336, -inf
        %v1458 = vsel %vm295, %v1337, -inf
        %v1459 = vmax.f32 %v1454, %v1458
        %v1460 = vsel %vm295, %v1338, -inf
        %v1461 = vmax.f32 %v1455, %v1460
        %v1462 = vsel %vm295, %v1339, -inf
        %v1463 = vmax.f32 %v1456, %v1462
        %v1464 = vsel %vm295, %v1340, -inf
        %v1465 = vmax.f32 %v1457, %v1464
        %v1466 = vmax.f32 %v1459, %v1461
        %v1467 = vmax.f32 %v1463, %v1465
        %v1468 = vmax.f32 %v1466, %v1467
        %v1469 = vrot.slane %v1468, 4
        %v1470 = vmax.f32 %v1468, %v1469
        %v1471 = vrot.slane %v1470, 2
        %v1472 = vmax.f32 %v1470, %v1471
        %v1473 = vrot.slane %v1472, 1
        %v1474 = vmax.f32 %v1472, %v1473
        %v1475 = vsub.f32 %v1333, %v1474
        %v1476 = vsub.f32 %v1334, %v1474
        %v1477 = vsub.f32 %v1335, %v1474
        %v1478 = vsub.f32 %v1336, %v1474
        %v1479 = vsub.f32 %v1337, %v1474
        %v1480 = vsub.f32 %v1338, %v1474
        %v1481 = vsub.f32 %v1339, %v1474
        %v1482 = vsub.f32 %v1340, %v1474
        %v1483 = vmul.f32 %v1475, 1.442695
        %v1484 = vpow.pop %v1483
        %v1485 = vmul.f32 %v1476, 1.442695
        %v1486 = vpow.pop %v1485
        %v1487 = vmul.f32 %v1477, 1.442695
        %v1488 = vpow.pop %v1487
        %v1489 = vmul.f32 %v1478, 1.442695
        %v1490 = vpow.pop %v1489
        %v1491 = vmul.f32 %v1479, 1.442695
        %v1492 = vpow.pop %v1491
        %v1493 = vmul.f32 %v1480, 1.442695
        %v1494 = vpow.pop %v1493
        %v1495 = vmul.f32 %v1481, 1.442695
        %v1496 = vpow.pop %v1495
        %v1497 = vmul.f32 %v1482, 1.442695
        %v1498 = vpow.pop %v1497
        %v1499 = vsel %vm295, %v1484, 0.0
        %v1500 = vsel %vm295, %v1486, 0.0
        %v1501 = vadd.f32 %v1499, %v1500
        %v1502 = vsel %vm295, %v1488, 0.0
        %v1503 = vadd.f32 %v1501, %v1502
        %v1504 = vsel %vm295, %v1490, 0.0
        %v1505 = vadd.f32 %v1503, %v1504
        %v1506 = vsel %vm295, %v1492, 0.0
        %v1507 = vadd.f32 %v1505, %v1506
        %v1508 = vsel %vm295, %v1494, 0.0
        %v1509 = vadd.f32 %v1507, %v1508
        %v1510 = vsel %vm295, %v1496, 0.0
        %v1511 = vadd.f32 %v1509, %v1510
        %v1512 = vsel %vm295, %v1498, 0.0
        %v1513 = vadd.f32 %v1511, %v1512
        %v1514 = vrot.slane %v1513, 4
        %v1515 = vadd.f32 %v1513, %v1514
        %v1516 = vrot.slane %v1515, 2
        %v1517 = vadd.f32 %v1515, %v1516
        %v1518 = vrot.slane %v1517, 1
        %v1519 = vadd.f32 %v1517, %v1518
        %v1520 = vrcp.pop %v1519
        %v1521 = vmul.f32 %v1484, %v1520
        %v1522 = vmul.f32 %v1486, %v1520
        %v1523 = vmul.f32 %v1488, %v1520
        %v1524 = vmul.f32 %v1490, %v1520
        %v1525 = vmul.f32 %v1492, %v1520
        %v1526 = vmul.f32 %v1494, %v1520
        %v1527 = vmul.f32 %v1496, %v1520
        %v1528 = vmul.f32 %v1498, %v1520
        %v1529 = vsel %vm295, %v1446, -inf
        %v1530 = vsel %vm295, %v1447, -inf
        %v1531 = vsel %vm295, %v1448, -inf
        %v1532 = vsel %vm295, %v1449, -inf
        %v1533 = vsel %vm295, %v1450, -inf
        %v1534 = vmax.f32 %v1529, %v1533
        %v1535 = vsel %vm295, %v1451, -inf
        %v1536 = vmax.f32 %v1530, %v1535
        %v1537 = vsel %vm295, %v1452, -inf
        %v1538 = vmax.f32 %v1531, %v1537
        %v1539 = vsel %vm295, %v1453, -inf
        %v1540 = vmax.f32 %v1532, %v1539
        %v1541 = vmax.f32 %v1534, %v1536
        %v1542 = vmax.f32 %v1538, %v1540
        %v1543 = vmax.f32 %v1541, %v1542
        %v1544 = vrot.slane %v1543, 4
        %v1545 = vmax.f32 %v1543, %v1544
        %v1546 = vrot.slane %v1545, 2
        %v1547 = vmax.f32 %v1545, %v1546
        %v1548 = vrot.slane %v1547, 1
        %v1549 = vmax.f32 %v1547, %v1548
        %v1550 = vsub.f32 %v1446, %v1549
        %v1551 = vsub.f32 %v1447, %v1549
        %v1552 = vsub.f32 %v1448, %v1549
        %v1553 = vsub.f32 %v1449, %v1549
        %v1554 = vsub.f32 %v1450, %v1549
        %v1555 = vsub.f32 %v1451, %v1549
        %v1556 = vsub.f32 %v1452, %v1549
        %v1557 = vsub.f32 %v1453, %v1549
        %v1558 = vmul.f32 %v1550, 1.442695
        %v1559 = vpow.pop %v1558
        %v1560 = vmul.f32 %v1551, 1.442695
        %v1561 = vpow.pop %v1560
        %v1562 = vmul.f32 %v1552, 1.442695
        %v1563 = vpow.pop %v1562
        %v1564 = vmul.f32 %v1553, 1.442695
        %v1565 = vpow.pop %v1564
        %v1566 = vmul.f32 %v1554, 1.442695
        %v1567 = vpow.pop %v1566
        %v1568 = vmul.f32 %v1555, 1.442695
        %v1569 = vpow.pop %v1568
        %v1570 = vmul.f32 %v1556, 1.442695
        %v1571 = vpow.pop %v1570
        %v1572 = vmul.f32 %v1557, 1.442695
        %v1573 = vpow.pop %v1572
        %v1574 = vsel %vm295, %v1559, 0.0
        %v1575 = vsel %vm295, %v1561, 0.0
        %v1576 = vadd.f32 %v1574, %v1575
        %v1577 = vsel %vm295, %v1563, 0.0
        %v1578 = vadd.f32 %v1576, %v1577
        %v1579 = vsel %vm295, %v1565, 0.0
        %v1580 = vadd.f32 %v1578, %v1579
        %v1581 = vsel %vm295, %v1567, 0.0
        %v1582 = vadd.f32 %v1580, %v1581
        %v1583 = vsel %vm295, %v1569, 0.0
        %v1584 = vadd.f32 %v1582, %v1583
        %v1585 = vsel %vm295, %v1571, 0.0
        %v1586 = vadd.f32 %v1584, %v1585
        %v1587 = vsel %vm295, %v1573, 0.0
        %v1588 = vadd.f32 %v1586, %v1587
        %v1589 = vrot.slane %v1588, 4
        %v1590 = vadd.f32 %v1588, %v1589
        %v1591 = vrot.slane %v1590, 2
        %v1592 = vadd.f32 %v1590, %v1591
        %v1593 = vrot.slane %v1592, 1
        %v1594 = vadd.f32 %v1592, %v1593
        %v1595 = vrcp.pop %v1594
        %v1596 = vmul.f32 %v1559, %v1595
        %v1597 = vmul.f32 %v1561, %v1595
        %v1598 = vmul.f32 %v1563, %v1595
        %v1599 = vmul.f32 %v1565, %v1595
        %v1600 = vmul.f32 %v1567, %v1595
        %v1601 = vmul.f32 %v1569, %v1595
        %v1602 = vmul.f32 %v1571, %v1595
        %v1603 = vmul.f32 %v1573, %v1595
        %1604 = vrot.lane.b32.xlu0 %v387, 92
        %v1605 = vpop.permute.xlu0 %1604
        %1606 = vrot.lane.b32.xlu0 %v392, 92
        %v1607 = vpop.permute.xlu0 %1606
        %1608 = vrot.lane.b32.xlu0 %v397, 92
        %v1609 = vpop.permute.xlu0 %1608
        %1610 = vrot.lane.b32.xlu0 %v402, 92
        %v1611 = vpop.permute.xlu0 %1610
        %1612 = vrot.lane.b32.xlu0 %v407, 92
        %v1613 = vpop.permute.xlu0 %1612
        %1614 = vrot.lane.b32.xlu0 %v412, 92
        %v1615 = vpop.permute.xlu0 %1614
        %1616 = vrot.lane.b32.xlu0 %v417, 92
        %v1617 = vpop.permute.xlu0 %1616
        %1618 = vrot.lane.b32.xlu0 %v422, 92
        %v1619 = vpop.permute.xlu0 %1618
        %v1629 = vsel %vm295, %v1521, 0
        %v1632 = vsel %vm295, %v1522, 0
        %v1635 = vsel %vm295, %v1523, 0
        %v1638 = vsel %vm295, %v1524, 0
        %v1641 = vsel %vm295, %v1525, 0
        %v1644 = vsel %vm295, %v1526, 0
        %v1647 = vsel %vm295, %v1527, 0
        %v1650 = vsel %vm295, %v1528, 0
        %1652 = vmatprep.subr.mxu0 0.0
        %1653 = vmatpush1.msra.mxu0 0.0
        %1654 = vmatprep.subr.mxu0 0.0
        %1655 = vmatpush1.msra.mxu0 0.0
        %1656 = vmatprep.subr.mxu0 0.0
        %1657 = vmatpush1.msra.mxu0 0.0
        %1658 = vmatprep.subr.mxu0 0.0
        %1659 = vmatpush1.msra.mxu0 0.0
        %1660 = vmatprep.subr.mxu0 0.0
        %1661 = vmatpush1.msra.mxu0 0.0
        %1662 = vmatprep.subr.mxu0 0.0
        %1663 = vmatpush1.msra.mxu0 0.0
        %1664 = vmatprep.subr.mxu0 0.0
        %1665 = vmatpush1.msra.mxu0 0.0
        %1666 = vmatprep.subr.mxu0 0.0
        %1667 = vmatpush1.msra.mxu0 0.0
        %1668 = vmatprep.subr.mxu0 0.0
        %1669 = vmatpush1.msra.mxu0 %v1619
        %1670 = vmatprep.subr.mxu0 0.0
        %1671 = vmatpush1.msra.mxu0 %v1617
        %1672 = vmatprep.subr.mxu0 0.0
        %1673 = vmatpush1.msra.mxu0 %v1615
        %1674 = vmatprep.subr.mxu0 0.0
        %1675 = vmatpush1.msra.mxu0 %v1613
        %1676 = vmatprep.subr.mxu0 0.0
        %1677 = vmatpush1.msra.mxu0 %v1611
        %1678 = vmatprep.subr.mxu0 0.0
        %1679 = vmatpush1.msra.mxu0 %v1609
        %1680 = vmatprep.subr.mxu0 0.0
        %1681 = vmatpush1.msra.mxu0 %v1607
        %1682 = vmatprep.subr.mxu0 0.0
        %1683 = vmatpush1.msra.mxu0 %v1605
        %1684 = vmatprep.subr.mxu0 0.0
        %1685 = vmatpush2.msra.mxu0 0.0
        %1686 = vmatprep.subr.mxu0 0.0
        %1687 = vmatpush2.msra.mxu0 0.0
        %1688 = vmatprep.subr.mxu0 0.0
        %1689 = vmatpush2.msra.mxu0 0.0
        %1690 = vmatprep.subr.mxu0 0.0
        %1691 = vmatpush2.msra.mxu0 0.0
        %1692 = vmatprep.subr.mxu0 0.0
        %1693 = vmatpush2.msra.mxu0 0.0
        %1694 = vmatprep.subr.mxu0 0.0
        %1695 = vmatpush2.msra.mxu0 0.0
        %1696 = vmatprep.subr.mxu0 0.0
        %1697 = vmatpush2.msra.mxu0 0.0
        %1698 = vmatprep.subr.mxu0 0.0
        %1699 = vmatpush2.msra.mxu0 0.0
        %1700 = vmatprep.subr.mxu0 0.0
        %1701 = vmatpush2.msra.mxu0 0.0
        %1702 = vmatprep.subr.mxu0 0.0
        %1703 = vmatpush2.msra.mxu0 0.0
        %1704 = vmatprep.subr.mxu0 0.0
        %1705 = vmatpush2.msra.mxu0 0.0
        %1706 = vmatprep.subr.mxu0 0.0
        %1707 = vmatpush2.msra.mxu0 0.0
        %1708 = vmatprep.subr.mxu0 0.0
        %1709 = vmatpush2.msra.mxu0 0.0
        %1710 = vmatprep.subr.mxu0 0.0
        %1711 = vmatpush2.msra.mxu0 0.0
        %1712 = vmatprep.subr.mxu0 0.0
        %1713 = vmatpush2.msra.mxu0 0.0
        %1714 = vmatprep.subr.mxu0 0.0
        %1715 = vmatpush2.msra.mxu0 0.0
        %1716 = vmatprep.mubr.f32.mxu0 0.0
        %1717 = vmatmul.mubr.f32.gmra.mxu0 %v1629
        %v1718 = vpop.f32.mrf.mxu0
        %v1719 = vadd.f32 0.0, %v1718
        %v1720 = vpop.f32.mrf.mxu0
        %1721 = vmatprep.mubr.f32.mxu0 0.0
        %1722 = vmatmul.mubr.f32.gmra.mxu0 %v1632
        %v1723 = vpop.f32.mrf.mxu0
        %v1724 = vadd.f32 0.0, %v1723
        %v1725 = vpop.f32.mrf.mxu0
        %1726 = vmatprep.mubr.f32.mxu0 0.0
        %1727 = vmatmul.mubr.f32.gmra.mxu0 %v1635
        %v1728 = vpop.f32.mrf.mxu0
        %v1729 = vadd.f32 0.0, %v1728
        %v1730 = vpop.f32.mrf.mxu0
        %1731 = vmatprep.mubr.f32.mxu0 0.0
        %1732 = vmatmul.mubr.f32.gmra.mxu0 %v1638
        %v1733 = vpop.f32.mrf.mxu0
        %v1734 = vadd.f32 0.0, %v1733
        %v1735 = vpop.f32.mrf.mxu0
        %1736 = vmatprep.mubr.f32.mxu0 0.0
        %1737 = vmatmul.mubr.f32.gmra.mxu0 %v1641
        %v1738 = vpop.f32.mrf.mxu0
        %v1739 = vadd.f32 0.0, %v1738
        %v1740 = vpop.f32.mrf.mxu0
        %1741 = vmatprep.mubr.f32.mxu0 0.0
        %1742 = vmatmul.mubr.f32.gmra.mxu0 %v1644
        %v1743 = vpop.f32.mrf.mxu0
        %v1744 = vadd.f32 0.0, %v1743
        %v1745 = vpop.f32.mrf.mxu0
        %1746 = vmatprep.mubr.f32.mxu0 0.0
        %1747 = vmatmul.mubr.f32.gmra.mxu0 %v1647
        %v1748 = vpop.f32.mrf.mxu0
        %v1749 = vadd.f32 0.0, %v1748
        %v1750 = vpop.f32.mrf.mxu0
        %1751 = vmatprep.mubr.f32.mxu0 0.0
        %1752 = vmatmul.mubr.f32.gmra.mxu0 %v1650
        %v1753 = vpop.f32.mrf.mxu0
        %v1754 = vadd.f32 0.0, %v1753
        %v1755 = vpop.f32.mrf.mxu0
        %1756 = vdwg.mxu0
        %1757 = vrot.lane.b32.xlu0 %v387, 28
        %v1758 = vpop.permute.xlu0 %1757
        %1759 = vrot.lane.b32.xlu0 %v392, 28
        %v1760 = vpop.permute.xlu0 %1759
        %1761 = vrot.lane.b32.xlu0 %v397, 28
        %v1762 = vpop.permute.xlu0 %1761
        %1763 = vrot.lane.b32.xlu0 %v402, 28
        %v1764 = vpop.permute.xlu0 %1763
        %1765 = vrot.lane.b32.xlu0 %v407, 28
        %v1766 = vpop.permute.xlu0 %1765
        %1767 = vrot.lane.b32.xlu0 %v412, 28
        %v1768 = vpop.permute.xlu0 %1767
        %1769 = vrot.lane.b32.xlu0 %v417, 28
        %v1770 = vpop.permute.xlu0 %1769
        %1771 = vrot.lane.b32.xlu0 %v422, 28
        %v1772 = vpop.permute.xlu0 %1771
        %v1782 = vsel %vm295, %v1596, 0
        %v1785 = vsel %vm295, %v1597, 0
        %v1788 = vsel %vm295, %v1598, 0
        %v1791 = vsel %vm295, %v1599, 0
        %v1794 = vsel %vm295, %v1600, 0
        %v1797 = vsel %vm295, %v1601, 0
        %v1800 = vsel %vm295, %v1602, 0
        %v1803 = vsel %vm295, %v1603, 0
        %1805 = vmatprep.subr.mxu0 0.0
        %1806 = vmatpush1.msra.mxu0 0.0
        %1807 = vmatprep.subr.mxu0 0.0
        %1808 = vmatpush1.msra.mxu0 0.0
        %1809 = vmatprep.subr.mxu0 0.0
        %1810 = vmatpush1.msra.mxu0 0.0
        %1811 = vmatprep.subr.mxu0 0.0
        %1812 = vmatpush1.msra.mxu0 0.0
        %1813 = vmatprep.subr.mxu0 0.0
        %1814 = vmatpush1.msra.mxu0 0.0
        %1815 = vmatprep.subr.mxu0 0.0
        %1816 = vmatpush1.msra.mxu0 0.0
        %1817 = vmatprep.subr.mxu0 0.0
        %1818 = vmatpush1.msra.mxu0 0.0
        %1819 = vmatprep.subr.mxu0 0.0
        %1820 = vmatpush1.msra.mxu0 0.0
        %1821 = vmatprep.subr.mxu0 0.0
        %1822 = vmatpush1.msra.mxu0 %v1772
        %1823 = vmatprep.subr.mxu0 0.0
        %1824 = vmatpush1.msra.mxu0 %v1770
        %1825 = vmatprep.subr.mxu0 0.0
        %1826 = vmatpush1.msra.mxu0 %v1768
        %1827 = vmatprep.subr.mxu0 0.0
        %1828 = vmatpush1.msra.mxu0 %v1766
        %1829 = vmatprep.subr.mxu0 0.0
        %1830 = vmatpush1.msra.mxu0 %v1764
        %1831 = vmatprep.subr.mxu0 0.0
        %1832 = vmatpush1.msra.mxu0 %v1762
        %1833 = vmatprep.subr.mxu0 0.0
        %1834 = vmatpush1.msra.mxu0 %v1760
        %1835 = vmatprep.subr.mxu0 0.0
        %1836 = vmatpush1.msra.mxu0 %v1758
        %1837 = vmatprep.subr.mxu0 0.0
        %1838 = vmatpush2.msra.mxu0 0.0
        %1839 = vmatprep.subr.mxu0 0.0
        %1840 = vmatpush2.msra.mxu0 0.0
        %1841 = vmatprep.subr.mxu0 0.0
        %1842 = vmatpush2.msra.mxu0 0.0
        %1843 = vmatprep.subr.mxu0 0.0
        %1844 = vmatpush2.msra.mxu0 0.0
        %1845 = vmatprep.subr.mxu0 0.0
        %1846 = vmatpush2.msra.mxu0 0.0
        %1847 = vmatprep.subr.mxu0 0.0
        %1848 = vmatpush2.msra.mxu0 0.0
        %1849 = vmatprep.subr.mxu0 0.0
        %1850 = vmatpush2.msra.mxu0 0.0
        %1851 = vmatprep.subr.mxu0 0.0
        %1852 = vmatpush2.msra.mxu0 0.0
        %1853 = vmatprep.subr.mxu0 0.0
        %1854 = vmatpush2.msra.mxu0 0.0
        %1855 = vmatprep.subr.mxu0 0.0
        %1856 = vmatpush2.msra.mxu0 0.0
        %1857 = vmatprep.subr.mxu0 0.0
        %1858 = vmatpush2.msra.mxu0 0.0
        %1859 = vmatprep.subr.mxu0 0.0
        %1860 = vmatpush2.msra.mxu0 0.0
        %1861 = vmatprep.subr.mxu0 0.0
        %1862 = vmatpush2.msra.mxu0 0.0
        %1863 = vmatprep.subr.mxu0 0.0
        %1864 = vmatpush2.msra.mxu0 0.0
        %1865 = vmatprep.subr.mxu0 0.0
        %1866 = vmatpush2.msra.mxu0 0.0
        %1867 = vmatprep.subr.mxu0 0.0
        %1868 = vmatpush2.msra.mxu0 0.0
        %1869 = vmatprep.mubr.f32.mxu0 0.0
        %1870 = vmatmul.mubr.f32.gmra.mxu0 %v1782
        %v1871 = vpop.f32.mrf.mxu0
        %v1872 = vadd.f32 0.0, %v1871
        %v1873 = vpop.f32.mrf.mxu0
        %1874 = vmatprep.mubr.f32.mxu0 0.0
        %1875 = vmatmul.mubr.f32.gmra.mxu0 %v1785
        %v1876 = vpop.f32.mrf.mxu0
        %v1877 = vadd.f32 0.0, %v1876
        %v1878 = vpop.f32.mrf.mxu0
        %1879 = vmatprep.mubr.f32.mxu0 0.0
        %1880 = vmatmul.mubr.f32.gmra.mxu0 %v1788
        %v1881 = vpop.f32.mrf.mxu0
        %v1882 = vadd.f32 0.0, %v1881
        %v1883 = vpop.f32.mrf.mxu0
        %1884 = vmatprep.mubr.f32.mxu0 0.0
        %1885 = vmatmul.mubr.f32.gmra.mxu0 %v1791
        %v1886 = vpop.f32.mrf.mxu0
        %v1887 = vadd.f32 0.0, %v1886
        %v1888 = vpop.f32.mrf.mxu0
        %1889 = vmatprep.mubr.f32.mxu0 0.0
        %1890 = vmatmul.mubr.f32.gmra.mxu0 %v1794
        %v1891 = vpop.f32.mrf.mxu0
        %v1892 = vadd.f32 0.0, %v1891
        %v1893 = vpop.f32.mrf.mxu0
        %1894 = vmatprep.mubr.f32.mxu0 0.0
        %1895 = vmatmul.mubr.f32.gmra.mxu0 %v1797
        %v1896 = vpop.f32.mrf.mxu0
        %v1897 = vadd.f32 0.0, %v1896
        %v1898 = vpop.f32.mrf.mxu0
        %1899 = vmatprep.mubr.f32.mxu0 0.0
        %1900 = vmatmul.mubr.f32.gmra.mxu0 %v1800
        %v1901 = vpop.f32.mrf.mxu0
        %v1902 = vadd.f32 0.0, %v1901
        %v1903 = vpop.f32.mrf.mxu0
        %1904 = vmatprep.mubr.f32.mxu0 0.0
        %1905 = vmatmul.mubr.f32.gmra.mxu0 %v1803
        %v1906 = vpop.f32.mrf.mxu0
        %v1907 = vadd.f32 0.0, %v1906
        %v1908 = vpop.f32.mrf.mxu0
        %1909 = vdwg.mxu0
        %1910 = vrot.lane.b32.xlu0 %v387, 120
        %v1911 = vpop.permute.xlu0 %1910
        %1912 = vrot.lane.b32.xlu0 %v392, 120
        %v1913 = vpop.permute.xlu0 %1912
        %1914 = vrot.lane.b32.xlu0 %v397, 120
        %v1915 = vpop.permute.xlu0 %1914
        %1916 = vrot.lane.b32.xlu0 %v402, 120
        %v1917 = vpop.permute.xlu0 %1916
        %1918 = vrot.lane.b32.xlu0 %v407, 120
        %v1919 = vpop.permute.xlu0 %1918
        %1920 = vrot.lane.b32.xlu0 %v412, 120
        %v1921 = vpop.permute.xlu0 %1920
        %1922 = vrot.lane.b32.xlu0 %v417, 120
        %v1923 = vpop.permute.xlu0 %1922
        %1924 = vrot.lane.b32.xlu0 %v422, 120
        %v1925 = vpop.permute.xlu0 %1924
        %1926 = vrot.lane.b32.xlu0 %v387, 56
        %v1927 = vpop.permute.xlu0 %1926
        %1928 = vrot.lane.b32.xlu0 %v392, 56
        %v1929 = vpop.permute.xlu0 %1928
        %1930 = vrot.lane.b32.xlu0 %v397, 56
        %v1931 = vpop.permute.xlu0 %1930
        %1932 = vrot.lane.b32.xlu0 %v402, 56
        %v1933 = vpop.permute.xlu0 %1932
        %1934 = vrot.lane.b32.xlu0 %v407, 56
        %v1935 = vpop.permute.xlu0 %1934
        %1936 = vrot.lane.b32.xlu0 %v412, 56
        %v1937 = vpop.permute.xlu0 %1936
        %1938 = vrot.lane.b32.xlu0 %v417, 56
        %v1939 = vpop.permute.xlu0 %1938
        %1940 = vrot.lane.b32.xlu0 %v422, 56
        %v1941 = vpop.permute.xlu0 %1940
        %v1942 = vsel %vm449, %v1911, 0
        %v1944 = vsel %vm449, %v1913, 0
        %v1946 = vsel %vm449, %v1915, 0
        %v1948 = vsel %vm449, %v1917, 0
        %v1950 = vsel %vm449, %v1919, 0
        %v1952 = vsel %vm449, %v1921, 0
        %v1954 = vsel %vm449, %v1923, 0
        %v1956 = vsel %vm449, %v1925, 0
        %v1958 = vsel %vm449, %v1927, 0
        %v1960 = vsel %vm449, %v1929, 0
        %v1962 = vsel %vm449, %v1931, 0
        %v1964 = vsel %vm449, %v1933, 0
        %v1966 = vsel %vm449, %v1935, 0
        %v1968 = vsel %vm449, %v1937, 0
        %v1970 = vsel %vm449, %v1939, 0
        %v1972 = vsel %vm449, %v1941, 0
        %1974 = vmatprep.subr.mxu0 0.0
        %1975 = vmatpush1.xpose.msra.mxu0 0.0
        %1976 = vmatprep.subr.mxu0 0.0
        %1977 = vmatpush1.xpose.msra.mxu0 0.0
        %1978 = vmatprep.subr.mxu0 0.0
        %1979 = vmatpush1.xpose.msra.mxu0 0.0
        %1980 = vmatprep.subr.mxu0 0.0
        %1981 = vmatpush1.xpose.msra.mxu0 0.0
        %1982 = vmatprep.subr.mxu0 0.0
        %1983 = vmatpush1.xpose.msra.mxu0 0.0
        %1984 = vmatprep.subr.mxu0 0.0
        %1985 = vmatpush1.xpose.msra.mxu0 0.0
        %1986 = vmatprep.subr.mxu0 0.0
        %1987 = vmatpush1.xpose.msra.mxu0 0.0
        %1988 = vmatprep.subr.mxu0 0.0
        %1989 = vmatpush1.xpose.msra.mxu0 0.0
        %1990 = vmatprep.subr.mxu0 0.0
        %1991 = vmatpush1.xpose.msra.mxu0 %v1972
        %1992 = vmatprep.subr.mxu0 0.0
        %1993 = vmatpush1.xpose.msra.mxu0 %v1970
        %1994 = vmatprep.subr.mxu0 0.0
        %1995 = vmatpush1.xpose.msra.mxu0 %v1968
        %1996 = vmatprep.subr.mxu0 0.0
        %1997 = vmatpush1.xpose.msra.mxu0 %v1966
        %1998 = vmatprep.subr.mxu0 0.0
        %1999 = vmatpush1.xpose.msra.mxu0 %v1964
        %2000 = vmatprep.subr.mxu0 0.0
        %2001 = vmatpush1.xpose.msra.mxu0 %v1962
        %2002 = vmatprep.subr.mxu0 0.0
        %2003 = vmatpush1.xpose.msra.mxu0 %v1960
        %2004 = vmatprep.subr.mxu0 0.0
        %2005 = vmatpush1.xpose.msra.mxu0 %v1958
        %2006 = vmatprep.subr.mxu0 0.0
        %2007 = vmatpush2.xpose.msra.mxu0 0.0
        %2008 = vmatprep.subr.mxu0 0.0
        %2009 = vmatpush2.xpose.msra.mxu0 0.0
        %2010 = vmatprep.subr.mxu0 0.0
        %2011 = vmatpush2.xpose.msra.mxu0 0.0
        %2012 = vmatprep.subr.mxu0 0.0
        %2013 = vmatpush2.xpose.msra.mxu0 0.0
        %2014 = vmatprep.subr.mxu0 0.0
        %2015 = vmatpush2.xpose.msra.mxu0 0.0
        %2016 = vmatprep.subr.mxu0 0.0
        %2017 = vmatpush2.xpose.msra.mxu0 0.0
        %2018 = vmatprep.subr.mxu0 0.0
        %2019 = vmatpush2.xpose.msra.mxu0 0.0
        %2020 = vmatprep.subr.mxu0 0.0
        %2021 = vmatpush2.xpose.msra.mxu0 0.0
        %2022 = vmatprep.subr.mxu0 0.0
        %2023 = vmatpush2.xpose.msra.mxu0 0.0
        %2024 = vmatprep.subr.mxu0 0.0
        %2025 = vmatpush2.xpose.msra.mxu0 0.0
        %2026 = vmatprep.subr.mxu0 0.0
        %2027 = vmatpush2.xpose.msra.mxu0 0.0
        %2028 = vmatprep.subr.mxu0 0.0
        %2029 = vmatpush2.xpose.msra.mxu0 0.0
        %2030 = vmatprep.subr.mxu0 0.0
        %2031 = vmatpush2.xpose.msra.mxu0 0.0
        %2032 = vmatprep.subr.mxu0 0.0
        %2033 = vmatpush2.xpose.msra.mxu0 0.0
        %2034 = vmatprep.subr.mxu0 0.0
        %2035 = vmatpush2.xpose.msra.mxu0 0.0
        %2036 = vmatprep.subr.mxu0 0.0
        %2037 = vmatpush2.xpose.msra.mxu0 0.0
        %2038 = vmatprep.mubr.f32.mxu0 0.0
        %2039 = vmatmul.mubr.f32.gmra.mxu0 %v1942
        %v2040 = vpop.f32.mrf.mxu0
        %v2041 = vadd.f32 0.0, %v2040
        %v2042 = vpop.f32.mrf.mxu0
        %2043 = vmatprep.mubr.f32.mxu0 0.0
        %2044 = vmatmul.mubr.f32.gmra.mxu0 %v1944
        %v2045 = vpop.f32.mrf.mxu0
        %v2046 = vadd.f32 0.0, %v2045
        %v2047 = vpop.f32.mrf.mxu0
        %2048 = vmatprep.mubr.f32.mxu0 0.0
        %2049 = vmatmul.mubr.f32.gmra.mxu0 %v1946
        %v2050 = vpop.f32.mrf.mxu0
        %v2051 = vadd.f32 0.0, %v2050
        %v2052 = vpop.f32.mrf.mxu0
        %2053 = vmatprep.mubr.f32.mxu0 0.0
        %2054 = vmatmul.mubr.f32.gmra.mxu0 %v1948
        %v2055 = vpop.f32.mrf.mxu0
        %v2056 = vadd.f32 0.0, %v2055
        %v2057 = vpop.f32.mrf.mxu0
        %2058 = vmatprep.mubr.f32.mxu0 0.0
        %2059 = vmatmul.mubr.f32.gmra.mxu0 %v1950
        %v2060 = vpop.f32.mrf.mxu0
        %v2061 = vadd.f32 0.0, %v2060
        %v2062 = vpop.f32.mrf.mxu0
        %2063 = vmatprep.mubr.f32.mxu0 0.0
        %2064 = vmatmul.mubr.f32.gmra.mxu0 %v1952
        %v2065 = vpop.f32.mrf.mxu0
        %v2066 = vadd.f32 0.0, %v2065
        %v2067 = vpop.f32.mrf.mxu0
        %2068 = vmatprep.mubr.f32.mxu0 0.0
        %2069 = vmatmul.mubr.f32.gmra.mxu0 %v1954
        %v2070 = vpop.f32.mrf.mxu0
        %v2071 = vadd.f32 0.0, %v2070
        %v2072 = vpop.f32.mrf.mxu0
        %2073 = vmatprep.mubr.f32.mxu0 0.0
        %2074 = vmatmul.mubr.f32.gmra.mxu0 %v1956
        %v2075 = vpop.f32.mrf.mxu0
        %v2076 = vadd.f32 0.0, %v2075
        %v2077 = vpop.f32.mrf.mxu0
        %2078 = vdwg.mxu0
        %v2079 = vmul.f32 %v2041, 0.5
        %v2080 = vmul.f32 %v2046, 0.5
        %v2081 = vmul.f32 %v2051, 0.5
        %v2082 = vmul.f32 %v2056, 0.5
        %v2083 = vmul.f32 %v2061, 0.5
        %v2084 = vmul.f32 %v2066, 0.5
        %v2085 = vmul.f32 %v2071, 0.5
        %v2086 = vmul.f32 %v2076, 0.5
        %2087 = vmatprep.subr.mxu0 0.0
        %2088 = vmatpush1.xpose.msra.mxu0 0.0
        %2089 = vmatprep.subr.mxu0 0.0
        %2090 = vmatpush1.xpose.msra.mxu0 0.0
        %2091 = vmatprep.subr.mxu0 0.0
        %2092 = vmatpush1.xpose.msra.mxu0 0.0
        %2093 = vmatprep.subr.mxu0 0.0
        %2094 = vmatpush1.xpose.msra.mxu0 0.0
        %2095 = vmatprep.subr.mxu0 0.0
        %2096 = vmatpush1.xpose.msra.mxu0 0.0
        %2097 = vmatprep.subr.mxu0 0.0
        %2098 = vmatpush1.xpose.msra.mxu0 0.0
        %2099 = vmatprep.subr.mxu0 0.0
        %2100 = vmatpush1.xpose.msra.mxu0 0.0
        %2101 = vmatprep.subr.mxu0 0.0
        %2102 = vmatpush1.xpose.msra.mxu0 0.0
        %2103 = vmatprep.subr.mxu0 0.0
        %2104 = vmatpush1.xpose.msra.mxu0 %v1956
        %2105 = vmatprep.subr.mxu0 0.0
        %2106 = vmatpush1.xpose.msra.mxu0 %v1954
        %2107 = vmatprep.subr.mxu0 0.0
        %2108 = vmatpush1.xpose.msra.mxu0 %v1952
        %2109 = vmatprep.subr.mxu0 0.0
        %2110 = vmatpush1.xpose.msra.mxu0 %v1950
        %2111 = vmatprep.subr.mxu0 0.0
        %2112 = vmatpush1.xpose.msra.mxu0 %v1948
        %2113 = vmatprep.subr.mxu0 0.0
        %2114 = vmatpush1.xpose.msra.mxu0 %v1946
        %2115 = vmatprep.subr.mxu0 0.0
        %2116 = vmatpush1.xpose.msra.mxu0 %v1944
        %2117 = vmatprep.subr.mxu0 0.0
        %2118 = vmatpush1.xpose.msra.mxu0 %v1942
        %2119 = vmatprep.subr.mxu0 0.0
        %2120 = vmatpush2.xpose.msra.mxu0 0.0
        %2121 = vmatprep.subr.mxu0 0.0
        %2122 = vmatpush2.xpose.msra.mxu0 0.0
        %2123 = vmatprep.subr.mxu0 0.0
        %2124 = vmatpush2.xpose.msra.mxu0 0.0
        %2125 = vmatprep.subr.mxu0 0.0
        %2126 = vmatpush2.xpose.msra.mxu0 0.0
        %2127 = vmatprep.subr.mxu0 0.0
        %2128 = vmatpush2.xpose.msra.mxu0 0.0
        %2129 = vmatprep.subr.mxu0 0.0
        %2130 = vmatpush2.xpose.msra.mxu0 0.0
        %2131 = vmatprep.subr.mxu0 0.0
        %2132 = vmatpush2.xpose.msra.mxu0 0.0
        %2133 = vmatprep.subr.mxu0 0.0
        %2134 = vmatpush2.xpose.msra.mxu0 0.0
        %2135 = vmatprep.subr.mxu0 0.0
        %2136 = vmatpush2.xpose.msra.mxu0 0.0
        %2137 = vmatprep.subr.mxu0 0.0
        %2138 = vmatpush2.xpose.msra.mxu0 0.0
        %2139 = vmatprep.subr.mxu0 0.0
        %2140 = vmatpush2.xpose.msra.mxu0 0.0
        %2141 = vmatprep.subr.mxu0 0.0
        %2142 = vmatpush2.xpose.msra.mxu0 0.0
        %2143 = vmatprep.subr.mxu0 0.0
        %2144 = vmatpush2.xpose.msra.mxu0 0.0
        %2145 = vmatprep.subr.mxu0 0.0
        %2146 = vmatpush2.xpose.msra.mxu0 0.0
        %2147 = vmatprep.subr.mxu0 0.0
        %2148 = vmatpush2.xpose.msra.mxu0 0.0
        %2149 = vmatprep.subr.mxu0 0.0
        %2150 = vmatpush2.xpose.msra.mxu0 0.0
        %2151 = vmatprep.mubr.f32.mxu0 0.0
        %2152 = vmatmul.mubr.f32.gmra.mxu0 %v1958
        %v2153 = vpop.f32.mrf.mxu0
        %v2154 = vadd.f32 0.0, %v2153
        %v2155 = vpop.f32.mrf.mxu0
        %2156 = vmatprep.mubr.f32.mxu0 0.0
        %2157 = vmatmul.mubr.f32.gmra.mxu0 %v1960
        %v2158 = vpop.f32.mrf.mxu0
        %v2159 = vadd.f32 0.0, %v2158
        %v2160 = vpop.f32.mrf.mxu0
        %2161 = vmatprep.mubr.f32.mxu0 0.0
        %2162 = vmatmul.mubr.f32.gmra.mxu0 %v1962
        %v2163 = vpop.f32.mrf.mxu0
        %v2164 = vadd.f32 0.0, %v2163
        %v2165 = vpop.f32.mrf.mxu0
        %2166 = vmatprep.mubr.f32.mxu0 0.0
        %2167 = vmatmul.mubr.f32.gmra.mxu0 %v1964
        %v2168 = vpop.f32.mrf.mxu0
        %v2169 = vadd.f32 0.0, %v2168
        %v2170 = vpop.f32.mrf.mxu0
        %2171 = vmatprep.mubr.f32.mxu0 0.0
        %2172 = vmatmul.mubr.f32.gmra.mxu0 %v1966
        %v2173 = vpop.f32.mrf.mxu0
        %v2174 = vadd.f32 0.0, %v2173
        %v2175 = vpop.f32.mrf.mxu0
        %2176 = vmatprep.mubr.f32.mxu0 0.0
        %2177 = vmatmul.mubr.f32.gmra.mxu0 %v1968
        %v2178 = vpop.f32.mrf.mxu0
        %v2179 = vadd.f32 0.0, %v2178
        %v2180 = vpop.f32.mrf.mxu0
        %2181 = vmatprep.mubr.f32.mxu0 0.0
        %2182 = vmatmul.mubr.f32.gmra.mxu0 %v1970
        %v2183 = vpop.f32.mrf.mxu0
        %v2184 = vadd.f32 0.0, %v2183
        %v2185 = vpop.f32.mrf.mxu0
        %2186 = vmatprep.mubr.f32.mxu0 0.0
        %2187 = vmatmul.mubr.f32.gmra.mxu0 %v1972
        %v2188 = vpop.f32.mrf.mxu0
        %v2189 = vadd.f32 0.0, %v2188
        %v2190 = vpop.f32.mrf.mxu0
        %2191 = vdwg.mxu0
        %v2192 = vmul.f32 %v2154, 0.5
        %v2193 = vmul.f32 %v2159, 0.5
        %v2194 = vmul.f32 %v2164, 0.5
        %v2195 = vmul.f32 %v2169, 0.5
        %v2196 = vmul.f32 %v2174, 0.5
        %v2197 = vmul.f32 %v2179, 0.5
        %v2198 = vmul.f32 %v2184, 0.5
        %v2199 = vmul.f32 %v2189, 0.5
        %v2200 = vsel %vm295, %v2079, -inf
        %v2201 = vsel %vm295, %v2080, -inf
        %v2202 = vsel %vm295, %v2081, -inf
        %v2203 = vsel %vm295, %v2082, -inf
        %v2204 = vsel %vm295, %v2083, -inf
        %v2205 = vmax.f32 %v2200, %v2204
        %v2206 = vsel %vm295, %v2084, -inf
        %v2207 = vmax.f32 %v2201, %v2206
        %v2208 = vsel %vm295, %v2085, -inf
        %v2209 = vmax.f32 %v2202, %v2208
        %v2210 = vsel %vm295, %v2086, -inf
        %v2211 = vmax.f32 %v2203, %v2210
        %v2212 = vmax.f32 %v2205, %v2207
        %v2213 = vmax.f32 %v2209, %v2211
        %v2214 = vmax.f32 %v2212, %v2213
        %v2215 = vrot.slane %v2214, 4
        %v2216 = vmax.f32 %v2214, %v2215
        %v2217 = vrot.slane %v2216, 2
        %v2218 = vmax.f32 %v2216, %v2217
        %v2219 = vrot.slane %v2218, 1
        %v2220 = vmax.f32 %v2218, %v2219
        %v2221 = vsub.f32 %v2079, %v2220
        %v2222 = vsub.f32 %v2080, %v2220
        %v2223 = vsub.f32 %v2081, %v2220
        %v2224 = vsub.f32 %v2082, %v2220
        %v2225 = vsub.f32 %v2083, %v2220
        %v2226 = vsub.f32 %v2084, %v2220
        %v2227 = vsub.f32 %v2085, %v2220
        %v2228 = vsub.f32 %v2086, %v2220
        %v2229 = vmul.f32 %v2221, 1.442695
        %v2230 = vpow.pop %v2229
        %v2231 = vmul.f32 %v2222, 1.442695
        %v2232 = vpow.pop %v2231
        %v2233 = vmul.f32 %v2223, 1.442695
        %v2234 = vpow.pop %v2233
        %v2235 = vmul.f32 %v2224, 1.442695
        %v2236 = vpow.pop %v2235
        %v2237 = vmul.f32 %v2225, 1.442695
        %v2238 = vpow.pop %v2237
        %v2239 = vmul.f32 %v2226, 1.442695
        %v2240 = vpow.pop %v2239
        %v2241 = vmul.f32 %v2227, 1.442695
        %v2242 = vpow.pop %v2241
        %v2243 = vmul.f32 %v2228, 1.442695
        %v2244 = vpow.pop %v2243
        %v2245 = vsel %vm295, %v2230, 0.0
        %v2246 = vsel %vm295, %v2232, 0.0
        %v2247 = vadd.f32 %v2245, %v2246
        %v2248 = vsel %vm295, %v2234, 0.0
        %v2249 = vadd.f32 %v2247, %v2248
        %v2250 = vsel %vm295, %v2236, 0.0
        %v2251 = vadd.f32 %v2249, %v2250
        %v2252 = vsel %vm295, %v2238, 0.0
        %v2253 = vadd.f32 %v2251, %v2252
        %v2254 = vsel %vm295, %v2240, 0.0
        %v2255 = vadd.f32 %v2253, %v2254
        %v2256 = vsel %vm295, %v2242, 0.0
        %v2257 = vadd.f32 %v2255, %v2256
        %v2258 = vsel %vm295, %v2244, 0.0
        %v2259 = vadd.f32 %v2257, %v2258
        %v2260 = vrot.slane %v2259, 4
        %v2261 = vadd.f32 %v2259, %v2260
        %v2262 = vrot.slane %v2261, 2
        %v2263 = vadd.f32 %v2261, %v2262
        %v2264 = vrot.slane %v2263, 1
        %v2265 = vadd.f32 %v2263, %v2264
        %v2266 = vrcp.pop %v2265
        %v2267 = vmul.f32 %v2230, %v2266
        %v2268 = vmul.f32 %v2232, %v2266
        %v2269 = vmul.f32 %v2234, %v2266
        %v2270 = vmul.f32 %v2236, %v2266
        %v2271 = vmul.f32 %v2238, %v2266
        %v2272 = vmul.f32 %v2240, %v2266
        %v2273 = vmul.f32 %v2242, %v2266
        %v2274 = vmul.f32 %v2244, %v2266
        %v2275 = vsel %vm295, %v2192, -inf
        %v2276 = vsel %vm295, %v2193, -inf
        %v2277 = vsel %vm295, %v2194, -inf
        %v2278 = vsel %vm295, %v2195, -inf
        %v2279 = vsel %vm295, %v2196, -inf
        %v2280 = vmax.f32 %v2275, %v2279
        %v2281 = vsel %vm295, %v2197, -inf
        %v2282 = vmax.f32 %v2276, %v2281
        %v2283 = vsel %vm295, %v2198, -inf
        %v2284 = vmax.f32 %v2277, %v2283
        %v2285 = vsel %vm295, %v2199, -inf
        %v2286 = vmax.f32 %v2278, %v2285
        %v2287 = vmax.f32 %v2280, %v2282
        %v2288 = vmax.f32 %v2284, %v2286
        %v2289 = vmax.f32 %v2287, %v2288
        %v2290 = vrot.slane %v2289, 4
        %v2291 = vmax.f32 %v2289, %v2290
        %v2292 = vrot.slane %v2291, 2
        %v2293 = vmax.f32 %v2291, %v2292
        %v2294 = vrot.slane %v2293, 1
        %v2295 = vmax.f32 %v2293, %v2294
        %v2296 = vsub.f32 %v2192, %v2295
        %v2297 = vsub.f32 %v2193, %v2295
        %v2298 = vsub.f32 %v2194, %v2295
        %v2299 = vsub.f32 %v2195, %v2295
        %v2300 = vsub.f32 %v2196, %v2295
        %v2301 = vsub.f32 %v2197, %v2295
        %v2302 = vsub.f32 %v2198, %v2295
        %v2303 = vsub.f32 %v2199, %v2295
        %v2304 = vmul.f32 %v2296, 1.442695
        %v2305 = vpow.pop %v2304
        %v2306 = vmul.f32 %v2297, 1.442695
        %v2307 = vpow.pop %v2306
        %v2308 = vmul.f32 %v2298, 1.442695
        %v2309 = vpow.pop %v2308
        %v2310 = vmul.f32 %v2299, 1.442695
        %v2311 = vpow.pop %v2310
        %v2312 = vmul.f32 %v2300, 1.442695
        %v2313 = vpow.pop %v2312
        %v2314 = vmul.f32 %v2301, 1.442695
        %v2315 = vpow.pop %v2314
        %v2316 = vmul.f32 %v2302, 1.442695
        %v2317 = vpow.pop %v2316
        %v2318 = vmul.f32 %v2303, 1.442695
        %v2319 = vpow.pop %v2318
        %v2320 = vsel %vm295, %v2305, 0.0
        %v2321 = vsel %vm295, %v2307, 0.0
        %v2322 = vadd.f32 %v2320, %v2321
        %v2323 = vsel %vm295, %v2309, 0.0
        %v2324 = vadd.f32 %v2322, %v2323
        %v2325 = vsel %vm295, %v2311, 0.0
        %v2326 = vadd.f32 %v2324, %v2325
        %v2327 = vsel %vm295, %v2313, 0.0
        %v2328 = vadd.f32 %v2326, %v2327
        %v2329 = vsel %vm295, %v2315, 0.0
        %v2330 = vadd.f32 %v2328, %v2329
        %v2331 = vsel %vm295, %v2317, 0.0
        %v2332 = vadd.f32 %v2330, %v2331
        %v2333 = vsel %vm295, %v2319, 0.0
        %v2334 = vadd.f32 %v2332, %v2333
        %v2335 = vrot.slane %v2334, 4
        %v2336 = vadd.f32 %v2334, %v2335
        %v2337 = vrot.slane %v2336, 2
        %v2338 = vadd.f32 %v2336, %v2337
        %v2339 = vrot.slane %v2338, 1
        %v2340 = vadd.f32 %v2338, %v2339
        %v2341 = vrcp.pop %v2340
        %v2342 = vmul.f32 %v2305, %v2341
        %v2343 = vmul.f32 %v2307, %v2341
        %v2344 = vmul.f32 %v2309, %v2341
        %v2345 = vmul.f32 %v2311, %v2341
        %v2346 = vmul.f32 %v2313, %v2341
        %v2347 = vmul.f32 %v2315, %v2341
        %v2348 = vmul.f32 %v2317, %v2341
        %v2349 = vmul.f32 %v2319, %v2341
        %2350 = vrot.lane.b32.xlu0 %v387, 88
        %v2351 = vpop.permute.xlu0 %2350
        %2352 = vrot.lane.b32.xlu0 %v392, 88
        %v2353 = vpop.permute.xlu0 %2352
        %2354 = vrot.lane.b32.xlu0 %v397, 88
        %v2355 = vpop.permute.xlu0 %2354
        %2356 = vrot.lane.b32.xlu0 %v402, 88
        %v2357 = vpop.permute.xlu0 %2356
        %2358 = vrot.lane.b32.xlu0 %v407, 88
        %v2359 = vpop.permute.xlu0 %2358
        %2360 = vrot.lane.b32.xlu0 %v412, 88
        %v2361 = vpop.permute.xlu0 %2360
        %2362 = vrot.lane.b32.xlu0 %v417, 88
        %v2363 = vpop.permute.xlu0 %2362
        %2364 = vrot.lane.b32.xlu0 %v422, 88
        %v2365 = vpop.permute.xlu0 %2364
        %v2375 = vsel %vm295, %v2267, 0
        %v2378 = vsel %vm295, %v2268, 0
        %v2381 = vsel %vm295, %v2269, 0
        %v2384 = vsel %vm295, %v2270, 0
        %v2387 = vsel %vm295, %v2271, 0
        %v2390 = vsel %vm295, %v2272, 0
        %v2393 = vsel %vm295, %v2273, 0
        %v2396 = vsel %vm295, %v2274, 0
        %2398 = vmatprep.subr.mxu0 0.0
        %2399 = vmatpush1.msra.mxu0 0.0
        %2400 = vmatprep.subr.mxu0 0.0
        %2401 = vmatpush1.msra.mxu0 0.0
        %2402 = vmatprep.subr.mxu0 0.0
        %2403 = vmatpush1.msra.mxu0 0.0
        %2404 = vmatprep.subr.mxu0 0.0
        %2405 = vmatpush1.msra.mxu0 0.0
        %2406 = vmatprep.subr.mxu0 0.0
        %2407 = vmatpush1.msra.mxu0 0.0
        %2408 = vmatprep.subr.mxu0 0.0
        %2409 = vmatpush1.msra.mxu0 0.0
        %2410 = vmatprep.subr.mxu0 0.0
        %2411 = vmatpush1.msra.mxu0 0.0
        %2412 = vmatprep.subr.mxu0 0.0
        %2413 = vmatpush1.msra.mxu0 0.0
        %2414 = vmatprep.subr.mxu0 0.0
        %2415 = vmatpush1.msra.mxu0 %v2365
        %2416 = vmatprep.subr.mxu0 0.0
        %2417 = vmatpush1.msra.mxu0 %v2363
        %2418 = vmatprep.subr.mxu0 0.0
        %2419 = vmatpush1.msra.mxu0 %v2361
        %2420 = vmatprep.subr.mxu0 0.0
        %2421 = vmatpush1.msra.mxu0 %v2359
        %2422 = vmatprep.subr.mxu0 0.0
        %2423 = vmatpush1.msra.mxu0 %v2357
        %2424 = vmatprep.subr.mxu0 0.0
        %2425 = vmatpush1.msra.mxu0 %v2355
        %2426 = vmatprep.subr.mxu0 0.0
        %2427 = vmatpush1.msra.mxu0 %v2353
        %2428 = vmatprep.subr.mxu0 0.0
        %2429 = vmatpush1.msra.mxu0 %v2351
        %2430 = vmatprep.subr.mxu0 0.0
        %2431 = vmatpush2.msra.mxu0 0.0
        %2432 = vmatprep.subr.mxu0 0.0
        %2433 = vmatpush2.msra.mxu0 0.0
        %2434 = vmatprep.subr.mxu0 0.0
        %2435 = vmatpush2.msra.mxu0 0.0
        %2436 = vmatprep.subr.mxu0 0.0
        %2437 = vmatpush2.msra.mxu0 0.0
        %2438 = vmatprep.subr.mxu0 0.0
        %2439 = vmatpush2.msra.mxu0 0.0
        %2440 = vmatprep.subr.mxu0 0.0
        %2441 = vmatpush2.msra.mxu0 0.0
        %2442 = vmatprep.subr.mxu0 0.0
        %2443 = vmatpush2.msra.mxu0 0.0
        %2444 = vmatprep.subr.mxu0 0.0
        %2445 = vmatpush2.msra.mxu0 0.0
        %2446 = vmatprep.subr.mxu0 0.0
        %2447 = vmatpush2.msra.mxu0 0.0
        %2448 = vmatprep.subr.mxu0 0.0
        %2449 = vmatpush2.msra.mxu0 0.0
        %2450 = vmatprep.subr.mxu0 0.0
        %2451 = vmatpush2.msra.mxu0 0.0
        %2452 = vmatprep.subr.mxu0 0.0
        %2453 = vmatpush2.msra.mxu0 0.0
        %2454 = vmatprep.subr.mxu0 0.0
        %2455 = vmatpush2.msra.mxu0 0.0
        %2456 = vmatprep.subr.mxu0 0.0
        %2457 = vmatpush2.msra.mxu0 0.0
        %2458 = vmatprep.subr.mxu0 0.0
        %2459 = vmatpush2.msra.mxu0 0.0
        %2460 = vmatprep.subr.mxu0 0.0
        %2461 = vmatpush2.msra.mxu0 0.0
        %2462 = vmatprep.mubr.f32.mxu0 0.0
        %2463 = vmatmul.mubr.f32.gmra.mxu0 %v2375
        %v2464 = vpop.f32.mrf.mxu0
        %v2465 = vadd.f32 0.0, %v2464
        %v2466 = vpop.f32.mrf.mxu0
        %2467 = vmatprep.mubr.f32.mxu0 0.0
        %2468 = vmatmul.mubr.f32.gmra.mxu0 %v2378
        %v2469 = vpop.f32.mrf.mxu0
        %v2470 = vadd.f32 0.0, %v2469
        %v2471 = vpop.f32.mrf.mxu0
        %2472 = vmatprep.mubr.f32.mxu0 0.0
        %2473 = vmatmul.mubr.f32.gmra.mxu0 %v2381
        %v2474 = vpop.f32.mrf.mxu0
        %v2475 = vadd.f32 0.0, %v2474
        %v2476 = vpop.f32.mrf.mxu0
        %2477 = vmatprep.mubr.f32.mxu0 0.0
        %2478 = vmatmul.mubr.f32.gmra.mxu0 %v2384
        %v2479 = vpop.f32.mrf.mxu0
        %v2480 = vadd.f32 0.0, %v2479
        %v2481 = vpop.f32.mrf.mxu0
        %2482 = vmatprep.mubr.f32.mxu0 0.0
        %2483 = vmatmul.mubr.f32.gmra.mxu0 %v2387
        %v2484 = vpop.f32.mrf.mxu0
        %v2485 = vadd.f32 0.0, %v2484
        %v2486 = vpop.f32.mrf.mxu0
        %2487 = vmatprep.mubr.f32.mxu0 0.0
        %2488 = vmatmul.mubr.f32.gmra.mxu0 %v2390
        %v2489 = vpop.f32.mrf.mxu0
        %v2490 = vadd.f32 0.0, %v2489
        %v2491 = vpop.f32.mrf.mxu0
        %2492 = vmatprep.mubr.f32.mxu0 0.0
        %2493 = vmatmul.mubr.f32.gmra.mxu0 %v2393
        %v2494 = vpop.f32.mrf.mxu0
        %v2495 = vadd.f32 0.0, %v2494
        %v2496 = vpop.f32.mrf.mxu0
        %2497 = vmatprep.mubr.f32.mxu0 0.0
        %2498 = vmatmul.mubr.f32.gmra.mxu0 %v2396
        %v2499 = vpop.f32.mrf.mxu0
        %v2500 = vadd.f32 0.0, %v2499
        %v2501 = vpop.f32.mrf.mxu0
        %2502 = vdwg.mxu0
        %2503 = vrot.lane.b32.xlu0 %v387, 24
        %v2504 = vpop.permute.xlu0 %2503
        %2505 = vrot.lane.b32.xlu0 %v392, 24
        %v2506 = vpop.permute.xlu0 %2505
        %2507 = vrot.lane.b32.xlu0 %v397, 24
        %v2508 = vpop.permute.xlu0 %2507
        %2509 = vrot.lane.b32.xlu0 %v402, 24
        %v2510 = vpop.permute.xlu0 %2509
        %2511 = vrot.lane.b32.xlu0 %v407, 24
        %v2512 = vpop.permute.xlu0 %2511
        %2513 = vrot.lane.b32.xlu0 %v412, 24
        %v2514 = vpop.permute.xlu0 %2513
        %2515 = vrot.lane.b32.xlu0 %v417, 24
        %v2516 = vpop.permute.xlu0 %2515
        %2517 = vrot.lane.b32.xlu0 %v422, 24
        %v2518 = vpop.permute.xlu0 %2517
        %v2528 = vsel %vm295, %v2342, 0
        %v2531 = vsel %vm295, %v2343, 0
        %v2534 = vsel %vm295, %v2344, 0
        %v2537 = vsel %vm295, %v2345, 0
        %v2540 = vsel %vm295, %v2346, 0
        %v2543 = vsel %vm295, %v2347, 0
        %v2546 = vsel %vm295, %v2348, 0
        %v2549 = vsel %vm295, %v2349, 0
        %2551 = vmatprep.subr.mxu0 0.0
        %2552 = vmatpush1.msra.mxu0 0.0
        %2553 = vmatprep.subr.mxu0 0.0
        %2554 = vmatpush1.msra.mxu0 0.0
        %2555 = vmatprep.subr.mxu0 0.0
        %2556 = vmatpush1.msra.mxu0 0.0
        %2557 = vmatprep.subr.mxu0 0.0
        %2558 = vmatpush1.msra.mxu0 0.0
        %2559 = vmatprep.subr.mxu0 0.0
        %2560 = vmatpush1.msra.mxu0 0.0
        %2561 = vmatprep.subr.mxu0 0.0
        %2562 = vmatpush1.msra.mxu0 0.0
        %2563 = vmatprep.subr.mxu0 0.0
        %2564 = vmatpush1.msra.mxu0 0.0
        %2565 = vmatprep.subr.mxu0 0.0
        %2566 = vmatpush1.msra.mxu0 0.0
        %2567 = vmatprep.subr.mxu0 0.0
        %2568 = vmatpush1.msra.mxu0 %v2518
        %2569 = vmatprep.subr.mxu0 0.0
        %2570 = vmatpush1.msra.mxu0 %v2516
        %2571 = vmatprep.subr.mxu0 0.0
        %2572 = vmatpush1.msra.mxu0 %v2514
        %2573 = vmatprep.subr.mxu0 0.0
        %2574 = vmatpush1.msra.mxu0 %v2512
        %2575 = vmatprep.subr.mxu0 0.0
        %2576 = vmatpush1.msra.mxu0 %v2510
        %2577 = vmatprep.subr.mxu0 0.0
        %2578 = vmatpush1.msra.mxu0 %v2508
        %2579 = vmatprep.subr.mxu0 0.0
        %2580 = vmatpush1.msra.mxu0 %v2506
        %2581 = vmatprep.subr.mxu0 0.0
        %2582 = vmatpush1.msra.mxu0 %v2504
        %2583 = vmatprep.subr.mxu0 0.0
        %2584 = vmatpush2.msra.mxu0 0.0
        %2585 = vmatprep.subr.mxu0 0.0
        %2586 = vmatpush2.msra.mxu0 0.0
        %2587 = vmatprep.subr.mxu0 0.0
        %2588 = vmatpush2.msra.mxu0 0.0
        %2589 = vmatprep.subr.mxu0 0.0
        %2590 = vmatpush2.msra.mxu0 0.0
        %2591 = vmatprep.subr.mxu0 0.0
        %2592 = vmatpush2.msra.mxu0 0.0
        %2593 = vmatprep.subr.mxu0 0.0
        %2594 = vmatpush2.msra.mxu0 0.0
        %2595 = vmatprep.subr.mxu0 0.0
        %2596 = vmatpush2.msra.mxu0 0.0
        %2597 = vmatprep.subr.mxu0 0.0
        %2598 = vmatpush2.msra.mxu0 0.0
        %2599 = vmatprep.subr.mxu0 0.0
        %2600 = vmatpush2.msra.mxu0 0.0
        %2601 = vmatprep.subr.mxu0 0.0
        %2602 = vmatpush2.msra.mxu0 0.0
        %2603 = vmatprep.subr.mxu0 0.0
        %2604 = vmatpush2.msra.mxu0 0.0
        %2605 = vmatprep.subr.mxu0 0.0
        %2606 = vmatpush2.msra.mxu0 0.0
        %2607 = vmatprep.subr.mxu0 0.0
        %2608 = vmatpush2.msra.mxu0 0.0
        %2609 = vmatprep.subr.mxu0 0.0
        %2610 = vmatpush2.msra.mxu0 0.0
        %2611 = vmatprep.subr.mxu0 0.0
        %2612 = vmatpush2.msra.mxu0 0.0
        %2613 = vmatprep.subr.mxu0 0.0
        %2614 = vmatpush2.msra.mxu0 0.0
        %2615 = vmatprep.mubr.f32.mxu0 0.0
        %2616 = vmatmul.mubr.f32.gmra.mxu0 %v2528
        %v2617 = vpop.f32.mrf.mxu0
        %v2618 = vadd.f32 0.0, %v2617
        %v2619 = vpop.f32.mrf.mxu0
        %2620 = vmatprep.mubr.f32.mxu0 0.0
        %2621 = vmatmul.mubr.f32.gmra.mxu0 %v2531
        %v2622 = vpop.f32.mrf.mxu0
        %v2623 = vadd.f32 0.0, %v2622
        %v2624 = vpop.f32.mrf.mxu0
        %2625 = vmatprep.mubr.f32.mxu0 0.0
        %2626 = vmatmul.mubr.f32.gmra.mxu0 %v2534
        %v2627 = vpop.f32.mrf.mxu0
        %v2628 = vadd.f32 0.0, %v2627
        %v2629 = vpop.f32.mrf.mxu0
        %2630 = vmatprep.mubr.f32.mxu0 0.0
        %2631 = vmatmul.mubr.f32.gmra.mxu0 %v2537
        %v2632 = vpop.f32.mrf.mxu0
        %v2633 = vadd.f32 0.0, %v2632
        %v2634 = vpop.f32.mrf.mxu0
        %2635 = vmatprep.mubr.f32.mxu0 0.0
        %2636 = vmatmul.mubr.f32.gmra.mxu0 %v2540
        %v2637 = vpop.f32.mrf.mxu0
        %v2638 = vadd.f32 0.0, %v2637
        %v2639 = vpop.f32.mrf.mxu0
        %2640 = vmatprep.mubr.f32.mxu0 0.0
        %2641 = vmatmul.mubr.f32.gmra.mxu0 %v2543
        %v2642 = vpop.f32.mrf.mxu0
        %v2643 = vadd.f32 0.0, %v2642
        %v2644 = vpop.f32.mrf.mxu0
        %2645 = vmatprep.mubr.f32.mxu0 0.0
        %2646 = vmatmul.mubr.f32.gmra.mxu0 %v2546
        %v2647 = vpop.f32.mrf.mxu0
        %v2648 = vadd.f32 0.0, %v2647
        %v2649 = vpop.f32.mrf.mxu0
        %2650 = vmatprep.mubr.f32.mxu0 0.0
        %2651 = vmatmul.mubr.f32.gmra.mxu0 %v2549
        %v2652 = vpop.f32.mrf.mxu0
        %v2653 = vadd.f32 0.0, %v2652
        %v2654 = vpop.f32.mrf.mxu0
        %2655 = vdwg.mxu0
        %2656 = vrot.lane.b32.xlu0 %v387, 116
        %v2657 = vpop.permute.xlu0 %2656
        %2658 = vrot.lane.b32.xlu0 %v392, 116
        %v2659 = vpop.permute.xlu0 %2658
        %2660 = vrot.lane.b32.xlu0 %v397, 116
        %v2661 = vpop.permute.xlu0 %2660
        %2662 = vrot.lane.b32.xlu0 %v402, 116
        %v2663 = vpop.permute.xlu0 %2662
        %2664 = vrot.lane.b32.xlu0 %v407, 116
        %v2665 = vpop.permute.xlu0 %2664
        %2666 = vrot.lane.b32.xlu0 %v412, 116
        %v2667 = vpop.permute.xlu0 %2666
        %2668 = vrot.lane.b32.xlu0 %v417, 116
        %v2669 = vpop.permute.xlu0 %2668
        %2670 = vrot.lane.b32.xlu0 %v422, 116
        %v2671 = vpop.permute.xlu0 %2670
        %2672 = vrot.lane.b32.xlu0 %v387, 52
        %v2673 = vpop.permute.xlu0 %2672
        %2674 = vrot.lane.b32.xlu0 %v392, 52
        %v2675 = vpop.permute.xlu0 %2674
        %2676 = vrot.lane.b32.xlu0 %v397, 52
        %v2677 = vpop.permute.xlu0 %2676
        %2678 = vrot.lane.b32.xlu0 %v402, 52
        %v2679 = vpop.permute.xlu0 %2678
        %2680 = vrot.lane.b32.xlu0 %v407, 52
        %v2681 = vpop.permute.xlu0 %2680
        %2682 = vrot.lane.b32.xlu0 %v412, 52
        %v2683 = vpop.permute.xlu0 %2682
        %2684 = vrot.lane.b32.xlu0 %v417, 52
        %v2685 = vpop.permute.xlu0 %2684
        %2686 = vrot.lane.b32.xlu0 %v422, 52
        %v2687 = vpop.permute.xlu0 %2686
        %v2688 = vsel %vm449, %v2657, 0
        %v2690 = vsel %vm449, %v2659, 0
        %v2692 = vsel %vm449, %v2661, 0
        %v2694 = vsel %vm449, %v2663, 0
        %v2696 = vsel %vm449, %v2665, 0
        %v2698 = vsel %vm449, %v2667, 0
        %v2700 = vsel %vm449, %v2669, 0
        %v2702 = vsel %vm449, %v2671, 0
        %v2704 = vsel %vm449, %v2673, 0
        %v2706 = vsel %vm449, %v2675, 0
        %v2708 = vsel %vm449, %v2677, 0
        %v2710 = vsel %vm449, %v2679, 0
        %v2712 = vsel %vm449, %v2681, 0
        %v2714 = vsel %vm449, %v2683, 0
        %v2716 = vsel %vm449, %v2685, 0
        %v2718 = vsel %vm449, %v2687, 0
        %2720 = vmatprep.subr.mxu0 0.0
        %2721 = vmatpush1.xpose.msra.mxu0 0.0
        %2722 = vmatprep.subr.mxu0 0.0
        %2723 = vmatpush1.xpose.msra.mxu0 0.0
        %2724 = vmatprep.subr.mxu0 0.0
        %2725 = vmatpush1.xpose.msra.mxu0 0.0
        %2726 = vmatprep.subr.mxu0 0.0
        %2727 = vmatpush1.xpose.msra.mxu0 0.0
        %2728 = vmatprep.subr.mxu0 0.0
        %2729 = vmatpush1.xpose.msra.mxu0 0.0
        %2730 = vmatprep.subr.mxu0 0.0
        %2731 = vmatpush1.xpose.msra.mxu0 0.0
        %2732 = vmatprep.subr.mxu0 0.0
        %2733 = vmatpush1.xpose.msra.mxu0 0.0
        %2734 = vmatprep.subr.mxu0 0.0
        %2735 = vmatpush1.xpose.msra.mxu0 0.0
        %2736 = vmatprep.subr.mxu0 0.0
        %2737 = vmatpush1.xpose.msra.mxu0 %v2718
        %2738 = vmatprep.subr.mxu0 0.0
        %2739 = vmatpush1.xpose.msra.mxu0 %v2716
        %2740 = vmatprep.subr.mxu0 0.0
        %2741 = vmatpush1.xpose.msra.mxu0 %v2714
        %2742 = vmatprep.subr.mxu0 0.0
        %2743 = vmatpush1.xpose.msra.mxu0 %v2712
        %2744 = vmatprep.subr.mxu0 0.0
        %2745 = vmatpush1.xpose.msra.mxu0 %v2710
        %2746 = vmatprep.subr.mxu0 0.0
        %2747 = vmatpush1.xpose.msra.mxu0 %v2708
        %2748 = vmatprep.subr.mxu0 0.0
        %2749 = vmatpush1.xpose.msra.mxu0 %v2706
        %2750 = vmatprep.subr.mxu0 0.0
        %2751 = vmatpush1.xpose.msra.mxu0 %v2704
        %2752 = vmatprep.subr.mxu0 0.0
        %2753 = vmatpush2.xpose.msra.mxu0 0.0
        %2754 = vmatprep.subr.mxu0 0.0
        %2755 = vmatpush2.xpose.msra.mxu0 0.0
        %2756 = vmatprep.subr.mxu0 0.0
        %2757 = vmatpush2.xpose.msra.mxu0 0.0
        %2758 = vmatprep.subr.mxu0 0.0
        %2759 = vmatpush2.xpose.msra.mxu0 0.0
        %2760 = vmatprep.subr.mxu0 0.0
        %2761 = vmatpush2.xpose.msra.mxu0 0.0
        %2762 = vmatprep.subr.mxu0 0.0
        %2763 = vmatpush2.xpose.msra.mxu0 0.0
        %2764 = vmatprep.subr.mxu0 0.0
        %2765 = vmatpush2.xpose.msra.mxu0 0.0
        %2766 = vmatprep.subr.mxu0 0.0
        %2767 = vmatpush2.xpose.msra.mxu0 0.0
        %2768 = vmatprep.subr.mxu0 0.0
        %2769 = vmatpush2.xpose.msra.mxu0 0.0
        %2770 = vmatprep.subr.mxu0 0.0
        %2771 = vmatpush2.xpose.msra.mxu0 0.0
        %2772 = vmatprep.subr.mxu0 0.0
        %2773 = vmatpush2.xpose.msra.mxu0 0.0
        %2774 = vmatprep.subr.mxu0 0.0
        %2775 = vmatpush2.xpose.msra.mxu0 0.0
        %2776 = vmatprep.subr.mxu0 0.0
        %2777 = vmatpush2.xpose.msra.mxu0 0.0
        %2778 = vmatprep.subr.mxu0 0.0
        %2779 = vmatpush2.xpose.msra.mxu0 0.0
        %2780 = vmatprep.subr.mxu0 0.0
        %2781 = vmatpush2.xpose.msra.mxu0 0.0
        %2782 = vmatprep.subr.mxu0 0.0
        %2783 = vmatpush2.xpose.msra.mxu0 0.0
        %2784 = vmatprep.mubr.f32.mxu0 0.0
        %2785 = vmatmul.mubr.f32.gmra.mxu0 %v2688
        %v2786 = vpop.f32.mrf.mxu0
        %v2787 = vadd.f32 0.0, %v2786
        %v2788 = vpop.f32.mrf.mxu0
        %2789 = vmatprep.mubr.f32.mxu0 0.0
        %2790 = vmatmul.mubr.f32.gmra.mxu0 %v2690
        %v2791 = vpop.f32.mrf.mxu0
        %v2792 = vadd.f32 0.0, %v2791
        %v2793 = vpop.f32.mrf.mxu0
        %2794 = vmatprep.mubr.f32.mxu0 0.0
        %2795 = vmatmul.mubr.f32.gmra.mxu0 %v2692
        %v2796 = vpop.f32.mrf.mxu0
        %v2797 = vadd.f32 0.0, %v2796
        %v2798 = vpop.f32.mrf.mxu0
        %2799 = vmatprep.mubr.f32.mxu0 0.0
        %2800 = vmatmul.mubr.f32.gmra.mxu0 %v2694
        %v2801 = vpop.f32.mrf.mxu0
        %v2802 = vadd.f32 0.0, %v2801
        %v2803 = vpop.f32.mrf.mxu0
        %2804 = vmatprep.mubr.f32.mxu0 0.0
        %2805 = vmatmul.mubr.f32.gmra.mxu0 %v2696
        %v2806 = vpop.f32.mrf.mxu0
        %v2807 = vadd.f32 0.0, %v2806
        %v2808 = vpop.f32.mrf.mxu0
        %2809 = vmatprep.mubr.f32.mxu0 0.0
        %2810 = vmatmul.mubr.f32.gmra.mxu0 %v2698
        %v2811 = vpop.f32.mrf.mxu0
        %v2812 = vadd.f32 0.0, %v2811
        %v2813 = vpop.f32.mrf.mxu0
        %2814 = vmatprep.mubr.f32.mxu0 0.0
        %2815 = vmatmul.mubr.f32.gmra.mxu0 %v2700
        %v2816 = vpop.f32.mrf.mxu0
        %v2817 = vadd.f32 0.0, %v2816
        %v2818 = vpop.f32.mrf.mxu0
        %2819 = vmatprep.mubr.f32.mxu0 0.0
        %2820 = vmatmul.mubr.f32.gmra.mxu0 %v2702
        %v2821 = vpop.f32.mrf.mxu0
        %v2822 = vadd.f32 0.0, %v2821
        %v2823 = vpop.f32.mrf.mxu0
        %2824 = vdwg.mxu0
        %v2825 = vmul.f32 %v2787, 0.5
        %v2826 = vmul.f32 %v2792, 0.5
        %v2827 = vmul.f32 %v2797, 0.5
        %v2828 = vmul.f32 %v2802, 0.5
        %v2829 = vmul.f32 %v2807, 0.5
        %v2830 = vmul.f32 %v2812, 0.5
        %v2831 = vmul.f32 %v2817, 0.5
        %v2832 = vmul.f32 %v2822, 0.5
        %2833 = vmatprep.subr.mxu0 0.0
        %2834 = vmatpush1.xpose.msra.mxu0 0.0
        %2835 = vmatprep.subr.mxu0 0.0
        %2836 = vmatpush1.xpose.msra.mxu0 0.0
        %2837 = vmatprep.subr.mxu0 0.0
        %2838 = vmatpush1.xpose.msra.mxu0 0.0
        %2839 = vmatprep.subr.mxu0 0.0
        %2840 = vmatpush1.xpose.msra.mxu0 0.0
        %2841 = vmatprep.subr.mxu0 0.0
        %2842 = vmatpush1.xpose.msra.mxu0 0.0
        %2843 = vmatprep.subr.mxu0 0.0
        %2844 = vmatpush1.xpose.msra.mxu0 0.0
        %2845 = vmatprep.subr.mxu0 0.0
        %2846 = vmatpush1.xpose.msra.mxu0 0.0
        %2847 = vmatprep.subr.mxu0 0.0
        %2848 = vmatpush1.xpose.msra.mxu0 0.0
        %2849 = vmatprep.subr.mxu0 0.0
        %2850 = vmatpush1.xpose.msra.mxu0 %v2702
        %2851 = vmatprep.subr.mxu0 0.0
        %2852 = vmatpush1.xpose.msra.mxu0 %v2700
        %2853 = vmatprep.subr.mxu0 0.0
        %2854 = vmatpush1.xpose.msra.mxu0 %v2698
        %2855 = vmatprep.subr.mxu0 0.0
        %2856 = vmatpush1.xpose.msra.mxu0 %v2696
        %2857 = vmatprep.subr.mxu0 0.0
        %2858 = vmatpush1.xpose.msra.mxu0 %v2694
        %2859 = vmatprep.subr.mxu0 0.0
        %2860 = vmatpush1.xpose.msra.mxu0 %v2692
        %2861 = vmatprep.subr.mxu0 0.0
        %2862 = vmatpush1.xpose.msra.mxu0 %v2690
        %2863 = vmatprep.subr.mxu0 0.0
        %2864 = vmatpush1.xpose.msra.mxu0 %v2688
        %2865 = vmatprep.subr.mxu0 0.0
        %2866 = vmatpush2.xpose.msra.mxu0 0.0
        %2867 = vmatprep.subr.mxu0 0.0
        %2868 = vmatpush2.xpose.msra.mxu0 0.0
        %2869 = vmatprep.subr.mxu0 0.0
        %2870 = vmatpush2.xpose.msra.mxu0 0.0
        %2871 = vmatprep.subr.mxu0 0.0
        %2872 = vmatpush2.xpose.msra.mxu0 0.0
        %2873 = vmatprep.subr.mxu0 0.0
        %2874 = vmatpush2.xpose.msra.mxu0 0.0
        %2875 = vmatprep.subr.mxu0 0.0
        %2876 = vmatpush2.xpose.msra.mxu0 0.0
        %2877 = vmatprep.subr.mxu0 0.0
        %2878 = vmatpush2.xpose.msra.mxu0 0.0
        %2879 = vmatprep.subr.mxu0 0.0
        %2880 = vmatpush2.xpose.msra.mxu0 0.0
        %2881 = vmatprep.subr.mxu0 0.0
        %2882 = vmatpush2.xpose.msra.mxu0 0.0
        %2883 = vmatprep.subr.mxu0 0.0
        %2884 = vmatpush2.xpose.msra.mxu0 0.0
        %2885 = vmatprep.subr.mxu0 0.0
        %2886 = vmatpush2.xpose.msra.mxu0 0.0
        %2887 = vmatprep.subr.mxu0 0.0
        %2888 = vmatpush2.xpose.msra.mxu0 0.0
        %2889 = vmatprep.subr.mxu0 0.0
        %2890 = vmatpush2.xpose.msra.mxu0 0.0
        %2891 = vmatprep.subr.mxu0 0.0
        %2892 = vmatpush2.xpose.msra.mxu0 0.0
        %2893 = vmatprep.subr.mxu0 0.0
        %2894 = vmatpush2.xpose.msra.mxu0 0.0
        %2895 = vmatprep.subr.mxu0 0.0
        %2896 = vmatpush2.xpose.msra.mxu0 0.0
        %2897 = vmatprep.mubr.f32.mxu0 0.0
        %2898 = vmatmul.mubr.f32.gmra.mxu0 %v2704
        %v2899 = vpop.f32.mrf.mxu0
        %v2900 = vadd.f32 0.0, %v2899
        %v2901 = vpop.f32.mrf.mxu0
        %2902 = vmatprep.mubr.f32.mxu0 0.0
        %2903 = vmatmul.mubr.f32.gmra.mxu0 %v2706
        %v2904 = vpop.f32.mrf.mxu0
        %v2905 = vadd.f32 0.0, %v2904
        %v2906 = vpop.f32.mrf.mxu0
        %2907 = vmatprep.mubr.f32.mxu0 0.0
        %2908 = vmatmul.mubr.f32.gmra.mxu0 %v2708
        %v2909 = vpop.f32.mrf.mxu0
        %v2910 = vadd.f32 0.0, %v2909
        %v2911 = vpop.f32.mrf.mxu0
        %2912 = vmatprep.mubr.f32.mxu0 0.0
        %2913 = vmatmul.mubr.f32.gmra.mxu0 %v2710
        %v2914 = vpop.f32.mrf.mxu0
        %v2915 = vadd.f32 0.0, %v2914
        %v2916 = vpop.f32.mrf.mxu0
        %2917 = vmatprep.mubr.f32.mxu0 0.0
        %2918 = vmatmul.mubr.f32.gmra.mxu0 %v2712
        %v2919 = vpop.f32.mrf.mxu0
        %v2920 = vadd.f32 0.0, %v2919
        %v2921 = vpop.f32.mrf.mxu0
        %2922 = vmatprep.mubr.f32.mxu0 0.0
        %2923 = vmatmul.mubr.f32.gmra.mxu0 %v2714
        %v2924 = vpop.f32.mrf.mxu0
        %v2925 = vadd.f32 0.0, %v2924
        %v2926 = vpop.f32.mrf.mxu0
        %2927 = vmatprep.mubr.f32.mxu0 0.0
        %2928 = vmatmul.mubr.f32.gmra.mxu0 %v2716
        %v2929 = vpop.f32.mrf.mxu0
        %v2930 = vadd.f32 0.0, %v2929
        %v2931 = vpop.f32.mrf.mxu0
        %2932 = vmatprep.mubr.f32.mxu0 0.0
        %2933 = vmatmul.mubr.f32.gmra.mxu0 %v2718
        %v2934 = vpop.f32.mrf.mxu0
        %v2935 = vadd.f32 0.0, %v2934
        %v2936 = vpop.f32.mrf.mxu0
        %2937 = vdwg.mxu0
        %v2938 = vmul.f32 %v2900, 0.5
        %v2939 = vmul.f32 %v2905, 0.5
        %v2940 = vmul.f32 %v2910, 0.5
        %v2941 = vmul.f32 %v2915, 0.5
        %v2942 = vmul.f32 %v2920, 0.5
        %v2943 = vmul.f32 %v2925, 0.5
        %v2944 = vmul.f32 %v2930, 0.5
        %v2945 = vmul.f32 %v2935, 0.5
        %v2946 = vsel %vm295, %v2825, -inf
        %v2947 = vsel %vm295, %v2826, -inf
        %v2948 = vsel %vm295, %v2827, -inf
        %v2949 = vsel %vm295, %v2828, -inf
        %v2950 = vsel %vm295, %v2829, -inf
        %v2951 = vmax.f32 %v2946, %v2950
        %v2952 = vsel %vm295, %v2830, -inf
        %v2953 = vmax.f32 %v2947, %v2952
        %v2954 = vsel %vm295, %v2831, -inf
        %v2955 = vmax.f32 %v2948, %v2954
        %v2956 = vsel %vm295, %v2832, -inf
        %v2957 = vmax.f32 %v2949, %v2956
        %v2958 = vmax.f32 %v2951, %v2953
        %v2959 = vmax.f32 %v2955, %v2957
        %v2960 = vmax.f32 %v2958, %v2959
        %v2961 = vrot.slane %v2960, 4
        %v2962 = vmax.f32 %v2960, %v2961
        %v2963 = vrot.slane %v2962, 2
        %v2964 = vmax.f32 %v2962, %v2963
        %v2965 = vrot.slane %v2964, 1
        %v2966 = vmax.f32 %v2964, %v2965
        %v2967 = vsub.f32 %v2825, %v2966
        %v2968 = vsub.f32 %v2826, %v2966
        %v2969 = vsub.f32 %v2827, %v2966
        %v2970 = vsub.f32 %v2828, %v2966
        %v2971 = vsub.f32 %v2829, %v2966
        %v2972 = vsub.f32 %v2830, %v2966
        %v2973 = vsub.f32 %v2831, %v2966
        %v2974 = vsub.f32 %v2832, %v2966
        %v2975 = vmul.f32 %v2967, 1.442695
        %v2976 = vpow.pop %v2975
        %v2977 = vmul.f32 %v2968, 1.442695
        %v2978 = vpow.pop %v2977
        %v2979 = vmul.f32 %v2969, 1.442695
        %v2980 = vpow.pop %v2979
        %v2981 = vmul.f32 %v2970, 1.442695
        %v2982 = vpow.pop %v2981
        %v2983 = vmul.f32 %v2971, 1.442695
        %v2984 = vpow.pop %v2983
        %v2985 = vmul.f32 %v2972, 1.442695
        %v2986 = vpow.pop %v2985
        %v2987 = vmul.f32 %v2973, 1.442695
        %v2988 = vpow.pop %v2987
        %v2989 = vmul.f32 %v2974, 1.442695
        %v2990 = vpow.pop %v2989
        %v2991 = vsel %vm295, %v2976, 0.0
        %v2992 = vsel %vm295, %v2978, 0.0
        %v2993 = vadd.f32 %v2991, %v2992
        %v2994 = vsel %vm295, %v2980, 0.0
        %v2995 = vadd.f32 %v2993, %v2994
        %v2996 = vsel %vm295, %v2982, 0.0
        %v2997 = vadd.f32 %v2995, %v2996
        %v2998 = vsel %vm295, %v2984, 0.0
        %v2999 = vadd.f32 %v2997, %v2998
        %v3000 = vsel %vm295, %v2986, 0.0
        %v3001 = vadd.f32 %v2999, %v3000
        %v3002 = vsel %vm295, %v2988, 0.0
        %v3003 = vadd.f32 %v3001, %v3002
        %v3004 = vsel %vm295, %v2990, 0.0
        %v3005 = vadd.f32 %v3003, %v3004
        %v3006 = vrot.slane %v3005, 4
        %v3007 = vadd.f32 %v3005, %v3006
        %v3008 = vrot.slane %v3007, 2
        %v3009 = vadd.f32 %v3007, %v3008
        %v3010 = vrot.slane %v3009, 1
        %v3011 = vadd.f32 %v3009, %v3010
        %v3012 = vrcp.pop %v3011
        %v3013 = vmul.f32 %v2976, %v3012
        %v3014 = vmul.f32 %v2978, %v3012
        %v3015 = vmul.f32 %v2980, %v3012
        %v3016 = vmul.f32 %v2982, %v3012
        %v3017 = vmul.f32 %v2984, %v3012
        %v3018 = vmul.f32 %v2986, %v3012
        %v3019 = vmul.f32 %v2988, %v3012
        %v3020 = vmul.f32 %v2990, %v3012
        %v3021 = vsel %vm295, %v2938, -inf
        %v3022 = vsel %vm295, %v2939, -inf
        %v3023 = vsel %vm295, %v2940, -inf
        %v3024 = vsel %vm295, %v2941, -inf
        %v3025 = vsel %vm295, %v2942, -inf
        %v3026 = vmax.f32 %v3021, %v3025
        %v3027 = vsel %vm295, %v2943, -inf
        %v3028 = vmax.f32 %v3022, %v3027
        %v3029 = vsel %vm295, %v2944, -inf
        %v3030 = vmax.f32 %v3023, %v3029
        %v3031 = vsel %vm295, %v2945, -inf
        %v3032 = vmax.f32 %v3024, %v3031
        %v3033 = vmax.f32 %v3026, %v3028
        %v3034 = vmax.f32 %v3030, %v3032
        %v3035 = vmax.f32 %v3033, %v3034
        %v3036 = vrot.slane %v3035, 4
        %v3037 = vmax.f32 %v3035, %v3036
        %v3038 = vrot.slane %v3037, 2
        %v3039 = vmax.f32 %v3037, %v3038
        %v3040 = vrot.slane %v3039, 1
        %v3041 = vmax.f32 %v3039, %v3040
        %v3042 = vsub.f32 %v2938, %v3041
        %v3043 = vsub.f32 %v2939, %v3041
        %v3044 = vsub.f32 %v2940, %v3041
        %v3045 = vsub.f32 %v2941, %v3041
        %v3046 = vsub.f32 %v2942, %v3041
        %v3047 = vsub.f32 %v2943, %v3041
        %v3048 = vsub.f32 %v2944, %v3041
        %v3049 = vsub.f32 %v2945, %v3041
        %v3050 = vmul.f32 %v3042, 1.442695
        %v3051 = vpow.pop %v3050
        %v3052 = vmul.f32 %v3043, 1.442695
        %v3053 = vpow.pop %v3052
        %v3054 = vmul.f32 %v3044, 1.442695
        %v3055 = vpow.pop %v3054
        %v3056 = vmul.f32 %v3045, 1.442695
        %v3057 = vpow.pop %v3056
        %v3058 = vmul.f32 %v3046, 1.442695
        %v3059 = vpow.pop %v3058
        %v3060 = vmul.f32 %v3047, 1.442695
        %v3061 = vpow.pop %v3060
        %v3062 = vmul.f32 %v3048, 1.442695
        %v3063 = vpow.pop %v3062
        %v3064 = vmul.f32 %v3049, 1.442695
        %v3065 = vpow.pop %v3064
        %v3066 = vsel %vm295, %v3051, 0.0
        %v3067 = vsel %vm295, %v3053, 0.0
        %v3068 = vadd.f32 %v3066, %v3067
        %v3069 = vsel %vm295, %v3055, 0.0
        %v3070 = vadd.f32 %v3068, %v3069
        %v3071 = vsel %vm295, %v3057, 0.0
        %v3072 = vadd.f32 %v3070, %v3071
        %v3073 = vsel %vm295, %v3059, 0.0
        %v3074 = vadd.f32 %v3072, %v3073
        %v3075 = vsel %vm295, %v3061, 0.0
        %v3076 = vadd.f32 %v3074, %v3075
        %v3077 = vsel %vm295, %v3063, 0.0
        %v3078 = vadd.f32 %v3076, %v3077
        %v3079 = vsel %vm295, %v3065, 0.0
        %v3080 = vadd.f32 %v3078, %v3079
        %v3081 = vrot.slane %v3080, 4
        %v3082 = vadd.f32 %v3080, %v3081
        %v3083 = vrot.slane %v3082, 2
        %v3084 = vadd.f32 %v3082, %v3083
        %v3085 = vrot.slane %v3084, 1
        %v3086 = vadd.f32 %v3084, %v3085
        %v3087 = vrcp.pop %v3086
        %v3088 = vmul.f32 %v3051, %v3087
        %v3089 = vmul.f32 %v3053, %v3087
        %v3090 = vmul.f32 %v3055, %v3087
        %v3091 = vmul.f32 %v3057, %v3087
        %v3092 = vmul.f32 %v3059, %v3087
        %v3093 = vmul.f32 %v3061, %v3087
        %v3094 = vmul.f32 %v3063, %v3087
        %v3095 = vmul.f32 %v3065, %v3087
        %3096 = vrot.lane.b32.xlu0 %v387, 84
        %v3097 = vpop.permute.xlu0 %3096
        %3098 = vrot.lane.b32.xlu0 %v392, 84
        %v3099 = vpop.permute.xlu0 %3098
        %3100 = vrot.lane.b32.xlu0 %v397, 84
        %v3101 = vpop.permute.xlu0 %3100
        %3102 = vrot.lane.b32.xlu0 %v402, 84
        %v3103 = vpop.permute.xlu0 %3102
        %3104 = vrot.lane.b32.xlu0 %v407, 84
        %v3105 = vpop.permute.xlu0 %3104
        %3106 = vrot.lane.b32.xlu0 %v412, 84
        %v3107 = vpop.permute.xlu0 %3106
        %3108 = vrot.lane.b32.xlu0 %v417, 84
        %v3109 = vpop.permute.xlu0 %3108
        %3110 = vrot.lane.b32.xlu0 %v422, 84
        %v3111 = vpop.permute.xlu0 %3110
        %v3121 = vsel %vm295, %v3013, 0
        %v3124 = vsel %vm295, %v3014, 0
        %v3127 = vsel %vm295, %v3015, 0
        %v3130 = vsel %vm295, %v3016, 0
        %v3133 = vsel %vm295, %v3017, 0
        %v3136 = vsel %vm295, %v3018, 0
        %v3139 = vsel %vm295, %v3019, 0
        %v3142 = vsel %vm295, %v3020, 0
        %3144 = vmatprep.subr.mxu0 0.0
        %3145 = vmatpush1.msra.mxu0 0.0
        %3146 = vmatprep.subr.mxu0 0.0
        %3147 = vmatpush1.msra.mxu0 0.0
        %3148 = vmatprep.subr.mxu0 0.0
        %3149 = vmatpush1.msra.mxu0 0.0
        %3150 = vmatprep.subr.mxu0 0.0
        %3151 = vmatpush1.msra.mxu0 0.0
        %3152 = vmatprep.subr.mxu0 0.0
        %3153 = vmatpush1.msra.mxu0 0.0
        %3154 = vmatprep.subr.mxu0 0.0
        %3155 = vmatpush1.msra.mxu0 0.0
        %3156 = vmatprep.subr.mxu0 0.0
        %3157 = vmatpush1.msra.mxu0 0.0
        %3158 = vmatprep.subr.mxu0 0.0
        %3159 = vmatpush1.msra.mxu0 0.0
        %3160 = vmatprep.subr.mxu0 0.0
        %3161 = vmatpush1.msra.mxu0 %v3111
        %3162 = vmatprep.subr.mxu0 0.0
        %3163 = vmatpush1.msra.mxu0 %v3109
        %3164 = vmatprep.subr.mxu0 0.0
        %3165 = vmatpush1.msra.mxu0 %v3107
        %3166 = vmatprep.subr.mxu0 0.0
        %3167 = vmatpush1.msra.mxu0 %v3105
        %3168 = vmatprep.subr.mxu0 0.0
        %3169 = vmatpush1.msra.mxu0 %v3103
        %3170 = vmatprep.subr.mxu0 0.0
        %3171 = vmatpush1.msra.mxu0 %v3101
        %3172 = vmatprep.subr.mxu0 0.0
        %3173 = vmatpush1.msra.mxu0 %v3099
        %3174 = vmatprep.subr.mxu0 0.0
        %3175 = vmatpush1.msra.mxu0 %v3097
        %3176 = vmatprep.subr.mxu0 0.0
        %3177 = vmatpush2.msra.mxu0 0.0
        %3178 = vmatprep.subr.mxu0 0.0
        %3179 = vmatpush2.msra.mxu0 0.0
        %3180 = vmatprep.subr.mxu0 0.0
        %3181 = vmatpush2.msra.mxu0 0.0
        %3182 = vmatprep.subr.mxu0 0.0
        %3183 = vmatpush2.msra.mxu0 0.0
        %3184 = vmatprep.subr.mxu0 0.0
        %3185 = vmatpush2.msra.mxu0 0.0
        %3186 = vmatprep.subr.mxu0 0.0
        %3187 = vmatpush2.msra.mxu0 0.0
        %3188 = vmatprep.subr.mxu0 0.0
        %3189 = vmatpush2.msra.mxu0 0.0
        %3190 = vmatprep.subr.mxu0 0.0
        %3191 = vmatpush2.msra.mxu0 0.0
        %3192 = vmatprep.subr.mxu0 0.0
        %3193 = vmatpush2.msra.mxu0 0.0
        %3194 = vmatprep.subr.mxu0 0.0
        %3195 = vmatpush2.msra.mxu0 0.0
        %3196 = vmatprep.subr.mxu0 0.0
        %3197 = vmatpush2.msra.mxu0 0.0
        %3198 = vmatprep.subr.mxu0 0.0
        %3199 = vmatpush2.msra.mxu0 0.0
        %3200 = vmatprep.subr.mxu0 0.0
        %3201 = vmatpush2.msra.mxu0 0.0
        %3202 = vmatprep.subr.mxu0 0.0
        %3203 = vmatpush2.msra.mxu0 0.0
        %3204 = vmatprep.subr.mxu0 0.0
        %3205 = vmatpush2.msra.mxu0 0.0
        %3206 = vmatprep.subr.mxu0 0.0
        %3207 = vmatpush2.msra.mxu0 0.0
        %3208 = vmatprep.mubr.f32.mxu0 0.0
        %3209 = vmatmul.mubr.f32.gmra.mxu0 %v3121
        %v3210 = vpop.f32.mrf.mxu0
        %v3211 = vadd.f32 0.0, %v3210
        %v3212 = vpop.f32.mrf.mxu0
        %3213 = vmatprep.mubr.f32.mxu0 0.0
        %3214 = vmatmul.mubr.f32.gmra.mxu0 %v3124
        %v3215 = vpop.f32.mrf.mxu0
        %v3216 = vadd.f32 0.0, %v3215
        %v3217 = vpop.f32.mrf.mxu0
        %3218 = vmatprep.mubr.f32.mxu0 0.0
        %3219 = vmatmul.mubr.f32.gmra.mxu0 %v3127
        %v3220 = vpop.f32.mrf.mxu0
        %v3221 = vadd.f32 0.0, %v3220
        %v3222 = vpop.f32.mrf.mxu0
        %3223 = vmatprep.mubr.f32.mxu0 0.0
        %3224 = vmatmul.mubr.f32.gmra.mxu0 %v3130
        %v3225 = vpop.f32.mrf.mxu0
        %v3226 = vadd.f32 0.0, %v3225
        %v3227 = vpop.f32.mrf.mxu0
        %3228 = vmatprep.mubr.f32.mxu0 0.0
        %3229 = vmatmul.mubr.f32.gmra.mxu0 %v3133
        %v3230 = vpop.f32.mrf.mxu0
        %v3231 = vadd.f32 0.0, %v3230
        %v3232 = vpop.f32.mrf.mxu0
        %3233 = vmatprep.mubr.f32.mxu0 0.0
        %3234 = vmatmul.mubr.f32.gmra.mxu0 %v3136
        %v3235 = vpop.f32.mrf.mxu0
        %v3236 = vadd.f32 0.0, %v3235
        %v3237 = vpop.f32.mrf.mxu0
        %3238 = vmatprep.mubr.f32.mxu0 0.0
        %3239 = vmatmul.mubr.f32.gmra.mxu0 %v3139
        %v3240 = vpop.f32.mrf.mxu0
        %v3241 = vadd.f32 0.0, %v3240
        %v3242 = vpop.f32.mrf.mxu0
        %3243 = vmatprep.mubr.f32.mxu0 0.0
        %3244 = vmatmul.mubr.f32.gmra.mxu0 %v3142
        %v3245 = vpop.f32.mrf.mxu0
        %v3246 = vadd.f32 0.0, %v3245
        %v3247 = vpop.f32.mrf.mxu0
        %3248 = vdwg.mxu0
        %3249 = vrot.lane.b32.xlu0 %v387, 20
        %v3250 = vpop.permute.xlu0 %3249
        %3251 = vrot.lane.b32.xlu0 %v392, 20
        %v3252 = vpop.permute.xlu0 %3251
        %3253 = vrot.lane.b32.xlu0 %v397, 20
        %v3254 = vpop.permute.xlu0 %3253
        %3255 = vrot.lane.b32.xlu0 %v402, 20
        %v3256 = vpop.permute.xlu0 %3255
        %3257 = vrot.lane.b32.xlu0 %v407, 20
        %v3258 = vpop.permute.xlu0 %3257
        %3259 = vrot.lane.b32.xlu0 %v412, 20
        %v3260 = vpop.permute.xlu0 %3259
        %3261 = vrot.lane.b32.xlu0 %v417, 20
        %v3262 = vpop.permute.xlu0 %3261
        %3263 = vrot.lane.b32.xlu0 %v422, 20
        %v3264 = vpop.permute.xlu0 %3263
        %v3274 = vsel %vm295, %v3088, 0
        %v3277 = vsel %vm295, %v3089, 0
        %v3280 = vsel %vm295, %v3090, 0
        %v3283 = vsel %vm295, %v3091, 0
        %v3286 = vsel %vm295, %v3092, 0
        %v3289 = vsel %vm295, %v3093, 0
        %v3292 = vsel %vm295, %v3094, 0
        %v3295 = vsel %vm295, %v3095, 0
        %3297 = vmatprep.subr.mxu0 0.0
        %3298 = vmatpush1.msra.mxu0 0.0
        %3299 = vmatprep.subr.mxu0 0.0
        %3300 = vmatpush1.msra.mxu0 0.0
        %3301 = vmatprep.subr.mxu0 0.0
        %3302 = vmatpush1.msra.mxu0 0.0
        %3303 = vmatprep.subr.mxu0 0.0
        %3304 = vmatpush1.msra.mxu0 0.0
        %3305 = vmatprep.subr.mxu0 0.0
        %3306 = vmatpush1.msra.mxu0 0.0
        %3307 = vmatprep.subr.mxu0 0.0
        %3308 = vmatpush1.msra.mxu0 0.0
        %3309 = vmatprep.subr.mxu0 0.0
        %3310 = vmatpush1.msra.mxu0 0.0
        %3311 = vmatprep.subr.mxu0 0.0
        %3312 = vmatpush1.msra.mxu0 0.0
        %3313 = vmatprep.subr.mxu0 0.0
        %3314 = vmatpush1.msra.mxu0 %v3264
        %3315 = vmatprep.subr.mxu0 0.0
        %3316 = vmatpush1.msra.mxu0 %v3262
        %3317 = vmatprep.subr.mxu0 0.0
        %3318 = vmatpush1.msra.mxu0 %v3260
        %3319 = vmatprep.subr.mxu0 0.0
        %3320 = vmatpush1.msra.mxu0 %v3258
        %3321 = vmatprep.subr.mxu0 0.0
        %3322 = vmatpush1.msra.mxu0 %v3256
        %3323 = vmatprep.subr.mxu0 0.0
        %3324 = vmatpush1.msra.mxu0 %v3254
        %3325 = vmatprep.subr.mxu0 0.0
        %3326 = vmatpush1.msra.mxu0 %v3252
        %3327 = vmatprep.subr.mxu0 0.0
        %3328 = vmatpush1.msra.mxu0 %v3250
        %3329 = vmatprep.subr.mxu0 0.0
        %3330 = vmatpush2.msra.mxu0 0.0
        %3331 = vmatprep.subr.mxu0 0.0
        %3332 = vmatpush2.msra.mxu0 0.0
        %3333 = vmatprep.subr.mxu0 0.0
        %3334 = vmatpush2.msra.mxu0 0.0
        %3335 = vmatprep.subr.mxu0 0.0
        %3336 = vmatpush2.msra.mxu0 0.0
        %3337 = vmatprep.subr.mxu0 0.0
        %3338 = vmatpush2.msra.mxu0 0.0
        %3339 = vmatprep.subr.mxu0 0.0
        %3340 = vmatpush2.msra.mxu0 0.0
        %3341 = vmatprep.subr.mxu0 0.0
        %3342 = vmatpush2.msra.mxu0 0.0
        %3343 = vmatprep.subr.mxu0 0.0
        %3344 = vmatpush2.msra.mxu0 0.0
        %3345 = vmatprep.subr.mxu0 0.0
        %3346 = vmatpush2.msra.mxu0 0.0
        %3347 = vmatprep.subr.mxu0 0.0
        %3348 = vmatpush2.msra.mxu0 0.0
        %3349 = vmatprep.subr.mxu0 0.0
        %3350 = vmatpush2.msra.mxu0 0.0
        %3351 = vmatprep.subr.mxu0 0.0
        %3352 = vmatpush2.msra.mxu0 0.0
        %3353 = vmatprep.subr.mxu0 0.0
        %3354 = vmatpush2.msra.mxu0 0.0
        %3355 = vmatprep.subr.mxu0 0.0
        %3356 = vmatpush2.msra.mxu0 0.0
        %3357 = vmatprep.subr.mxu0 0.0
        %3358 = vmatpush2.msra.mxu0 0.0
        %3359 = vmatprep.subr.mxu0 0.0
        %3360 = vmatpush2.msra.mxu0 0.0
        %3361 = vmatprep.mubr.f32.mxu0 0.0
        %3362 = vmatmul.mubr.f32.gmra.mxu0 %v3274
        %v3363 = vpop.f32.mrf.mxu0
        %v3364 = vadd.f32 0.0, %v3363
        %v3365 = vpop.f32.mrf.mxu0
        %3366 = vmatprep.mubr.f32.mxu0 0.0
        %3367 = vmatmul.mubr.f32.gmra.mxu0 %v3277
        %v3368 = vpop.f32.mrf.mxu0
        %v3369 = vadd.f32 0.0, %v3368
        %v3370 = vpop.f32.mrf.mxu0
        %3371 = vmatprep.mubr.f32.mxu0 0.0
        %3372 = vmatmul.mubr.f32.gmra.mxu0 %v3280
        %v3373 = vpop.f32.mrf.mxu0
        %v3374 = vadd.f32 0.0, %v3373
        %v3375 = vpop.f32.mrf.mxu0
        %3376 = vmatprep.mubr.f32.mxu0 0.0
        %3377 = vmatmul.mubr.f32.gmra.mxu0 %v3283
        %v3378 = vpop.f32.mrf.mxu0
        %v3379 = vadd.f32 0.0, %v3378
        %v3380 = vpop.f32.mrf.mxu0
        %3381 = vmatprep.mubr.f32.mxu0 0.0
        %3382 = vmatmul.mubr.f32.gmra.mxu0 %v3286
        %v3383 = vpop.f32.mrf.mxu0
        %v3384 = vadd.f32 0.0, %v3383
        %v3385 = vpop.f32.mrf.mxu0
        %3386 = vmatprep.mubr.f32.mxu0 0.0
        %3387 = vmatmul.mubr.f32.gmra.mxu0 %v3289
        %v3388 = vpop.f32.mrf.mxu0
        %v3389 = vadd.f32 0.0, %v3388
        %v3390 = vpop.f32.mrf.mxu0
        %3391 = vmatprep.mubr.f32.mxu0 0.0
        %3392 = vmatmul.mubr.f32.gmra.mxu0 %v3292
        %v3393 = vpop.f32.mrf.mxu0
        %v3394 = vadd.f32 0.0, %v3393
        %v3395 = vpop.f32.mrf.mxu0
        %3396 = vmatprep.mubr.f32.mxu0 0.0
        %3397 = vmatmul.mubr.f32.gmra.mxu0 %v3295
        %v3398 = vpop.f32.mrf.mxu0
        %v3399 = vadd.f32 0.0, %v3398
        %v3400 = vpop.f32.mrf.mxu0
        %3401 = vdwg.mxu0
        %3402 = vrot.lane.b32.xlu0 %v387, 112
        %v3403 = vpop.permute.xlu0 %3402
        %3404 = vrot.lane.b32.xlu0 %v392, 112
        %v3405 = vpop.permute.xlu0 %3404
        %3406 = vrot.lane.b32.xlu0 %v397, 112
        %v3407 = vpop.permute.xlu0 %3406
        %3408 = vrot.lane.b32.xlu0 %v402, 112
        %v3409 = vpop.permute.xlu0 %3408
        %3410 = vrot.lane.b32.xlu0 %v407, 112
        %v3411 = vpop.permute.xlu0 %3410
        %3412 = vrot.lane.b32.xlu0 %v412, 112
        %v3413 = vpop.permute.xlu0 %3412
        %3414 = vrot.lane.b32.xlu0 %v417, 112
        %v3415 = vpop.permute.xlu0 %3414
        %3416 = vrot.lane.b32.xlu0 %v422, 112
        %v3417 = vpop.permute.xlu0 %3416
        %3418 = vrot.lane.b32.xlu0 %v387, 48
        %v3419 = vpop.permute.xlu0 %3418
        %3420 = vrot.lane.b32.xlu0 %v392, 48
        %v3421 = vpop.permute.xlu0 %3420
        %3422 = vrot.lane.b32.xlu0 %v397, 48
        %v3423 = vpop.permute.xlu0 %3422
        %3424 = vrot.lane.b32.xlu0 %v402, 48
        %v3425 = vpop.permute.xlu0 %3424
        %3426 = vrot.lane.b32.xlu0 %v407, 48
        %v3427 = vpop.permute.xlu0 %3426
        %3428 = vrot.lane.b32.xlu0 %v412, 48
        %v3429 = vpop.permute.xlu0 %3428
        %3430 = vrot.lane.b32.xlu0 %v417, 48
        %v3431 = vpop.permute.xlu0 %3430
        %3432 = vrot.lane.b32.xlu0 %v422, 48
        %v3433 = vpop.permute.xlu0 %3432
        %v3434 = vsel %vm449, %v3403, 0
        %v3436 = vsel %vm449, %v3405, 0
        %v3438 = vsel %vm449, %v3407, 0
        %v3440 = vsel %vm449, %v3409, 0
        %v3442 = vsel %vm449, %v3411, 0
        %v3444 = vsel %vm449, %v3413, 0
        %v3446 = vsel %vm449, %v3415, 0
        %v3448 = vsel %vm449, %v3417, 0
        %v3450 = vsel %vm449, %v3419, 0
        %v3452 = vsel %vm449, %v3421, 0
        %v3454 = vsel %vm449, %v3423, 0
        %v3456 = vsel %vm449, %v3425, 0
        %v3458 = vsel %vm449, %v3427, 0
        %v3460 = vsel %vm449, %v3429, 0
        %v3462 = vsel %vm449, %v3431, 0
        %v3464 = vsel %vm449, %v3433, 0
        %3466 = vmatprep.subr.mxu0 0.0
        %3467 = vmatpush1.xpose.msra.mxu0 0.0
        %3468 = vmatprep.subr.mxu0 0.0
        %3469 = vmatpush1.xpose.msra.mxu0 0.0
        %3470 = vmatprep.subr.mxu0 0.0
        %3471 = vmatpush1.xpose.msra.mxu0 0.0
        %3472 = vmatprep.subr.mxu0 0.0
        %3473 = vmatpush1.xpose.msra.mxu0 0.0
        %3474 = vmatprep.subr.mxu0 0.0
        %3475 = vmatpush1.xpose.msra.mxu0 0.0
        %3476 = vmatprep.subr.mxu0 0.0
        %3477 = vmatpush1.xpose.msra.mxu0 0.0
        %3478 = vmatprep.subr.mxu0 0.0
        %3479 = vmatpush1.xpose.msra.mxu0 0.0
        %3480 = vmatprep.subr.mxu0 0.0
        %3481 = vmatpush1.xpose.msra.mxu0 0.0
        %3482 = vmatprep.subr.mxu0 0.0
        %3483 = vmatpush1.xpose.msra.mxu0 %v3464
        %3484 = vmatprep.subr.mxu0 0.0
        %3485 = vmatpush1.xpose.msra.mxu0 %v3462
        %3486 = vmatprep.subr.mxu0 0.0
        %3487 = vmatpush1.xpose.msra.mxu0 %v3460
        %3488 = vmatprep.subr.mxu0 0.0
        %3489 = vmatpush1.xpose.msra.mxu0 %v3458
        %3490 = vmatprep.subr.mxu0 0.0
        %3491 = vmatpush1.xpose.msra.mxu0 %v3456
        %3492 = vmatprep.subr.mxu0 0.0
        %3493 = vmatpush1.xpose.msra.mxu0 %v3454
        %3494 = vmatprep.subr.mxu0 0.0
        %3495 = vmatpush1.xpose.msra.mxu0 %v3452
        %3496 = vmatprep.subr.mxu0 0.0
        %3497 = vmatpush1.xpose.msra.mxu0 %v3450
        %3498 = vmatprep.subr.mxu0 0.0
        %3499 = vmatpush2.xpose.msra.mxu0 0.0
        %3500 = vmatprep.subr.mxu0 0.0
        %3501 = vmatpush2.xpose.msra.mxu0 0.0
        %3502 = vmatprep.subr.mxu0 0.0
        %3503 = vmatpush2.xpose.msra.mxu0 0.0
        %3504 = vmatprep.subr.mxu0 0.0
        %3505 = vmatpush2.xpose.msra.mxu0 0.0
        %3506 = vmatprep.subr.mxu0 0.0
        %3507 = vmatpush2.xpose.msra.mxu0 0.0
        %3508 = vmatprep.subr.mxu0 0.0
        %3509 = vmatpush2.xpose.msra.mxu0 0.0
        %3510 = vmatprep.subr.mxu0 0.0
        %3511 = vmatpush2.xpose.msra.mxu0 0.0
        %3512 = vmatprep.subr.mxu0 0.0
        %3513 = vmatpush2.xpose.msra.mxu0 0.0
        %3514 = vmatprep.subr.mxu0 0.0
        %3515 = vmatpush2.xpose.msra.mxu0 0.0
        %3516 = vmatprep.subr.mxu0 0.0
        %3517 = vmatpush2.xpose.msra.mxu0 0.0
        %3518 = vmatprep.subr.mxu0 0.0
        %3519 = vmatpush2.xpose.msra.mxu0 0.0
        %3520 = vmatprep.subr.mxu0 0.0
        %3521 = vmatpush2.xpose.msra.mxu0 0.0
        %3522 = vmatprep.subr.mxu0 0.0
        %3523 = vmatpush2.xpose.msra.mxu0 0.0
        %3524 = vmatprep.subr.mxu0 0.0
        %3525 = vmatpush2.xpose.msra.mxu0 0.0
        %3526 = vmatprep.subr.mxu0 0.0
        %3527 = vmatpush2.xpose.msra.mxu0 0.0
        %3528 = vmatprep.subr.mxu0 0.0
        %3529 = vmatpush2.xpose.msra.mxu0 0.0
        %3530 = vmatprep.mubr.f32.mxu0 0.0
        %3531 = vmatmul.mubr.f32.gmra.mxu0 %v3434
        %v3532 = vpop.f32.mrf.mxu0
        %v3533 = vadd.f32 0.0, %v3532
        %v3534 = vpop.f32.mrf.mxu0
        %3535 = vmatprep.mubr.f32.mxu0 0.0
        %3536 = vmatmul.mubr.f32.gmra.mxu0 %v3436
        %v3537 = vpop.f32.mrf.mxu0
        %v3538 = vadd.f32 0.0, %v3537
        %v3539 = vpop.f32.mrf.mxu0
        %3540 = vmatprep.mubr.f32.mxu0 0.0
        %3541 = vmatmul.mubr.f32.gmra.mxu0 %v3438
        %v3542 = vpop.f32.mrf.mxu0
        %v3543 = vadd.f32 0.0, %v3542
        %v3544 = vpop.f32.mrf.mxu0
        %3545 = vmatprep.mubr.f32.mxu0 0.0
        %3546 = vmatmul.mubr.f32.gmra.mxu0 %v3440
        %v3547 = vpop.f32.mrf.mxu0
        %v3548 = vadd.f32 0.0, %v3547
        %v3549 = vpop.f32.mrf.mxu0
        %3550 = vmatprep.mubr.f32.mxu0 0.0
        %3551 = vmatmul.mubr.f32.gmra.mxu0 %v3442
        %v3552 = vpop.f32.mrf.mxu0
        %v3553 = vadd.f32 0.0, %v3552
        %v3554 = vpop.f32.mrf.mxu0
        %3555 = vmatprep.mubr.f32.mxu0 0.0
        %3556 = vmatmul.mubr.f32.gmra.mxu0 %v3444
        %v3557 = vpop.f32.mrf.mxu0
        %v3558 = vadd.f32 0.0, %v3557
        %v3559 = vpop.f32.mrf.mxu0
        %3560 = vmatprep.mubr.f32.mxu0 0.0
        %3561 = vmatmul.mubr.f32.gmra.mxu0 %v3446
        %v3562 = vpop.f32.mrf.mxu0
        %v3563 = vadd.f32 0.0, %v3562
        %v3564 = vpop.f32.mrf.mxu0
        %3565 = vmatprep.mubr.f32.mxu0 0.0
        %3566 = vmatmul.mubr.f32.gmra.mxu0 %v3448
        %v3567 = vpop.f32.mrf.mxu0
        %v3568 = vadd.f32 0.0, %v3567
        %v3569 = vpop.f32.mrf.mxu0
        %3570 = vdwg.mxu0
        %v3571 = vmul.f32 %v3533, 0.5
        %v3572 = vmul.f32 %v3538, 0.5
        %v3573 = vmul.f32 %v3543, 0.5
        %v3574 = vmul.f32 %v3548, 0.5
        %v3575 = vmul.f32 %v3553, 0.5
        %v3576 = vmul.f32 %v3558, 0.5
        %v3577 = vmul.f32 %v3563, 0.5
        %v3578 = vmul.f32 %v3568, 0.5
        %3579 = vmatprep.subr.mxu0 0.0
        %3580 = vmatpush1.xpose.msra.mxu0 0.0
        %3581 = vmatprep.subr.mxu0 0.0
        %3582 = vmatpush1.xpose.msra.mxu0 0.0
        %3583 = vmatprep.subr.mxu0 0.0
        %3584 = vmatpush1.xpose.msra.mxu0 0.0
        %3585 = vmatprep.subr.mxu0 0.0
        %3586 = vmatpush1.xpose.msra.mxu0 0.0
        %3587 = vmatprep.subr.mxu0 0.0
        %3588 = vmatpush1.xpose.msra.mxu0 0.0
        %3589 = vmatprep.subr.mxu0 0.0
        %3590 = vmatpush1.xpose.msra.mxu0 0.0
        %3591 = vmatprep.subr.mxu0 0.0
        %3592 = vmatpush1.xpose.msra.mxu0 0.0
        %3593 = vmatprep.subr.mxu0 0.0
        %3594 = vmatpush1.xpose.msra.mxu0 0.0
        %3595 = vmatprep.subr.mxu0 0.0
        %3596 = vmatpush1.xpose.msra.mxu0 %v3448
        %3597 = vmatprep.subr.mxu0 0.0
        %3598 = vmatpush1.xpose.msra.mxu0 %v3446
        %3599 = vmatprep.subr.mxu0 0.0
        %3600 = vmatpush1.xpose.msra.mxu0 %v3444
        %3601 = vmatprep.subr.mxu0 0.0
        %3602 = vmatpush1.xpose.msra.mxu0 %v3442
        %3603 = vmatprep.subr.mxu0 0.0
        %3604 = vmatpush1.xpose.msra.mxu0 %v3440
        %3605 = vmatprep.subr.mxu0 0.0
        %3606 = vmatpush1.xpose.msra.mxu0 %v3438
        %3607 = vmatprep.subr.mxu0 0.0
        %3608 = vmatpush1.xpose.msra.mxu0 %v3436
        %3609 = vmatprep.subr.mxu0 0.0
        %3610 = vmatpush1.xpose.msra.mxu0 %v3434
        %3611 = vmatprep.subr.mxu0 0.0
        %3612 = vmatpush2.xpose.msra.mxu0 0.0
        %3613 = vmatprep.subr.mxu0 0.0
        %3614 = vmatpush2.xpose.msra.mxu0 0.0
        %3615 = vmatprep.subr.mxu0 0.0
        %3616 = vmatpush2.xpose.msra.mxu0 0.0
        %3617 = vmatprep.subr.mxu0 0.0
        %3618 = vmatpush2.xpose.msra.mxu0 0.0
        %3619 = vmatprep.subr.mxu0 0.0
        %3620 = vmatpush2.xpose.msra.mxu0 0.0
        %3621 = vmatprep.subr.mxu0 0.0
        %3622 = vmatpush2.xpose.msra.mxu0 0.0
        %3623 = vmatprep.subr.mxu0 0.0
        %3624 = vmatpush2.xpose.msra.mxu0 0.0
        %3625 = vmatprep.subr.mxu0 0.0
        %3626 = vmatpush2.xpose.msra.mxu0 0.0
        %3627 = vmatprep.subr.mxu0 0.0
        %3628 = vmatpush2.xpose.msra.mxu0 0.0
        %3629 = vmatprep.subr.mxu0 0.0
        %3630 = vmatpush2.xpose.msra.mxu0 0.0
        %3631 = vmatprep.subr.mxu0 0.0
        %3632 = vmatpush2.xpose.msra.mxu0 0.0
        %3633 = vmatprep.subr.mxu0 0.0
        %3634 = vmatpush2.xpose.msra.mxu0 0.0
        %3635 = vmatprep.subr.mxu0 0.0
        %3636 = vmatpush2.xpose.msra.mxu0 0.0
        %3637 = vmatprep.subr.mxu0 0.0
        %3638 = vmatpush2.xpose.msra.mxu0 0.0
        %3639 = vmatprep.subr.mxu0 0.0
        %3640 = vmatpush2.xpose.msra.mxu0 0.0
        %3641 = vmatprep.subr.mxu0 0.0
        %3642 = vmatpush2.xpose.msra.mxu0 0.0
        %3643 = vmatprep.mubr.f32.mxu0 0.0
        %3644 = vmatmul.mubr.f32.gmra.mxu0 %v3450
        %v3645 = vpop.f32.mrf.mxu0
        %v3646 = vadd.f32 0.0, %v3645
        %v3647 = vpop.f32.mrf.mxu0
        %3648 = vmatprep.mubr.f32.mxu0 0.0
        %3649 = vmatmul.mubr.f32.gmra.mxu0 %v3452
        %v3650 = vpop.f32.mrf.mxu0
        %v3651 = vadd.f32 0.0, %v3650
        %v3652 = vpop.f32.mrf.mxu0
        %3653 = vmatprep.mubr.f32.mxu0 0.0
        %3654 = vmatmul.mubr.f32.gmra.mxu0 %v3454
        %v3655 = vpop.f32.mrf.mxu0
        %v3656 = vadd.f32 0.0, %v3655
        %v3657 = vpop.f32.mrf.mxu0
        %3658 = vmatprep.mubr.f32.mxu0 0.0
        %3659 = vmatmul.mubr.f32.gmra.mxu0 %v3456
        %v3660 = vpop.f32.mrf.mxu0
        %v3661 = vadd.f32 0.0, %v3660
        %v3662 = vpop.f32.mrf.mxu0
        %3663 = vmatprep.mubr.f32.mxu0 0.0
        %3664 = vmatmul.mubr.f32.gmra.mxu0 %v3458
        %v3665 = vpop.f32.mrf.mxu0
        %v3666 = vadd.f32 0.0, %v3665
        %v3667 = vpop.f32.mrf.mxu0
        %3668 = vmatprep.mubr.f32.mxu0 0.0
        %3669 = vmatmul.mubr.f32.gmra.mxu0 %v3460
        %v3670 = vpop.f32.mrf.mxu0
        %v3671 = vadd.f32 0.0, %v3670
        %v3672 = vpop.f32.mrf.mxu0
        %3673 = vmatprep.mubr.f32.mxu0 0.0
        %3674 = vmatmul.mubr.f32.gmra.mxu0 %v3462
        %v3675 = vpop.f32.mrf.mxu0
        %v3676 = vadd.f32 0.0, %v3675
        %v3677 = vpop.f32.mrf.mxu0
        %3678 = vmatprep.mubr.f32.mxu0 0.0
        %3679 = vmatmul.mubr.f32.gmra.mxu0 %v3464
        %v3680 = vpop.f32.mrf.mxu0
        %v3681 = vadd.f32 0.0, %v3680
        %v3682 = vpop.f32.mrf.mxu0
        %3683 = vdwg.mxu0
        %v3684 = vmul.f32 %v3646, 0.5
        %v3685 = vmul.f32 %v3651, 0.5
        %v3686 = vmul.f32 %v3656, 0.5
        %v3687 = vmul.f32 %v3661, 0.5
        %v3688 = vmul.f32 %v3666, 0.5
        %v3689 = vmul.f32 %v3671, 0.5
        %v3690 = vmul.f32 %v3676, 0.5
        %v3691 = vmul.f32 %v3681, 0.5
        %v3692 = vsel %vm295, %v3571, -inf
        %v3693 = vsel %vm295, %v3572, -inf
        %v3694 = vsel %vm295, %v3573, -inf
        %v3695 = vsel %vm295, %v3574, -inf
        %v3696 = vsel %vm295, %v3575, -inf
        %v3697 = vmax.f32 %v3692, %v3696
        %v3698 = vsel %vm295, %v3576, -inf
        %v3699 = vmax.f32 %v3693, %v3698
        %v3700 = vsel %vm295, %v3577, -inf
        %v3701 = vmax.f32 %v3694, %v3700
        %v3702 = vsel %vm295, %v3578, -inf
        %v3703 = vmax.f32 %v3695, %v3702
        %v3704 = vmax.f32 %v3697, %v3699
        %v3705 = vmax.f32 %v3701, %v3703
        %v3706 = vmax.f32 %v3704, %v3705
        %v3707 = vrot.slane %v3706, 4
        %v3708 = vmax.f32 %v3706, %v3707
        %v3709 = vrot.slane %v3708, 2
        %v3710 = vmax.f32 %v3708, %v3709
        %v3711 = vrot.slane %v3710, 1
        %v3712 = vmax.f32 %v3710, %v3711
        %v3713 = vsub.f32 %v3571, %v3712
        %v3714 = vsub.f32 %v3572, %v3712
        %v3715 = vsub.f32 %v3573, %v3712
        %v3716 = vsub.f32 %v3574, %v3712
        %v3717 = vsub.f32 %v3575, %v3712
        %v3718 = vsub.f32 %v3576, %v3712
        %v3719 = vsub.f32 %v3577, %v3712
        %v3720 = vsub.f32 %v3578, %v3712
        %v3721 = vmul.f32 %v3713, 1.442695
        %v3722 = vpow.pop %v3721
        %v3723 = vmul.f32 %v3714, 1.442695
        %v3724 = vpow.pop %v3723
        %v3725 = vmul.f32 %v3715, 1.442695
        %v3726 = vpow.pop %v3725
        %v3727 = vmul.f32 %v3716, 1.442695
        %v3728 = vpow.pop %v3727
        %v3729 = vmul.f32 %v3717, 1.442695
        %v3730 = vpow.pop %v3729
        %v3731 = vmul.f32 %v3718, 1.442695
        %v3732 = vpow.pop %v3731
        %v3733 = vmul.f32 %v3719, 1.442695
        %v3734 = vpow.pop %v3733
        %v3735 = vmul.f32 %v3720, 1.442695
        %v3736 = vpow.pop %v3735
        %v3737 = vsel %vm295, %v3722, 0.0
        %v3738 = vsel %vm295, %v3724, 0.0
        %v3739 = vadd.f32 %v3737, %v3738
        %v3740 = vsel %vm295, %v3726, 0.0
        %v3741 = vadd.f32 %v3739, %v3740
        %v3742 = vsel %vm295, %v3728, 0.0
        %v3743 = vadd.f32 %v3741, %v3742
        %v3744 = vsel %vm295, %v3730, 0.0
        %v3745 = vadd.f32 %v3743, %v3744
        %v3746 = vsel %vm295, %v3732, 0.0
        %v3747 = vadd.f32 %v3745, %v3746
        %v3748 = vsel %vm295, %v3734, 0.0
        %v3749 = vadd.f32 %v3747, %v3748
        %v3750 = vsel %vm295, %v3736, 0.0
        %v3751 = vadd.f32 %v3749, %v3750
        %v3752 = vrot.slane %v3751, 4
        %v3753 = vadd.f32 %v3751, %v3752
        %v3754 = vrot.slane %v3753, 2
        %v3755 = vadd.f32 %v3753, %v3754
        %v3756 = vrot.slane %v3755, 1
        %v3757 = vadd.f32 %v3755, %v3756
        %v3758 = vrcp.pop %v3757
        %v3759 = vmul.f32 %v3722, %v3758
        %v3760 = vmul.f32 %v3724, %v3758
        %v3761 = vmul.f32 %v3726, %v3758
        %v3762 = vmul.f32 %v3728, %v3758
        %v3763 = vmul.f32 %v3730, %v3758
        %v3764 = vmul.f32 %v3732, %v3758
        %v3765 = vmul.f32 %v3734, %v3758
        %v3766 = vmul.f32 %v3736, %v3758
        %v3767 = vsel %vm295, %v3684, -inf
        %v3768 = vsel %vm295, %v3685, -inf
        %v3769 = vsel %vm295, %v3686, -inf
        %v3770 = vsel %vm295, %v3687, -inf
        %v3771 = vsel %vm295, %v3688, -inf
        %v3772 = vmax.f32 %v3767, %v3771
        %v3773 = vsel %vm295, %v3689, -inf
        %v3774 = vmax.f32 %v3768, %v3773
        %v3775 = vsel %vm295, %v3690, -inf
        %v3776 = vmax.f32 %v3769, %v3775
        %v3777 = vsel %vm295, %v3691, -inf
        %v3778 = vmax.f32 %v3770, %v3777
        %v3779 = vmax.f32 %v3772, %v3774
        %v3780 = vmax.f32 %v3776, %v3778
        %v3781 = vmax.f32 %v3779, %v3780
        %v3782 = vrot.slane %v3781, 4
        %v3783 = vmax.f32 %v3781, %v3782
        %v3784 = vrot.slane %v3783, 2
        %v3785 = vmax.f32 %v3783, %v3784
        %v3786 = vrot.slane %v3785, 1
        %v3787 = vmax.f32 %v3785, %v3786
        %v3788 = vsub.f32 %v3684, %v3787
        %v3789 = vsub.f32 %v3685, %v3787
        %v3790 = vsub.f32 %v3686, %v3787
        %v3791 = vsub.f32 %v3687, %v3787
        %v3792 = vsub.f32 %v3688, %v3787
        %v3793 = vsub.f32 %v3689, %v3787
        %v3794 = vsub.f32 %v3690, %v3787
        %v3795 = vsub.f32 %v3691, %v3787
        %v3796 = vmul.f32 %v3788, 1.442695
        %v3797 = vpow.pop %v3796
        %v3798 = vmul.f32 %v3789, 1.442695
        %v3799 = vpow.pop %v3798
        %v3800 = vmul.f32 %v3790, 1.442695
        %v3801 = vpow.pop %v3800
        %v3802 = vmul.f32 %v3791, 1.442695
        %v3803 = vpow.pop %v3802
        %v3804 = vmul.f32 %v3792, 1.442695
        %v3805 = vpow.pop %v3804
        %v3806 = vmul.f32 %v3793, 1.442695
        %v3807 = vpow.pop %v3806
        %v3808 = vmul.f32 %v3794, 1.442695
        %v3809 = vpow.pop %v3808
        %v3810 = vmul.f32 %v3795, 1.442695
        %v3811 = vpow.pop %v3810
        %v3812 = vsel %vm295, %v3797, 0.0
        %v3813 = vsel %vm295, %v3799, 0.0
        %v3814 = vadd.f32 %v3812, %v3813
        %v3815 = vsel %vm295, %v3801, 0.0
        %v3816 = vadd.f32 %v3814, %v3815
        %v3817 = vsel %vm295, %v3803, 0.0
        %v3818 = vadd.f32 %v3816, %v3817
        %v3819 = vsel %vm295, %v3805, 0.0
        %v3820 = vadd.f32 %v3818, %v3819
        %v3821 = vsel %vm295, %v3807, 0.0
        %v3822 = vadd.f32 %v3820, %v3821
        %v3823 = vsel %vm295, %v3809, 0.0
        %v3824 = vadd.f32 %v3822, %v3823
        %v3825 = vsel %vm295, %v3811, 0.0
        %v3826 = vadd.f32 %v3824, %v3825
        %v3827 = vrot.slane %v3826, 4
        %v3828 = vadd.f32 %v3826, %v3827
        %v3829 = vrot.slane %v3828, 2
        %v3830 = vadd.f32 %v3828, %v3829
        %v3831 = vrot.slane %v3830, 1
        %v3832 = vadd.f32 %v3830, %v3831
        %v3833 = vrcp.pop %v3832
        %v3834 = vmul.f32 %v3797, %v3833
        %v3835 = vmul.f32 %v3799, %v3833
        %v3836 = vmul.f32 %v3801, %v3833
        %v3837 = vmul.f32 %v3803, %v3833
        %v3838 = vmul.f32 %v3805, %v3833
        %v3839 = vmul.f32 %v3807, %v3833
        %v3840 = vmul.f32 %v3809, %v3833
        %v3841 = vmul.f32 %v3811, %v3833
        %3842 = vrot.lane.b32.xlu0 %v387, 80
        %v3843 = vpop.permute.xlu0 %3842
        %3844 = vrot.lane.b32.xlu0 %v392, 80
        %v3845 = vpop.permute.xlu0 %3844
        %3846 = vrot.lane.b32.xlu0 %v397, 80
        %v3847 = vpop.permute.xlu0 %3846
        %3848 = vrot.lane.b32.xlu0 %v402, 80
        %v3849 = vpop.permute.xlu0 %3848
        %3850 = vrot.lane.b32.xlu0 %v407, 80
        %v3851 = vpop.permute.xlu0 %3850
        %3852 = vrot.lane.b32.xlu0 %v412, 80
        %v3853 = vpop.permute.xlu0 %3852
        %3854 = vrot.lane.b32.xlu0 %v417, 80
        %v3855 = vpop.permute.xlu0 %3854
        %3856 = vrot.lane.b32.xlu0 %v422, 80
        %v3857 = vpop.permute.xlu0 %3856
        %v3867 = vsel %vm295, %v3759, 0
        %v3870 = vsel %vm295, %v3760, 0
        %v3873 = vsel %vm295, %v3761, 0
        %v3876 = vsel %vm295, %v3762, 0
        %v3879 = vsel %vm295, %v3763, 0
        %v3882 = vsel %vm295, %v3764, 0
        %v3885 = vsel %vm295, %v3765, 0
        %v3888 = vsel %vm295, %v3766, 0
        %3890 = vmatprep.subr.mxu0 0.0
        %3891 = vmatpush1.msra.mxu0 0.0
        %3892 = vmatprep.subr.mxu0 0.0
        %3893 = vmatpush1.msra.mxu0 0.0
        %3894 = vmatprep.subr.mxu0 0.0
        %3895 = vmatpush1.msra.mxu0 0.0
        %3896 = vmatprep.subr.mxu0 0.0
        %3897 = vmatpush1.msra.mxu0 0.0
        %3898 = vmatprep.subr.mxu0 0.0
        %3899 = vmatpush1.msra.mxu0 0.0
        %3900 = vmatprep.subr.mxu0 0.0
        %3901 = vmatpush1.msra.mxu0 0.0
        %3902 = vmatprep.subr.mxu0 0.0
        %3903 = vmatpush1.msra.mxu0 0.0
        %3904 = vmatprep.subr.mxu0 0.0
        %3905 = vmatpush1.msra.mxu0 0.0
        %3906 = vmatprep.subr.mxu0 0.0
        %3907 = vmatpush1.msra.mxu0 %v3857
        %3908 = vmatprep.subr.mxu0 0.0
        %3909 = vmatpush1.msra.mxu0 %v3855
        %3910 = vmatprep.subr.mxu0 0.0
        %3911 = vmatpush1.msra.mxu0 %v3853
        %3912 = vmatprep.subr.mxu0 0.0
        %3913 = vmatpush1.msra.mxu0 %v3851
        %3914 = vmatprep.subr.mxu0 0.0
        %3915 = vmatpush1.msra.mxu0 %v3849
        %3916 = vmatprep.subr.mxu0 0.0
        %3917 = vmatpush1.msra.mxu0 %v3847
        %3918 = vmatprep.subr.mxu0 0.0
        %3919 = vmatpush1.msra.mxu0 %v3845
        %3920 = vmatprep.subr.mxu0 0.0
        %3921 = vmatpush1.msra.mxu0 %v3843
        %3922 = vmatprep.subr.mxu0 0.0
        %3923 = vmatpush2.msra.mxu0 0.0
        %3924 = vmatprep.subr.mxu0 0.0
        %3925 = vmatpush2.msra.mxu0 0.0
        %3926 = vmatprep.subr.mxu0 0.0
        %3927 = vmatpush2.msra.mxu0 0.0
        %3928 = vmatprep.subr.mxu0 0.0
        %3929 = vmatpush2.msra.mxu0 0.0
        %3930 = vmatprep.subr.mxu0 0.0
        %3931 = vmatpush2.msra.mxu0 0.0
        %3932 = vmatprep.subr.mxu0 0.0
        %3933 = vmatpush2.msra.mxu0 0.0
        %3934 = vmatprep.subr.mxu0 0.0
        %3935 = vmatpush2.msra.mxu0 0.0
        %3936 = vmatprep.subr.mxu0 0.0
        %3937 = vmatpush2.msra.mxu0 0.0
        %3938 = vmatprep.subr.mxu0 0.0
        %3939 = vmatpush2.msra.mxu0 0.0
        %3940 = vmatprep.subr.mxu0 0.0
        %3941 = vmatpush2.msra.mxu0 0.0
        %3942 = vmatprep.subr.mxu0 0.0
        %3943 = vmatpush2.msra.mxu0 0.0
        %3944 = vmatprep.subr.mxu0 0.0
        %3945 = vmatpush2.msra.mxu0 0.0
        %3946 = vmatprep.subr.mxu0 0.0
        %3947 = vmatpush2.msra.mxu0 0.0
        %3948 = vmatprep.subr.mxu0 0.0
        %3949 = vmatpush2.msra.mxu0 0.0
        %3950 = vmatprep.subr.mxu0 0.0
        %3951 = vmatpush2.msra.mxu0 0.0
        %3952 = vmatprep.subr.mxu0 0.0
        %3953 = vmatpush2.msra.mxu0 0.0
        %3954 = vmatprep.mubr.f32.mxu0 0.0
        %3955 = vmatmul.mubr.f32.gmra.mxu0 %v3867
        %v3956 = vpop.f32.mrf.mxu0
        %v3957 = vadd.f32 0.0, %v3956
        %v3958 = vpop.f32.mrf.mxu0
        %3959 = vmatprep.mubr.f32.mxu0 0.0
        %3960 = vmatmul.mubr.f32.gmra.mxu0 %v3870
        %v3961 = vpop.f32.mrf.mxu0
        %v3962 = vadd.f32 0.0, %v3961
        %v3963 = vpop.f32.mrf.mxu0
        %3964 = vmatprep.mubr.f32.mxu0 0.0
        %3965 = vmatmul.mubr.f32.gmra.mxu0 %v3873
        %v3966 = vpop.f32.mrf.mxu0
        %v3967 = vadd.f32 0.0, %v3966
        %v3968 = vpop.f32.mrf.mxu0
        %3969 = vmatprep.mubr.f32.mxu0 0.0
        %3970 = vmatmul.mubr.f32.gmra.mxu0 %v3876
        %v3971 = vpop.f32.mrf.mxu0
        %v3972 = vadd.f32 0.0, %v3971
        %v3973 = vpop.f32.mrf.mxu0
        %3974 = vmatprep.mubr.f32.mxu0 0.0
        %3975 = vmatmul.mubr.f32.gmra.mxu0 %v3879
        %v3976 = vpop.f32.mrf.mxu0
        %v3977 = vadd.f32 0.0, %v3976
        %v3978 = vpop.f32.mrf.mxu0
        %3979 = vmatprep.mubr.f32.mxu0 0.0
        %3980 = vmatmul.mubr.f32.gmra.mxu0 %v3882
        %v3981 = vpop.f32.mrf.mxu0
        %v3982 = vadd.f32 0.0, %v3981
        %v3983 = vpop.f32.mrf.mxu0
        %3984 = vmatprep.mubr.f32.mxu0 0.0
        %3985 = vmatmul.mubr.f32.gmra.mxu0 %v3885
        %v3986 = vpop.f32.mrf.mxu0
        %v3987 = vadd.f32 0.0, %v3986
        %v3988 = vpop.f32.mrf.mxu0
        %3989 = vmatprep.mubr.f32.mxu0 0.0
        %3990 = vmatmul.mubr.f32.gmra.mxu0 %v3888
        %v3991 = vpop.f32.mrf.mxu0
        %v3992 = vadd.f32 0.0, %v3991
        %v3993 = vpop.f32.mrf.mxu0
        %3994 = vdwg.mxu0
        %3995 = vrot.lane.b32.xlu0 %v387, 16
        %v3996 = vpop.permute.xlu0 %3995
        %3997 = vrot.lane.b32.xlu0 %v392, 16
        %v3998 = vpop.permute.xlu0 %3997
        %3999 = vrot.lane.b32.xlu0 %v397, 16
        %v4000 = vpop.permute.xlu0 %3999
        %4001 = vrot.lane.b32.xlu0 %v402, 16
        %v4002 = vpop.permute.xlu0 %4001
        %4003 = vrot.lane.b32.xlu0 %v407, 16
        %v4004 = vpop.permute.xlu0 %4003
        %4005 = vrot.lane.b32.xlu0 %v412, 16
        %v4006 = vpop.permute.xlu0 %4005
        %4007 = vrot.lane.b32.xlu0 %v417, 16
        %v4008 = vpop.permute.xlu0 %4007
        %4009 = vrot.lane.b32.xlu0 %v422, 16
        %v4010 = vpop.permute.xlu0 %4009
        %v4020 = vsel %vm295, %v3834, 0
        %v4023 = vsel %vm295, %v3835, 0
        %v4026 = vsel %vm295, %v3836, 0
        %v4029 = vsel %vm295, %v3837, 0
        %v4032 = vsel %vm295, %v3838, 0
        %v4035 = vsel %vm295, %v3839, 0
        %v4038 = vsel %vm295, %v3840, 0
        %v4041 = vsel %vm295, %v3841, 0
        %4043 = vmatprep.subr.mxu0 0.0
        %4044 = vmatpush1.msra.mxu0 0.0
        %4045 = vmatprep.subr.mxu0 0.0
        %4046 = vmatpush1.msra.mxu0 0.0
        %4047 = vmatprep.subr.mxu0 0.0
        %4048 = vmatpush1.msra.mxu0 0.0
        %4049 = vmatprep.subr.mxu0 0.0
        %4050 = vmatpush1.msra.mxu0 0.0
        %4051 = vmatprep.subr.mxu0 0.0
        %4052 = vmatpush1.msra.mxu0 0.0
        %4053 = vmatprep.subr.mxu0 0.0
        %4054 = vmatpush1.msra.mxu0 0.0
        %4055 = vmatprep.subr.mxu0 0.0
        %4056 = vmatpush1.msra.mxu0 0.0
        %4057 = vmatprep.subr.mxu0 0.0
        %4058 = vmatpush1.msra.mxu0 0.0
        %4059 = vmatprep.subr.mxu0 0.0
        %4060 = vmatpush1.msra.mxu0 %v4010
        %4061 = vmatprep.subr.mxu0 0.0
        %4062 = vmatpush1.msra.mxu0 %v4008
        %4063 = vmatprep.subr.mxu0 0.0
        %4064 = vmatpush1.msra.mxu0 %v4006
        %4065 = vmatprep.subr.mxu0 0.0
        %4066 = vmatpush1.msra.mxu0 %v4004
        %4067 = vmatprep.subr.mxu0 0.0
        %4068 = vmatpush1.msra.mxu0 %v4002
        %4069 = vmatprep.subr.mxu0 0.0
        %4070 = vmatpush1.msra.mxu0 %v4000
        %4071 = vmatprep.subr.mxu0 0.0
        %4072 = vmatpush1.msra.mxu0 %v3998
        %4073 = vmatprep.subr.mxu0 0.0
        %4074 = vmatpush1.msra.mxu0 %v3996
        %4075 = vmatprep.subr.mxu0 0.0
        %4076 = vmatpush2.msra.mxu0 0.0
        %4077 = vmatprep.subr.mxu0 0.0
        %4078 = vmatpush2.msra.mxu0 0.0
        %4079 = vmatprep.subr.mxu0 0.0
        %4080 = vmatpush2.msra.mxu0 0.0
        %4081 = vmatprep.subr.mxu0 0.0
        %4082 = vmatpush2.msra.mxu0 0.0
        %4083 = vmatprep.subr.mxu0 0.0
        %4084 = vmatpush2.msra.mxu0 0.0
        %4085 = vmatprep.subr.mxu0 0.0
        %4086 = vmatpush2.msra.mxu0 0.0
        %4087 = vmatprep.subr.mxu0 0.0
        %4088 = vmatpush2.msra.mxu0 0.0
        %4089 = vmatprep.subr.mxu0 0.0
        %4090 = vmatpush2.msra.mxu0 0.0
        %4091 = vmatprep.subr.mxu0 0.0
        %4092 = vmatpush2.msra.mxu0 0.0
        %4093 = vmatprep.subr.mxu0 0.0
        %4094 = vmatpush2.msra.mxu0 0.0
        %4095 = vmatprep.subr.mxu0 0.0
        %4096 = vmatpush2.msra.mxu0 0.0
        %4097 = vmatprep.subr.mxu0 0.0
        %4098 = vmatpush2.msra.mxu0 0.0
        %4099 = vmatprep.subr.mxu0 0.0
        %4100 = vmatpush2.msra.mxu0 0.0
        %4101 = vmatprep.subr.mxu0 0.0
        %4102 = vmatpush2.msra.mxu0 0.0
        %4103 = vmatprep.subr.mxu0 0.0
        %4104 = vmatpush2.msra.mxu0 0.0
        %4105 = vmatprep.subr.mxu0 0.0
        %4106 = vmatpush2.msra.mxu0 0.0
        %4107 = vmatprep.mubr.f32.mxu0 0.0
        %4108 = vmatmul.mubr.f32.gmra.mxu0 %v4020
        %v4109 = vpop.f32.mrf.mxu0
        %v4110 = vadd.f32 0.0, %v4109
        %v4111 = vpop.f32.mrf.mxu0
        %4112 = vmatprep.mubr.f32.mxu0 0.0
        %4113 = vmatmul.mubr.f32.gmra.mxu0 %v4023
        %v4114 = vpop.f32.mrf.mxu0
        %v4115 = vadd.f32 0.0, %v4114
        %v4116 = vpop.f32.mrf.mxu0
        %4117 = vmatprep.mubr.f32.mxu0 0.0
        %4118 = vmatmul.mubr.f32.gmra.mxu0 %v4026
        %v4119 = vpop.f32.mrf.mxu0
        %v4120 = vadd.f32 0.0, %v4119
        %v4121 = vpop.f32.mrf.mxu0
        %4122 = vmatprep.mubr.f32.mxu0 0.0
        %4123 = vmatmul.mubr.f32.gmra.mxu0 %v4029
        %v4124 = vpop.f32.mrf.mxu0
        %v4125 = vadd.f32 0.0, %v4124
        %v4126 = vpop.f32.mrf.mxu0
        %4127 = vmatprep.mubr.f32.mxu0 0.0
        %4128 = vmatmul.mubr.f32.gmra.mxu0 %v4032
        %v4129 = vpop.f32.mrf.mxu0
        %v4130 = vadd.f32 0.0, %v4129
        %v4131 = vpop.f32.mrf.mxu0
        %4132 = vmatprep.mubr.f32.mxu0 0.0
        %4133 = vmatmul.mubr.f32.gmra.mxu0 %v4035
        %v4134 = vpop.f32.mrf.mxu0
        %v4135 = vadd.f32 0.0, %v4134
        %v4136 = vpop.f32.mrf.mxu0
        %4137 = vmatprep.mubr.f32.mxu0 0.0
        %4138 = vmatmul.mubr.f32.gmra.mxu0 %v4038
        %v4139 = vpop.f32.mrf.mxu0
        %v4140 = vadd.f32 0.0, %v4139
        %v4141 = vpop.f32.mrf.mxu0
        %4142 = vmatprep.mubr.f32.mxu0 0.0
        %4143 = vmatmul.mubr.f32.gmra.mxu0 %v4041
        %v4144 = vpop.f32.mrf.mxu0
        %v4145 = vadd.f32 0.0, %v4144
        %v4146 = vpop.f32.mrf.mxu0
        %4147 = vdwg.mxu0
        %4148 = vrot.lane.b32.xlu0 %v387, 108
        %v4149 = vpop.permute.xlu0 %4148
        %4150 = vrot.lane.b32.xlu0 %v392, 108
        %v4151 = vpop.permute.xlu0 %4150
        %4152 = vrot.lane.b32.xlu0 %v397, 108
        %v4153 = vpop.permute.xlu0 %4152
        %4154 = vrot.lane.b32.xlu0 %v402, 108
        %v4155 = vpop.permute.xlu0 %4154
        %4156 = vrot.lane.b32.xlu0 %v407, 108
        %v4157 = vpop.permute.xlu0 %4156
        %4158 = vrot.lane.b32.xlu0 %v412, 108
        %v4159 = vpop.permute.xlu0 %4158
        %4160 = vrot.lane.b32.xlu0 %v417, 108
        %v4161 = vpop.permute.xlu0 %4160
        %4162 = vrot.lane.b32.xlu0 %v422, 108
        %v4163 = vpop.permute.xlu0 %4162
        %4164 = vrot.lane.b32.xlu0 %v387, 44
        %v4165 = vpop.permute.xlu0 %4164
        %4166 = vrot.lane.b32.xlu0 %v392, 44
        %v4167 = vpop.permute.xlu0 %4166
        %4168 = vrot.lane.b32.xlu0 %v397, 44
        %v4169 = vpop.permute.xlu0 %4168
        %4170 = vrot.lane.b32.xlu0 %v402, 44
        %v4171 = vpop.permute.xlu0 %4170
        %4172 = vrot.lane.b32.xlu0 %v407, 44
        %v4173 = vpop.permute.xlu0 %4172
        %4174 = vrot.lane.b32.xlu0 %v412, 44
        %v4175 = vpop.permute.xlu0 %4174
        %4176 = vrot.lane.b32.xlu0 %v417, 44
        %v4177 = vpop.permute.xlu0 %4176
        %4178 = vrot.lane.b32.xlu0 %v422, 44
        %v4179 = vpop.permute.xlu0 %4178
        %v4180 = vsel %vm449, %v4149, 0
        %v4182 = vsel %vm449, %v4151, 0
        %v4184 = vsel %vm449, %v4153, 0
        %v4186 = vsel %vm449, %v4155, 0
        %v4188 = vsel %vm449, %v4157, 0
        %v4190 = vsel %vm449, %v4159, 0
        %v4192 = vsel %vm449, %v4161, 0
        %v4194 = vsel %vm449, %v4163, 0
        %v4196 = vsel %vm449, %v4165, 0
        %v4198 = vsel %vm449, %v4167, 0
        %v4200 = vsel %vm449, %v4169, 0
        %v4202 = vsel %vm449, %v4171, 0
        %v4204 = vsel %vm449, %v4173, 0
        %v4206 = vsel %vm449, %v4175, 0
        %v4208 = vsel %vm449, %v4177, 0
        %v4210 = vsel %vm449, %v4179, 0
        %4212 = vmatprep.subr.mxu0 0.0
        %4213 = vmatpush1.xpose.msra.mxu0 0.0
        %4214 = vmatprep.subr.mxu0 0.0
        %4215 = vmatpush1.xpose.msra.mxu0 0.0
        %4216 = vmatprep.subr.mxu0 0.0
        %4217 = vmatpush1.xpose.msra.mxu0 0.0
        %4218 = vmatprep.subr.mxu0 0.0
        %4219 = vmatpush1.xpose.msra.mxu0 0.0
        %4220 = vmatprep.subr.mxu0 0.0
        %4221 = vmatpush1.xpose.msra.mxu0 0.0
        %4222 = vmatprep.subr.mxu0 0.0
        %4223 = vmatpush1.xpose.msra.mxu0 0.0
        %4224 = vmatprep.subr.mxu0 0.0
        %4225 = vmatpush1.xpose.msra.mxu0 0.0
        %4226 = vmatprep.subr.mxu0 0.0
        %4227 = vmatpush1.xpose.msra.mxu0 0.0
        %4228 = vmatprep.subr.mxu0 0.0
        %4229 = vmatpush1.xpose.msra.mxu0 %v4210
        %4230 = vmatprep.subr.mxu0 0.0
        %4231 = vmatpush1.xpose.msra.mxu0 %v4208
        %4232 = vmatprep.subr.mxu0 0.0
        %4233 = vmatpush1.xpose.msra.mxu0 %v4206
        %4234 = vmatprep.subr.mxu0 0.0
        %4235 = vmatpush1.xpose.msra.mxu0 %v4204
        %4236 = vmatprep.subr.mxu0 0.0
        %4237 = vmatpush1.xpose.msra.mxu0 %v4202
        %4238 = vmatprep.subr.mxu0 0.0
        %4239 = vmatpush1.xpose.msra.mxu0 %v4200
        %4240 = vmatprep.subr.mxu0 0.0
        %4241 = vmatpush1.xpose.msra.mxu0 %v4198
        %4242 = vmatprep.subr.mxu0 0.0
        %4243 = vmatpush1.xpose.msra.mxu0 %v4196
        %4244 = vmatprep.subr.mxu0 0.0
        %4245 = vmatpush2.xpose.msra.mxu0 0.0
        %4246 = vmatprep.subr.mxu0 0.0
        %4247 = vmatpush2.xpose.msra.mxu0 0.0
        %4248 = vmatprep.subr.mxu0 0.0
        %4249 = vmatpush2.xpose.msra.mxu0 0.0
        %4250 = vmatprep.subr.mxu0 0.0
        %4251 = vmatpush2.xpose.msra.mxu0 0.0
        %4252 = vmatprep.subr.mxu0 0.0
        %4253 = vmatpush2.xpose.msra.mxu0 0.0
        %4254 = vmatprep.subr.mxu0 0.0
        %4255 = vmatpush2.xpose.msra.mxu0 0.0
        %4256 = vmatprep.subr.mxu0 0.0
        %4257 = vmatpush2.xpose.msra.mxu0 0.0
        %4258 = vmatprep.subr.mxu0 0.0
        %4259 = vmatpush2.xpose.msra.mxu0 0.0
        %4260 = vmatprep.subr.mxu0 0.0
        %4261 = vmatpush2.xpose.msra.mxu0 0.0
        %4262 = vmatprep.subr.mxu0 0.0
        %4263 = vmatpush2.xpose.msra.mxu0 0.0
        %4264 = vmatprep.subr.mxu0 0.0
        %4265 = vmatpush2.xpose.msra.mxu0 0.0
        %4266 = vmatprep.subr.mxu0 0.0
        %4267 = vmatpush2.xpose.msra.mxu0 0.0
        %4268 = vmatprep.subr.mxu0 0.0
        %4269 = vmatpush2.xpose.msra.mxu0 0.0
        %4270 = vmatprep.subr.mxu0 0.0
        %4271 = vmatpush2.xpose.msra.mxu0 0.0
        %4272 = vmatprep.subr.mxu0 0.0
        %4273 = vmatpush2.xpose.msra.mxu0 0.0
        %4274 = vmatprep.subr.mxu0 0.0
        %4275 = vmatpush2.xpose.msra.mxu0 0.0
        %4276 = vmatprep.mubr.f32.mxu0 0.0
        %4277 = vmatmul.mubr.f32.gmra.mxu0 %v4180
        %v4278 = vpop.f32.mrf.mxu0
        %v4279 = vadd.f32 0.0, %v4278
        %v4280 = vpop.f32.mrf.mxu0
        %4281 = vmatprep.mubr.f32.mxu0 0.0
        %4282 = vmatmul.mubr.f32.gmra.mxu0 %v4182
        %v4283 = vpop.f32.mrf.mxu0
        %v4284 = vadd.f32 0.0, %v4283
        %v4285 = vpop.f32.mrf.mxu0
        %4286 = vmatprep.mubr.f32.mxu0 0.0
        %4287 = vmatmul.mubr.f32.gmra.mxu0 %v4184
        %v4288 = vpop.f32.mrf.mxu0
        %v4289 = vadd.f32 0.0, %v4288
        %v4290 = vpop.f32.mrf.mxu0
        %4291 = vmatprep.mubr.f32.mxu0 0.0
        %4292 = vmatmul.mubr.f32.gmra.mxu0 %v4186
        %v4293 = vpop.f32.mrf.mxu0
        %v4294 = vadd.f32 0.0, %v4293
        %v4295 = vpop.f32.mrf.mxu0
        %4296 = vmatprep.mubr.f32.mxu0 0.0
        %4297 = vmatmul.mubr.f32.gmra.mxu0 %v4188
        %v4298 = vpop.f32.mrf.mxu0
        %v4299 = vadd.f32 0.0, %v4298
        %v4300 = vpop.f32.mrf.mxu0
        %4301 = vmatprep.mubr.f32.mxu0 0.0
        %4302 = vmatmul.mubr.f32.gmra.mxu0 %v4190
        %v4303 = vpop.f32.mrf.mxu0
        %v4304 = vadd.f32 0.0, %v4303
        %v4305 = vpop.f32.mrf.mxu0
        %4306 = vmatprep.mubr.f32.mxu0 0.0
        %4307 = vmatmul.mubr.f32.gmra.mxu0 %v4192
        %v4308 = vpop.f32.mrf.mxu0
        %v4309 = vadd.f32 0.0, %v4308
        %v4310 = vpop.f32.mrf.mxu0
        %4311 = vmatprep.mubr.f32.mxu0 0.0
        %4312 = vmatmul.mubr.f32.gmra.mxu0 %v4194
        %v4313 = vpop.f32.mrf.mxu0
        %v4314 = vadd.f32 0.0, %v4313
        %v4315 = vpop.f32.mrf.mxu0
        %4316 = vdwg.mxu0
        %v4317 = vmul.f32 %v4279, 0.5
        %v4318 = vmul.f32 %v4284, 0.5
        %v4319 = vmul.f32 %v4289, 0.5
        %v4320 = vmul.f32 %v4294, 0.5
        %v4321 = vmul.f32 %v4299, 0.5
        %v4322 = vmul.f32 %v4304, 0.5
        %v4323 = vmul.f32 %v4309, 0.5
        %v4324 = vmul.f32 %v4314, 0.5
        %4325 = vmatprep.subr.mxu0 0.0
        %4326 = vmatpush1.xpose.msra.mxu0 0.0
        %4327 = vmatprep.subr.mxu0 0.0
        %4328 = vmatpush1.xpose.msra.mxu0 0.0
        %4329 = vmatprep.subr.mxu0 0.0
        %4330 = vmatpush1.xpose.msra.mxu0 0.0
        %4331 = vmatprep.subr.mxu0 0.0
        %4332 = vmatpush1.xpose.msra.mxu0 0.0
        %4333 = vmatprep.subr.mxu0 0.0
        %4334 = vmatpush1.xpose.msra.mxu0 0.0
        %4335 = vmatprep.subr.mxu0 0.0
        %4336 = vmatpush1.xpose.msra.mxu0 0.0
        %4337 = vmatprep.subr.mxu0 0.0
        %4338 = vmatpush1.xpose.msra.mxu0 0.0
        %4339 = vmatprep.subr.mxu0 0.0
        %4340 = vmatpush1.xpose.msra.mxu0 0.0
        %4341 = vmatprep.subr.mxu0 0.0
        %4342 = vmatpush1.xpose.msra.mxu0 %v4194
        %4343 = vmatprep.subr.mxu0 0.0
        %4344 = vmatpush1.xpose.msra.mxu0 %v4192
        %4345 = vmatprep.subr.mxu0 0.0
        %4346 = vmatpush1.xpose.msra.mxu0 %v4190
        %4347 = vmatprep.subr.mxu0 0.0
        %4348 = vmatpush1.xpose.msra.mxu0 %v4188
        %4349 = vmatprep.subr.mxu0 0.0
        %4350 = vmatpush1.xpose.msra.mxu0 %v4186
        %4351 = vmatprep.subr.mxu0 0.0
        %4352 = vmatpush1.xpose.msra.mxu0 %v4184
        %4353 = vmatprep.subr.mxu0 0.0
        %4354 = vmatpush1.xpose.msra.mxu0 %v4182
        %4355 = vmatprep.subr.mxu0 0.0
        %4356 = vmatpush1.xpose.msra.mxu0 %v4180
        %4357 = vmatprep.subr.mxu0 0.0
        %4358 = vmatpush2.xpose.msra.mxu0 0.0
        %4359 = vmatprep.subr.mxu0 0.0
        %4360 = vmatpush2.xpose.msra.mxu0 0.0
        %4361 = vmatprep.subr.mxu0 0.0
        %4362 = vmatpush2.xpose.msra.mxu0 0.0
        %4363 = vmatprep.subr.mxu0 0.0
        %4364 = vmatpush2.xpose.msra.mxu0 0.0
        %4365 = vmatprep.subr.mxu0 0.0
        %4366 = vmatpush2.xpose.msra.mxu0 0.0
        %4367 = vmatprep.subr.mxu0 0.0
        %4368 = vmatpush2.xpose.msra.mxu0 0.0
        %4369 = vmatprep.subr.mxu0 0.0
        %4370 = vmatpush2.xpose.msra.mxu0 0.0
        %4371 = vmatprep.subr.mxu0 0.0
        %4372 = vmatpush2.xpose.msra.mxu0 0.0
        %4373 = vmatprep.subr.mxu0 0.0
        %4374 = vmatpush2.xpose.msra.mxu0 0.0
        %4375 = vmatprep.subr.mxu0 0.0
        %4376 = vmatpush2.xpose.msra.mxu0 0.0
        %4377 = vmatprep.subr.mxu0 0.0
        %4378 = vmatpush2.xpose.msra.mxu0 0.0
        %4379 = vmatprep.subr.mxu0 0.0
        %4380 = vmatpush2.xpose.msra.mxu0 0.0
        %4381 = vmatprep.subr.mxu0 0.0
        %4382 = vmatpush2.xpose.msra.mxu0 0.0
        %4383 = vmatprep.subr.mxu0 0.0
        %4384 = vmatpush2.xpose.msra.mxu0 0.0
        %4385 = vmatprep.subr.mxu0 0.0
        %4386 = vmatpush2.xpose.msra.mxu0 0.0
        %4387 = vmatprep.subr.mxu0 0.0
        %4388 = vmatpush2.xpose.msra.mxu0 0.0
        %4389 = vmatprep.mubr.f32.mxu0 0.0
        %4390 = vmatmul.mubr.f32.gmra.mxu0 %v4196
        %v4391 = vpop.f32.mrf.mxu0
        %v4392 = vadd.f32 0.0, %v4391
        %v4393 = vpop.f32.mrf.mxu0
        %4394 = vmatprep.mubr.f32.mxu0 0.0
        %4395 = vmatmul.mubr.f32.gmra.mxu0 %v4198
        %v4396 = vpop.f32.mrf.mxu0
        %v4397 = vadd.f32 0.0, %v4396
        %v4398 = vpop.f32.mrf.mxu0
        %4399 = vmatprep.mubr.f32.mxu0 0.0
        %4400 = vmatmul.mubr.f32.gmra.mxu0 %v4200
        %v4401 = vpop.f32.mrf.mxu0
        %v4402 = vadd.f32 0.0, %v4401
        %v4403 = vpop.f32.mrf.mxu0
        %4404 = vmatprep.mubr.f32.mxu0 0.0
        %4405 = vmatmul.mubr.f32.gmra.mxu0 %v4202
        %v4406 = vpop.f32.mrf.mxu0
        %v4407 = vadd.f32 0.0, %v4406
        %v4408 = vpop.f32.mrf.mxu0
        %4409 = vmatprep.mubr.f32.mxu0 0.0
        %4410 = vmatmul.mubr.f32.gmra.mxu0 %v4204
        %v4411 = vpop.f32.mrf.mxu0
        %v4412 = vadd.f32 0.0, %v4411
        %v4413 = vpop.f32.mrf.mxu0
        %4414 = vmatprep.mubr.f32.mxu0 0.0
        %4415 = vmatmul.mubr.f32.gmra.mxu0 %v4206
        %v4416 = vpop.f32.mrf.mxu0
        %v4417 = vadd.f32 0.0, %v4416
        %v4418 = vpop.f32.mrf.mxu0
        %4419 = vmatprep.mubr.f32.mxu0 0.0
        %4420 = vmatmul.mubr.f32.gmra.mxu0 %v4208
        %v4421 = vpop.f32.mrf.mxu0
        %v4422 = vadd.f32 0.0, %v4421
        %v4423 = vpop.f32.mrf.mxu0
        %4424 = vmatprep.mubr.f32.mxu0 0.0
        %4425 = vmatmul.mubr.f32.gmra.mxu0 %v4210
        %v4426 = vpop.f32.mrf.mxu0
        %v4427 = vadd.f32 0.0, %v4426
        %v4428 = vpop.f32.mrf.mxu0
        %4429 = vdwg.mxu0
        %v4430 = vmul.f32 %v4392, 0.5
        %v4431 = vmul.f32 %v4397, 0.5
        %v4432 = vmul.f32 %v4402, 0.5
        %v4433 = vmul.f32 %v4407, 0.5
        %v4434 = vmul.f32 %v4412, 0.5
        %v4435 = vmul.f32 %v4417, 0.5
        %v4436 = vmul.f32 %v4422, 0.5
        %v4437 = vmul.f32 %v4427, 0.5
        %v4438 = vsel %vm295, %v4317, -inf
        %v4439 = vsel %vm295, %v4318, -inf
        %v4440 = vsel %vm295, %v4319, -inf
        %v4441 = vsel %vm295, %v4320, -inf
        %v4442 = vsel %vm295, %v4321, -inf
        %v4443 = vmax.f32 %v4438, %v4442
        %v4444 = vsel %vm295, %v4322, -inf
        %v4445 = vmax.f32 %v4439, %v4444
        %v4446 = vsel %vm295, %v4323, -inf
        %v4447 = vmax.f32 %v4440, %v4446
        %v4448 = vsel %vm295, %v4324, -inf
        %v4449 = vmax.f32 %v4441, %v4448
        %v4450 = vmax.f32 %v4443, %v4445
        %v4451 = vmax.f32 %v4447, %v4449
        %v4452 = vmax.f32 %v4450, %v4451
        %v4453 = vrot.slane %v4452, 4
        %v4454 = vmax.f32 %v4452, %v4453
        %v4455 = vrot.slane %v4454, 2
        %v4456 = vmax.f32 %v4454, %v4455
        %v4457 = vrot.slane %v4456, 1
        %v4458 = vmax.f32 %v4456, %v4457
        %v4459 = vsub.f32 %v4317, %v4458
        %v4460 = vsub.f32 %v4318, %v4458
        %v4461 = vsub.f32 %v4319, %v4458
        %v4462 = vsub.f32 %v4320, %v4458
        %v4463 = vsub.f32 %v4321, %v4458
        %v4464 = vsub.f32 %v4322, %v4458
        %v4465 = vsub.f32 %v4323, %v4458
        %v4466 = vsub.f32 %v4324, %v4458
        %v4467 = vmul.f32 %v4459, 1.442695
        %v4468 = vpow.pop %v4467
        %v4469 = vmul.f32 %v4460, 1.442695
        %v4470 = vpow.pop %v4469
        %v4471 = vmul.f32 %v4461, 1.442695
        %v4472 = vpow.pop %v4471
        %v4473 = vmul.f32 %v4462, 1.442695
        %v4474 = vpow.pop %v4473
        %v4475 = vmul.f32 %v4463, 1.442695
        %v4476 = vpow.pop %v4475
        %v4477 = vmul.f32 %v4464, 1.442695
        %v4478 = vpow.pop %v4477
        %v4479 = vmul.f32 %v4465, 1.442695
        %v4480 = vpow.pop %v4479
        %v4481 = vmul.f32 %v4466, 1.442695
        %v4482 = vpow.pop %v4481
        %v4483 = vsel %vm295, %v4468, 0.0
        %v4484 = vsel %vm295, %v4470, 0.0
        %v4485 = vadd.f32 %v4483, %v4484
        %v4486 = vsel %vm295, %v4472, 0.0
        %v4487 = vadd.f32 %v4485, %v4486
        %v4488 = vsel %vm295, %v4474, 0.0
        %v4489 = vadd.f32 %v4487, %v4488
        %v4490 = vsel %vm295, %v4476, 0.0
        %v4491 = vadd.f32 %v4489, %v4490
        %v4492 = vsel %vm295, %v4478, 0.0
        %v4493 = vadd.f32 %v4491, %v4492
        %v4494 = vsel %vm295, %v4480, 0.0
        %v4495 = vadd.f32 %v4493, %v4494
        %v4496 = vsel %vm295, %v4482, 0.0
        %v4497 = vadd.f32 %v4495, %v4496
        %v4498 = vrot.slane %v4497, 4
        %v4499 = vadd.f32 %v4497, %v4498
        %v4500 = vrot.slane %v4499, 2
        %v4501 = vadd.f32 %v4499, %v4500
        %v4502 = vrot.slane %v4501, 1
        %v4503 = vadd.f32 %v4501, %v4502
        %v4504 = vrcp.pop %v4503
        %v4505 = vmul.f32 %v4468, %v4504
        %v4506 = vmul.f32 %v4470, %v4504
        %v4507 = vmul.f32 %v4472, %v4504
        %v4508 = vmul.f32 %v4474, %v4504
        %v4509 = vmul.f32 %v4476, %v4504
        %v4510 = vmul.f32 %v4478, %v4504
        %v4511 = vmul.f32 %v4480, %v4504
        %v4512 = vmul.f32 %v4482, %v4504
        %v4513 = vsel %vm295, %v4430, -inf
        %v4514 = vsel %vm295, %v4431, -inf
        %v4515 = vsel %vm295, %v4432, -inf
        %v4516 = vsel %vm295, %v4433, -inf
        %v4517 = vsel %vm295, %v4434, -inf
        %v4518 = vmax.f32 %v4513, %v4517
        %v4519 = vsel %vm295, %v4435, -inf
        %v4520 = vmax.f32 %v4514, %v4519
        %v4521 = vsel %vm295, %v4436, -inf
        %v4522 = vmax.f32 %v4515, %v4521
        %v4523 = vsel %vm295, %v4437, -inf
        %v4524 = vmax.f32 %v4516, %v4523
        %v4525 = vmax.f32 %v4518, %v4520
        %v4526 = vmax.f32 %v4522, %v4524
        %v4527 = vmax.f32 %v4525, %v4526
        %v4528 = vrot.slane %v4527, 4
        %v4529 = vmax.f32 %v4527, %v4528
        %v4530 = vrot.slane %v4529, 2
        %v4531 = vmax.f32 %v4529, %v4530
        %v4532 = vrot.slane %v4531, 1
        %v4533 = vmax.f32 %v4531, %v4532
        %v4534 = vsub.f32 %v4430, %v4533
        %v4535 = vsub.f32 %v4431, %v4533
        %v4536 = vsub.f32 %v4432, %v4533
        %v4537 = vsub.f32 %v4433, %v4533
        %v4538 = vsub.f32 %v4434, %v4533
        %v4539 = vsub.f32 %v4435, %v4533
        %v4540 = vsub.f32 %v4436, %v4533
        %v4541 = vsub.f32 %v4437, %v4533
        %v4542 = vmul.f32 %v4534, 1.442695
        %v4543 = vpow.pop %v4542
        %v4544 = vmul.f32 %v4535, 1.442695
        %v4545 = vpow.pop %v4544
        %v4546 = vmul.f32 %v4536, 1.442695
        %v4547 = vpow.pop %v4546
        %v4548 = vmul.f32 %v4537, 1.442695
        %v4549 = vpow.pop %v4548
        %v4550 = vmul.f32 %v4538, 1.442695
        %v4551 = vpow.pop %v4550
        %v4552 = vmul.f32 %v4539, 1.442695
        %v4553 = vpow.pop %v4552
        %v4554 = vmul.f32 %v4540, 1.442695
        %v4555 = vpow.pop %v4554
        %v4556 = vmul.f32 %v4541, 1.442695
        %v4557 = vpow.pop %v4556
        %v4558 = vsel %vm295, %v4543, 0.0
        %v4559 = vsel %vm295, %v4545, 0.0
        %v4560 = vadd.f32 %v4558, %v4559
        %v4561 = vsel %vm295, %v4547, 0.0
        %v4562 = vadd.f32 %v4560, %v4561
        %v4563 = vsel %vm295, %v4549, 0.0
        %v4564 = vadd.f32 %v4562, %v4563
        %v4565 = vsel %vm295, %v4551, 0.0
        %v4566 = vadd.f32 %v4564, %v4565
        %v4567 = vsel %vm295, %v4553, 0.0
        %v4568 = vadd.f32 %v4566, %v4567
        %v4569 = vsel %vm295, %v4555, 0.0
        %v4570 = vadd.f32 %v4568, %v4569
        %v4571 = vsel %vm295, %v4557, 0.0
        %v4572 = vadd.f32 %v4570, %v4571
        %v4573 = vrot.slane %v4572, 4
        %v4574 = vadd.f32 %v4572, %v4573
        %v4575 = vrot.slane %v4574, 2
        %v4576 = vadd.f32 %v4574, %v4575
        %v4577 = vrot.slane %v4576, 1
        %v4578 = vadd.f32 %v4576, %v4577
        %v4579 = vrcp.pop %v4578
        %v4580 = vmul.f32 %v4543, %v4579
        %v4581 = vmul.f32 %v4545, %v4579
        %v4582 = vmul.f32 %v4547, %v4579
        %v4583 = vmul.f32 %v4549, %v4579
        %v4584 = vmul.f32 %v4551, %v4579
        %v4585 = vmul.f32 %v4553, %v4579
        %v4586 = vmul.f32 %v4555, %v4579
        %v4587 = vmul.f32 %v4557, %v4579
        %4588 = vrot.lane.b32.xlu0 %v387, 76
        %v4589 = vpop.permute.xlu0 %4588
        %4590 = vrot.lane.b32.xlu0 %v392, 76
        %v4591 = vpop.permute.xlu0 %4590
        %4592 = vrot.lane.b32.xlu0 %v397, 76
        %v4593 = vpop.permute.xlu0 %4592
        %4594 = vrot.lane.b32.xlu0 %v402, 76
        %v4595 = vpop.permute.xlu0 %4594
        %4596 = vrot.lane.b32.xlu0 %v407, 76
        %v4597 = vpop.permute.xlu0 %4596
        %4598 = vrot.lane.b32.xlu0 %v412, 76
        %v4599 = vpop.permute.xlu0 %4598
        %4600 = vrot.lane.b32.xlu0 %v417, 76
        %v4601 = vpop.permute.xlu0 %4600
        %4602 = vrot.lane.b32.xlu0 %v422, 76
        %v4603 = vpop.permute.xlu0 %4602
        %v4613 = vsel %vm295, %v4505, 0
        %v4616 = vsel %vm295, %v4506, 0
        %v4619 = vsel %vm295, %v4507, 0
        %v4622 = vsel %vm295, %v4508, 0
        %v4625 = vsel %vm295, %v4509, 0
        %v4628 = vsel %vm295, %v4510, 0
        %v4631 = vsel %vm295, %v4511, 0
        %v4634 = vsel %vm295, %v4512, 0
        %4636 = vmatprep.subr.mxu0 0.0
        %4637 = vmatpush1.msra.mxu0 0.0
        %4638 = vmatprep.subr.mxu0 0.0
        %4639 = vmatpush1.msra.mxu0 0.0
        %4640 = vmatprep.subr.mxu0 0.0
        %4641 = vmatpush1.msra.mxu0 0.0
        %4642 = vmatprep.subr.mxu0 0.0
        %4643 = vmatpush1.msra.mxu0 0.0
        %4644 = vmatprep.subr.mxu0 0.0
        %4645 = vmatpush1.msra.mxu0 0.0
        %4646 = vmatprep.subr.mxu0 0.0
        %4647 = vmatpush1.msra.mxu0 0.0
        %4648 = vmatprep.subr.mxu0 0.0
        %4649 = vmatpush1.msra.mxu0 0.0
        %4650 = vmatprep.subr.mxu0 0.0
        %4651 = vmatpush1.msra.mxu0 0.0
        %4652 = vmatprep.subr.mxu0 0.0
        %4653 = vmatpush1.msra.mxu0 %v4603
        %4654 = vmatprep.subr.mxu0 0.0
        %4655 = vmatpush1.msra.mxu0 %v4601
        %4656 = vmatprep.subr.mxu0 0.0
        %4657 = vmatpush1.msra.mxu0 %v4599
        %4658 = vmatprep.subr.mxu0 0.0
        %4659 = vmatpush1.msra.mxu0 %v4597
        %4660 = vmatprep.subr.mxu0 0.0
        %4661 = vmatpush1.msra.mxu0 %v4595
        %4662 = vmatprep.subr.mxu0 0.0
        %4663 = vmatpush1.msra.mxu0 %v4593
        %4664 = vmatprep.subr.mxu0 0.0
        %4665 = vmatpush1.msra.mxu0 %v4591
        %4666 = vmatprep.subr.mxu0 0.0
        %4667 = vmatpush1.msra.mxu0 %v4589
        %4668 = vmatprep.subr.mxu0 0.0
        %4669 = vmatpush2.msra.mxu0 0.0
        %4670 = vmatprep.subr.mxu0 0.0
        %4671 = vmatpush2.msra.mxu0 0.0
        %4672 = vmatprep.subr.mxu0 0.0
        %4673 = vmatpush2.msra.mxu0 0.0
        %4674 = vmatprep.subr.mxu0 0.0
        %4675 = vmatpush2.msra.mxu0 0.0
        %4676 = vmatprep.subr.mxu0 0.0
        %4677 = vmatpush2.msra.mxu0 0.0
        %4678 = vmatprep.subr.mxu0 0.0
        %4679 = vmatpush2.msra.mxu0 0.0
        %4680 = vmatprep.subr.mxu0 0.0
        %4681 = vmatpush2.msra.mxu0 0.0
        %4682 = vmatprep.subr.mxu0 0.0
        %4683 = vmatpush2.msra.mxu0 0.0
        %4684 = vmatprep.subr.mxu0 0.0
        %4685 = vmatpush2.msra.mxu0 0.0
        %4686 = vmatprep.subr.mxu0 0.0
        %4687 = vmatpush2.msra.mxu0 0.0
        %4688 = vmatprep.subr.mxu0 0.0
        %4689 = vmatpush2.msra.mxu0 0.0
        %4690 = vmatprep.subr.mxu0 0.0
        %4691 = vmatpush2.msra.mxu0 0.0
        %4692 = vmatprep.subr.mxu0 0.0
        %4693 = vmatpush2.msra.mxu0 0.0
        %4694 = vmatprep.subr.mxu0 0.0
        %4695 = vmatpush2.msra.mxu0 0.0
        %4696 = vmatprep.subr.mxu0 0.0
        %4697 = vmatpush2.msra.mxu0 0.0
        %4698 = vmatprep.subr.mxu0 0.0
        %4699 = vmatpush2.msra.mxu0 0.0
        %4700 = vmatprep.mubr.f32.mxu0 0.0
        %4701 = vmatmul.mubr.f32.gmra.mxu0 %v4613
        %v4702 = vpop.f32.mrf.mxu0
        %v4703 = vadd.f32 0.0, %v4702
        %v4704 = vpop.f32.mrf.mxu0
        %4705 = vmatprep.mubr.f32.mxu0 0.0
        %4706 = vmatmul.mubr.f32.gmra.mxu0 %v4616
        %v4707 = vpop.f32.mrf.mxu0
        %v4708 = vadd.f32 0.0, %v4707
        %v4709 = vpop.f32.mrf.mxu0
        %4710 = vmatprep.mubr.f32.mxu0 0.0
        %4711 = vmatmul.mubr.f32.gmra.mxu0 %v4619
        %v4712 = vpop.f32.mrf.mxu0
        %v4713 = vadd.f32 0.0, %v4712
        %v4714 = vpop.f32.mrf.mxu0
        %4715 = vmatprep.mubr.f32.mxu0 0.0
        %4716 = vmatmul.mubr.f32.gmra.mxu0 %v4622
        %v4717 = vpop.f32.mrf.mxu0
        %v4718 = vadd.f32 0.0, %v4717
        %v4719 = vpop.f32.mrf.mxu0
        %4720 = vmatprep.mubr.f32.mxu0 0.0
        %4721 = vmatmul.mubr.f32.gmra.mxu0 %v4625
        %v4722 = vpop.f32.mrf.mxu0
        %v4723 = vadd.f32 0.0, %v4722
        %v4724 = vpop.f32.mrf.mxu0
        %4725 = vmatprep.mubr.f32.mxu0 0.0
        %4726 = vmatmul.mubr.f32.gmra.mxu0 %v4628
        %v4727 = vpop.f32.mrf.mxu0
        %v4728 = vadd.f32 0.0, %v4727
        %v4729 = vpop.f32.mrf.mxu0
        %4730 = vmatprep.mubr.f32.mxu0 0.0
        %4731 = vmatmul.mubr.f32.gmra.mxu0 %v4631
        %v4732 = vpop.f32.mrf.mxu0
        %v4733 = vadd.f32 0.0, %v4732
        %v4734 = vpop.f32.mrf.mxu0
        %4735 = vmatprep.mubr.f32.mxu0 0.0
        %4736 = vmatmul.mubr.f32.gmra.mxu0 %v4634
        %v4737 = vpop.f32.mrf.mxu0
        %v4738 = vadd.f32 0.0, %v4737
        %v4739 = vpop.f32.mrf.mxu0
        %4740 = vdwg.mxu0
        %4741 = vrot.lane.b32.xlu0 %v387, 12
        %v4742 = vpop.permute.xlu0 %4741
        %4743 = vrot.lane.b32.xlu0 %v392, 12
        %v4744 = vpop.permute.xlu0 %4743
        %4745 = vrot.lane.b32.xlu0 %v397, 12
        %v4746 = vpop.permute.xlu0 %4745
        %4747 = vrot.lane.b32.xlu0 %v402, 12
        %v4748 = vpop.permute.xlu0 %4747
        %4749 = vrot.lane.b32.xlu0 %v407, 12
        %v4750 = vpop.permute.xlu0 %4749
        %4751 = vrot.lane.b32.xlu0 %v412, 12
        %v4752 = vpop.permute.xlu0 %4751
        %4753 = vrot.lane.b32.xlu0 %v417, 12
        %v4754 = vpop.permute.xlu0 %4753
        %4755 = vrot.lane.b32.xlu0 %v422, 12
        %v4756 = vpop.permute.xlu0 %4755
        %v4766 = vsel %vm295, %v4580, 0
        %v4769 = vsel %vm295, %v4581, 0
        %v4772 = vsel %vm295, %v4582, 0
        %v4775 = vsel %vm295, %v4583, 0
        %v4778 = vsel %vm295, %v4584, 0
        %v4781 = vsel %vm295, %v4585, 0
        %v4784 = vsel %vm295, %v4586, 0
        %v4787 = vsel %vm295, %v4587, 0
        %4789 = vmatprep.subr.mxu0 0.0
        %4790 = vmatpush1.msra.mxu0 0.0
        %4791 = vmatprep.subr.mxu0 0.0
        %4792 = vmatpush1.msra.mxu0 0.0
        %4793 = vmatprep.subr.mxu0 0.0
        %4794 = vmatpush1.msra.mxu0 0.0
        %4795 = vmatprep.subr.mxu0 0.0
        %4796 = vmatpush1.msra.mxu0 0.0
        %4797 = vmatprep.subr.mxu0 0.0
        %4798 = vmatpush1.msra.mxu0 0.0
        %4799 = vmatprep.subr.mxu0 0.0
        %4800 = vmatpush1.msra.mxu0 0.0
        %4801 = vmatprep.subr.mxu0 0.0
        %4802 = vmatpush1.msra.mxu0 0.0
        %4803 = vmatprep.subr.mxu0 0.0
        %4804 = vmatpush1.msra.mxu0 0.0
        %4805 = vmatprep.subr.mxu0 0.0
        %4806 = vmatpush1.msra.mxu0 %v4756
        %4807 = vmatprep.subr.mxu0 0.0
        %4808 = vmatpush1.msra.mxu0 %v4754
        %4809 = vmatprep.subr.mxu0 0.0
        %4810 = vmatpush1.msra.mxu0 %v4752
        %4811 = vmatprep.subr.mxu0 0.0
        %4812 = vmatpush1.msra.mxu0 %v4750
        %4813 = vmatprep.subr.mxu0 0.0
        %4814 = vmatpush1.msra.mxu0 %v4748
        %4815 = vmatprep.subr.mxu0 0.0
        %4816 = vmatpush1.msra.mxu0 %v4746
        %4817 = vmatprep.subr.mxu0 0.0
        %4818 = vmatpush1.msra.mxu0 %v4744
        %4819 = vmatprep.subr.mxu0 0.0
        %4820 = vmatpush1.msra.mxu0 %v4742
        %4821 = vmatprep.subr.mxu0 0.0
        %4822 = vmatpush2.msra.mxu0 0.0
        %4823 = vmatprep.subr.mxu0 0.0
        %4824 = vmatpush2.msra.mxu0 0.0
        %4825 = vmatprep.subr.mxu0 0.0
        %4826 = vmatpush2.msra.mxu0 0.0
        %4827 = vmatprep.subr.mxu0 0.0
        %4828 = vmatpush2.msra.mxu0 0.0
        %4829 = vmatprep.subr.mxu0 0.0
        %4830 = vmatpush2.msra.mxu0 0.0
        %4831 = vmatprep.subr.mxu0 0.0
        %4832 = vmatpush2.msra.mxu0 0.0
        %4833 = vmatprep.subr.mxu0 0.0
        %4834 = vmatpush2.msra.mxu0 0.0
        %4835 = vmatprep.subr.mxu0 0.0
        %4836 = vmatpush2.msra.mxu0 0.0
        %4837 = vmatprep.subr.mxu0 0.0
        %4838 = vmatpush2.msra.mxu0 0.0
        %4839 = vmatprep.subr.mxu0 0.0
        %4840 = vmatpush2.msra.mxu0 0.0
        %4841 = vmatprep.subr.mxu0 0.0
        %4842 = vmatpush2.msra.mxu0 0.0
        %4843 = vmatprep.subr.mxu0 0.0
        %4844 = vmatpush2.msra.mxu0 0.0
        %4845 = vmatprep.subr.mxu0 0.0
        %4846 = vmatpush2.msra.mxu0 0.0
        %4847 = vmatprep.subr.mxu0 0.0
        %4848 = vmatpush2.msra.mxu0 0.0
        %4849 = vmatprep.subr.mxu0 0.0
        %4850 = vmatpush2.msra.mxu0 0.0
        %4851 = vmatprep.subr.mxu0 0.0
        %4852 = vmatpush2.msra.mxu0 0.0
        %4853 = vmatprep.mubr.f32.mxu0 0.0
        %4854 = vmatmul.mubr.f32.gmra.mxu0 %v4766
        %v4855 = vpop.f32.mrf.mxu0
        %v4856 = vadd.f32 0.0, %v4855
        %v4857 = vpop.f32.mrf.mxu0
        %4858 = vmatprep.mubr.f32.mxu0 0.0
        %4859 = vmatmul.mubr.f32.gmra.mxu0 %v4769
        %v4860 = vpop.f32.mrf.mxu0
        %v4861 = vadd.f32 0.0, %v4860
        %v4862 = vpop.f32.mrf.mxu0
        %4863 = vmatprep.mubr.f32.mxu0 0.0
        %4864 = vmatmul.mubr.f32.gmra.mxu0 %v4772
        %v4865 = vpop.f32.mrf.mxu0
        %v4866 = vadd.f32 0.0, %v4865
        %v4867 = vpop.f32.mrf.mxu0
        %4868 = vmatprep.mubr.f32.mxu0 0.0
        %4869 = vmatmul.mubr.f32.gmra.mxu0 %v4775
        %v4870 = vpop.f32.mrf.mxu0
        %v4871 = vadd.f32 0.0, %v4870
        %v4872 = vpop.f32.mrf.mxu0
        %4873 = vmatprep.mubr.f32.mxu0 0.0
        %4874 = vmatmul.mubr.f32.gmra.mxu0 %v4778
        %v4875 = vpop.f32.mrf.mxu0
        %v4876 = vadd.f32 0.0, %v4875
        %v4877 = vpop.f32.mrf.mxu0
        %4878 = vmatprep.mubr.f32.mxu0 0.0
        %4879 = vmatmul.mubr.f32.gmra.mxu0 %v4781
        %v4880 = vpop.f32.mrf.mxu0
        %v4881 = vadd.f32 0.0, %v4880
        %v4882 = vpop.f32.mrf.mxu0
        %4883 = vmatprep.mubr.f32.mxu0 0.0
        %4884 = vmatmul.mubr.f32.gmra.mxu0 %v4784
        %v4885 = vpop.f32.mrf.mxu0
        %v4886 = vadd.f32 0.0, %v4885
        %v4887 = vpop.f32.mrf.mxu0
        %4888 = vmatprep.mubr.f32.mxu0 0.0
        %4889 = vmatmul.mubr.f32.gmra.mxu0 %v4787
        %v4890 = vpop.f32.mrf.mxu0
        %v4891 = vadd.f32 0.0, %v4890
        %v4892 = vpop.f32.mrf.mxu0
        %4893 = vdwg.mxu0
        %4894 = vrot.lane.b32.xlu0 %v387, 104
        %v4895 = vpop.permute.xlu0 %4894
        %4896 = vrot.lane.b32.xlu0 %v392, 104
        %v4897 = vpop.permute.xlu0 %4896
        %4898 = vrot.lane.b32.xlu0 %v397, 104
        %v4899 = vpop.permute.xlu0 %4898
        %4900 = vrot.lane.b32.xlu0 %v402, 104
        %v4901 = vpop.permute.xlu0 %4900
        %4902 = vrot.lane.b32.xlu0 %v407, 104
        %v4903 = vpop.permute.xlu0 %4902
        %4904 = vrot.lane.b32.xlu0 %v412, 104
        %v4905 = vpop.permute.xlu0 %4904
        %4906 = vrot.lane.b32.xlu0 %v417, 104
        %v4907 = vpop.permute.xlu0 %4906
        %4908 = vrot.lane.b32.xlu0 %v422, 104
        %v4909 = vpop.permute.xlu0 %4908
        %4910 = vrot.lane.b32.xlu0 %v387, 40
        %v4911 = vpop.permute.xlu0 %4910
        %4912 = vrot.lane.b32.xlu0 %v392, 40
        %v4913 = vpop.permute.xlu0 %4912
        %4914 = vrot.lane.b32.xlu0 %v397, 40
        %v4915 = vpop.permute.xlu0 %4914
        %4916 = vrot.lane.b32.xlu0 %v402, 40
        %v4917 = vpop.permute.xlu0 %4916
        %4918 = vrot.lane.b32.xlu0 %v407, 40
        %v4919 = vpop.permute.xlu0 %4918
        %4920 = vrot.lane.b32.xlu0 %v412, 40
        %v4921 = vpop.permute.xlu0 %4920
        %4922 = vrot.lane.b32.xlu0 %v417, 40
        %v4923 = vpop.permute.xlu0 %4922
        %4924 = vrot.lane.b32.xlu0 %v422, 40
        %v4925 = vpop.permute.xlu0 %4924
        %v4926 = vsel %vm449, %v4895, 0
        %v4928 = vsel %vm449, %v4897, 0
        %v4930 = vsel %vm449, %v4899, 0
        %v4932 = vsel %vm449, %v4901, 0
        %v4934 = vsel %vm449, %v4903, 0
        %v4936 = vsel %vm449, %v4905, 0
        %v4938 = vsel %vm449, %v4907, 0
        %v4940 = vsel %vm449, %v4909, 0
        %v4942 = vsel %vm449, %v4911, 0
        %v4944 = vsel %vm449, %v4913, 0
        %v4946 = vsel %vm449, %v4915, 0
        %v4948 = vsel %vm449, %v4917, 0
        %v4950 = vsel %vm449, %v4919, 0
        %v4952 = vsel %vm449, %v4921, 0
        %v4954 = vsel %vm449, %v4923, 0
        %v4956 = vsel %vm449, %v4925, 0
        %4958 = vmatprep.subr.mxu0 0.0
        %4959 = vmatpush1.xpose.msra.mxu0 0.0
        %4960 = vmatprep.subr.mxu0 0.0
        %4961 = vmatpush1.xpose.msra.mxu0 0.0
        %4962 = vmatprep.subr.mxu0 0.0
        %4963 = vmatpush1.xpose.msra.mxu0 0.0
        %4964 = vmatprep.subr.mxu0 0.0
        %4965 = vmatpush1.xpose.msra.mxu0 0.0
        %4966 = vmatprep.subr.mxu0 0.0
        %4967 = vmatpush1.xpose.msra.mxu0 0.0
        %4968 = vmatprep.subr.mxu0 0.0
        %4969 = vmatpush1.xpose.msra.mxu0 0.0
        %4970 = vmatprep.subr.mxu0 0.0
        %4971 = vmatpush1.xpose.msra.mxu0 0.0
        %4972 = vmatprep.subr.mxu0 0.0
        %4973 = vmatpush1.xpose.msra.mxu0 0.0
        %4974 = vmatprep.subr.mxu0 0.0
        %4975 = vmatpush1.xpose.msra.mxu0 %v4956
        %4976 = vmatprep.subr.mxu0 0.0
        %4977 = vmatpush1.xpose.msra.mxu0 %v4954
        %4978 = vmatprep.subr.mxu0 0.0
        %4979 = vmatpush1.xpose.msra.mxu0 %v4952
        %4980 = vmatprep.subr.mxu0 0.0
        %4981 = vmatpush1.xpose.msra.mxu0 %v4950
        %4982 = vmatprep.subr.mxu0 0.0
        %4983 = vmatpush1.xpose.msra.mxu0 %v4948
        %4984 = vmatprep.subr.mxu0 0.0
        %4985 = vmatpush1.xpose.msra.mxu0 %v4946
        %4986 = vmatprep.subr.mxu0 0.0
        %4987 = vmatpush1.xpose.msra.mxu0 %v4944
        %4988 = vmatprep.subr.mxu0 0.0
        %4989 = vmatpush1.xpose.msra.mxu0 %v4942
        %4990 = vmatprep.subr.mxu0 0.0
        %4991 = vmatpush2.xpose.msra.mxu0 0.0
        %4992 = vmatprep.subr.mxu0 0.0
        %4993 = vmatpush2.xpose.msra.mxu0 0.0
        %4994 = vmatprep.subr.mxu0 0.0
        %4995 = vmatpush2.xpose.msra.mxu0 0.0
        %4996 = vmatprep.subr.mxu0 0.0
        %4997 = vmatpush2.xpose.msra.mxu0 0.0
        %4998 = vmatprep.subr.mxu0 0.0
        %4999 = vmatpush2.xpose.msra.mxu0 0.0
        %5000 = vmatprep.subr.mxu0 0.0
        %5001 = vmatpush2.xpose.msra.mxu0 0.0
        %5002 = vmatprep.subr.mxu0 0.0
        %5003 = vmatpush2.xpose.msra.mxu0 0.0
        %5004 = vmatprep.subr.mxu0 0.0
        %5005 = vmatpush2.xpose.msra.mxu0 0.0
        %5006 = vmatprep.subr.mxu0 0.0
        %5007 = vmatpush2.xpose.msra.mxu0 0.0
        %5008 = vmatprep.subr.mxu0 0.0
        %5009 = vmatpush2.xpose.msra.mxu0 0.0
        %5010 = vmatprep.subr.mxu0 0.0
        %5011 = vmatpush2.xpose.msra.mxu0 0.0
        %5012 = vmatprep.subr.mxu0 0.0
        %5013 = vmatpush2.xpose.msra.mxu0 0.0
        %5014 = vmatprep.subr.mxu0 0.0
        %5015 = vmatpush2.xpose.msra.mxu0 0.0
        %5016 = vmatprep.subr.mxu0 0.0
        %5017 = vmatpush2.xpose.msra.mxu0 0.0
        %5018 = vmatprep.subr.mxu0 0.0
        %5019 = vmatpush2.xpose.msra.mxu0 0.0
        %5020 = vmatprep.subr.mxu0 0.0
        %5021 = vmatpush2.xpose.msra.mxu0 0.0
        %5022 = vmatprep.mubr.f32.mxu0 0.0
        %5023 = vmatmul.mubr.f32.gmra.mxu0 %v4926
        %v5024 = vpop.f32.mrf.mxu0
        %v5025 = vadd.f32 0.0, %v5024
        %v5026 = vpop.f32.mrf.mxu0
        %5027 = vmatprep.mubr.f32.mxu0 0.0
        %5028 = vmatmul.mubr.f32.gmra.mxu0 %v4928
        %v5029 = vpop.f32.mrf.mxu0
        %v5030 = vadd.f32 0.0, %v5029
        %v5031 = vpop.f32.mrf.mxu0
        %5032 = vmatprep.mubr.f32.mxu0 0.0
        %5033 = vmatmul.mubr.f32.gmra.mxu0 %v4930
        %v5034 = vpop.f32.mrf.mxu0
        %v5035 = vadd.f32 0.0, %v5034
        %v5036 = vpop.f32.mrf.mxu0
        %5037 = vmatprep.mubr.f32.mxu0 0.0
        %5038 = vmatmul.mubr.f32.gmra.mxu0 %v4932
        %v5039 = vpop.f32.mrf.mxu0
        %v5040 = vadd.f32 0.0, %v5039
        %v5041 = vpop.f32.mrf.mxu0
        %5042 = vmatprep.mubr.f32.mxu0 0.0
        %5043 = vmatmul.mubr.f32.gmra.mxu0 %v4934
        %v5044 = vpop.f32.mrf.mxu0
        %v5045 = vadd.f32 0.0, %v5044
        %v5046 = vpop.f32.mrf.mxu0
        %5047 = vmatprep.mubr.f32.mxu0 0.0
        %5048 = vmatmul.mubr.f32.gmra.mxu0 %v4936
        %v5049 = vpop.f32.mrf.mxu0
        %v5050 = vadd.f32 0.0, %v5049
        %v5051 = vpop.f32.mrf.mxu0
        %5052 = vmatprep.mubr.f32.mxu0 0.0
        %5053 = vmatmul.mubr.f32.gmra.mxu0 %v4938
        %v5054 = vpop.f32.mrf.mxu0
        %v5055 = vadd.f32 0.0, %v5054
        %v5056 = vpop.f32.mrf.mxu0
        %5057 = vmatprep.mubr.f32.mxu0 0.0
        %5058 = vmatmul.mubr.f32.gmra.mxu0 %v4940
        %v5059 = vpop.f32.mrf.mxu0
        %v5060 = vadd.f32 0.0, %v5059
        %v5061 = vpop.f32.mrf.mxu0
        %5062 = vdwg.mxu0
        %v5063 = vmul.f32 %v5025, 0.5
        %v5064 = vmul.f32 %v5030, 0.5
        %v5065 = vmul.f32 %v5035, 0.5
        %v5066 = vmul.f32 %v5040, 0.5
        %v5067 = vmul.f32 %v5045, 0.5
        %v5068 = vmul.f32 %v5050, 0.5
        %v5069 = vmul.f32 %v5055, 0.5
        %v5070 = vmul.f32 %v5060, 0.5
        %5071 = vmatprep.subr.mxu0 0.0
        %5072 = vmatpush1.xpose.msra.mxu0 0.0
        %5073 = vmatprep.subr.mxu0 0.0
        %5074 = vmatpush1.xpose.msra.mxu0 0.0
        %5075 = vmatprep.subr.mxu0 0.0
        %5076 = vmatpush1.xpose.msra.mxu0 0.0
        %5077 = vmatprep.subr.mxu0 0.0
        %5078 = vmatpush1.xpose.msra.mxu0 0.0
        %5079 = vmatprep.subr.mxu0 0.0
        %5080 = vmatpush1.xpose.msra.mxu0 0.0
        %5081 = vmatprep.subr.mxu0 0.0
        %5082 = vmatpush1.xpose.msra.mxu0 0.0
        %5083 = vmatprep.subr.mxu0 0.0
        %5084 = vmatpush1.xpose.msra.mxu0 0.0
        %5085 = vmatprep.subr.mxu0 0.0
        %5086 = vmatpush1.xpose.msra.mxu0 0.0
        %5087 = vmatprep.subr.mxu0 0.0
        %5088 = vmatpush1.xpose.msra.mxu0 %v4940
        %5089 = vmatprep.subr.mxu0 0.0
        %5090 = vmatpush1.xpose.msra.mxu0 %v4938
        %5091 = vmatprep.subr.mxu0 0.0
        %5092 = vmatpush1.xpose.msra.mxu0 %v4936
        %5093 = vmatprep.subr.mxu0 0.0
        %5094 = vmatpush1.xpose.msra.mxu0 %v4934
        %5095 = vmatprep.subr.mxu0 0.0
        %5096 = vmatpush1.xpose.msra.mxu0 %v4932
        %5097 = vmatprep.subr.mxu0 0.0
        %5098 = vmatpush1.xpose.msra.mxu0 %v4930
        %5099 = vmatprep.subr.mxu0 0.0
        %5100 = vmatpush1.xpose.msra.mxu0 %v4928
        %5101 = vmatprep.subr.mxu0 0.0
        %5102 = vmatpush1.xpose.msra.mxu0 %v4926
        %5103 = vmatprep.subr.mxu0 0.0
        %5104 = vmatpush2.xpose.msra.mxu0 0.0
        %5105 = vmatprep.subr.mxu0 0.0
        %5106 = vmatpush2.xpose.msra.mxu0 0.0
        %5107 = vmatprep.subr.mxu0 0.0
        %5108 = vmatpush2.xpose.msra.mxu0 0.0
        %5109 = vmatprep.subr.mxu0 0.0
        %5110 = vmatpush2.xpose.msra.mxu0 0.0
        %5111 = vmatprep.subr.mxu0 0.0
        %5112 = vmatpush2.xpose.msra.mxu0 0.0
        %5113 = vmatprep.subr.mxu0 0.0
        %5114 = vmatpush2.xpose.msra.mxu0 0.0
        %5115 = vmatprep.subr.mxu0 0.0
        %5116 = vmatpush2.xpose.msra.mxu0 0.0
        %5117 = vmatprep.subr.mxu0 0.0
        %5118 = vmatpush2.xpose.msra.mxu0 0.0
        %5119 = vmatprep.subr.mxu0 0.0
        %5120 = vmatpush2.xpose.msra.mxu0 0.0
        %5121 = vmatprep.subr.mxu0 0.0
        %5122 = vmatpush2.xpose.msra.mxu0 0.0
        %5123 = vmatprep.subr.mxu0 0.0
        %5124 = vmatpush2.xpose.msra.mxu0 0.0
        %5125 = vmatprep.subr.mxu0 0.0
        %5126 = vmatpush2.xpose.msra.mxu0 0.0
        %5127 = vmatprep.subr.mxu0 0.0
        %5128 = vmatpush2.xpose.msra.mxu0 0.0
        %5129 = vmatprep.subr.mxu0 0.0
        %5130 = vmatpush2.xpose.msra.mxu0 0.0
        %5131 = vmatprep.subr.mxu0 0.0
        %5132 = vmatpush2.xpose.msra.mxu0 0.0
        %5133 = vmatprep.subr.mxu0 0.0
        %5134 = vmatpush2.xpose.msra.mxu0 0.0
        %5135 = vmatprep.mubr.f32.mxu0 0.0
        %5136 = vmatmul.mubr.f32.gmra.mxu0 %v4942
        %v5137 = vpop.f32.mrf.mxu0
        %v5138 = vadd.f32 0.0, %v5137
        %v5139 = vpop.f32.mrf.mxu0
        %5140 = vmatprep.mubr.f32.mxu0 0.0
        %5141 = vmatmul.mubr.f32.gmra.mxu0 %v4944
        %v5142 = vpop.f32.mrf.mxu0
        %v5143 = vadd.f32 0.0, %v5142
        %v5144 = vpop.f32.mrf.mxu0
        %5145 = vmatprep.mubr.f32.mxu0 0.0
        %5146 = vmatmul.mubr.f32.gmra.mxu0 %v4946
        %v5147 = vpop.f32.mrf.mxu0
        %v5148 = vadd.f32 0.0, %v5147
        %v5149 = vpop.f32.mrf.mxu0
        %5150 = vmatprep.mubr.f32.mxu0 0.0
        %5151 = vmatmul.mubr.f32.gmra.mxu0 %v4948
        %v5152 = vpop.f32.mrf.mxu0
        %v5153 = vadd.f32 0.0, %v5152
        %v5154 = vpop.f32.mrf.mxu0
        %5155 = vmatprep.mubr.f32.mxu0 0.0
        %5156 = vmatmul.mubr.f32.gmra.mxu0 %v4950
        %v5157 = vpop.f32.mrf.mxu0
        %v5158 = vadd.f32 0.0, %v5157
        %v5159 = vpop.f32.mrf.mxu0
        %5160 = vmatprep.mubr.f32.mxu0 0.0
        %5161 = vmatmul.mubr.f32.gmra.mxu0 %v4952
        %v5162 = vpop.f32.mrf.mxu0
        %v5163 = vadd.f32 0.0, %v5162
        %v5164 = vpop.f32.mrf.mxu0
        %5165 = vmatprep.mubr.f32.mxu0 0.0
        %5166 = vmatmul.mubr.f32.gmra.mxu0 %v4954
        %v5167 = vpop.f32.mrf.mxu0
        %v5168 = vadd.f32 0.0, %v5167
        %v5169 = vpop.f32.mrf.mxu0
        %5170 = vmatprep.mubr.f32.mxu0 0.0
        %5171 = vmatmul.mubr.f32.gmra.mxu0 %v4956
        %v5172 = vpop.f32.mrf.mxu0
        %v5173 = vadd.f32 0.0, %v5172
        %v5174 = vpop.f32.mrf.mxu0
        %5175 = vdwg.mxu0
        %v5176 = vmul.f32 %v5138, 0.5
        %v5177 = vmul.f32 %v5143, 0.5
        %v5178 = vmul.f32 %v5148, 0.5
        %v5179 = vmul.f32 %v5153, 0.5
        %v5180 = vmul.f32 %v5158, 0.5
        %v5181 = vmul.f32 %v5163, 0.5
        %v5182 = vmul.f32 %v5168, 0.5
        %v5183 = vmul.f32 %v5173, 0.5
        %v5184 = vsel %vm295, %v5063, -inf
        %v5185 = vsel %vm295, %v5064, -inf
        %v5186 = vsel %vm295, %v5065, -inf
        %v5187 = vsel %vm295, %v5066, -inf
        %v5188 = vsel %vm295, %v5067, -inf
        %v5189 = vmax.f32 %v5184, %v5188
        %v5190 = vsel %vm295, %v5068, -inf
        %v5191 = vmax.f32 %v5185, %v5190
        %v5192 = vsel %vm295, %v5069, -inf
        %v5193 = vmax.f32 %v5186, %v5192
        %v5194 = vsel %vm295, %v5070, -inf
        %v5195 = vmax.f32 %v5187, %v5194
        %v5196 = vmax.f32 %v5189, %v5191
        %v5197 = vmax.f32 %v5193, %v5195
        %v5198 = vmax.f32 %v5196, %v5197
        %v5199 = vrot.slane %v5198, 4
        %v5200 = vmax.f32 %v5198, %v5199
        %v5201 = vrot.slane %v5200, 2
        %v5202 = vmax.f32 %v5200, %v5201
        %v5203 = vrot.slane %v5202, 1
        %v5204 = vmax.f32 %v5202, %v5203
        %v5205 = vsub.f32 %v5063, %v5204
        %v5206 = vsub.f32 %v5064, %v5204
        %v5207 = vsub.f32 %v5065, %v5204
        %v5208 = vsub.f32 %v5066, %v5204
        %v5209 = vsub.f32 %v5067, %v5204
        %v5210 = vsub.f32 %v5068, %v5204
        %v5211 = vsub.f32 %v5069, %v5204
        %v5212 = vsub.f32 %v5070, %v5204
        %v5213 = vmul.f32 %v5205, 1.442695
        %v5214 = vpow.pop %v5213
        %v5215 = vmul.f32 %v5206, 1.442695
        %v5216 = vpow.pop %v5215
        %v5217 = vmul.f32 %v5207, 1.442695
        %v5218 = vpow.pop %v5217
        %v5219 = vmul.f32 %v5208, 1.442695
        %v5220 = vpow.pop %v5219
        %v5221 = vmul.f32 %v5209, 1.442695
        %v5222 = vpow.pop %v5221
        %v5223 = vmul.f32 %v5210, 1.442695
        %v5224 = vpow.pop %v5223
        %v5225 = vmul.f32 %v5211, 1.442695
        %v5226 = vpow.pop %v5225
        %v5227 = vmul.f32 %v5212, 1.442695
        %v5228 = vpow.pop %v5227
        %v5229 = vsel %vm295, %v5214, 0.0
        %v5230 = vsel %vm295, %v5216, 0.0
        %v5231 = vadd.f32 %v5229, %v5230
        %v5232 = vsel %vm295, %v5218, 0.0
        %v5233 = vadd.f32 %v5231, %v5232
        %v5234 = vsel %vm295, %v5220, 0.0
        %v5235 = vadd.f32 %v5233, %v5234
        %v5236 = vsel %vm295, %v5222, 0.0
        %v5237 = vadd.f32 %v5235, %v5236
        %v5238 = vsel %vm295, %v5224, 0.0
        %v5239 = vadd.f32 %v5237, %v5238
        %v5240 = vsel %vm295, %v5226, 0.0
        %v5241 = vadd.f32 %v5239, %v5240
        %v5242 = vsel %vm295, %v5228, 0.0
        %v5243 = vadd.f32 %v5241, %v5242
        %v5244 = vrot.slane %v5243, 4
        %v5245 = vadd.f32 %v5243, %v5244
        %v5246 = vrot.slane %v5245, 2
        %v5247 = vadd.f32 %v5245, %v5246
        %v5248 = vrot.slane %v5247, 1
        %v5249 = vadd.f32 %v5247, %v5248
        %v5250 = vrcp.pop %v5249
        %v5251 = vmul.f32 %v5214, %v5250
        %v5252 = vmul.f32 %v5216, %v5250
        %v5253 = vmul.f32 %v5218, %v5250
        %v5254 = vmul.f32 %v5220, %v5250
        %v5255 = vmul.f32 %v5222, %v5250
        %v5256 = vmul.f32 %v5224, %v5250
        %v5257 = vmul.f32 %v5226, %v5250
        %v5258 = vmul.f32 %v5228, %v5250
        %v5259 = vsel %vm295, %v5176, -inf
        %v5260 = vsel %vm295, %v5177, -inf
        %v5261 = vsel %vm295, %v5178, -inf
        %v5262 = vsel %vm295, %v5179, -inf
        %v5263 = vsel %vm295, %v5180, -inf
        %v5264 = vmax.f32 %v5259, %v5263
        %v5265 = vsel %vm295, %v5181, -inf
        %v5266 = vmax.f32 %v5260, %v5265
        %v5267 = vsel %vm295, %v5182, -inf
        %v5268 = vmax.f32 %v5261, %v5267
        %v5269 = vsel %vm295, %v5183, -inf
        %v5270 = vmax.f32 %v5262, %v5269
        %v5271 = vmax.f32 %v5264, %v5266
        %v5272 = vmax.f32 %v5268, %v5270
        %v5273 = vmax.f32 %v5271, %v5272
        %v5274 = vrot.slane %v5273, 4
        %v5275 = vmax.f32 %v5273, %v5274
        %v5276 = vrot.slane %v5275, 2
        %v5277 = vmax.f32 %v5275, %v5276
        %v5278 = vrot.slane %v5277, 1
        %v5279 = vmax.f32 %v5277, %v5278
        %v5280 = vsub.f32 %v5176, %v5279
        %v5281 = vsub.f32 %v5177, %v5279
        %v5282 = vsub.f32 %v5178, %v5279
        %v5283 = vsub.f32 %v5179, %v5279
        %v5284 = vsub.f32 %v5180, %v5279
        %v5285 = vsub.f32 %v5181, %v5279
        %v5286 = vsub.f32 %v5182, %v5279
        %v5287 = vsub.f32 %v5183, %v5279
        %v5288 = vmul.f32 %v5280, 1.442695
        %v5289 = vpow.pop %v5288
        %v5290 = vmul.f32 %v5281, 1.442695
        %v5291 = vpow.pop %v5290
        %v5292 = vmul.f32 %v5282, 1.442695
        %v5293 = vpow.pop %v5292
        %v5294 = vmul.f32 %v5283, 1.442695
        %v5295 = vpow.pop %v5294
        %v5296 = vmul.f32 %v5284, 1.442695
        %v5297 = vpow.pop %v5296
        %v5298 = vmul.f32 %v5285, 1.442695
        %v5299 = vpow.pop %v5298
        %v5300 = vmul.f32 %v5286, 1.442695
        %v5301 = vpow.pop %v5300
        %v5302 = vmul.f32 %v5287, 1.442695
        %v5303 = vpow.pop %v5302
        %v5304 = vsel %vm295, %v5289, 0.0
        %v5305 = vsel %vm295, %v5291, 0.0
        %v5306 = vadd.f32 %v5304, %v5305
        %v5307 = vsel %vm295, %v5293, 0.0
        %v5308 = vadd.f32 %v5306, %v5307
        %v5309 = vsel %vm295, %v5295, 0.0
        %v5310 = vadd.f32 %v5308, %v5309
        %v5311 = vsel %vm295, %v5297, 0.0
        %v5312 = vadd.f32 %v5310, %v5311
        %v5313 = vsel %vm295, %v5299, 0.0
        %v5314 = vadd.f32 %v5312, %v5313
        %v5315 = vsel %vm295, %v5301, 0.0
        %v5316 = vadd.f32 %v5314, %v5315
        %v5317 = vsel %vm295, %v5303, 0.0
        %v5318 = vadd.f32 %v5316, %v5317
        %v5319 = vrot.slane %v5318, 4
        %v5320 = vadd.f32 %v5318, %v5319
        %v5321 = vrot.slane %v5320, 2
        %v5322 = vadd.f32 %v5320, %v5321
        %v5323 = vrot.slane %v5322, 1
        %v5324 = vadd.f32 %v5322, %v5323
        %v5325 = vrcp.pop %v5324
        %v5326 = vmul.f32 %v5289, %v5325
        %v5327 = vmul.f32 %v5291, %v5325
        %v5328 = vmul.f32 %v5293, %v5325
        %v5329 = vmul.f32 %v5295, %v5325
        %v5330 = vmul.f32 %v5297, %v5325
        %v5331 = vmul.f32 %v5299, %v5325
        %v5332 = vmul.f32 %v5301, %v5325
        %v5333 = vmul.f32 %v5303, %v5325
        %5334 = vrot.lane.b32.xlu0 %v387, 72
        %v5335 = vpop.permute.xlu0 %5334
        %5336 = vrot.lane.b32.xlu0 %v392, 72
        %v5337 = vpop.permute.xlu0 %5336
        %5338 = vrot.lane.b32.xlu0 %v397, 72
        %v5339 = vpop.permute.xlu0 %5338
        %5340 = vrot.lane.b32.xlu0 %v402, 72
        %v5341 = vpop.permute.xlu0 %5340
        %5342 = vrot.lane.b32.xlu0 %v407, 72
        %v5343 = vpop.permute.xlu0 %5342
        %5344 = vrot.lane.b32.xlu0 %v412, 72
        %v5345 = vpop.permute.xlu0 %5344
        %5346 = vrot.lane.b32.xlu0 %v417, 72
        %v5347 = vpop.permute.xlu0 %5346
        %5348 = vrot.lane.b32.xlu0 %v422, 72
        %v5349 = vpop.permute.xlu0 %5348
        %v5359 = vsel %vm295, %v5251, 0
        %v5362 = vsel %vm295, %v5252, 0
        %v5365 = vsel %vm295, %v5253, 0
        %v5368 = vsel %vm295, %v5254, 0
        %v5371 = vsel %vm295, %v5255, 0
        %v5374 = vsel %vm295, %v5256, 0
        %v5377 = vsel %vm295, %v5257, 0
        %v5380 = vsel %vm295, %v5258, 0
        %5382 = vmatprep.subr.mxu0 0.0
        %5383 = vmatpush1.msra.mxu0 0.0
        %5384 = vmatprep.subr.mxu0 0.0
        %5385 = vmatpush1.msra.mxu0 0.0
        %5386 = vmatprep.subr.mxu0 0.0
        %5387 = vmatpush1.msra.mxu0 0.0
        %5388 = vmatprep.subr.mxu0 0.0
        %5389 = vmatpush1.msra.mxu0 0.0
        %5390 = vmatprep.subr.mxu0 0.0
        %5391 = vmatpush1.msra.mxu0 0.0
        %5392 = vmatprep.subr.mxu0 0.0
        %5393 = vmatpush1.msra.mxu0 0.0
        %5394 = vmatprep.subr.mxu0 0.0
        %5395 = vmatpush1.msra.mxu0 0.0
        %5396 = vmatprep.subr.mxu0 0.0
        %5397 = vmatpush1.msra.mxu0 0.0
        %5398 = vmatprep.subr.mxu0 0.0
        %5399 = vmatpush1.msra.mxu0 %v5349
        %5400 = vmatprep.subr.mxu0 0.0
        %5401 = vmatpush1.msra.mxu0 %v5347
        %5402 = vmatprep.subr.mxu0 0.0
        %5403 = vmatpush1.msra.mxu0 %v5345
        %5404 = vmatprep.subr.mxu0 0.0
        %5405 = vmatpush1.msra.mxu0 %v5343
        %5406 = vmatprep.subr.mxu0 0.0
        %5407 = vmatpush1.msra.mxu0 %v5341
        %5408 = vmatprep.subr.mxu0 0.0
        %5409 = vmatpush1.msra.mxu0 %v5339
        %5410 = vmatprep.subr.mxu0 0.0
        %5411 = vmatpush1.msra.mxu0 %v5337
        %5412 = vmatprep.subr.mxu0 0.0
        %5413 = vmatpush1.msra.mxu0 %v5335
        %5414 = vmatprep.subr.mxu0 0.0
        %5415 = vmatpush2.msra.mxu0 0.0
        %5416 = vmatprep.subr.mxu0 0.0
        %5417 = vmatpush2.msra.mxu0 0.0
        %5418 = vmatprep.subr.mxu0 0.0
        %5419 = vmatpush2.msra.mxu0 0.0
        %5420 = vmatprep.subr.mxu0 0.0
        %5421 = vmatpush2.msra.mxu0 0.0
        %5422 = vmatprep.subr.mxu0 0.0
        %5423 = vmatpush2.msra.mxu0 0.0
        %5424 = vmatprep.subr.mxu0 0.0
        %5425 = vmatpush2.msra.mxu0 0.0
        %5426 = vmatprep.subr.mxu0 0.0
        %5427 = vmatpush2.msra.mxu0 0.0
        %5428 = vmatprep.subr.mxu0 0.0
        %5429 = vmatpush2.msra.mxu0 0.0
        %5430 = vmatprep.subr.mxu0 0.0
        %5431 = vmatpush2.msra.mxu0 0.0
        %5432 = vmatprep.subr.mxu0 0.0
        %5433 = vmatpush2.msra.mxu0 0.0
        %5434 = vmatprep.subr.mxu0 0.0
        %5435 = vmatpush2.msra.mxu0 0.0
        %5436 = vmatprep.subr.mxu0 0.0
        %5437 = vmatpush2.msra.mxu0 0.0
        %5438 = vmatprep.subr.mxu0 0.0
        %5439 = vmatpush2.msra.mxu0 0.0
        %5440 = vmatprep.subr.mxu0 0.0
        %5441 = vmatpush2.msra.mxu0 0.0
        %5442 = vmatprep.subr.mxu0 0.0
        %5443 = vmatpush2.msra.mxu0 0.0
        %5444 = vmatprep.subr.mxu0 0.0
        %5445 = vmatpush2.msra.mxu0 0.0
        %5446 = vmatprep.mubr.f32.mxu0 0.0
        %5447 = vmatmul.mubr.f32.gmra.mxu0 %v5359
        %v5448 = vpop.f32.mrf.mxu0
        %v5449 = vadd.f32 0.0, %v5448
        %v5450 = vpop.f32.mrf.mxu0
        %5451 = vmatprep.mubr.f32.mxu0 0.0
        %5452 = vmatmul.mubr.f32.gmra.mxu0 %v5362
        %v5453 = vpop.f32.mrf.mxu0
        %v5454 = vadd.f32 0.0, %v5453
        %v5455 = vpop.f32.mrf.mxu0
        %5456 = vmatprep.mubr.f32.mxu0 0.0
        %5457 = vmatmul.mubr.f32.gmra.mxu0 %v5365
        %v5458 = vpop.f32.mrf.mxu0
        %v5459 = vadd.f32 0.0, %v5458
        %v5460 = vpop.f32.mrf.mxu0
        %5461 = vmatprep.mubr.f32.mxu0 0.0
        %5462 = vmatmul.mubr.f32.gmra.mxu0 %v5368
        %v5463 = vpop.f32.mrf.mxu0
        %v5464 = vadd.f32 0.0, %v5463
        %v5465 = vpop.f32.mrf.mxu0
        %5466 = vmatprep.mubr.f32.mxu0 0.0
        %5467 = vmatmul.mubr.f32.gmra.mxu0 %v5371
        %v5468 = vpop.f32.mrf.mxu0
        %v5469 = vadd.f32 0.0, %v5468
        %v5470 = vpop.f32.mrf.mxu0
        %5471 = vmatprep.mubr.f32.mxu0 0.0
        %5472 = vmatmul.mubr.f32.gmra.mxu0 %v5374
        %v5473 = vpop.f32.mrf.mxu0
        %v5474 = vadd.f32 0.0, %v5473
        %v5475 = vpop.f32.mrf.mxu0
        %5476 = vmatprep.mubr.f32.mxu0 0.0
        %5477 = vmatmul.mubr.f32.gmra.mxu0 %v5377
        %v5478 = vpop.f32.mrf.mxu0
        %v5479 = vadd.f32 0.0, %v5478
        %v5480 = vpop.f32.mrf.mxu0
        %5481 = vmatprep.mubr.f32.mxu0 0.0
        %5482 = vmatmul.mubr.f32.gmra.mxu0 %v5380
        %v5483 = vpop.f32.mrf.mxu0
        %v5484 = vadd.f32 0.0, %v5483
        %v5485 = vpop.f32.mrf.mxu0
        %5486 = vdwg.mxu0
        %5487 = vrot.lane.b32.xlu0 %v387, 8
        %v5488 = vpop.permute.xlu0 %5487
        %5489 = vrot.lane.b32.xlu0 %v392, 8
        %v5490 = vpop.permute.xlu0 %5489
        %5491 = vrot.lane.b32.xlu0 %v397, 8
        %v5492 = vpop.permute.xlu0 %5491
        %5493 = vrot.lane.b32.xlu0 %v402, 8
        %v5494 = vpop.permute.xlu0 %5493
        %5495 = vrot.lane.b32.xlu0 %v407, 8
        %v5496 = vpop.permute.xlu0 %5495
        %5497 = vrot.lane.b32.xlu0 %v412, 8
        %v5498 = vpop.permute.xlu0 %5497
        %5499 = vrot.lane.b32.xlu0 %v417, 8
        %v5500 = vpop.permute.xlu0 %5499
        %5501 = vrot.lane.b32.xlu0 %v422, 8
        %v5502 = vpop.permute.xlu0 %5501
        %v5512 = vsel %vm295, %v5326, 0
        %v5515 = vsel %vm295, %v5327, 0
        %v5518 = vsel %vm295, %v5328, 0
        %v5521 = vsel %vm295, %v5329, 0
        %v5524 = vsel %vm295, %v5330, 0
        %v5527 = vsel %vm295, %v5331, 0
        %v5530 = vsel %vm295, %v5332, 0
        %v5533 = vsel %vm295, %v5333, 0
        %5535 = vmatprep.subr.mxu0 0.0
        %5536 = vmatpush1.msra.mxu0 0.0
        %5537 = vmatprep.subr.mxu0 0.0
        %5538 = vmatpush1.msra.mxu0 0.0
        %5539 = vmatprep.subr.mxu0 0.0
        %5540 = vmatpush1.msra.mxu0 0.0
        %5541 = vmatprep.subr.mxu0 0.0
        %5542 = vmatpush1.msra.mxu0 0.0
        %5543 = vmatprep.subr.mxu0 0.0
        %5544 = vmatpush1.msra.mxu0 0.0
        %5545 = vmatprep.subr.mxu0 0.0
        %5546 = vmatpush1.msra.mxu0 0.0
        %5547 = vmatprep.subr.mxu0 0.0
        %5548 = vmatpush1.msra.mxu0 0.0
        %5549 = vmatprep.subr.mxu0 0.0
        %5550 = vmatpush1.msra.mxu0 0.0
        %5551 = vmatprep.subr.mxu0 0.0
        %5552 = vmatpush1.msra.mxu0 %v5502
        %5553 = vmatprep.subr.mxu0 0.0
        %5554 = vmatpush1.msra.mxu0 %v5500
        %5555 = vmatprep.subr.mxu0 0.0
        %5556 = vmatpush1.msra.mxu0 %v5498
        %5557 = vmatprep.subr.mxu0 0.0
        %5558 = vmatpush1.msra.mxu0 %v5496
        %5559 = vmatprep.subr.mxu0 0.0
        %5560 = vmatpush1.msra.mxu0 %v5494
        %5561 = vmatprep.subr.mxu0 0.0
        %5562 = vmatpush1.msra.mxu0 %v5492
        %5563 = vmatprep.subr.mxu0 0.0
        %5564 = vmatpush1.msra.mxu0 %v5490
        %5565 = vmatprep.subr.mxu0 0.0
        %5566 = vmatpush1.msra.mxu0 %v5488
        %5567 = vmatprep.subr.mxu0 0.0
        %5568 = vmatpush2.msra.mxu0 0.0
        %5569 = vmatprep.subr.mxu0 0.0
        %5570 = vmatpush2.msra.mxu0 0.0
        %5571 = vmatprep.subr.mxu0 0.0
        %5572 = vmatpush2.msra.mxu0 0.0
        %5573 = vmatprep.subr.mxu0 0.0
        %5574 = vmatpush2.msra.mxu0 0.0
        %5575 = vmatprep.subr.mxu0 0.0
        %5576 = vmatpush2.msra.mxu0 0.0
        %5577 = vmatprep.subr.mxu0 0.0
        %5578 = vmatpush2.msra.mxu0 0.0
        %5579 = vmatprep.subr.mxu0 0.0
        %5580 = vmatpush2.msra.mxu0 0.0
        %5581 = vmatprep.subr.mxu0 0.0
        %5582 = vmatpush2.msra.mxu0 0.0
        %5583 = vmatprep.subr.mxu0 0.0
        %5584 = vmatpush2.msra.mxu0 0.0
        %5585 = vmatprep.subr.mxu0 0.0
        %5586 = vmatpush2.msra.mxu0 0.0
        %5587 = vmatprep.subr.mxu0 0.0
        %5588 = vmatpush2.msra.mxu0 0.0
        %5589 = vmatprep.subr.mxu0 0.0
        %5590 = vmatpush2.msra.mxu0 0.0
        %5591 = vmatprep.subr.mxu0 0.0
        %5592 = vmatpush2.msra.mxu0 0.0
        %5593 = vmatprep.subr.mxu0 0.0
        %5594 = vmatpush2.msra.mxu0 0.0
        %5595 = vmatprep.subr.mxu0 0.0
        %5596 = vmatpush2.msra.mxu0 0.0
        %5597 = vmatprep.subr.mxu0 0.0
        %5598 = vmatpush2.msra.mxu0 0.0
        %5599 = vmatprep.mubr.f32.mxu0 0.0
        %5600 = vmatmul.mubr.f32.gmra.mxu0 %v5512
        %v5601 = vpop.f32.mrf.mxu0
        %v5602 = vadd.f32 0.0, %v5601
        %v5603 = vpop.f32.mrf.mxu0
        %5604 = vmatprep.mubr.f32.mxu0 0.0
        %5605 = vmatmul.mubr.f32.gmra.mxu0 %v5515
        %v5606 = vpop.f32.mrf.mxu0
        %v5607 = vadd.f32 0.0, %v5606
        %v5608 = vpop.f32.mrf.mxu0
        %5609 = vmatprep.mubr.f32.mxu0 0.0
        %5610 = vmatmul.mubr.f32.gmra.mxu0 %v5518
        %v5611 = vpop.f32.mrf.mxu0
        %v5612 = vadd.f32 0.0, %v5611
        %v5613 = vpop.f32.mrf.mxu0
        %5614 = vmatprep.mubr.f32.mxu0 0.0
        %5615 = vmatmul.mubr.f32.gmra.mxu0 %v5521
        %v5616 = vpop.f32.mrf.mxu0
        %v5617 = vadd.f32 0.0, %v5616
        %v5618 = vpop.f32.mrf.mxu0
        %5619 = vmatprep.mubr.f32.mxu0 0.0
        %5620 = vmatmul.mubr.f32.gmra.mxu0 %v5524
        %v5621 = vpop.f32.mrf.mxu0
        %v5622 = vadd.f32 0.0, %v5621
        %v5623 = vpop.f32.mrf.mxu0
        %5624 = vmatprep.mubr.f32.mxu0 0.0
        %5625 = vmatmul.mubr.f32.gmra.mxu0 %v5527
        %v5626 = vpop.f32.mrf.mxu0
        %v5627 = vadd.f32 0.0, %v5626
        %v5628 = vpop.f32.mrf.mxu0
        %5629 = vmatprep.mubr.f32.mxu0 0.0
        %5630 = vmatmul.mubr.f32.gmra.mxu0 %v5530
        %v5631 = vpop.f32.mrf.mxu0
        %v5632 = vadd.f32 0.0, %v5631
        %v5633 = vpop.f32.mrf.mxu0
        %5634 = vmatprep.mubr.f32.mxu0 0.0
        %5635 = vmatmul.mubr.f32.gmra.mxu0 %v5533
        %v5636 = vpop.f32.mrf.mxu0
        %v5637 = vadd.f32 0.0, %v5636
        %v5638 = vpop.f32.mrf.mxu0
        %5639 = vdwg.mxu0
        %5640 = vrot.lane.b32.xlu0 %v387, 100
        %v5641 = vpop.permute.xlu0 %5640
        %5642 = vrot.lane.b32.xlu0 %v392, 100
        %v5643 = vpop.permute.xlu0 %5642
        %5644 = vrot.lane.b32.xlu0 %v397, 100
        %v5645 = vpop.permute.xlu0 %5644
        %5646 = vrot.lane.b32.xlu0 %v402, 100
        %v5647 = vpop.permute.xlu0 %5646
        %5648 = vrot.lane.b32.xlu0 %v407, 100
        %v5649 = vpop.permute.xlu0 %5648
        %5650 = vrot.lane.b32.xlu0 %v412, 100
        %v5651 = vpop.permute.xlu0 %5650
        %5652 = vrot.lane.b32.xlu0 %v417, 100
        %v5653 = vpop.permute.xlu0 %5652
        %5654 = vrot.lane.b32.xlu0 %v422, 100
        %v5655 = vpop.permute.xlu0 %5654
        %5656 = vrot.lane.b32.xlu0 %v387, 36
        %v5657 = vpop.permute.xlu0 %5656
        %5658 = vrot.lane.b32.xlu0 %v392, 36
        %v5659 = vpop.permute.xlu0 %5658
        %5660 = vrot.lane.b32.xlu0 %v397, 36
        %v5661 = vpop.permute.xlu0 %5660
        %5662 = vrot.lane.b32.xlu0 %v402, 36
        %v5663 = vpop.permute.xlu0 %5662
        %5664 = vrot.lane.b32.xlu0 %v407, 36
        %v5665 = vpop.permute.xlu0 %5664
        %5666 = vrot.lane.b32.xlu0 %v412, 36
        %v5667 = vpop.permute.xlu0 %5666
        %5668 = vrot.lane.b32.xlu0 %v417, 36
        %v5669 = vpop.permute.xlu0 %5668
        %5670 = vrot.lane.b32.xlu0 %v422, 36
        %v5671 = vpop.permute.xlu0 %5670
        %v5672 = vsel %vm449, %v5641, 0
        %v5674 = vsel %vm449, %v5643, 0
        %v5676 = vsel %vm449, %v5645, 0
        %v5678 = vsel %vm449, %v5647, 0
        %v5680 = vsel %vm449, %v5649, 0
        %v5682 = vsel %vm449, %v5651, 0
        %v5684 = vsel %vm449, %v5653, 0
        %v5686 = vsel %vm449, %v5655, 0
        %v5688 = vsel %vm449, %v5657, 0
        %v5690 = vsel %vm449, %v5659, 0
        %v5692 = vsel %vm449, %v5661, 0
        %v5694 = vsel %vm449, %v5663, 0
        %v5696 = vsel %vm449, %v5665, 0
        %v5698 = vsel %vm449, %v5667, 0
        %v5700 = vsel %vm449, %v5669, 0
        %v5702 = vsel %vm449, %v5671, 0
        %5704 = vmatprep.subr.mxu0 0.0
        %5705 = vmatpush1.xpose.msra.mxu0 0.0
        %5706 = vmatprep.subr.mxu0 0.0
        %5707 = vmatpush1.xpose.msra.mxu0 0.0
        %5708 = vmatprep.subr.mxu0 0.0
        %5709 = vmatpush1.xpose.msra.mxu0 0.0
        %5710 = vmatprep.subr.mxu0 0.0
        %5711 = vmatpush1.xpose.msra.mxu0 0.0
        %5712 = vmatprep.subr.mxu0 0.0
        %5713 = vmatpush1.xpose.msra.mxu0 0.0
        %5714 = vmatprep.subr.mxu0 0.0
        %5715 = vmatpush1.xpose.msra.mxu0 0.0
        %5716 = vmatprep.subr.mxu0 0.0
        %5717 = vmatpush1.xpose.msra.mxu0 0.0
        %5718 = vmatprep.subr.mxu0 0.0
        %5719 = vmatpush1.xpose.msra.mxu0 0.0
        %5720 = vmatprep.subr.mxu0 0.0
        %5721 = vmatpush1.xpose.msra.mxu0 %v5702
        %5722 = vmatprep.subr.mxu0 0.0
        %5723 = vmatpush1.xpose.msra.mxu0 %v5700
        %5724 = vmatprep.subr.mxu0 0.0
        %5725 = vmatpush1.xpose.msra.mxu0 %v5698
        %5726 = vmatprep.subr.mxu0 0.0
        %5727 = vmatpush1.xpose.msra.mxu0 %v5696
        %5728 = vmatprep.subr.mxu0 0.0
        %5729 = vmatpush1.xpose.msra.mxu0 %v5694
        %5730 = vmatprep.subr.mxu0 0.0
        %5731 = vmatpush1.xpose.msra.mxu0 %v5692
        %5732 = vmatprep.subr.mxu0 0.0
        %5733 = vmatpush1.xpose.msra.mxu0 %v5690
        %5734 = vmatprep.subr.mxu0 0.0
        %5735 = vmatpush1.xpose.msra.mxu0 %v5688
        %5736 = vmatprep.subr.mxu0 0.0
        %5737 = vmatpush2.xpose.msra.mxu0 0.0
        %5738 = vmatprep.subr.mxu0 0.0
        %5739 = vmatpush2.xpose.msra.mxu0 0.0
        %5740 = vmatprep.subr.mxu0 0.0
        %5741 = vmatpush2.xpose.msra.mxu0 0.0
        %5742 = vmatprep.subr.mxu0 0.0
        %5743 = vmatpush2.xpose.msra.mxu0 0.0
        %5744 = vmatprep.subr.mxu0 0.0
        %5745 = vmatpush2.xpose.msra.mxu0 0.0
        %5746 = vmatprep.subr.mxu0 0.0
        %5747 = vmatpush2.xpose.msra.mxu0 0.0
        %5748 = vmatprep.subr.mxu0 0.0
        %5749 = vmatpush2.xpose.msra.mxu0 0.0
        %5750 = vmatprep.subr.mxu0 0.0
        %5751 = vmatpush2.xpose.msra.mxu0 0.0
        %5752 = vmatprep.subr.mxu0 0.0
        %5753 = vmatpush2.xpose.msra.mxu0 0.0
        %5754 = vmatprep.subr.mxu0 0.0
        %5755 = vmatpush2.xpose.msra.mxu0 0.0
        %5756 = vmatprep.subr.mxu0 0.0
        %5757 = vmatpush2.xpose.msra.mxu0 0.0
        %5758 = vmatprep.subr.mxu0 0.0
        %5759 = vmatpush2.xpose.msra.mxu0 0.0
        %5760 = vmatprep.subr.mxu0 0.0
        %5761 = vmatpush2.xpose.msra.mxu0 0.0
        %5762 = vmatprep.subr.mxu0 0.0
        %5763 = vmatpush2.xpose.msra.mxu0 0.0
        %5764 = vmatprep.subr.mxu0 0.0
        %5765 = vmatpush2.xpose.msra.mxu0 0.0
        %5766 = vmatprep.subr.mxu0 0.0
        %5767 = vmatpush2.xpose.msra.mxu0 0.0
        %5768 = vmatprep.mubr.f32.mxu0 0.0
        %5769 = vmatmul.mubr.f32.gmra.mxu0 %v5672
        %v5770 = vpop.f32.mrf.mxu0
        %v5771 = vadd.f32 0.0, %v5770
        %v5772 = vpop.f32.mrf.mxu0
        %5773 = vmatprep.mubr.f32.mxu0 0.0
        %5774 = vmatmul.mubr.f32.gmra.mxu0 %v5674
        %v5775 = vpop.f32.mrf.mxu0
        %v5776 = vadd.f32 0.0, %v5775
        %v5777 = vpop.f32.mrf.mxu0
        %5778 = vmatprep.mubr.f32.mxu0 0.0
        %5779 = vmatmul.mubr.f32.gmra.mxu0 %v5676
        %v5780 = vpop.f32.mrf.mxu0
        %v5781 = vadd.f32 0.0, %v5780
        %v5782 = vpop.f32.mrf.mxu0
        %5783 = vmatprep.mubr.f32.mxu0 0.0
        %5784 = vmatmul.mubr.f32.gmra.mxu0 %v5678
        %v5785 = vpop.f32.mrf.mxu0
        %v5786 = vadd.f32 0.0, %v5785
        %v5787 = vpop.f32.mrf.mxu0
        %5788 = vmatprep.mubr.f32.mxu0 0.0
        %5789 = vmatmul.mubr.f32.gmra.mxu0 %v5680
        %v5790 = vpop.f32.mrf.mxu0
        %v5791 = vadd.f32 0.0, %v5790
        %v5792 = vpop.f32.mrf.mxu0
        %5793 = vmatprep.mubr.f32.mxu0 0.0
        %5794 = vmatmul.mubr.f32.gmra.mxu0 %v5682
        %v5795 = vpop.f32.mrf.mxu0
        %v5796 = vadd.f32 0.0, %v5795
        %v5797 = vpop.f32.mrf.mxu0
        %5798 = vmatprep.mubr.f32.mxu0 0.0
        %5799 = vmatmul.mubr.f32.gmra.mxu0 %v5684
        %v5800 = vpop.f32.mrf.mxu0
        %v5801 = vadd.f32 0.0, %v5800
        %v5802 = vpop.f32.mrf.mxu0
        %5803 = vmatprep.mubr.f32.mxu0 0.0
        %5804 = vmatmul.mubr.f32.gmra.mxu0 %v5686
        %v5805 = vpop.f32.mrf.mxu0
        %v5806 = vadd.f32 0.0, %v5805
        %v5807 = vpop.f32.mrf.mxu0
        %5808 = vdwg.mxu0
        %v5809 = vmul.f32 %v5771, 0.5
        %v5810 = vmul.f32 %v5776, 0.5
        %v5811 = vmul.f32 %v5781, 0.5
        %v5812 = vmul.f32 %v5786, 0.5
        %v5813 = vmul.f32 %v5791, 0.5
        %v5814 = vmul.f32 %v5796, 0.5
        %v5815 = vmul.f32 %v5801, 0.5
        %v5816 = vmul.f32 %v5806, 0.5
        %5817 = vmatprep.subr.mxu0 0.0
        %5818 = vmatpush1.xpose.msra.mxu0 0.0
        %5819 = vmatprep.subr.mxu0 0.0
        %5820 = vmatpush1.xpose.msra.mxu0 0.0
        %5821 = vmatprep.subr.mxu0 0.0
        %5822 = vmatpush1.xpose.msra.mxu0 0.0
        %5823 = vmatprep.subr.mxu0 0.0
        %5824 = vmatpush1.xpose.msra.mxu0 0.0
        %5825 = vmatprep.subr.mxu0 0.0
        %5826 = vmatpush1.xpose.msra.mxu0 0.0
        %5827 = vmatprep.subr.mxu0 0.0
        %5828 = vmatpush1.xpose.msra.mxu0 0.0
        %5829 = vmatprep.subr.mxu0 0.0
        %5830 = vmatpush1.xpose.msra.mxu0 0.0
        %5831 = vmatprep.subr.mxu0 0.0
        %5832 = vmatpush1.xpose.msra.mxu0 0.0
        %5833 = vmatprep.subr.mxu0 0.0
        %5834 = vmatpush1.xpose.msra.mxu0 %v5686
        %5835 = vmatprep.subr.mxu0 0.0
        %5836 = vmatpush1.xpose.msra.mxu0 %v5684
        %5837 = vmatprep.subr.mxu0 0.0
        %5838 = vmatpush1.xpose.msra.mxu0 %v5682
        %5839 = vmatprep.subr.mxu0 0.0
        %5840 = vmatpush1.xpose.msra.mxu0 %v5680
        %5841 = vmatprep.subr.mxu0 0.0
        %5842 = vmatpush1.xpose.msra.mxu0 %v5678
        %5843 = vmatprep.subr.mxu0 0.0
        %5844 = vmatpush1.xpose.msra.mxu0 %v5676
        %5845 = vmatprep.subr.mxu0 0.0
        %5846 = vmatpush1.xpose.msra.mxu0 %v5674
        %5847 = vmatprep.subr.mxu0 0.0
        %5848 = vmatpush1.xpose.msra.mxu0 %v5672
        %5849 = vmatprep.subr.mxu0 0.0
        %5850 = vmatpush2.xpose.msra.mxu0 0.0
        %5851 = vmatprep.subr.mxu0 0.0
        %5852 = vmatpush2.xpose.msra.mxu0 0.0
        %5853 = vmatprep.subr.mxu0 0.0
        %5854 = vmatpush2.xpose.msra.mxu0 0.0
        %5855 = vmatprep.subr.mxu0 0.0
        %5856 = vmatpush2.xpose.msra.mxu0 0.0
        %5857 = vmatprep.subr.mxu0 0.0
        %5858 = vmatpush2.xpose.msra.mxu0 0.0
        %5859 = vmatprep.subr.mxu0 0.0
        %5860 = vmatpush2.xpose.msra.mxu0 0.0
        %5861 = vmatprep.subr.mxu0 0.0
        %5862 = vmatpush2.xpose.msra.mxu0 0.0
        %5863 = vmatprep.subr.mxu0 0.0
        %5864 = vmatpush2.xpose.msra.mxu0 0.0
        %5865 = vmatprep.subr.mxu0 0.0
        %5866 = vmatpush2.xpose.msra.mxu0 0.0
        %5867 = vmatprep.subr.mxu0 0.0
        %5868 = vmatpush2.xpose.msra.mxu0 0.0
        %5869 = vmatprep.subr.mxu0 0.0
        %5870 = vmatpush2.xpose.msra.mxu0 0.0
        %5871 = vmatprep.subr.mxu0 0.0
        %5872 = vmatpush2.xpose.msra.mxu0 0.0
        %5873 = vmatprep.subr.mxu0 0.0
        %5874 = vmatpush2.xpose.msra.mxu0 0.0
        %5875 = vmatprep.subr.mxu0 0.0
        %5876 = vmatpush2.xpose.msra.mxu0 0.0
        %5877 = vmatprep.subr.mxu0 0.0
        %5878 = vmatpush2.xpose.msra.mxu0 0.0
        %5879 = vmatprep.subr.mxu0 0.0
        %5880 = vmatpush2.xpose.msra.mxu0 0.0
        %5881 = vmatprep.mubr.f32.mxu0 0.0
        %5882 = vmatmul.mubr.f32.gmra.mxu0 %v5688
        %v5883 = vpop.f32.mrf.mxu0
        %v5884 = vadd.f32 0.0, %v5883
        %v5885 = vpop.f32.mrf.mxu0
        %5886 = vmatprep.mubr.f32.mxu0 0.0
        %5887 = vmatmul.mubr.f32.gmra.mxu0 %v5690
        %v5888 = vpop.f32.mrf.mxu0
        %v5889 = vadd.f32 0.0, %v5888
        %v5890 = vpop.f32.mrf.mxu0
        %5891 = vmatprep.mubr.f32.mxu0 0.0
        %5892 = vmatmul.mubr.f32.gmra.mxu0 %v5692
        %v5893 = vpop.f32.mrf.mxu0
        %v5894 = vadd.f32 0.0, %v5893
        %v5895 = vpop.f32.mrf.mxu0
        %5896 = vmatprep.mubr.f32.mxu0 0.0
        %5897 = vmatmul.mubr.f32.gmra.mxu0 %v5694
        %v5898 = vpop.f32.mrf.mxu0
        %v5899 = vadd.f32 0.0, %v5898
        %v5900 = vpop.f32.mrf.mxu0
        %5901 = vmatprep.mubr.f32.mxu0 0.0
        %5902 = vmatmul.mubr.f32.gmra.mxu0 %v5696
        %v5903 = vpop.f32.mrf.mxu0
        %v5904 = vadd.f32 0.0, %v5903
        %v5905 = vpop.f32.mrf.mxu0
        %5906 = vmatprep.mubr.f32.mxu0 0.0
        %5907 = vmatmul.mubr.f32.gmra.mxu0 %v5698
        %v5908 = vpop.f32.mrf.mxu0
        %v5909 = vadd.f32 0.0, %v5908
        %v5910 = vpop.f32.mrf.mxu0
        %5911 = vmatprep.mubr.f32.mxu0 0.0
        %5912 = vmatmul.mubr.f32.gmra.mxu0 %v5700
        %v5913 = vpop.f32.mrf.mxu0
        %v5914 = vadd.f32 0.0, %v5913
        %v5915 = vpop.f32.mrf.mxu0
        %5916 = vmatprep.mubr.f32.mxu0 0.0
        %5917 = vmatmul.mubr.f32.gmra.mxu0 %v5702
        %v5918 = vpop.f32.mrf.mxu0
        %v5919 = vadd.f32 0.0, %v5918
        %v5920 = vpop.f32.mrf.mxu0
        %5921 = vdwg.mxu0
        %v5922 = vmul.f32 %v5884, 0.5
        %v5923 = vmul.f32 %v5889, 0.5
        %v5924 = vmul.f32 %v5894, 0.5
        %v5925 = vmul.f32 %v5899, 0.5
        %v5926 = vmul.f32 %v5904, 0.5
        %v5927 = vmul.f32 %v5909, 0.5
        %v5928 = vmul.f32 %v5914, 0.5
        %v5929 = vmul.f32 %v5919, 0.5
        %v5930 = vsel %vm295, %v5809, -inf
        %v5931 = vsel %vm295, %v5810, -inf
        %v5932 = vsel %vm295, %v5811, -inf
        %v5933 = vsel %vm295, %v5812, -inf
        %v5934 = vsel %vm295, %v5813, -inf
        %v5935 = vmax.f32 %v5930, %v5934
        %v5936 = vsel %vm295, %v5814, -inf
        %v5937 = vmax.f32 %v5931, %v5936
        %v5938 = vsel %vm295, %v5815, -inf
        %v5939 = vmax.f32 %v5932, %v5938
        %v5940 = vsel %vm295, %v5816, -inf
        %v5941 = vmax.f32 %v5933, %v5940
        %v5942 = vmax.f32 %v5935, %v5937
        %v5943 = vmax.f32 %v5939, %v5941
        %v5944 = vmax.f32 %v5942, %v5943
        %v5945 = vrot.slane %v5944, 4
        %v5946 = vmax.f32 %v5944, %v5945
        %v5947 = vrot.slane %v5946, 2
        %v5948 = vmax.f32 %v5946, %v5947
        %v5949 = vrot.slane %v5948, 1
        %v5950 = vmax.f32 %v5948, %v5949
        %v5951 = vsub.f32 %v5809, %v5950
        %v5952 = vsub.f32 %v5810, %v5950
        %v5953 = vsub.f32 %v5811, %v5950
        %v5954 = vsub.f32 %v5812, %v5950
        %v5955 = vsub.f32 %v5813, %v5950
        %v5956 = vsub.f32 %v5814, %v5950
        %v5957 = vsub.f32 %v5815, %v5950
        %v5958 = vsub.f32 %v5816, %v5950
        %v5959 = vmul.f32 %v5951, 1.442695
        %v5960 = vpow.pop %v5959
        %v5961 = vmul.f32 %v5952, 1.442695
        %v5962 = vpow.pop %v5961
        %v5963 = vmul.f32 %v5953, 1.442695
        %v5964 = vpow.pop %v5963
        %v5965 = vmul.f32 %v5954, 1.442695
        %v5966 = vpow.pop %v5965
        %v5967 = vmul.f32 %v5955, 1.442695
        %v5968 = vpow.pop %v5967
        %v5969 = vmul.f32 %v5956, 1.442695
        %v5970 = vpow.pop %v5969
        %v5971 = vmul.f32 %v5957, 1.442695
        %v5972 = vpow.pop %v5971
        %v5973 = vmul.f32 %v5958, 1.442695
        %v5974 = vpow.pop %v5973
        %v5975 = vsel %vm295, %v5960, 0.0
        %v5976 = vsel %vm295, %v5962, 0.0
        %v5977 = vadd.f32 %v5975, %v5976
        %v5978 = vsel %vm295, %v5964, 0.0
        %v5979 = vadd.f32 %v5977, %v5978
        %v5980 = vsel %vm295, %v5966, 0.0
        %v5981 = vadd.f32 %v5979, %v5980
        %v5982 = vsel %vm295, %v5968, 0.0
        %v5983 = vadd.f32 %v5981, %v5982
        %v5984 = vsel %vm295, %v5970, 0.0
        %v5985 = vadd.f32 %v5983, %v5984
        %v5986 = vsel %vm295, %v5972, 0.0
        %v5987 = vadd.f32 %v5985, %v5986
        %v5988 = vsel %vm295, %v5974, 0.0
        %v5989 = vadd.f32 %v5987, %v5988
        %v5990 = vrot.slane %v5989, 4
        %v5991 = vadd.f32 %v5989, %v5990
        %v5992 = vrot.slane %v5991, 2
        %v5993 = vadd.f32 %v5991, %v5992
        %v5994 = vrot.slane %v5993, 1
        %v5995 = vadd.f32 %v5993, %v5994
        %v5996 = vrcp.pop %v5995
        %v5997 = vmul.f32 %v5960, %v5996
        %v5998 = vmul.f32 %v5962, %v5996
        %v5999 = vmul.f32 %v5964, %v5996
        %v6000 = vmul.f32 %v5966, %v5996
        %v6001 = vmul.f32 %v5968, %v5996
        %v6002 = vmul.f32 %v5970, %v5996
        %v6003 = vmul.f32 %v5972, %v5996
        %v6004 = vmul.f32 %v5974, %v5996
        %v6005 = vsel %vm295, %v5922, -inf
        %v6006 = vsel %vm295, %v5923, -inf
        %v6007 = vsel %vm295, %v5924, -inf
        %v6008 = vsel %vm295, %v5925, -inf
        %v6009 = vsel %vm295, %v5926, -inf
        %v6010 = vmax.f32 %v6005, %v6009
        %v6011 = vsel %vm295, %v5927, -inf
        %v6012 = vmax.f32 %v6006, %v6011
        %v6013 = vsel %vm295, %v5928, -inf
        %v6014 = vmax.f32 %v6007, %v6013
        %v6015 = vsel %vm295, %v5929, -inf
        %v6016 = vmax.f32 %v6008, %v6015
        %v6017 = vmax.f32 %v6010, %v6012
        %v6018 = vmax.f32 %v6014, %v6016
        %v6019 = vmax.f32 %v6017, %v6018
        %v6020 = vrot.slane %v6019, 4
        %v6021 = vmax.f32 %v6019, %v6020
        %v6022 = vrot.slane %v6021, 2
        %v6023 = vmax.f32 %v6021, %v6022
        %v6024 = vrot.slane %v6023, 1
        %v6025 = vmax.f32 %v6023, %v6024
        %v6026 = vsub.f32 %v5922, %v6025
        %v6027 = vsub.f32 %v5923, %v6025
        %v6028 = vsub.f32 %v5924, %v6025
        %v6029 = vsub.f32 %v5925, %v6025
        %v6030 = vsub.f32 %v5926, %v6025
        %v6031 = vsub.f32 %v5927, %v6025
        %v6032 = vsub.f32 %v5928, %v6025
        %v6033 = vsub.f32 %v5929, %v6025
        %v6034 = vmul.f32 %v6026, 1.442695
        %v6035 = vpow.pop %v6034
        %v6036 = vmul.f32 %v6027, 1.442695
        %v6037 = vpow.pop %v6036
        %v6038 = vmul.f32 %v6028, 1.442695
        %v6039 = vpow.pop %v6038
        %v6040 = vmul.f32 %v6029, 1.442695
        %v6041 = vpow.pop %v6040
        %v6042 = vmul.f32 %v6030, 1.442695
        %v6043 = vpow.pop %v6042
        %v6044 = vmul.f32 %v6031, 1.442695
        %v6045 = vpow.pop %v6044
        %v6046 = vmul.f32 %v6032, 1.442695
        %v6047 = vpow.pop %v6046
        %v6048 = vmul.f32 %v6033, 1.442695
        %v6049 = vpow.pop %v6048
        %v6050 = vsel %vm295, %v6035, 0.0
        %v6051 = vsel %vm295, %v6037, 0.0
        %v6052 = vadd.f32 %v6050, %v6051
        %v6053 = vsel %vm295, %v6039, 0.0
        %v6054 = vadd.f32 %v6052, %v6053
        %v6055 = vsel %vm295, %v6041, 0.0
        %v6056 = vadd.f32 %v6054, %v6055
        %v6057 = vsel %vm295, %v6043, 0.0
        %v6058 = vadd.f32 %v6056, %v6057
        %v6059 = vsel %vm295, %v6045, 0.0
        %v6060 = vadd.f32 %v6058, %v6059
        %v6061 = vsel %vm295, %v6047, 0.0
        %v6062 = vadd.f32 %v6060, %v6061
        %v6063 = vsel %vm295, %v6049, 0.0
        %v6064 = vadd.f32 %v6062, %v6063
        %v6065 = vrot.slane %v6064, 4
        %v6066 = vadd.f32 %v6064, %v6065
        %v6067 = vrot.slane %v6066, 2
        %v6068 = vadd.f32 %v6066, %v6067
        %v6069 = vrot.slane %v6068, 1
        %v6070 = vadd.f32 %v6068, %v6069
        %v6071 = vrcp.pop %v6070
        %v6072 = vmul.f32 %v6035, %v6071
        %v6073 = vmul.f32 %v6037, %v6071
        %v6074 = vmul.f32 %v6039, %v6071
        %v6075 = vmul.f32 %v6041, %v6071
        %v6076 = vmul.f32 %v6043, %v6071
        %v6077 = vmul.f32 %v6045, %v6071
        %v6078 = vmul.f32 %v6047, %v6071
        %v6079 = vmul.f32 %v6049, %v6071
        %6080 = vrot.lane.b32.xlu0 %v387, 68
        %v6081 = vpop.permute.xlu0 %6080
        %6082 = vrot.lane.b32.xlu0 %v392, 68
        %v6083 = vpop.permute.xlu0 %6082
        %6084 = vrot.lane.b32.xlu0 %v397, 68
        %v6085 = vpop.permute.xlu0 %6084
        %6086 = vrot.lane.b32.xlu0 %v402, 68
        %v6087 = vpop.permute.xlu0 %6086
        %6088 = vrot.lane.b32.xlu0 %v407, 68
        %v6089 = vpop.permute.xlu0 %6088
        %6090 = vrot.lane.b32.xlu0 %v412, 68
        %v6091 = vpop.permute.xlu0 %6090
        %6092 = vrot.lane.b32.xlu0 %v417, 68
        %v6093 = vpop.permute.xlu0 %6092
        %6094 = vrot.lane.b32.xlu0 %v422, 68
        %v6095 = vpop.permute.xlu0 %6094
        %v6105 = vsel %vm295, %v5997, 0
        %v6108 = vsel %vm295, %v5998, 0
        %v6111 = vsel %vm295, %v5999, 0
        %v6114 = vsel %vm295, %v6000, 0
        %v6117 = vsel %vm295, %v6001, 0
        %v6120 = vsel %vm295, %v6002, 0
        %v6123 = vsel %vm295, %v6003, 0
        %v6126 = vsel %vm295, %v6004, 0
        %6128 = vmatprep.subr.mxu0 0.0
        %6129 = vmatpush1.msra.mxu0 0.0
        %6130 = vmatprep.subr.mxu0 0.0
        %6131 = vmatpush1.msra.mxu0 0.0
        %6132 = vmatprep.subr.mxu0 0.0
        %6133 = vmatpush1.msra.mxu0 0.0
        %6134 = vmatprep.subr.mxu0 0.0
        %6135 = vmatpush1.msra.mxu0 0.0
        %6136 = vmatprep.subr.mxu0 0.0
        %6137 = vmatpush1.msra.mxu0 0.0
        %6138 = vmatprep.subr.mxu0 0.0
        %6139 = vmatpush1.msra.mxu0 0.0
        %6140 = vmatprep.subr.mxu0 0.0
        %6141 = vmatpush1.msra.mxu0 0.0
        %6142 = vmatprep.subr.mxu0 0.0
        %6143 = vmatpush1.msra.mxu0 0.0
        %6144 = vmatprep.subr.mxu0 0.0
        %6145 = vmatpush1.msra.mxu0 %v6095
        %6146 = vmatprep.subr.mxu0 0.0
        %6147 = vmatpush1.msra.mxu0 %v6093
        %6148 = vmatprep.subr.mxu0 0.0
        %6149 = vmatpush1.msra.mxu0 %v6091
        %6150 = vmatprep.subr.mxu0 0.0
        %6151 = vmatpush1.msra.mxu0 %v6089
        %6152 = vmatprep.subr.mxu0 0.0
        %6153 = vmatpush1.msra.mxu0 %v6087
        %6154 = vmatprep.subr.mxu0 0.0
        %6155 = vmatpush1.msra.mxu0 %v6085
        %6156 = vmatprep.subr.mxu0 0.0
        %6157 = vmatpush1.msra.mxu0 %v6083
        %6158 = vmatprep.subr.mxu0 0.0
        %6159 = vmatpush1.msra.mxu0 %v6081
        %6160 = vmatprep.subr.mxu0 0.0
        %6161 = vmatpush2.msra.mxu0 0.0
        %6162 = vmatprep.subr.mxu0 0.0
        %6163 = vmatpush2.msra.mxu0 0.0
        %6164 = vmatprep.subr.mxu0 0.0
        %6165 = vmatpush2.msra.mxu0 0.0
        %6166 = vmatprep.subr.mxu0 0.0
        %6167 = vmatpush2.msra.mxu0 0.0
        %6168 = vmatprep.subr.mxu0 0.0
        %6169 = vmatpush2.msra.mxu0 0.0
        %6170 = vmatprep.subr.mxu0 0.0
        %6171 = vmatpush2.msra.mxu0 0.0
        %6172 = vmatprep.subr.mxu0 0.0
        %6173 = vmatpush2.msra.mxu0 0.0
        %6174 = vmatprep.subr.mxu0 0.0
        %6175 = vmatpush2.msra.mxu0 0.0
        %6176 = vmatprep.subr.mxu0 0.0
        %6177 = vmatpush2.msra.mxu0 0.0
        %6178 = vmatprep.subr.mxu0 0.0
        %6179 = vmatpush2.msra.mxu0 0.0
        %6180 = vmatprep.subr.mxu0 0.0
        %6181 = vmatpush2.msra.mxu0 0.0
        %6182 = vmatprep.subr.mxu0 0.0
        %6183 = vmatpush2.msra.mxu0 0.0
        %6184 = vmatprep.subr.mxu0 0.0
        %6185 = vmatpush2.msra.mxu0 0.0
        %6186 = vmatprep.subr.mxu0 0.0
        %6187 = vmatpush2.msra.mxu0 0.0
        %6188 = vmatprep.subr.mxu0 0.0
        %6189 = vmatpush2.msra.mxu0 0.0
        %6190 = vmatprep.subr.mxu0 0.0
        %6191 = vmatpush2.msra.mxu0 0.0
        %6192 = vmatprep.mubr.f32.mxu0 0.0
        %6193 = vmatmul.mubr.f32.gmra.mxu0 %v6105
        %v6194 = vpop.f32.mrf.mxu0
        %v6195 = vadd.f32 0.0, %v6194
        %v6196 = vpop.f32.mrf.mxu0
        %6197 = vmatprep.mubr.f32.mxu0 0.0
        %6198 = vmatmul.mubr.f32.gmra.mxu0 %v6108
        %v6199 = vpop.f32.mrf.mxu0
        %v6200 = vadd.f32 0.0, %v6199
        %v6201 = vpop.f32.mrf.mxu0
        %6202 = vmatprep.mubr.f32.mxu0 0.0
        %6203 = vmatmul.mubr.f32.gmra.mxu0 %v6111
        %v6204 = vpop.f32.mrf.mxu0
        %v6205 = vadd.f32 0.0, %v6204
        %v6206 = vpop.f32.mrf.mxu0
        %6207 = vmatprep.mubr.f32.mxu0 0.0
        %6208 = vmatmul.mubr.f32.gmra.mxu0 %v6114
        %v6209 = vpop.f32.mrf.mxu0
        %v6210 = vadd.f32 0.0, %v6209
        %v6211 = vpop.f32.mrf.mxu0
        %6212 = vmatprep.mubr.f32.mxu0 0.0
        %6213 = vmatmul.mubr.f32.gmra.mxu0 %v6117
        %v6214 = vpop.f32.mrf.mxu0
        %v6215 = vadd.f32 0.0, %v6214
        %v6216 = vpop.f32.mrf.mxu0
        %6217 = vmatprep.mubr.f32.mxu0 0.0
        %6218 = vmatmul.mubr.f32.gmra.mxu0 %v6120
        %v6219 = vpop.f32.mrf.mxu0
        %v6220 = vadd.f32 0.0, %v6219
        %v6221 = vpop.f32.mrf.mxu0
        %6222 = vmatprep.mubr.f32.mxu0 0.0
        %6223 = vmatmul.mubr.f32.gmra.mxu0 %v6123
        %v6224 = vpop.f32.mrf.mxu0
        %v6225 = vadd.f32 0.0, %v6224
        %v6226 = vpop.f32.mrf.mxu0
        %6227 = vmatprep.mubr.f32.mxu0 0.0
        %6228 = vmatmul.mubr.f32.gmra.mxu0 %v6126
        %v6229 = vpop.f32.mrf.mxu0
        %v6230 = vadd.f32 0.0, %v6229
        %v6231 = vpop.f32.mrf.mxu0
        %6232 = vdwg.mxu0
        %6233 = vrot.lane.b32.xlu0 %v387, 4
        %v6234 = vpop.permute.xlu0 %6233
        %6235 = vrot.lane.b32.xlu0 %v392, 4
        %v6236 = vpop.permute.xlu0 %6235
        %6237 = vrot.lane.b32.xlu0 %v397, 4
        %v6238 = vpop.permute.xlu0 %6237
        %6239 = vrot.lane.b32.xlu0 %v402, 4
        %v6240 = vpop.permute.xlu0 %6239
        %6241 = vrot.lane.b32.xlu0 %v407, 4
        %v6242 = vpop.permute.xlu0 %6241
        %6243 = vrot.lane.b32.xlu0 %v412, 4
        %v6244 = vpop.permute.xlu0 %6243
        %6245 = vrot.lane.b32.xlu0 %v417, 4
        %v6246 = vpop.permute.xlu0 %6245
        %6247 = vrot.lane.b32.xlu0 %v422, 4
        %v6248 = vpop.permute.xlu0 %6247
        %v6258 = vsel %vm295, %v6072, 0
        %v6261 = vsel %vm295, %v6073, 0
        %v6264 = vsel %vm295, %v6074, 0
        %v6267 = vsel %vm295, %v6075, 0
        %v6270 = vsel %vm295, %v6076, 0
        %v6273 = vsel %vm295, %v6077, 0
        %v6276 = vsel %vm295, %v6078, 0
        %v6279 = vsel %vm295, %v6079, 0
        %6281 = vmatprep.subr.mxu0 0.0
        %6282 = vmatpush1.msra.mxu0 0.0
        %6283 = vmatprep.subr.mxu0 0.0
        %6284 = vmatpush1.msra.mxu0 0.0
        %6285 = vmatprep.subr.mxu0 0.0
        %6286 = vmatpush1.msra.mxu0 0.0
        %6287 = vmatprep.subr.mxu0 0.0
        %6288 = vmatpush1.msra.mxu0 0.0
        %6289 = vmatprep.subr.mxu0 0.0
        %6290 = vmatpush1.msra.mxu0 0.0
        %6291 = vmatprep.subr.mxu0 0.0
        %6292 = vmatpush1.msra.mxu0 0.0
        %6293 = vmatprep.subr.mxu0 0.0
        %6294 = vmatpush1.msra.mxu0 0.0
        %6295 = vmatprep.subr.mxu0 0.0
        %6296 = vmatpush1.msra.mxu0 0.0
        %6297 = vmatprep.subr.mxu0 0.0
        %6298 = vmatpush1.msra.mxu0 %v6248
        %6299 = vmatprep.subr.mxu0 0.0
        %6300 = vmatpush1.msra.mxu0 %v6246
        %6301 = vmatprep.subr.mxu0 0.0
        %6302 = vmatpush1.msra.mxu0 %v6244
        %6303 = vmatprep.subr.mxu0 0.0
        %6304 = vmatpush1.msra.mxu0 %v6242
        %6305 = vmatprep.subr.mxu0 0.0
        %6306 = vmatpush1.msra.mxu0 %v6240
        %6307 = vmatprep.subr.mxu0 0.0
        %6308 = vmatpush1.msra.mxu0 %v6238
        %6309 = vmatprep.subr.mxu0 0.0
        %6310 = vmatpush1.msra.mxu0 %v6236
        %6311 = vmatprep.subr.mxu0 0.0
        %6312 = vmatpush1.msra.mxu0 %v6234
        %6313 = vmatprep.subr.mxu0 0.0
        %6314 = vmatpush2.msra.mxu0 0.0
        %6315 = vmatprep.subr.mxu0 0.0
        %6316 = vmatpush2.msra.mxu0 0.0
        %6317 = vmatprep.subr.mxu0 0.0
        %6318 = vmatpush2.msra.mxu0 0.0
        %6319 = vmatprep.subr.mxu0 0.0
        %6320 = vmatpush2.msra.mxu0 0.0
        %6321 = vmatprep.subr.mxu0 0.0
        %6322 = vmatpush2.msra.mxu0 0.0
        %6323 = vmatprep.subr.mxu0 0.0
        %6324 = vmatpush2.msra.mxu0 0.0
        %6325 = vmatprep.subr.mxu0 0.0
        %6326 = vmatpush2.msra.mxu0 0.0
        %6327 = vmatprep.subr.mxu0 0.0
        %6328 = vmatpush2.msra.mxu0 0.0
        %6329 = vmatprep.subr.mxu0 0.0
        %6330 = vmatpush2.msra.mxu0 0.0
        %6331 = vmatprep.subr.mxu0 0.0
        %6332 = vmatpush2.msra.mxu0 0.0
        %6333 = vmatprep.subr.mxu0 0.0
        %6334 = vmatpush2.msra.mxu0 0.0
        %6335 = vmatprep.subr.mxu0 0.0
        %6336 = vmatpush2.msra.mxu0 0.0
        %6337 = vmatprep.subr.mxu0 0.0
        %6338 = vmatpush2.msra.mxu0 0.0
        %6339 = vmatprep.subr.mxu0 0.0
        %6340 = vmatpush2.msra.mxu0 0.0
        %6341 = vmatprep.subr.mxu0 0.0
        %6342 = vmatpush2.msra.mxu0 0.0
        %6343 = vmatprep.subr.mxu0 0.0
        %6344 = vmatpush2.msra.mxu0 0.0
        %6345 = vmatprep.mubr.f32.mxu0 0.0
        %6346 = vmatmul.mubr.f32.gmra.mxu0 %v6258
        %v6347 = vpop.f32.mrf.mxu0
        %v6348 = vadd.f32 0.0, %v6347
        %v6349 = vpop.f32.mrf.mxu0
        %6350 = vmatprep.mubr.f32.mxu0 0.0
        %6351 = vmatmul.mubr.f32.gmra.mxu0 %v6261
        %v6352 = vpop.f32.mrf.mxu0
        %v6353 = vadd.f32 0.0, %v6352
        %v6354 = vpop.f32.mrf.mxu0
        %6355 = vmatprep.mubr.f32.mxu0 0.0
        %6356 = vmatmul.mubr.f32.gmra.mxu0 %v6264
        %v6357 = vpop.f32.mrf.mxu0
        %v6358 = vadd.f32 0.0, %v6357
        %v6359 = vpop.f32.mrf.mxu0
        %6360 = vmatprep.mubr.f32.mxu0 0.0
        %6361 = vmatmul.mubr.f32.gmra.mxu0 %v6267
        %v6362 = vpop.f32.mrf.mxu0
        %v6363 = vadd.f32 0.0, %v6362
        %v6364 = vpop.f32.mrf.mxu0
        %6365 = vmatprep.mubr.f32.mxu0 0.0
        %6366 = vmatmul.mubr.f32.gmra.mxu0 %v6270
        %v6367 = vpop.f32.mrf.mxu0
        %v6368 = vadd.f32 0.0, %v6367
        %v6369 = vpop.f32.mrf.mxu0
        %6370 = vmatprep.mubr.f32.mxu0 0.0
        %6371 = vmatmul.mubr.f32.gmra.mxu0 %v6273
        %v6372 = vpop.f32.mrf.mxu0
        %v6373 = vadd.f32 0.0, %v6372
        %v6374 = vpop.f32.mrf.mxu0
        %6375 = vmatprep.mubr.f32.mxu0 0.0
        %6376 = vmatmul.mubr.f32.gmra.mxu0 %v6276
        %v6377 = vpop.f32.mrf.mxu0
        %v6378 = vadd.f32 0.0, %v6377
        %v6379 = vpop.f32.mrf.mxu0
        %6380 = vmatprep.mubr.f32.mxu0 0.0
        %6381 = vmatmul.mubr.f32.gmra.mxu0 %v6279
        %v6382 = vpop.f32.mrf.mxu0
        %v6383 = vadd.f32 0.0, %v6382
        %v6384 = vpop.f32.mrf.mxu0
        %6385 = vdwg.mxu0
        %6394 = vrot.lane.b32.xlu0 %v1719, 4
        %v6395 = vpop.permute.xlu0 %6394
        %6396 = vrot.lane.b32.xlu0 %v1724, 4
        %v6397 = vpop.permute.xlu0 %6396
        %6398 = vrot.lane.b32.xlu0 %v1729, 4
        %v6399 = vpop.permute.xlu0 %6398
        %6400 = vrot.lane.b32.xlu0 %v1734, 4
        %v6401 = vpop.permute.xlu0 %6400
        %6402 = vrot.lane.b32.xlu0 %v1739, 4
        %v6403 = vpop.permute.xlu0 %6402
        %6404 = vrot.lane.b32.xlu0 %v1744, 4
        %v6405 = vpop.permute.xlu0 %6404
        %6406 = vrot.lane.b32.xlu0 %v1749, 4
        %v6407 = vpop.permute.xlu0 %6406
        %6408 = vrot.lane.b32.xlu0 %v1754, 4
        %v6409 = vpop.permute.xlu0 %6408
        %6426 = vrot.lane.b32.xlu0 %v2465, 8
        %v6427 = vpop.permute.xlu0 %6426
        %6428 = vrot.lane.b32.xlu0 %v2470, 8
        %v6429 = vpop.permute.xlu0 %6428
        %6430 = vrot.lane.b32.xlu0 %v2475, 8
        %v6431 = vpop.permute.xlu0 %6430
        %6432 = vrot.lane.b32.xlu0 %v2480, 8
        %v6433 = vpop.permute.xlu0 %6432
        %6434 = vrot.lane.b32.xlu0 %v2485, 8
        %v6435 = vpop.permute.xlu0 %6434
        %6436 = vrot.lane.b32.xlu0 %v2490, 8
        %v6437 = vpop.permute.xlu0 %6436
        %6438 = vrot.lane.b32.xlu0 %v2495, 8
        %v6439 = vpop.permute.xlu0 %6438
        %6440 = vrot.lane.b32.xlu0 %v2500, 8
        %v6441 = vpop.permute.xlu0 %6440
        %6458 = vrot.lane.b32.xlu0 %v3211, 12
        %v6459 = vpop.permute.xlu0 %6458
        %6460 = vrot.lane.b32.xlu0 %v3216, 12
        %v6461 = vpop.permute.xlu0 %6460
        %6462 = vrot.lane.b32.xlu0 %v3221, 12
        %v6463 = vpop.permute.xlu0 %6462
        %6464 = vrot.lane.b32.xlu0 %v3226, 12
        %v6465 = vpop.permute.xlu0 %6464
        %6466 = vrot.lane.b32.xlu0 %v3231, 12
        %v6467 = vpop.permute.xlu0 %6466
        %6468 = vrot.lane.b32.xlu0 %v3236, 12
        %v6469 = vpop.permute.xlu0 %6468
        %6470 = vrot.lane.b32.xlu0 %v3241, 12
        %v6471 = vpop.permute.xlu0 %6470
        %6472 = vrot.lane.b32.xlu0 %v3246, 12
        %v6473 = vpop.permute.xlu0 %6472
        %6490 = vrot.lane.b32.xlu0 %v3957, 16
        %v6491 = vpop.permute.xlu0 %6490
        %6492 = vrot.lane.b32.xlu0 %v3962, 16
        %v6493 = vpop.permute.xlu0 %6492
        %6494 = vrot.lane.b32.xlu0 %v3967, 16
        %v6495 = vpop.permute.xlu0 %6494
        %6496 = vrot.lane.b32.xlu0 %v3972, 16
        %v6497 = vpop.permute.xlu0 %6496
        %6498 = vrot.lane.b32.xlu0 %v3977, 16
        %v6499 = vpop.permute.xlu0 %6498
        %6500 = vrot.lane.b32.xlu0 %v3982, 16
        %v6501 = vpop.permute.xlu0 %6500
        %6502 = vrot.lane.b32.xlu0 %v3987, 16
        %v6503 = vpop.permute.xlu0 %6502
        %6504 = vrot.lane.b32.xlu0 %v3992, 16
        %v6505 = vpop.permute.xlu0 %6504
        %6522 = vrot.lane.b32.xlu0 %v4703, 20
        %v6523 = vpop.permute.xlu0 %6522
        %6524 = vrot.lane.b32.xlu0 %v4708, 20
        %v6525 = vpop.permute.xlu0 %6524
        %6526 = vrot.lane.b32.xlu0 %v4713, 20
        %v6527 = vpop.permute.xlu0 %6526
        %6528 = vrot.lane.b32.xlu0 %v4718, 20
        %v6529 = vpop.permute.xlu0 %6528
        %6530 = vrot.lane.b32.xlu0 %v4723, 20
        %v6531 = vpop.permute.xlu0 %6530
        %6532 = vrot.lane.b32.xlu0 %v4728, 20
        %v6533 = vpop.permute.xlu0 %6532
        %6534 = vrot.lane.b32.xlu0 %v4733, 20
        %v6535 = vpop.permute.xlu0 %6534
        %6536 = vrot.lane.b32.xlu0 %v4738, 20
        %v6537 = vpop.permute.xlu0 %6536
        %6554 = vrot.lane.b32.xlu0 %v5449, 24
        %v6555 = vpop.permute.xlu0 %6554
        %6556 = vrot.lane.b32.xlu0 %v5454, 24
        %v6557 = vpop.permute.xlu0 %6556
        %6558 = vrot.lane.b32.xlu0 %v5459, 24
        %v6559 = vpop.permute.xlu0 %6558
        %6560 = vrot.lane.b32.xlu0 %v5464, 24
        %v6561 = vpop.permute.xlu0 %6560
        %6562 = vrot.lane.b32.xlu0 %v5469, 24
        %v6563 = vpop.permute.xlu0 %6562
        %6564 = vrot.lane.b32.xlu0 %v5474, 24
        %v6565 = vpop.permute.xlu0 %6564
        %6566 = vrot.lane.b32.xlu0 %v5479, 24
        %v6567 = vpop.permute.xlu0 %6566
        %6568 = vrot.lane.b32.xlu0 %v5484, 24
        %v6569 = vpop.permute.xlu0 %6568
        %6586 = vrot.lane.b32.xlu0 %v6195, 28
        %v6587 = vpop.permute.xlu0 %6586
        %6588 = vrot.lane.b32.xlu0 %v6200, 28
        %v6589 = vpop.permute.xlu0 %6588
        %6590 = vrot.lane.b32.xlu0 %v6205, 28
        %v6591 = vpop.permute.xlu0 %6590
        %6592 = vrot.lane.b32.xlu0 %v6210, 28
        %v6593 = vpop.permute.xlu0 %6592
        %6594 = vrot.lane.b32.xlu0 %v6215, 28
        %v6595 = vpop.permute.xlu0 %6594
        %6596 = vrot.lane.b32.xlu0 %v6220, 28
        %v6597 = vpop.permute.xlu0 %6596
        %6598 = vrot.lane.b32.xlu0 %v6225, 28
        %v6599 = vpop.permute.xlu0 %6598
        %6600 = vrot.lane.b32.xlu0 %v6230, 28
        %v6601 = vpop.permute.xlu0 %6600
        %6618 = vrot.lane.b32.xlu0 %v1126, 32
        %v6619 = vpop.permute.xlu0 %6618
        %6620 = vrot.lane.b32.xlu0 %v1131, 32
        %v6621 = vpop.permute.xlu0 %6620
        %6622 = vrot.lane.b32.xlu0 %v1136, 32
        %v6623 = vpop.permute.xlu0 %6622
        %6624 = vrot.lane.b32.xlu0 %v1141, 32
        %v6625 = vpop.permute.xlu0 %6624
        %6626 = vrot.lane.b32.xlu0 %v1146, 32
        %v6627 = vpop.permute.xlu0 %6626
        %6628 = vrot.lane.b32.xlu0 %v1151, 32
        %v6629 = vpop.permute.xlu0 %6628
        %6630 = vrot.lane.b32.xlu0 %v1156, 32
        %v6631 = vpop.permute.xlu0 %6630
        %6632 = vrot.lane.b32.xlu0 %v1161, 32
        %v6633 = vpop.permute.xlu0 %6632
        %6650 = vrot.lane.b32.xlu0 %v1872, 36
        %v6651 = vpop.permute.xlu0 %6650
        %6652 = vrot.lane.b32.xlu0 %v1877, 36
        %v6653 = vpop.permute.xlu0 %6652
        %6654 = vrot.lane.b32.xlu0 %v1882, 36
        %v6655 = vpop.permute.xlu0 %6654
        %6656 = vrot.lane.b32.xlu0 %v1887, 36
        %v6657 = vpop.permute.xlu0 %6656
        %6658 = vrot.lane.b32.xlu0 %v1892, 36
        %v6659 = vpop.permute.xlu0 %6658
        %6660 = vrot.lane.b32.xlu0 %v1897, 36
        %v6661 = vpop.permute.xlu0 %6660
        %6662 = vrot.lane.b32.xlu0 %v1902, 36
        %v6663 = vpop.permute.xlu0 %6662
        %6664 = vrot.lane.b32.xlu0 %v1907, 36
        %v6665 = vpop.permute.xlu0 %6664
        %6682 = vrot.lane.b32.xlu0 %v2618, 40
        %v6683 = vpop.permute.xlu0 %6682
        %6684 = vrot.lane.b32.xlu0 %v2623, 40
        %v6685 = vpop.permute.xlu0 %6684
        %6686 = vrot.lane.b32.xlu0 %v2628, 40
        %v6687 = vpop.permute.xlu0 %6686
        %6688 = vrot.lane.b32.xlu0 %v2633, 40
        %v6689 = vpop.permute.xlu0 %6688
        %6690 = vrot.lane.b32.xlu0 %v2638, 40
        %v6691 = vpop.permute.xlu0 %6690
        %6692 = vrot.lane.b32.xlu0 %v2643, 40
        %v6693 = vpop.permute.xlu0 %6692
        %6694 = vrot.lane.b32.xlu0 %v2648, 40
        %v6695 = vpop.permute.xlu0 %6694
        %6696 = vrot.lane.b32.xlu0 %v2653, 40
        %v6697 = vpop.permute.xlu0 %6696
        %6714 = vrot.lane.b32.xlu0 %v3364, 44
        %v6715 = vpop.permute.xlu0 %6714
        %6716 = vrot.lane.b32.xlu0 %v3369, 44
        %v6717 = vpop.permute.xlu0 %6716
        %6718 = vrot.lane.b32.xlu0 %v3374, 44
        %v6719 = vpop.permute.xlu0 %6718
        %6720 = vrot.lane.b32.xlu0 %v3379, 44
        %v6721 = vpop.permute.xlu0 %6720
        %6722 = vrot.lane.b32.xlu0 %v3384, 44
        %v6723 = vpop.permute.xlu0 %6722
        %6724 = vrot.lane.b32.xlu0 %v3389, 44
        %v6725 = vpop.permute.xlu0 %6724
        %6726 = vrot.lane.b32.xlu0 %v3394, 44
        %v6727 = vpop.permute.xlu0 %6726
        %6728 = vrot.lane.b32.xlu0 %v3399, 44
        %v6729 = vpop.permute.xlu0 %6728
        %6746 = vrot.lane.b32.xlu0 %v4110, 48
        %v6747 = vpop.permute.xlu0 %6746
        %6748 = vrot.lane.b32.xlu0 %v4115, 48
        %v6749 = vpop.permute.xlu0 %6748
        %6750 = vrot.lane.b32.xlu0 %v4120, 48
        %v6751 = vpop.permute.xlu0 %6750
        %6752 = vrot.lane.b32.xlu0 %v4125, 48
        %v6753 = vpop.permute.xlu0 %6752
        %6754 = vrot.lane.b32.xlu0 %v4130, 48
        %v6755 = vpop.permute.xlu0 %6754
        %6756 = vrot.lane.b32.xlu0 %v4135, 48
        %v6757 = vpop.permute.xlu0 %6756
        %6758 = vrot.lane.b32.xlu0 %v4140, 48
        %v6759 = vpop.permute.xlu0 %6758
        %6760 = vrot.lane.b32.xlu0 %v4145, 48
        %v6761 = vpop.permute.xlu0 %6760
        %6778 = vrot.lane.b32.xlu0 %v4856, 52
        %v6779 = vpop.permute.xlu0 %6778
        %6780 = vrot.lane.b32.xlu0 %v4861, 52
        %v6781 = vpop.permute.xlu0 %6780
        %6782 = vrot.lane.b32.xlu0 %v4866, 52
        %v6783 = vpop.permute.xlu0 %6782
        %6784 = vrot.lane.b32.xlu0 %v4871, 52
        %v6785 = vpop.permute.xlu0 %6784
        %6786 = vrot.lane.b32.xlu0 %v4876, 52
        %v6787 = vpop.permute.xlu0 %6786
        %6788 = vrot.lane.b32.xlu0 %v4881, 52
        %v6789 = vpop.permute.xlu0 %6788
        %6790 = vrot.lane.b32.xlu0 %v4886, 52
        %v6791 = vpop.permute.xlu0 %6790
        %6792 = vrot.lane.b32.xlu0 %v4891, 52
        %v6793 = vpop.permute.xlu0 %6792
        %6810 = vrot.lane.b32.xlu0 %v5602, 56
        %v6811 = vpop.permute.xlu0 %6810
        %6812 = vrot.lane.b32.xlu0 %v5607, 56
        %v6813 = vpop.permute.xlu0 %6812
        %6814 = vrot.lane.b32.xlu0 %v5612, 56
        %v6815 = vpop.permute.xlu0 %6814
        %6816 = vrot.lane.b32.xlu0 %v5617, 56
        %v6817 = vpop.permute.xlu0 %6816
        %6818 = vrot.lane.b32.xlu0 %v5622, 56
        %v6819 = vpop.permute.xlu0 %6818
        %6820 = vrot.lane.b32.xlu0 %v5627, 56
        %v6821 = vpop.permute.xlu0 %6820
        %6822 = vrot.lane.b32.xlu0 %v5632, 56
        %v6823 = vpop.permute.xlu0 %6822
        %6824 = vrot.lane.b32.xlu0 %v5637, 56
        %v6825 = vpop.permute.xlu0 %6824
        %6842 = vrot.lane.b32.xlu0 %v6348, 60
        %v6843 = vpop.permute.xlu0 %6842
        %6844 = vrot.lane.b32.xlu0 %v6353, 60
        %v6845 = vpop.permute.xlu0 %6844
        %6846 = vrot.lane.b32.xlu0 %v6358, 60
        %v6847 = vpop.permute.xlu0 %6846
        %6848 = vrot.lane.b32.xlu0 %v6363, 60
        %v6849 = vpop.permute.xlu0 %6848
        %6850 = vrot.lane.b32.xlu0 %v6368, 60
        %v6851 = vpop.permute.xlu0 %6850
        %6852 = vrot.lane.b32.xlu0 %v6373, 60
        %v6853 = vpop.permute.xlu0 %6852
        %6854 = vrot.lane.b32.xlu0 %v6378, 60
        %v6855 = vpop.permute.xlu0 %6854
        %6856 = vrot.lane.b32.xlu0 %v6383, 60
        %v6857 = vpop.permute.xlu0 %6856
        %v6866 = vsel %vm449, %v973, %v6395
        %v6867 = vsel %vm449, %v978, %v6397
        %v6868 = vsel %vm449, %v983, %v6399
        %v6869 = vsel %vm449, %v988, %v6401
        %v6870 = vsel %vm449, %v993, %v6403
        %v6871 = vsel %vm449, %v998, %v6405
        %v6872 = vsel %vm449, %v1003, %v6407
        %v6873 = vsel %vm449, %v1008, %v6409
        %vm6874 = vcmask 64512
        %v6875 = vsel %vm6874, %v6866, %v6427
        %v6876 = vsel %vm6874, %v6867, %v6429
        %v6877 = vsel %vm6874, %v6868, %v6431
        %v6878 = vsel %vm6874, %v6869, %v6433
        %v6879 = vsel %vm6874, %v6870, %v6435
        %v6880 = vsel %vm6874, %v6871, %v6437
        %v6881 = vsel %vm6874, %v6872, %v6439
        %v6882 = vsel %vm6874, %v6873, %v6441
        %vm6883 = vcmask 97280
        %v6884 = vsel %vm6883, %v6875, %v6459
        %v6885 = vsel %vm6883, %v6876, %v6461
        %v6886 = vsel %vm6883, %v6877, %v6463
        %v6887 = vsel %vm6883, %v6878, %v6465
        %v6888 = vsel %vm6883, %v6879, %v6467
        %v6889 = vsel %vm6883, %v6880, %v6469
        %v6890 = vsel %vm6883, %v6881, %v6471
        %v6891 = vsel %vm6883, %v6882, %v6473
        %vm6892 = vcmask 130048
        %v6893 = vsel %vm6892, %v6884, %v6491
        %v6894 = vsel %vm6892, %v6885, %v6493
        %v6895 = vsel %vm6892, %v6886, %v6495
        %v6896 = vsel %vm6892, %v6887, %v6497
        %v6897 = vsel %vm6892, %v6888, %v6499
        %v6898 = vsel %vm6892, %v6889, %v6501
        %v6899 = vsel %vm6892, %v6890, %v6503
        %v6900 = vsel %vm6892, %v6891, %v6505
        %vm6901 = vcmask 162816
        %v6902 = vsel %vm6901, %v6893, %v6523
        %v6903 = vsel %vm6901, %v6894, %v6525
        %v6904 = vsel %vm6901, %v6895, %v6527
        %v6905 = vsel %vm6901, %v6896, %v6529
        %v6906 = vsel %vm6901, %v6897, %v6531
        %v6907 = vsel %vm6901, %v6898, %v6533
        %v6908 = vsel %vm6901, %v6899, %v6535
        %v6909 = vsel %vm6901, %v6900, %v6537
        %vm6910 = vcmask 195584
        %v6911 = vsel %vm6910, %v6902, %v6555
        %v6912 = vsel %vm6910, %v6903, %v6557
        %v6913 = vsel %vm6910, %v6904, %v6559
        %v6914 = vsel %vm6910, %v6905, %v6561
        %v6915 = vsel %vm6910, %v6906, %v6563
        %v6916 = vsel %vm6910, %v6907, %v6565
        %v6917 = vsel %vm6910, %v6908, %v6567
        %v6918 = vsel %vm6910, %v6909, %v6569
        %vm6919 = vcmask 228352
        %v6920 = vsel %vm6919, %v6911, %v6587
        %v6921 = vsel %vm6919, %v6912, %v6589
        %v6922 = vsel %vm6919, %v6913, %v6591
        %v6923 = vsel %vm6919, %v6914, %v6593
        %v6924 = vsel %vm6919, %v6915, %v6595
        %v6925 = vsel %vm6919, %v6916, %v6597
        %v6926 = vsel %vm6919, %v6917, %v6599
        %v6927 = vsel %vm6919, %v6918, %v6601
        %vm6928 = vcmask 261120
        %v6929 = vsel %vm6928, %v6920, %v6619
        %v6930 = vsel %vm6928, %v6921, %v6621
        %v6931 = vsel %vm6928, %v6922, %v6623
        %v6932 = vsel %vm6928, %v6923, %v6625
        %v6933 = vsel %vm6928, %v6924, %v6627
        %v6934 = vsel %vm6928, %v6925, %v6629
        %v6935 = vsel %vm6928, %v6926, %v6631
        %v6936 = vsel %vm6928, %v6927, %v6633
        %vm6937 = vcmask 293888
        %v6938 = vsel %vm6937, %v6929, %v6651
        %v6939 = vsel %vm6937, %v6930, %v6653
        %v6940 = vsel %vm6937, %v6931, %v6655
        %v6941 = vsel %vm6937, %v6932, %v6657
        %v6942 = vsel %vm6937, %v6933, %v6659
        %v6943 = vsel %vm6937, %v6934, %v6661
        %v6944 = vsel %vm6937, %v6935, %v6663
        %v6945 = vsel %vm6937, %v6936, %v6665
        %vm6946 = vcmask 326656
        %v6947 = vsel %vm6946, %v6938, %v6683
        %v6948 = vsel %vm6946, %v6939, %v6685
        %v6949 = vsel %vm6946, %v6940, %v6687
        %v6950 = vsel %vm6946, %v6941, %v6689
        %v6951 = vsel %vm6946, %v6942, %v6691
        %v6952 = vsel %vm6946, %v6943, %v6693
        %v6953 = vsel %vm6946, %v6944, %v6695
        %v6954 = vsel %vm6946, %v6945, %v6697
        %vm6955 = vcmask 359424
        %v6956 = vsel %vm6955, %v6947, %v6715
        %v6957 = vsel %vm6955, %v6948, %v6717
        %v6958 = vsel %vm6955, %v6949, %v6719
        %v6959 = vsel %vm6955, %v6950, %v6721
        %v6960 = vsel %vm6955, %v6951, %v6723
        %v6961 = vsel %vm6955, %v6952, %v6725
        %v6962 = vsel %vm6955, %v6953, %v6727
        %v6963 = vsel %vm6955, %v6954, %v6729
        %vm6964 = vcmask 392192
        %v6965 = vsel %vm6964, %v6956, %v6747
        %v6966 = vsel %vm6964, %v6957, %v6749
        %v6967 = vsel %vm6964, %v6958, %v6751
        %v6968 = vsel %vm6964, %v6959, %v6753
        %v6969 = vsel %vm6964, %v6960, %v6755
        %v6970 = vsel %vm6964, %v6961, %v6757
        %v6971 = vsel %vm6964, %v6962, %v6759
        %v6972 = vsel %vm6964, %v6963, %v6761
        %vm6973 = vcmask 424960
        %v6974 = vsel %vm6973, %v6965, %v6779
        %v6975 = vsel %vm6973, %v6966, %v6781
        %v6976 = vsel %vm6973, %v6967, %v6783
        %v6977 = vsel %vm6973, %v6968, %v6785
        %v6978 = vsel %vm6973, %v6969, %v6787
        %v6979 = vsel %vm6973, %v6970, %v6789
        %v6980 = vsel %vm6973, %v6971, %v6791
        %v6981 = vsel %vm6973, %v6972, %v6793
        %vm6982 = vcmask 457728
        %v6983 = vsel %vm6982, %v6974, %v6811
        %v6984 = vsel %vm6982, %v6975, %v6813
        %v6985 = vsel %vm6982, %v6976, %v6815
        %v6986 = vsel %vm6982, %v6977, %v6817
        %v6987 = vsel %vm6982, %v6978, %v6819
        %v6988 = vsel %vm6982, %v6979, %v6821
        %v6989 = vsel %vm6982, %v6980, %v6823
        %v6990 = vsel %vm6982, %v6981, %v6825
        %vm6991 = vcmask 490496
        %v6992 = vsel %vm6991, %v6983, %v6843
        %v6993 = vsel %vm6991, %v6984, %v6845
        %v6994 = vsel %vm6991, %v6985, %v6847
        %v6995 = vsel %vm6991, %v6986, %v6849
        %v6996 = vsel %vm6991, %v6987, %v6851
        %v6997 = vsel %vm6991, %v6988, %v6853
        %v6998 = vsel %vm6991, %v6989, %v6855
        %v6999 = vsel %vm6991, %v6990, %v6857
        %v7000 = vld [vmem:[#allocation7] sm:$0xff]
        %v7001 = vld [vmem:[#allocation7 + $0x8] sm:$0xff]
        %v7002 = vld [vmem:[#allocation7 + $0x10] sm:$0xff]
        %v7003 = vld [vmem:[#allocation7 + $0x18] sm:$0xff]
        %v7004 = vld [vmem:[#allocation7 + $0x20] sm:$0xff]
        %v7005 = vld [vmem:[#allocation7 + $0x28] sm:$0xff]
        %v7006 = vld [vmem:[#allocation7 + $0x30] sm:$0xff]
        %v7007 = vld [vmem:[#allocation7 + $0x38] sm:$0xff]
        %v7008 = vld [vmem:[%s4] sm:$0x1]
        %v7010 = vlaneseq
        %v7011 = vshrl.u32 %v7010, 7
        %v7012 = vsub.s32 0, %v7011
        %v7013 = vrot.slane %v7008, %v7012
        %v7016 = vsel %vm295, %v6992, 0
        %v7019 = vsel %vm295, %v6993, 0
        %v7022 = vsel %vm295, %v6994, 0
        %v7025 = vsel %vm295, %v6995, 0
        %v7028 = vsel %vm295, %v6996, 0
        %v7031 = vsel %vm295, %v6997, 0
        %v7034 = vsel %vm295, %v6998, 0
        %v7037 = vsel %vm295, %v6999, 0
        %7039 = vmatprep.subr.mxu0 0.0
        %7040 = vmatpush1.msra.mxu0 0.0
        %7041 = vmatprep.subr.mxu0 0.0
        %7042 = vmatpush1.msra.mxu0 0.0
        %7043 = vmatprep.subr.mxu0 0.0
        %7044 = vmatpush1.msra.mxu0 0.0
        %7045 = vmatprep.subr.mxu0 0.0
        %7046 = vmatpush1.msra.mxu0 0.0
        %7047 = vmatprep.subr.mxu0 0.0
        %7048 = vmatpush1.msra.mxu0 0.0
        %7049 = vmatprep.subr.mxu0 0.0
        %7050 = vmatpush1.msra.mxu0 0.0
        %7051 = vmatprep.subr.mxu0 0.0
        %7052 = vmatpush1.msra.mxu0 0.0
        %7053 = vmatprep.subr.mxu0 0.0
        %7054 = vmatpush1.msra.mxu0 0.0
        %7055 = vmatprep.subr.mxu0 0.0
        %7056 = vmatpush1.msra.mxu0 %v7007
        %7057 = vmatprep.subr.mxu0 0.0
        %7058 = vmatpush1.msra.mxu0 %v7006
        %7059 = vmatprep.subr.mxu0 0.0
        %7060 = vmatpush1.msra.mxu0 %v7005
        %7061 = vmatprep.subr.mxu0 0.0
        %7062 = vmatpush1.msra.mxu0 %v7004
        %7063 = vmatprep.subr.mxu0 0.0
        %7064 = vmatpush1.msra.mxu0 %v7003
        %7065 = vmatprep.subr.mxu0 0.0
        %7066 = vmatpush1.msra.mxu0 %v7002
        %7067 = vmatprep.subr.mxu0 0.0
        %7068 = vmatpush1.msra.mxu0 %v7001
        %7069 = vmatprep.subr.mxu0 0.0
        %7070 = vmatpush1.msra.mxu0 %v7000
        %7071 = vmatprep.subr.mxu0 0.0
        %7072 = vmatpush2.msra.mxu0 0.0
        %7073 = vmatprep.subr.mxu0 0.0
        %7074 = vmatpush2.msra.mxu0 0.0
        %7075 = vmatprep.subr.mxu0 0.0
        %7076 = vmatpush2.msra.mxu0 0.0
        %7077 = vmatprep.subr.mxu0 0.0
        %7078 = vmatpush2.msra.mxu0 0.0
        %7079 = vmatprep.subr.mxu0 0.0
        %7080 = vmatpush2.msra.mxu0 0.0
        %7081 = vmatprep.subr.mxu0 0.0
        %7082 = vmatpush2.msra.mxu0 0.0
        %7083 = vmatprep.subr.mxu0 0.0
        %7084 = vmatpush2.msra.mxu0 0.0
        %7085 = vmatprep.subr.mxu0 0.0
        %7086 = vmatpush2.msra.mxu0 0.0
        %7087 = vmatprep.subr.mxu0 0.0
        %7088 = vmatpush2.msra.mxu0 0.0
        %7089 = vmatprep.subr.mxu0 0.0
        %7090 = vmatpush2.msra.mxu0 0.0
        %7091 = vmatprep.subr.mxu0 0.0
        %7092 = vmatpush2.msra.mxu0 0.0
        %7093 = vmatprep.subr.mxu0 0.0
        %7094 = vmatpush2.msra.mxu0 0.0
        %7095 = vmatprep.subr.mxu0 0.0
        %7096 = vmatpush2.msra.mxu0 0.0
        %7097 = vmatprep.subr.mxu0 0.0
        %7098 = vmatpush2.msra.mxu0 0.0
        %7099 = vmatprep.subr.mxu0 0.0
        %7100 = vmatpush2.msra.mxu0 0.0
        %7101 = vmatprep.subr.mxu0 0.0
        %7102 = vmatpush2.msra.mxu0 0.0
        %7103 = vmatprep.mubr.f32.mxu0 0.0
        %7104 = vmatmul.mubr.f32.gmra.mxu0 %v7016
        %v7105 = vpop.f32.mrf.mxu0
        %v7106 = vadd.f32 %v7013, %v7105
        %v7107 = vpop.f32.mrf.mxu0
        %7108 = vmatprep.mubr.f32.mxu0 0.0
        %7109 = vmatmul.mubr.f32.gmra.mxu0 %v7019
        %v7110 = vpop.f32.mrf.mxu0
        %v7111 = vadd.f32 %v7013, %v7110
        %v7112 = vpop.f32.mrf.mxu0
        %7113 = vmatprep.mubr.f32.mxu0 0.0
        %7114 = vmatmul.mubr.f32.gmra.mxu0 %v7022
        %v7115 = vpop.f32.mrf.mxu0
        %v7116 = vadd.f32 %v7013, %v7115
        %v7117 = vpop.f32.mrf.mxu0
        %7118 = vmatprep.mubr.f32.mxu0 0.0
        %7119 = vmatmul.mubr.f32.gmra.mxu0 %v7025
        %v7120 = vpop.f32.mrf.mxu0
        %v7121 = vadd.f32 %v7013, %v7120
        %v7122 = vpop.f32.mrf.mxu0
        %7123 = vmatprep.mubr.f32.mxu0 0.0
        %7124 = vmatmul.mubr.f32.gmra.mxu0 %v7028
        %v7125 = vpop.f32.mrf.mxu0
        %v7126 = vadd.f32 %v7013, %v7125
        %v7127 = vpop.f32.mrf.mxu0
        %7128 = vmatprep.mubr.f32.mxu0 0.0
        %7129 = vmatmul.mubr.f32.gmra.mxu0 %v7031
        %v7130 = vpop.f32.mrf.mxu0
        %v7131 = vadd.f32 %v7013, %v7130
        %v7132 = vpop.f32.mrf.mxu0
        %7133 = vmatprep.mubr.f32.mxu0 0.0
        %7134 = vmatmul.mubr.f32.gmra.mxu0 %v7034
        %v7135 = vpop.f32.mrf.mxu0
        %v7136 = vadd.f32 %v7013, %v7135
        %v7137 = vpop.f32.mrf.mxu0
        %7138 = vmatprep.mubr.f32.mxu0 0.0
        %7139 = vmatmul.mubr.f32.gmra.mxu0 %v7037
        %v7140 = vpop.f32.mrf.mxu0
        %v7141 = vadd.f32 %v7013, %v7140
        %v7142 = vpop.f32.mrf.mxu0
        %7143 = vdwg.mxu0
        %v7144 = vadd.f32 %v7106, %v272
        %v7145 = vadd.f32 %v7111, %v273
        %v7146 = vadd.f32 %v7116, %v274
        %v7147 = vadd.f32 %v7121, %v275
        %v7148 = vadd.f32 %v7126, %v276
        %v7149 = vadd.f32 %v7131, %v277
        %v7150 = vadd.f32 %v7136, %v278
        %v7151 = vadd.f32 %v7141, %v279
        %7152 = vst.msk [vmem:[%s271] sm:$0xff] %vm295, %v7144
        %7153 = vst.msk [vmem:[%s271 + $0x8] sm:$0xff] %vm295, %v7145
        %7154 = vst.msk [vmem:[%s271 + $0x10] sm:$0xff] %vm295, %v7146
        %7155 = vst.msk [vmem:[%s271 + $0x18] sm:$0xff] %vm295, %v7147
        %7156 = vst.msk [vmem:[%s271 + $0x20] sm:$0xff] %vm295, %v7148
        %7157 = vst.msk [vmem:[%s271 + $0x28] sm:$0xff] %vm295, %v7149
        %7158 = vst.msk [vmem:[%s271 + $0x30] sm:$0xff] %vm295, %v7150
        %7159 = vst.msk [vmem:[%s271 + $0x38] sm:$0xff] %vm295, %v7151
        %s7160 = sand.u32 %s141, 1
        %s7161 = scalar_lea.sflag [#allocation4], %s7160
        %s7162 = sand.u32 %s141, 1
        %s7163 = smul.addr %s7162, 64
        %s7164 = scalar_lea.vmem [#allocation8], %s7163
        // Predicated region
        $region53: #{tpu_custom_call.1} parent=39 // pred_check
          %p7165 = pneg %p151
        $region54: #{tpu_custom_call.1} parent=39 // pred_check_branch
          %7167 = sbr.rel (%p7165) target = $region56
        $region55: #{tpu_custom_call.1} parent=39 // pred_region
          %s7169 = ssub.s32 1024, 1024
          %7170 = vsyncadd %s7161, %s7169
          %s7171 = smul.addr %s23, 8
          %s7172 = smul.addr %s7171, 128
          %s7173 = scalar_lea.hbm %s5, %s7172
          %s7174 = sshll.u32 %s7164, 4
          %s7175 = int_to_ptr.vmem [resolvable:$true] %s7174
          %7180 = dma.vmem_to_hbm [thread:$0]  %s7175, 1024, %s7173, %s7161, 128, 128, 8
        $region56: #{tpu_custom_call.1} parent=39 // pred_fallthru
          _
      $region40: #{tpu_custom_call.1} parent=5 // pred_fallthru
        _
      %p7181 = scmp.le.s32.totalorder 2, %s18
      // Predicated region
      $region57: #{tpu_custom_call.1} parent=5 // pred_check
        %p7182 = pneg %p7181
      $region58: #{tpu_custom_call.1} parent=5 // pred_check_branch
        %7184 = sbr.rel (%p7182) target = $region60
      $region59: #{tpu_custom_call.1} parent=5 // pred_region
        %s7185 = ssub.s32 %s18, 2
        // Predicated region
        $region61: #{tpu_custom_call.1} parent=59 // pred_check
          %p7186 = pneg %p157
        $region62: #{tpu_custom_call.1} parent=59 // pred_check_branch
          %7188 = sbr.rel (%p7186) target = $region64
        $region63: #{tpu_custom_call.1} parent=59 // pred_region
          %s7189 = sand.u32 %s142, 1
          %s7190 = scalar_lea.sflag [#allocation4], %s7189
          %s7191 = sand.u32 %s142, 1
          %s7192 = smul.addr %s7191, 64
          %s7193 = scalar_lea.vmem [#allocation8], %s7192
          %7194 = dma.done %s7190, 1024
        $region64: #{tpu_custom_call.1} parent=59 // pred_fallthru
          _
      $region60: #{tpu_custom_call.1} parent=5 // pred_fallthru
        _
    $region6: #{tpu_custom_call.1} parent=1 // loop_footer
      %s22 = sadd.s32 1, %s18
    $region7: #{tpu_custom_call.1} parent=1 // loop_footer_branch
      %17 = sbr.rel target = $region3
    $region8: #{tpu_custom_call.1} parent=1 // loop_exit
      _
    %7195 = vsyncpa [#allocation3], 1
    %s7196 = scalar_lea.sflag [#allocation3], 1
    %7197 = vsyncpa %s7196, 1
    %7198 = vsyncpa [#allocation6], 1
    %7199 = vsyncpa [#allocation4], 1
    %s7200 = scalar_lea.sflag [#allocation4], 1
    %7201 = vsyncpa %s7200, 1

</llo_original>
